<compile_context>
chip_gen: v6e
topology: v6e:2x2x1
jax: 0.10.0
libtpu: 0.0.40
codegen_flags: <defaults>
</compile_context>

<pallas_src>
import functools
import math

import jax
import jax.numpy as jnp
from jax.experimental import pallas as pl
from jax.experimental.pallas import tpu as pltpu


D_K = 50           # hard-coded in BootGCNLayer: HyperAttentionLayer(..., 50, ...)
DK_PAD = 128       # zero-padded d_k -> lane-dense (8,128) tiles / full MXU passes
ALPHA = 0.5
LN_EPS = 1e-5      # PyTorch nn.LayerNorm default
BIG_NEG = -1e30    # memory-efficient masked-softmax fill value
# Explicit scoped-VMEM budget; raise when bumping TM/TK for production sizes
# (budget double-buffered blocks against 64 MiB physical VMEM on v7x).
VMEM_LIMIT = 32 * 1024 * 1024


# -----------------------------------------------------------------------------
# Kernel 1: key/value projection (single wide matmul over [W_ks | W_vs]) which
# also emits the global logit row  glog = (gq/temp) . k^T  for this key tile.
# Run once per layer over the key/value rows; outputs are bf16 (halves the
# bytes the attention kernel re-streams per query-row tile).
# -----------------------------------------------------------------------------
def _kv_project_kernel(x_ref, w_ref, b_ref, gq_ref, k_ref, v_ref, glog_ref):
    x = x_ref[...].astype(jnp.bfloat16)
    y = jnp.dot(x, w_ref[...], preferred_element_type=jnp.float32) + b_ref[...]
    k = y[:, :DK_PAD]                                   # (T, 128) f32
    k_ref[...] = k.astype(k_ref.dtype)
    v_ref[...] = y[:, DK_PAD:].astype(v_ref.dtype)
    # global logits for this key tile: (1, T); 1/temp already folded into gq.
    glog_ref[...] = jax.lax.dot_general(
        gq_ref[...], k, (((1,), (1,)), ((), ())),
        preferred_element_type=jnp.float32)


def kv_project(x, w_kv, b_kv, gq, *, tile_rows=128):
    n, d_in = x.shape
    d_cat = w_kv.shape[1]
    d_out = d_cat - DK_PAD
    assert n % tile_rows == 0, "n_k must be a multiple of the projection tile"
    return pl.pallas_call(
        _kv_project_kernel,
        out_shape=(jax.ShapeDtypeStruct((n, DK_PAD), jnp.bfloat16),
                   jax.ShapeDtypeStruct((n, d_out), jnp.bfloat16),
                   jax.ShapeDtypeStruct((1, n), jnp.float32)),
        grid_spec=pltpu.PrefetchScalarGridSpec(
            num_scalar_prefetch=0,
            grid=(n // tile_rows,),
            in_specs=[
                pl.BlockSpec((tile_rows, d_in), lambda i: (i, 0)),   # x rows
                pl.BlockSpec((d_in, d_cat), lambda i: (0, 0)),       # [W_ks|W_vs]
                pl.BlockSpec((1, d_cat), lambda i: (0, 0)),          # [b_ks|b_vs]
                pl.BlockSpec((1, DK_PAD), lambda i: (0, 0)),         # gq (scaled)
            ],
            out_specs=(pl.BlockSpec((tile_rows, DK_PAD), lambda i: (i, 0)),
                       pl.BlockSpec((tile_rows, d_out), lambda i: (i, 0)),
                       pl.BlockSpec((1, tile_rows), lambda i: (0, i))),
        ),
        compiler_params=pltpu.CompilerParams(
            dimension_semantics=("parallel",),
            vmem_limit_bytes=VMEM_LIMIT),
    )(x, w_kv, b_kv, gq)


# -----------------------------------------------------------------------------
# Kernel 2: fused attention.
#   grid = (n_q // TM  [parallel],  n_k // TK  [arbitrary / reduction])
#   j==0   : project the local_q row tile (lq, residual) with resident weights
#   per j  : local stream  -> online softmax (scores already 1/temp-scaled)
#            global stream -> masked accumulation of the fixed pg row (no exp)
#   last j : mix streams, + residual, ReLU, LayerNorm, lane-dense store
# -----------------------------------------------------------------------------
def _attention_kernel(alpha,
                      x_q_ref, pg_ref, k_ref, v_ref, mask_ref,
                      w_ls_ref, b_ls_ref, w_res_ref, b_res_ref,
                      gamma_ref, beta_ref, out_ref,
                      lq_s, res_s, lm, ll, gl, lacc, gacc):
    j = pl.program_id(1)

    @pl.when(j == 0)
    def _():
        # Fused query-side projections: computed once per row tile (x_q / the
        # weights have constant block indices along j, so they stay resident).
        xq = x_q_ref[...]
        lq_s[...] = (jnp.dot(xq.astype(jnp.bfloat16), w_ls_ref[...],
                             preferred_element_type=jnp.float32)
                     + b_ls_ref[...].astype(jnp.float32)).astype(lq_s.dtype)
        res_s[...] = (jnp.dot(xq, w_res_ref[...],
                              preferred_element_type=jnp.float32)
                      + b_res_ref[...])
        lm[...] = jnp.full_like(lm, -jnp.inf)
        ll[...] = jnp.zeros_like(ll)
        gl[...] = jnp.zeros_like(gl)
        lacc[...] = jnp.zeros_like(lacc)
        gacc[...] = jnp.zeros_like(gacc)

    k = k_ref[...]                                   # (TK, 128) bf16
    v = v_ref[...]                                   # (TK, d_out) bf16
    keep = mask_ref[...].astype(jnp.int32) > 0       # (TM, TK) from int8 mask
    keep_f = keep.astype(jnp.float32)

    # ---- local stream: masked online softmax (1/temp folded into W_ls/b_ls) --
    s_l = jax.lax.dot_general(lq_s[...], k, (((1,), (1,)), ((), ())),
                              preferred_element_type=jnp.float32)
    s_l = jnp.where(keep, s_l, BIG_NEG)
    m_new = jnp.maximum(lm[...], s_l.max(axis=-1, keepdims=True))
    a = jnp.exp(lm[...] - m_new)
    p = jnp.exp(s_l - m_new)
    ll[...] = a * ll[...] + p.sum(axis=-1, keepdims=True)
    lacc[...] = a * lacc[...] + jnp.dot(p.astype(jnp.bfloat16), v,
                                        preferred_element_type=jnp.float32)
    lm[...] = m_new

    # ---- global stream: fixed logit row -> masked weighted accumulation ------
    # pg = exp(glog - max(glog)) is query-independent, so no exp / max / where
    # is needed here; per-row normalization happens in the finalize.
    wg = keep_f * pg_ref[...]                        # (TM, TK)
    gl[...] += wg.sum(axis=-1, keepdims=True)
    gacc[...] += jnp.dot(wg.astype(jnp.bfloat16), v,
                         preferred_element_type=jnp.float32)

    # ---- finalize: mix streams, residual, ReLU, LayerNorm --------------------
    @pl.when(j == pl.num_programs(1) - 1)
    def _():
        out_l = lacc[...] * pl.reciprocal(ll[...], approx=True)
        # Guard against gl == 0 (query row masked everywhere): produces 0 here.
        # TODO(synk): reference gives uniform "attention over nothing" for such
        #             rows; they do not occur with real adjacency matrices.
        out_g = gacc[...] * pl.reciprocal(jnp.maximum(gl[...], 1e-30),
                                          approx=True)
        # TODO(synk): training-mode nn.Dropout(0.5) not implemented (eval = id).
        h = alpha * out_g + (1.0 - alpha) * out_l + res_s[...]
        h = jnp.maximum(h, 0.0)
        mean = jnp.mean(h, axis=-1, keepdims=True)
        var = jnp.mean(jnp.square(h - mean), axis=-1, keepdims=True)
        h = (h - mean) * jax.lax.rsqrt(var + LN_EPS)
        out_ref[...] = (h * gamma_ref[...] + beta_ref[...]).astype(out_ref.dtype)


def fused_attention(x_q, pg, k_proj, v_proj, mask, w_ls, b_ls, w_res, b_res,
                    gamma, beta, *, alpha, tm, tk):
    n_q, d_local = x_q.shape
    n_k, d_out = v_proj.shape
    assert n_q % tm == 0 and n_k % tk == 0, "n_q/n_k must divide the tile sizes"
    kernel = functools.partial(_attention_kernel, alpha)
    return pl.pallas_call(
        kernel,
        out_shape=jax.ShapeDtypeStruct((n_q, d_out), jnp.float32),
        grid_spec=pltpu.PrefetchScalarGridSpec(
            num_scalar_prefetch=0,
            grid=(n_q // tm, n_k // tk),
            in_specs=[
                pl.BlockSpec((tm, d_local), lambda i, j: (i, 0)),     # local_q
                pl.BlockSpec((1, tk), lambda i, j: (0, j)),           # pg row
                pl.BlockSpec((tk, DK_PAD), lambda i, j: (j, 0)),      # k (bf16)
                pl.BlockSpec((tk, d_out), lambda i, j: (j, 0)),       # v (bf16)
                pl.BlockSpec((tm, tk), lambda i, j: (i, j)),          # mask (i8)
                pl.BlockSpec((d_local, DK_PAD), lambda i, j: (0, 0)), # W_ls
                pl.BlockSpec((1, DK_PAD), lambda i, j: (0, 0)),       # b_ls
                pl.BlockSpec((d_local, d_out), lambda i, j: (0, 0)),  # W_res
                pl.BlockSpec((1, d_out), lambda i, j: (0, 0)),        # b_res
                pl.BlockSpec((1, d_out), lambda i, j: (0, 0)),        # LN gamma
                pl.BlockSpec((1, d_out), lambda i, j: (0, 0)),        # LN beta
            ],
            out_specs=pl.BlockSpec((tm, d_out), lambda i, j: (i, 0)),
            scratch_shapes=[
                pltpu.VMEM((tm, DK_PAD), jnp.bfloat16),  # lq (projected once)
                pltpu.VMEM((tm, d_out), jnp.float32),    # residual
                pltpu.VMEM((tm, 1), jnp.float32),        # local running max
                pltpu.VMEM((tm, 1), jnp.float32),        # local running sum
                pltpu.VMEM((tm, 1), jnp.float32),        # global running sum
                pltpu.VMEM((tm, d_out), jnp.float32),    # local accumulator
                pltpu.VMEM((tm, d_out), jnp.float32),    # global accumulator
            ],
        ),
        compiler_params=pltpu.CompilerParams(
            dimension_semantics=("parallel", "arbitrary"),
            vmem_limit_bytes=VMEM_LIMIT),
    )(x_q, pg, k_proj, v_proj, mask, w_ls, b_ls, w_res, b_res, gamma, beta)


# -----------------------------------------------------------------------------
# HyperAttentionLayer / BootGCNLayer wrappers
# -----------------------------------------------------------------------------
def prepare_hyper_attention_params(params):
    """One-time repack of torch-layout params into kernel layout:
       pad d_k 50->128, fold 1/sqrt(d_k) into the local-query projection,
       concatenate [W_ks|W_vs] for one wide matmul, bf16 on the MXU paths."""
    temp = math.sqrt(D_K)
    pad = ((0, 0), (0, DK_PAD - D_K))
    w_ls = (jnp.pad(params["w_ls_t"], pad) / temp).astype(jnp.bfloat16)
    b_ls = (jnp.pad(params["b_ls"], pad) / temp).astype(jnp.bfloat16)
    w_ks = jnp.pad(params["w_ks_t"], pad)
    b_ks = jnp.pad(params["b_ks"], pad)
    w_gs = jnp.pad(params["w_gs_t"], pad)
    b_gs = jnp.pad(params["b_gs"], pad)
    return dict(
        w_ls=w_ls, b_ls=b_ls,
        w_kv=jnp.concatenate([w_ks, params["w_vs_t"]], axis=1).astype(jnp.bfloat16),
        b_kv=jnp.concatenate([b_ks, params["b_vs"]], axis=1),   # f32, post-matmul
        w_gs=w_gs, b_gs=b_gs,                                   # f32 (tiny, JAX side)
        w_res=params["w_res_t"], b_res=params["b_res"],         # f32 residual path
        gamma=params["gamma"], beta=params["beta"])


def hyper_attention_layer(prep, global_q, local_q, kv_in, mask, *,
                          alpha=ALPHA, tm=128, tk=128, proj_tile=128):
    # For production sizes raise tm/tk/proj_tile to 256-512 ((8,128) multiples,
    # n_q//tm >= 2 for v7x's two TensorCores) and keep d_out a multiple of 128
    # so every store stays lane-dense (matters most on v5e).
    if mask.dtype != jnp.int8:
        mask = (mask != 0).astype(jnp.int8)
    # Global query projection: tiny (1, d_global) matmul, independent of the
    # projection kernel, so it does not serialize the two pallas_calls.
    gq = (global_q @ prep["w_gs"] + prep["b_gs"]) * (1.0 / math.sqrt(D_K))
    # k/v projection + global logit row in one pass over the key/value rows.
    k_proj, v_proj, glog = kv_project(kv_in, prep["w_kv"], prep["b_kv"], gq,
                                      tile_rows=proj_tile)
    # Query-independent global-attention numerators (1, n_k); per-row masking
    # and normalization happen inside the attention kernel.
    pg = jnp.exp(glog - jnp.max(glog))
    return fused_attention(local_q, pg, k_proj, v_proj, mask,
                           prep["w_ls"], prep["b_ls"], prep["w_res"],
                           prep["b_res"], prep["gamma"], prep["beta"],
                           alpha=alpha, tm=tm, tk=tk)


def boot_gcn_layer(e2p_prep, p2e_prep, seeds, e_input, p_input, ep_adj, pe_adj):
    seeds = seeds.reshape(1, -1)
    p_output = hyper_attention_layer(e2p_prep, seeds, p_input, e_input, pe_adj)
    e_output = hyper_attention_layer(p2e_prep, seeds, e_input, p_output, ep_adj)
    return e_output, p_output


# -----------------------------------------------------------------------------
# Parameter init (mirrors HyperAttentionLayer.reset(): normal weights with
# std = sqrt(2/(fan_in+fan_out)); biases keep nn.Linear default uniform init).
# Weights stored pre-transposed to (in, out) for x @ W layout.
# -----------------------------------------------------------------------------
def init_hyper_attention_params(key, *, d_in, d_out, d_global, d_local):
    keys = jax.random.split(key, 10)

    def lin(kw, kb, fan_in, fan_out):
        std = math.sqrt(2.0 / (fan_in + fan_out))
        w_t = std * jax.random.normal(kw, (fan_in, fan_out), jnp.float32)
        bound = 1.0 / math.sqrt(fan_in)
        b = jax.random.uniform(kb, (1, fan_out), jnp.float32, -bound, bound)
        return w_t, b

    w_ls_t, b_ls = lin(keys[0], keys[1], d_local, D_K)
    w_ks_t, b_ks = lin(keys[2], keys[3], d_in, D_K)
    w_vs_t, b_vs = lin(keys[4], keys[5], d_in, d_out)
    w_res_t, b_res = lin(keys[6], keys[7], d_in, d_out)
    w_gs_t, b_gs = lin(keys[8], keys[9], d_global, D_K)
    return dict(w_ls_t=w_ls_t, b_ls=b_ls, w_ks_t=w_ks_t, b_ks=b_ks,
                w_vs_t=w_vs_t, b_vs=b_vs, w_res_t=w_res_t, b_res=b_res,
                w_gs_t=w_gs_t, b_gs=b_gs,
                gamma=jnp.ones((1, d_out), jnp.float32),
                beta=jnp.zeros((1, d_out), jnp.float32))


# -----------------------------------------------------------------------------
# Pure-JAX f32 reference of the PyTorch forward (dense path, eval-mode dropout).
# -----------------------------------------------------------------------------
def hyper_attention_ref(params, global_q, local_q, kv_in, mask, *, alpha=ALPHA):
    residual = local_q @ params["w_res_t"] + params["b_res"]
    lq = local_q @ params["w_ls_t"] + params["b_ls"]
    k = kv_in @ params["w_ks_t"] + params["b_ks"]
    v = kv_in @ params["w_vs_t"] + params["b_vs"]
    temp = math.sqrt(D_K)
    keep = mask > 0
    s_l = jnp.where(keep, (lq @ k.T) / temp, BIG_NEG)
    l_attn = jax.nn.softmax(s_l, axis=-1)
    gq = global_q @ params["w_gs_t"] + params["b_gs"]
    s_g = jnp.where(keep, jnp.broadcast_to((gq @ k.T) / temp, s_l.shape), BIG_NEG)
    g_attn = jax.nn.softmax(s_g, axis=-1)
    attn = alpha * g_attn + (1.0 - alpha) * l_attn
    h = jax.nn.relu(attn @ v + residual)
    mean = h.mean(axis=-1, keepdims=True)
    var = ((h - mean) ** 2).mean(axis=-1, keepdims=True)
    return (h - mean) / jnp.sqrt(var + LN_EPS) * params["gamma"] + params["beta"]


def _assert_close(name, got, want, max_abs=7.5e-2, max_rel=2.5e-2):
    # Tolerances sized for the bf16 MXU operands + approx reciprocal in the
    # kernels (the reference is full f32); LayerNorm outputs are ~N(0,1).
    abs_err = float(jnp.max(jnp.abs(got - want)))
    rel_err = float(jnp.linalg.norm(got - want) / jnp.linalg.norm(want))
    if not (abs_err < max_abs and rel_err < max_rel):
        raise AssertionError(
            f"{name} mismatch: max_abs={abs_err:.3e} rel_fro={rel_err:.3e}")


if __name__ == "__main__":
    # BootGCNLayer wiring forces e2p_in == p2e_in == e2p_out, so one shared D.
    N_SEED = 4
    D = 128          # e2p_in == p2e_in == e2p_out  (lane-dense)
    P2E_OUT = 128    # p2e output width (multiple of 128 -> unmasked stores)
    N_E = 128        # number of "e" nodes
    N_P = 256        # number of "p" nodes

    key = jax.random.PRNGKey(0)
    ks, ke, kp, kpe, kep, k1, k2 = jax.random.split(key, 7)

    seeds = jax.random.normal(ks, (N_SEED, D), jnp.float32)
    e_input = jax.random.normal(ke, (N_E, D), jnp.float32)
    p_input = jax.random.normal(kp, (N_P, D), jnp.float32)
    # adjacency masks streamed as int8 (only O(n_q*n_k) input of the kernel)
    pe_adj = (jax.random.uniform(kpe, (N_P, N_E)) > 0.5).astype(jnp.int8)
    ep_adj = (jax.random.uniform(kep, (N_E, N_P)) > 0.5).astype(jnp.int8)

    e2p_params = init_hyper_attention_params(
        k1, d_in=D, d_out=D, d_global=N_SEED * D, d_local=D)
    p2e_params = init_hyper_attention_params(
        k2, d_in=D, d_out=P2E_OUT, d_global=N_SEED * D, d_local=D)

    # one-time kernel-layout repack (padding / folding / bf16 / concat)
    e2p_prep = prepare_hyper_attention_params(e2p_params)
    p2e_prep = prepare_hyper_attention_params(p2e_params)

    e_out, p_out = jax.jit(boot_gcn_layer)(
        e2p_prep, p2e_prep, seeds, e_input, p_input, ep_adj, pe_adj)
    e_out, p_out = jax.block_until_ready((e_out, p_out))

    # pure-JAX f32 reference of BootGCNLayer.forward
    seeds_flat = seeds.reshape(1, -1)
    p_ref = hyper_attention_ref(e2p_params, seeds_flat, p_input, e_input, pe_adj)
    e_ref = hyper_attention_ref(p2e_params, seeds_flat, e_input, p_ref, ep_adj)

    assert p_out.shape == (N_P, D) and e_out.shape == (N_E, P2E_OUT)
    _assert_close("p_output", p_out, p_ref)
    _assert_close("e_output", e_out, e_ref)
    print("KERNEL_OK")
</pallas_src>

<mosaic_0001>
module attributes {stable_mosaic.version = 11 : i64} {
  func.func @_kv_project_kernel(%arg0: i32, %arg1: memref<128x128xf32, #tpu.memory_space<vmem>>, %arg2: memref<128x256xbf16, #tpu.memory_space<vmem>>, %arg3: memref<1x256xf32, #tpu.memory_space<vmem>>, %arg4: memref<1x128xf32, #tpu.memory_space<vmem>>, %arg5: memref<128x128xbf16, #tpu.memory_space<vmem>>, %arg6: memref<128x128xbf16, #tpu.memory_space<vmem>>, %arg7: memref<1x128xf32, #tpu.memory_space<vmem>>) attributes {dimension_semantics = [#tpu.dimension_semantics<parallel>], iteration_bounds = array<i64: 1>, scalar_prefetch = 0 : i64, scratch_operands = 0 : i64, tpu.core_type = #tpu.core_type<tc>, window_params = [{transform_indices = @transform_0, window_bounds = array<i64: 128, 128>}, {pipeline_mode = #tpu.pipeline_mode<synchronous>, transform_indices = @transform_1, window_bounds = array<i64: 128, 256>}, {pipeline_mode = #tpu.pipeline_mode<synchronous>, transform_indices = @transform_2, window_bounds = array<i64: 1, 256>}, {pipeline_mode = #tpu.pipeline_mode<synchronous>, transform_indices = @transform_3, window_bounds = array<i64: 1, 128>}, {transform_indices = @transform_4, window_bounds = array<i64: 128, 128>}, {transform_indices = @transform_5, window_bounds = array<i64: 128, 128>}, {transform_indices = @transform_6, window_bounds = array<i64: 1, 128>}]} {
    %c0 = arith.constant 0 : index
    %c0_0 = arith.constant 0 : index
    %0 = vector.load %arg1[%c0, %c0_0] : memref<128x128xf32, #tpu.memory_space<vmem>>, vector<128x128xf32>
    %1 = arith.truncf %0 : vector<128x128xf32> to vector<128x128xbf16>
    %c0_1 = arith.constant 0 : index
    %c0_2 = arith.constant 0 : index
    %2 = vector.load %arg2[%c0_1, %c0_2] : memref<128x256xbf16, #tpu.memory_space<vmem>>, vector<128x256xbf16>
    %cst = arith.constant dense<0.000000e+00> : vector<128x256xf32>
    %3 = tpu.matmul %1, %2, %cst {dimension_numbers = #tpu.dot_dimension_numbers<[1], [0], [0], [1], [0, 0, 1, 1], [], []>} : vector<128x128xbf16>, vector<128x256xbf16>, vector<128x256xf32> -> vector<128x256xf32>
    %c0_3 = arith.constant 0 : index
    %c0_4 = arith.constant 0 : index
    %4 = vector.load %arg3[%c0_3, %c0_4] : memref<1x256xf32, #tpu.memory_space<vmem>>, vector<1x256xf32>
    %5 = vector.broadcast %4 : vector<1x256xf32> to vector<128x256xf32>
    %6 = arith.addf %3, %5 : vector<128x256xf32>
    %7 = vector.extract_strided_slice %6 {offsets = [0, 0], sizes = [128, 128], strides = [1, 1]} : vector<128x256xf32> to vector<128x128xf32>
    %8 = arith.truncf %7 : vector<128x128xf32> to vector<128x128xbf16>
    %c0_5 = arith.constant 0 : index
    %c0_6 = arith.constant 0 : index
    %9 = vector.load %arg5[%c0_5, %c0_6] : memref<128x128xbf16, #tpu.memory_space<vmem>>, vector<128x128xbf16>
    tpu.vector_store %arg5[%c0_5, %c0_6], %8 {strides = array<i32>} : memref<128x128xbf16, #tpu.memory_space<vmem>>, vector<128x128xbf16>,
    %10 = vector.extract_strided_slice %6 {offsets = [0, 128], sizes = [128, 128], strides = [1, 1]} : vector<128x256xf32> to vector<128x128xf32>
    %11 = arith.truncf %10 : vector<128x128xf32> to vector<128x128xbf16>
    %c0_7 = arith.constant 0 : index
    %c0_8 = arith.constant 0 : index
    %12 = vector.load %arg6[%c0_7, %c0_8] : memref<128x128xbf16, #tpu.memory_space<vmem>>, vector<128x128xbf16>
    tpu.vector_store %arg6[%c0_7, %c0_8], %11 {strides = array<i32>} : memref<128x128xbf16, #tpu.memory_space<vmem>>, vector<128x128xbf16>,
    %c0_9 = arith.constant 0 : index
    %c0_10 = arith.constant 0 : index
    %13 = vector.load %arg4[%c0_9, %c0_10] : memref<1x128xf32, #tpu.memory_space<vmem>>, vector<1x128xf32>
    %cst_11 = arith.constant dense<0.000000e+00> : vector<1x128xf32>
    %14 = tpu.matmul %13, %7, %cst_11 {dimension_numbers = #tpu.dot_dimension_numbers<[1], [1], [0], [0], [0, 0, 1, 0], [], []>} : vector<1x128xf32>, vector<128x128xf32>, vector<1x128xf32> -> vector<1x128xf32>
    %c0_12 = arith.constant 0 : index
    %c0_13 = arith.constant 0 : index
    %15 = vector.load %arg7[%c0_12, %c0_13] : memref<1x128xf32, #tpu.memory_space<vmem>>, vector<1x128xf32>
    tpu.vector_store %arg7[%c0_12, %c0_13], %14 {strides = array<i32>} : memref<1x128xf32, #tpu.memory_space<vmem>>, vector<1x128xf32>,
    return
  }
  func.func @transform_0(%arg0: i32) -> (i32, i32) {
    %c0_i32 = arith.constant 0 : i32
    %c0_i32_0 = arith.constant 0 : i32
    return %arg0, %c0_i32 : i32, i32
  }
  func.func @transform_1(%arg0: i32) -> (i32, i32) {
    %c0_i32 = arith.constant 0 : i32
    %c0_i32_0 = arith.constant 0 : i32
    %c0_i32_1 = arith.constant 0 : i32
    return %c0_i32, %c0_i32_0 : i32, i32
  }
  func.func @transform_2(%arg0: i32) -> (i32, i32) {
    %c0_i32 = arith.constant 0 : i32
    %c0_i32_0 = arith.constant 0 : i32
    %c0_i32_1 = arith.constant 0 : i32
    return %c0_i32, %c0_i32_0 : i32, i32
  }
  func.func @transform_3(%arg0: i32) -> (i32, i32) {
    %c0_i32 = arith.constant 0 : i32
    %c0_i32_0 = arith.constant 0 : i32
    %c0_i32_1 = arith.constant 0 : i32
    return %c0_i32, %c0_i32_0 : i32, i32
  }
  func.func @transform_4(%arg0: i32) -> (i32, i32) {
    %c0_i32 = arith.constant 0 : i32
    %c0_i32_0 = arith.constant 0 : i32
    return %arg0, %c0_i32 : i32, i32
  }
  func.func @transform_5(%arg0: i32) -> (i32, i32) {
    %c0_i32 = arith.constant 0 : i32
    %c0_i32_0 = arith.constant 0 : i32
    return %arg0, %c0_i32 : i32, i32
  }
  func.func @transform_6(%arg0: i32) -> (i32, i32) {
    %c0_i32 = arith.constant 0 : i32
    %c0_i32_0 = arith.constant 0 : i32
    return %c0_i32, %arg0 : i32, i32
  }
}

module attributes {stable_mosaic.version = 11 : i64} {
  func.func @_attention_kernel(%arg0: i32, %arg1: i32, %arg2: memref<128x128xf32, #tpu.memory_space<vmem>>, %arg3: memref<1x128xf32, #tpu.memory_space<vmem>>, %arg4: memref<128x128xbf16, #tpu.memory_space<vmem>>, %arg5: memref<128x128xbf16, #tpu.memory_space<vmem>>, %arg6: memref<128x128xi8, #tpu.memory_space<vmem>>, %arg7: memref<128x128xbf16, #tpu.memory_space<vmem>>, %arg8: memref<1x128xbf16, #tpu.memory_space<vmem>>, %arg9: memref<128x128xf32, #tpu.memory_space<vmem>>, %arg10: memref<1x128xf32, #tpu.memory_space<vmem>>, %arg11: memref<1x128xf32, #tpu.memory_space<vmem>>, %arg12: memref<1x128xf32, #tpu.memory_space<vmem>>, %arg13: memref<128x128xf32, #tpu.memory_space<vmem>>, %arg14: memref<128x128xbf16, #tpu.memory_space<vmem>>, %arg15: memref<128x128xf32, #tpu.memory_space<vmem>>, %arg16: memref<128x1xf32, #tpu.memory_space<vmem>>, %arg17: memref<128x1xf32, #tpu.memory_space<vmem>>, %arg18: memref<128x1xf32, #tpu.memory_space<vmem>>, %arg19: memref<128x128xf32, #tpu.memory_space<vmem>>, %arg20: memref<128x128xf32, #tpu.memory_space<vmem>>) attributes {dimension_semantics = [#tpu.dimension_semantics<parallel>, #tpu.dimension_semantics<arbitrary>], iteration_bounds = array<i64: 2, 1>, scalar_prefetch = 0 : i64, scratch_operands = 7 : i64, tpu.core_type = #tpu.core_type<tc>, window_params = [{transform_indices = @transform_0, window_bounds = array<i64: 128, 128>}, {transform_indices = @transform_1, window_bounds = array<i64: 1, 128>}, {transform_indices = @transform_2, window_bounds = array<i64: 128, 128>}, {transform_indices = @transform_3, window_bounds = array<i64: 128, 128>}, {transform_indices = @transform_4, window_bounds = array<i64: 128, 128>}, {pipeline_mode = #tpu.pipeline_mode<synchronous>, transform_indices = @transform_5, window_bounds = array<i64: 128, 128>}, {pipeline_mode = #tpu.pipeline_mode<synchronous>, transform_indices = @transform_6, window_bounds = array<i64: 1, 128>}, {pipeline_mode = #tpu.pipeline_mode<synchronous>, transform_indices = @transform_7, window_bounds = array<i64: 128, 128>}, {pipeline_mode = #tpu.pipeline_mode<synchronous>, transform_indices = @transform_8, window_bounds = array<i64: 1, 128>}, {pipeline_mode = #tpu.pipeline_mode<synchronous>, transform_indices = @transform_9, window_bounds = array<i64: 1, 128>}, {pipeline_mode = #tpu.pipeline_mode<synchronous>, transform_indices = @transform_10, window_bounds = array<i64: 1, 128>}, {transform_indices = @transform_11, window_bounds = array<i64: 128, 128>}]} {
    %c0_i32 = arith.constant 0 : i32
    %0 = arith.cmpi eq, %arg1, %c0_i32 : i32
    %1 = arith.extui %0 : i1 to i32
    %c0_i32_0 = arith.constant 0 : i32
    %2 = arith.cmpi ne, %1, %c0_i32_0 : i32
    scf.if %2 {
      %c0_41 = arith.constant 0 : index
      %c0_42 = arith.constant 0 : index
      %55 = vector.load %arg2[%c0_41, %c0_42] : memref<128x128xf32, #tpu.memory_space<vmem>>, vector<128x128xf32>
      %56 = arith.truncf %55 : vector<128x128xf32> to vector<128x128xbf16>
      %c0_43 = arith.constant 0 : index
      %c0_44 = arith.constant 0 : index
      %57 = vector.load %arg7[%c0_43, %c0_44] : memref<128x128xbf16, #tpu.memory_space<vmem>>, vector<128x128xbf16>
      %cst_45 = arith.constant dense<0.000000e+00> : vector<128x128xf32>
      %58 = tpu.matmul %56, %57, %cst_45 {dimension_numbers = #tpu.dot_dimension_numbers<[1], [0], [0], [1], [0, 0, 1, 1], [], []>} : vector<128x128xbf16>, vector<128x128xbf16>, vector<128x128xf32> -> vector<128x128xf32>
      %c0_46 = arith.constant 0 : index
      %c0_47 = arith.constant 0 : index
      %59 = vector.load %arg8[%c0_46, %c0_47] : memref<1x128xbf16, #tpu.memory_space<vmem>>, vector<1x128xbf16>
      %60 = arith.extf %59 : vector<1x128xbf16> to vector<1x128xf32>
      %61 = vector.broadcast %60 : vector<1x128xf32> to vector<128x128xf32>
      %62 = arith.addf %58, %61 : vector<128x128xf32>
      %63 = arith.truncf %62 : vector<128x128xf32> to vector<128x128xbf16>
      %c0_48 = arith.constant 0 : index
      %c0_49 = arith.constant 0 : index
      %64 = vector.load %arg14[%c0_48, %c0_49] : memref<128x128xbf16, #tpu.memory_space<vmem>>, vector<128x128xbf16>
      tpu.vector_store %arg14[%c0_48, %c0_49], %63 {strides = array<i32>} : memref<128x128xbf16, #tpu.memory_space<vmem>>, vector<128x128xbf16>,
      %c0_50 = arith.constant 0 : index
      %c0_51 = arith.constant 0 : index
      %65 = vector.load %arg9[%c0_50, %c0_51] : memref<128x128xf32, #tpu.memory_space<vmem>>, vector<128x128xf32>
      %cst_52 = arith.constant dense<0.000000e+00> : vector<128x128xf32>
      %66 = tpu.matmul %55, %65, %cst_52 {dimension_numbers = #tpu.dot_dimension_numbers<[1], [0], [0], [1], [0, 0, 1, 1], [], []>} : vector<128x128xf32>, vector<128x128xf32>, vector<128x128xf32> -> vector<128x128xf32>
      %c0_53 = arith.constant 0 : index
      %c0_54 = arith.constant 0 : index
      %67 = vector.load %arg10[%c0_53, %c0_54] : memref<1x128xf32, #tpu.memory_space<vmem>>, vector<1x128xf32>
      %68 = vector.broadcast %67 : vector<1x128xf32> to vector<128x128xf32>
      %69 = arith.addf %66, %68 : vector<128x128xf32>
      %c0_55 = arith.constant 0 : index
      %c0_56 = arith.constant 0 : index
      %70 = vector.load %arg15[%c0_55, %c0_56] : memref<128x128xf32, #tpu.memory_space<vmem>>, vector<128x128xf32>
      tpu.vector_store %arg15[%c0_55, %c0_56], %69 {strides = array<i32>} : memref<128x128xf32, #tpu.memory_space<vmem>>, vector<128x128xf32>,
      %cst_57 = arith.constant 0xFF800000 : f32
      %71 = vector.broadcast %cst_57 : f32 to vector<128x1xf32>
      %c0_58 = arith.constant 0 : index
      %c0_59 = arith.constant 0 : index
      %72 = vector.load %arg16[%c0_58, %c0_59] : memref<128x1xf32, #tpu.memory_space<vmem>>, vector<128x1xf32>
      tpu.vector_store %arg16[%c0_58, %c0_59], %71 {strides = array<i32>} : memref<128x1xf32, #tpu.memory_space<vmem>>, vector<128x1xf32>,
      %cst_60 = arith.constant 0.000000e+00 : f32
      %73 = vector.broadcast %cst_60 : f32 to vector<128x1xf32>
      %c0_61 = arith.constant 0 : index
      %c0_62 = arith.constant 0 : index
      %74 = vector.load %arg17[%c0_61, %c0_62] : memref<128x1xf32, #tpu.memory_space<vmem>>, vector<128x1xf32>
      tpu.vector_store %arg17[%c0_61, %c0_62], %73 {strides = array<i32>} : memref<128x1xf32, #tpu.memory_space<vmem>>, vector<128x1xf32>,
      %cst_63 = arith.constant 0.000000e+00 : f32
      %75 = vector.broadcast %cst_63 : f32 to vector<128x1xf32>
      %c0_64 = arith.constant 0 : index
      %c0_65 = arith.constant 0 : index
      %76 = vector.load %arg18[%c0_64, %c0_65] : memref<128x1xf32, #tpu.memory_space<vmem>>, vector<128x1xf32>
      tpu.vector_store %arg18[%c0_64, %c0_65], %75 {strides = array<i32>} : memref<128x1xf32, #tpu.memory_space<vmem>>, vector<128x1xf32>,
      %cst_66 = arith.constant 0.000000e+00 : f32
      %77 = vector.broadcast %cst_66 : f32 to vector<128x128xf32>
      %c0_67 = arith.constant 0 : index
      %c0_68 = arith.constant 0 : index
      %78 = vector.load %arg19[%c0_67, %c0_68] : memref<128x128xf32, #tpu.memory_space<vmem>>, vector<128x128xf32>
      tpu.vector_store %arg19[%c0_67, %c0_68], %77 {strides = array<i32>} : memref<128x128xf32, #tpu.memory_space<vmem>>, vector<128x128xf32>,
      %cst_69 = arith.constant 0.000000e+00 : f32
      %79 = vector.broadcast %cst_69 : f32 to vector<128x128xf32>
      %c0_70 = arith.constant 0 : index
      %c0_71 = arith.constant 0 : index
      %80 = vector.load %arg20[%c0_70, %c0_71] : memref<128x128xf32, #tpu.memory_space<vmem>>, vector<128x128xf32>
      tpu.vector_store %arg20[%c0_70, %c0_71], %79 {strides = array<i32>} : memref<128x128xf32, #tpu.memory_space<vmem>>, vector<128x128xf32>,
    } else {
    }
    %c0 = arith.constant 0 : index
    %c0_1 = arith.constant 0 : index
    %3 = vector.load %arg4[%c0, %c0_1] : memref<128x128xbf16, #tpu.memory_space<vmem>>, vector<128x128xbf16>
    %c0_2 = arith.constant 0 : index
    %c0_3 = arith.constant 0 : index
    %4 = vector.load %arg5[%c0_2, %c0_3] : memref<128x128xbf16, #tpu.memory_space<vmem>>, vector<128x128xbf16>
    %c0_4 = arith.constant 0 : index
    %c0_5 = arith.constant 0 : index
    %5 = vector.load %arg6[%c0_4, %c0_5] : memref<128x128xi8, #tpu.memory_space<vmem>>, vector<128x128xi8>
    %6 = arith.extsi %5 : vector<128x128xi8> to vector<128x128xi32>
    %c0_i32_6 = arith.constant 0 : i32
    %7 = vector.broadcast %c0_i32_6 : i32 to vector<128x128xi32>
    %8 = arith.cmpi sgt, %6, %7 : vector<128x128xi32>
    %9 = arith.extui %8 : vector<128x128xi1> to vector<128x128xi32>
    %10 = arith.sitofp %9 : vector<128x128xi32> to vector<128x128xf32>
    %c0_7 = arith.constant 0 : index
    %c0_8 = arith.constant 0 : index
    %11 = vector.load %arg14[%c0_7, %c0_8] : memref<128x128xbf16, #tpu.memory_space<vmem>>, vector<128x128xbf16>
    %cst = arith.constant dense<0.000000e+00> : vector<128x128xf32>
    %12 = tpu.matmul %11, %3, %cst {dimension_numbers = #tpu.dot_dimension_numbers<[1], [1], [0], [0], [0, 0, 1, 0], [], []>} : vector<128x128xbf16>, vector<128x128xbf16>, vector<128x128xf32> -> vector<128x128xf32>
    %cst_9 = arith.constant -1.000000e+30 : f32
    %13 = vector.broadcast %cst_9 : f32 to vector<128x128xf32>
    %14 = arith.select %8, %12, %13 : vector<128x128xi1>, vector<128x128xf32>
    %c0_10 = arith.constant 0 : index
    %c0_11 = arith.constant 0 : index
    %15 = vector.load %arg16[%c0_10, %c0_11] : memref<128x1xf32, #tpu.memory_space<vmem>>, vector<128x1xf32>
    %cst_12 = arith.constant dense<0xFF800000> : vector<128xf32>
    %16 = vector.multi_reduction <maximumf>, %14, %cst_12 [1] : vector<128x128xf32> to vector<128xf32>
    %17 = vector.shape_cast %16 : vector<128xf32> to vector<128x1xf32>
    %18 = arith.maximumf %15, %17 : vector<128x1xf32>
    %c0_13 = arith.constant 0 : index
    %c0_14 = arith.constant 0 : index
    %19 = vector.load %arg16[%c0_13, %c0_14] : memref<128x1xf32, #tpu.memory_space<vmem>>, vector<128x1xf32>
    %20 = arith.subf %19, %18 : vector<128x1xf32>
    %21 = math.exp %20 : vector<128x1xf32>
    %22 = vector.broadcast %18 : vector<128x1xf32> to vector<128x128xf32>
    %23 = arith.subf %14, %22 : vector<128x128xf32>
    %24 = math.exp %23 : vector<128x128xf32>
    %c0_15 = arith.constant 0 : index
    %c0_16 = arith.constant 0 : index
    %25 = vector.load %arg17[%c0_15, %c0_16] : memref<128x1xf32, #tpu.memory_space<vmem>>, vector<128x1xf32>
    %26 = arith.mulf %21, %25 : vector<128x1xf32>
    %cst_17 = arith.constant dense<0.000000e+00> : vector<128xf32>
    %27 = vector.multi_reduction <add>, %24, %cst_17 [1] : vector<128x128xf32> to vector<128xf32>
    %28 = vector.shape_cast %27 : vector<128xf32> to vector<128x1xf32>
    %29 = arith.addf %26, %28 : vector<128x1xf32>
    %c0_18 = arith.constant 0 : index
    %c0_19 = arith.constant 0 : index
    %30 = vector.load %arg17[%c0_18, %c0_19] : memref<128x1xf32, #tpu.memory_space<vmem>>, vector<128x1xf32>
    tpu.vector_store %arg17[%c0_18, %c0_19], %29 {strides = array<i32>} : memref<128x1xf32, #tpu.memory_space<vmem>>, vector<128x1xf32>,
    %c0_20 = arith.constant 0 : index
    %c0_21 = arith.constant 0 : index
    %31 = vector.load %arg19[%c0_20, %c0_21] : memref<128x128xf32, #tpu.memory_space<vmem>>, vector<128x128xf32>
    %32 = vector.broadcast %21 : vector<128x1xf32> to vector<128x128xf32>
    %33 = arith.mulf %32, %31 : vector<128x128xf32>
    %34 = arith.truncf %24 : vector<128x128xf32> to vector<128x128xbf16>
    %cst_22 = arith.constant dense<0.000000e+00> : vector<128x128xf32>
    %35 = tpu.matmul %34, %4, %cst_22 {dimension_numbers = #tpu.dot_dimension_numbers<[1], [0], [0], [1], [0, 0, 1, 1], [], []>} : vector<128x128xbf16>, vector<128x128xbf16>, vector<128x128xf32> -> vector<128x128xf32>
    %36 = arith.addf %33, %35 : vector<128x128xf32>
    %c0_23 = arith.constant 0 : index
    %c0_24 = arith.constant 0 : index
    %37 = vector.load %arg19[%c0_23, %c0_24] : memref<128x128xf32, #tpu.memory_space<vmem>>, vector<128x128xf32>
    tpu.vector_store %arg19[%c0_23, %c0_24], %36 {strides = array<i32>} : memref<128x128xf32, #tpu.memory_space<vmem>>, vector<128x128xf32>,
    %c0_25 = arith.constant 0 : index
    %c0_26 = arith.constant 0 : index
    %38 = vector.load %arg16[%c0_25, %c0_26] : memref<128x1xf32, #tpu.memory_space<vmem>>, vector<128x1xf32>
    tpu.vector_store %arg16[%c0_25, %c0_26], %18 {strides = array<i32>} : memref<128x1xf32, #tpu.memory_space<vmem>>, vector<128x1xf32>,
    %c0_27 = arith.constant 0 : index
    %c0_28 = arith.constant 0 : index
    %39 = vector.load %arg3[%c0_27, %c0_28] : memref<1x128xf32, #tpu.memory_space<vmem>>, vector<1x128xf32>
    %40 = vector.broadcast %39 : vector<1x128xf32> to vector<128x128xf32>
    %41 = arith.mulf %10, %40 : vector<128x128xf32>
    %c0_29 = arith.constant 0 : index
    %c0_30 = arith.constant 0 : index
    %42 = vector.load %arg18[%c0_29, %c0_30] : memref<128x1xf32, #tpu.memory_space<vmem>>, vector<128x1xf32>
    %cst_31 = arith.constant dense<0.000000e+00> : vector<128xf32>
    %43 = vector.multi_reduction <add>, %41, %cst_31 [1] : vector<128x128xf32> to vector<128xf32>
    %44 = vector.shape_cast %43 : vector<128xf32> to vector<128x1xf32>
    %45 = arith.addf %42, %44 : vector<128x1xf32>
    %c0_32 = arith.constant 0 : index
    %c0_33 = arith.constant 0 : index
    %46 = vector.load %arg18[%c0_32, %c0_33] : memref<128x1xf32, #tpu.memory_space<vmem>>, vector<128x1xf32>
    tpu.vector_store %arg18[%c0_32, %c0_33], %45 {strides = array<i32>} : memref<128x1xf32, #tpu.memory_space<vmem>>, vector<128x1xf32>,
    %c0_34 = arith.constant 0 : index
    %c0_35 = arith.constant 0 : index
    %47 = vector.load %arg20[%c0_34, %c0_35] : memref<128x128xf32, #tpu.memory_space<vmem>>, vector<128x128xf32>
    %48 = arith.truncf %41 : vector<128x128xf32> to vector<128x128xbf16>
    %cst_36 = arith.constant dense<0.000000e+00> : vector<128x128xf32>
    %49 = tpu.matmul %48, %4, %cst_36 {dimension_numbers = #tpu.dot_dimension_numbers<[1], [0], [0], [1], [0, 0, 1, 1], [], []>} : vector<128x128xbf16>, vector<128x128xbf16>, vector<128x128xf32> -> vector<128x128xf32>
    %50 = arith.addf %47, %49 : vector<128x128xf32>
    %c0_37 = arith.constant 0 : index
    %c0_38 = arith.constant 0 : index
    %51 = vector.load %arg20[%c0_37, %c0_38] : memref<128x128xf32, #tpu.memory_space<vmem>>, vector<128x128xf32>
    tpu.vector_store %arg20[%c0_37, %c0_38], %50 {strides = array<i32>} : memref<128x128xf32, #tpu.memory_space<vmem>>, vector<128x128xf32>,
    %c0_i32_39 = arith.constant 0 : i32
    %52 = arith.cmpi eq, %arg1, %c0_i32_39 : i32
    %53 = arith.extui %52 : i1 to i32
    %c0_i32_40 = arith.constant 0 : i32
    %54 = arith.cmpi ne, %53, %c0_i32_40 : i32
    scf.if %54 {
      %c0_41 = arith.constant 0 : index
      %c0_42 = arith.constant 0 : index
      %55 = vector.load %arg19[%c0_41, %c0_42] : memref<128x128xf32, #tpu.memory_space<vmem>>, vector<128x128xf32>
      %c0_43 = arith.constant 0 : index
      %c0_44 = arith.constant 0 : index
      %56 = vector.load %arg17[%c0_43, %c0_44] : memref<128x1xf32, #tpu.memory_space<vmem>>, vector<128x1xf32>
      %57 = tpu.reciprocal %56 {approx = true} : vector<128x1xf32> -> vector<128x1xf32>
      %58 = vector.broadcast %57 : vector<128x1xf32> to vector<128x128xf32>
      %59 = arith.mulf %55, %58 : vector<128x128xf32>
      %c0_45 = arith.constant 0 : index
      %c0_46 = arith.constant 0 : index
      %60 = vector.load %arg20[%c0_45, %c0_46] : memref<128x128xf32, #tpu.memory_space<vmem>>, vector<128x128xf32>
      %c0_47 = arith.constant 0 : index
      %c0_48 = arith.constant 0 : index
      %61 = vector.load %arg18[%c0_47, %c0_48] : memref<128x1xf32, #tpu.memory_space<vmem>>, vector<128x1xf32>
      %cst_49 = arith.constant 1.000000e-30 : f32
      %62 = vector.broadcast %cst_49 : f32 to vector<128x1xf32>
      %63 = arith.maximumf %61, %62 : vector<128x1xf32>
      %64 = tpu.reciprocal %63 {approx = true} : vector<128x1xf32> -> vector<128x1xf32>
      %65 = vector.broadcast %64 : vector<128x1xf32> to vector<128x128xf32>
      %66 = arith.mulf %60, %65 : vector<128x128xf32>
      %cst_50 = arith.constant 5.000000e-01 : f32
      %67 = vector.broadcast %cst_50 : f32 to vector<128x128xf32>
      %68 = arith.mulf %67, %66 : vector<128x128xf32>
      %cst_51 = arith.constant 5.000000e-01 : f32
      %69 = vector.broadcast %cst_51 : f32 to vector<128x128xf32>
      %70 = arith.mulf %69, %59 : vector<128x128xf32>
      %71 = arith.addf %68, %70 : vector<128x128xf32>
      %c0_52 = arith.constant 0 : index
      %c0_53 = arith.constant 0 : index
      %72 = vector.load %arg15[%c0_52, %c0_53] : memref<128x128xf32, #tpu.memory_space<vmem>>, vector<128x128xf32>
      %73 = arith.addf %71, %72 : vector<128x128xf32>
      %cst_54 = arith.constant 0.000000e+00 : f32
      %74 = vector.broadcast %cst_54 : f32 to vector<128x128xf32>
      %75 = arith.maximumf %73, %74 : vector<128x128xf32>
      %cst_55 = arith.constant dense<0.000000e+00> : vector<128xf32>
      %76 = vector.multi_reduction <add>, %75, %cst_55 [1] : vector<128x128xf32> to vector<128xf32>
      %77 = vector.shape_cast %76 : vector<128xf32> to vector<128x1xf32>
      %cst_56 = arith.constant 1.280000e+02 : f32
      %78 = vector.broadcast %cst_56 : f32 to vector<128x1xf32>
      %79 = arith.divf %77, %78 : vector<128x1xf32>
      %80 = vector.broadcast %79 : vector<128x1xf32> to vector<128x128xf32>
      %81 = arith.subf %75, %80 : vector<128x128xf32>
      %82 = arith.mulf %81, %81 : vector<128x128xf32>
      %cst_57 = arith.constant dense<0.000000e+00> : vector<128xf32>
      %83 = vector.multi_reduction <add>, %82, %cst_57 [1] : vector<128x128xf32> to vector<128xf32>
      %84 = vector.shape_cast %83 : vector<128xf32> to vector<128x1xf32>
      %cst_58 = arith.constant 1.280000e+02 : f32
      %85 = vector.broadcast %cst_58 : f32 to vector<128x1xf32>
      %86 = arith.divf %84, %85 : vector<128x1xf32>
      %87 = vector.broadcast %79 : vector<128x1xf32> to vector<128x128xf32>
      %88 = arith.subf %75, %87 : vector<128x128xf32>
      %cst_59 = arith.constant 9.99999974E-6 : f32
      %89 = vector.broadcast %cst_59 : f32 to vector<128x1xf32>
      %90 = arith.addf %86, %89 : vector<128x1xf32>
      %91 = math.rsqrt %90 : vector<128x1xf32>
      %92 = vector.broadcast %91 : vector<128x1xf32> to vector<128x128xf32>
      %93 = arith.mulf %88, %92 : vector<128x128xf32>
      %c0_60 = arith.constant 0 : index
      %c0_61 = arith.constant 0 : index
      %94 = vector.load %arg11[%c0_60, %c0_61] : memref<1x128xf32, #tpu.memory_space<vmem>>, vector<1x128xf32>
      %95 = vector.broadcast %94 : vector<1x128xf32> to vector<128x128xf32>
      %96 = arith.mulf %93, %95 : vector<128x128xf32>
      %c0_62 = arith.constant 0 : index
      %c0_63 = arith.constant 0 : index
      %97 = vector.load %arg12[%c0_62, %c0_63] : memref<1x128xf32, #tpu.memory_space<vmem>>, vector<1x128xf32>
      %98 = vector.broadcast %97 : vector<1x128xf32> to vector<128x128xf32>
      %99 = arith.addf %96, %98 : vector<128x128xf32>
      %c0_64 = arith.constant 0 : index
      %c0_65 = arith.constant 0 : index
      %100 = vector.load %arg13[%c0_64, %c0_65] : memref<128x128xf32, #tpu.memory_space<vmem>>, vector<128x128xf32>
      tpu.vector_store %arg13[%c0_64, %c0_65], %99 {strides = array<i32>} : memref<128x128xf32, #tpu.memory_space<vmem>>, vector<128x128xf32>,
    } else {
    }
    return
  }
  func.func @transform_0(%arg0: i32, %arg1: i32) -> (i32, i32) {
    %c0_i32 = arith.constant 0 : i32
    %c0_i32_0 = arith.constant 0 : i32
    return %arg0, %c0_i32 : i32, i32
  }
  func.func @transform_1(%arg0: i32, %arg1: i32) -> (i32, i32) {
    %c0_i32 = arith.constant 0 : i32
    %c0_i32_0 = arith.constant 0 : i32
    return %c0_i32, %arg1 : i32, i32
  }
  func.func @transform_2(%arg0: i32, %arg1: i32) -> (i32, i32) {
    %c0_i32 = arith.constant 0 : i32
    %c0_i32_0 = arith.constant 0 : i32
    return %arg1, %c0_i32 : i32, i32
  }
  func.func @transform_3(%arg0: i32, %arg1: i32) -> (i32, i32) {
    %c0_i32 = arith.constant 0 : i32
    %c0_i32_0 = arith.constant 0 : i32
    return %arg1, %c0_i32 : i32, i32
  }
  func.func @transform_4(%arg0: i32, %arg1: i32) -> (i32, i32) {
    %c0_i32 = arith.constant 0 : i32
    return %arg0, %arg1 : i32, i32
  }
  func.func @transform_5(%arg0: i32, %arg1: i32) -> (i32, i32) {
    %c0_i32 = arith.constant 0 : i32
    %c0_i32_0 = arith.constant 0 : i32
    %c0_i32_1 = arith.constant 0 : i32
    return %c0_i32, %c0_i32_0 : i32, i32
  }
  func.func @transform_6(%arg0: i32, %arg1: i32) -> (i32, i32) {
    %c0_i32 = arith.constant 0 : i32
    %c0_i32_0 = arith.constant 0 : i32
    %c0_i32_1 = arith.constant 0 : i32
    return %c0_i32, %c0_i32_0 : i32, i32
  }
  func.func @transform_7(%arg0: i32, %arg1: i32) -> (i32, i32) {
    %c0_i32 = arith.constant 0 : i32
    %c0_i32_0 = arith.constant 0 : i32
    %c0_i32_1 = arith.constant 0 : i32
    return %c0_i32, %c0_i32_0 : i32, i32
  }
  func.func @transform_8(%arg0: i32, %arg1: i32) -> (i32, i32) {
    %c0_i32 = arith.constant 0 : i32
    %c0_i32_0 = arith.constant 0 : i32
    %c0_i32_1 = arith.constant 0 : i32
    return %c0_i32, %c0_i32_0 : i32, i32
  }
  func.func @transform_9(%arg0: i32, %arg1: i32) -> (i32, i32) {
    %c0_i32 = arith.constant 0 : i32
    %c0_i32_0 = arith.constant 0 : i32
    %c0_i32_1 = arith.constant 0 : i32
    return %c0_i32, %c0_i32_0 : i32, i32
  }
  func.func @transform_10(%arg0: i32, %arg1: i32) -> (i32, i32) {
    %c0_i32 = arith.constant 0 : i32
    %c0_i32_0 = arith.constant 0 : i32
    %c0_i32_1 = arith.constant 0 : i32
    return %c0_i32, %c0_i32_0 : i32, i32
  }
  func.func @transform_11(%arg0: i32, %arg1: i32) -> (i32, i32) {
    %c0_i32 = arith.constant 0 : i32
    %c0_i32_0 = arith.constant 0 : i32
    return %arg0, %c0_i32 : i32, i32
  }
}

module attributes {stable_mosaic.version = 11 : i64} {
  func.func @_kv_project_kernel(%arg0: i32, %arg1: memref<128x128xf32, #tpu.memory_space<vmem>>, %arg2: memref<128x256xbf16, #tpu.memory_space<vmem>>, %arg3: memref<1x256xf32, #tpu.memory_space<vmem>>, %arg4: memref<1x128xf32, #tpu.memory_space<vmem>>, %arg5: memref<128x128xbf16, #tpu.memory_space<vmem>>, %arg6: memref<128x128xbf16, #tpu.memory_space<vmem>>, %arg7: memref<1x128xf32, #tpu.memory_space<vmem>>) attributes {dimension_semantics = [#tpu.dimension_semantics<parallel>], iteration_bounds = array<i64: 2>, scalar_prefetch = 0 : i64, scratch_operands = 0 : i64, tpu.core_type = #tpu.core_type<tc>, window_params = [{transform_indices = @transform_0, window_bounds = array<i64: 128, 128>}, {pipeline_mode = #tpu.pipeline_mode<synchronous>, transform_indices = @transform_1, window_bounds = array<i64: 128, 256>}, {pipeline_mode = #tpu.pipeline_mode<synchronous>, transform_indices = @transform_2, window_bounds = array<i64: 1, 256>}, {pipeline_mode = #tpu.pipeline_mode<synchronous>, transform_indices = @transform_3, window_bounds = array<i64: 1, 128>}, {transform_indices = @transform_4, window_bounds = array<i64: 128, 128>}, {transform_indices = @transform_5, window_bounds = array<i64: 128, 128>}, {transform_indices = @transform_6, window_bounds = array<i64: 1, 128>}]} {
    %c0 = arith.constant 0 : index
    %c0_0 = arith.constant 0 : index
    %0 = vector.load %arg1[%c0, %c0_0] : memref<128x128xf32, #tpu.memory_space<vmem>>, vector<128x128xf32>
    %1 = arith.truncf %0 : vector<128x128xf32> to vector<128x128xbf16>
    %c0_1 = arith.constant 0 : index
    %c0_2 = arith.constant 0 : index
    %2 = vector.load %arg2[%c0_1, %c0_2] : memref<128x256xbf16, #tpu.memory_space<vmem>>, vector<128x256xbf16>
    %cst = arith.constant dense<0.000000e+00> : vector<128x256xf32>
    %3 = tpu.matmul %1, %2, %cst {dimension_numbers = #tpu.dot_dimension_numbers<[1], [0], [0], [1], [0, 0, 1, 1], [], []>} : vector<128x128xbf16>, vector<128x256xbf16>, vector<128x256xf32> -> vector<128x256xf32>
    %c0_3 = arith.constant 0 : index
    %c0_4 = arith.constant 0 : index
    %4 = vector.load %arg3[%c0_3, %c0_4] : memref<1x256xf32, #tpu.memory_space<vmem>>, vector<1x256xf32>
    %5 = vector.broadcast %4 : vector<1x256xf32> to vector<128x256xf32>
    %6 = arith.addf %3, %5 : vector<128x256xf32>
    %7 = vector.extract_strided_slice %6 {offsets = [0, 0], sizes = [128, 128], strides = [1, 1]} : vector<128x256xf32> to vector<128x128xf32>
    %8 = arith.truncf %7 : vector<128x128xf32> to vector<128x128xbf16>
    %c0_5 = arith.constant 0 : index
    %c0_6 = arith.constant 0 : index
    %9 = vector.load %arg5[%c0_5, %c0_6] : memref<128x128xbf16, #tpu.memory_space<vmem>>, vector<128x128xbf16>
    tpu.vector_store %arg5[%c0_5, %c0_6], %8 {strides = array<i32>} : memref<128x128xbf16, #tpu.memory_space<vmem>>, vector<128x128xbf16>,
    %10 = vector.extract_strided_slice %6 {offsets = [0, 128], sizes = [128, 128], strides = [1, 1]} : vector<128x256xf32> to vector<128x128xf32>
    %11 = arith.truncf %10 : vector<128x128xf32> to vector<128x128xbf16>
    %c0_7 = arith.constant 0 : index
    %c0_8 = arith.constant 0 : index
    %12 = vector.load %arg6[%c0_7, %c0_8] : memref<128x128xbf16, #tpu.memory_space<vmem>>, vector<128x128xbf16>
    tpu.vector_store %arg6[%c0_7, %c0_8], %11 {strides = array<i32>} : memref<128x128xbf16, #tpu.memory_space<vmem>>, vector<128x128xbf16>,
    %c0_9 = arith.constant 0 : index
    %c0_10 = arith.constant 0 : index
    %13 = vector.load %arg4[%c0_9, %c0_10] : memref<1x128xf32, #tpu.memory_space<vmem>>, vector<1x128xf32>
    %cst_11 = arith.constant dense<0.000000e+00> : vector<1x128xf32>
    %14 = tpu.matmul %13, %7, %cst_11 {dimension_numbers = #tpu.dot_dimension_numbers<[1], [1], [0], [0], [0, 0, 1, 0], [], []>} : vector<1x128xf32>, vector<128x128xf32>, vector<1x128xf32> -> vector<1x128xf32>
    %c0_12 = arith.constant 0 : index
    %c0_13 = arith.constant 0 : index
    %15 = vector.load %arg7[%c0_12, %c0_13] : memref<1x128xf32, #tpu.memory_space<vmem>>, vector<1x128xf32>
    tpu.vector_store %arg7[%c0_12, %c0_13], %14 {strides = array<i32>} : memref<1x128xf32, #tpu.memory_space<vmem>>, vector<1x128xf32>,
    return
  }
  func.func @transform_0(%arg0: i32) -> (i32, i32) {
    %c0_i32 = arith.constant 0 : i32
    %c0_i32_0 = arith.constant 0 : i32
    return %arg0, %c0_i32 : i32, i32
  }
  func.func @transform_1(%arg0: i32) -> (i32, i32) {
    %c0_i32 = arith.constant 0 : i32
    %c0_i32_0 = arith.constant 0 : i32
    %c0_i32_1 = arith.constant 0 : i32
    return %c0_i32, %c0_i32_0 : i32, i32
  }
  func.func @transform_2(%arg0: i32) -> (i32, i32) {
    %c0_i32 = arith.constant 0 : i32
    %c0_i32_0 = arith.constant 0 : i32
    %c0_i32_1 = arith.constant 0 : i32
    return %c0_i32, %c0_i32_0 : i32, i32
  }
  func.func @transform_3(%arg0: i32) -> (i32, i32) {
    %c0_i32 = arith.constant 0 : i32
    %c0_i32_0 = arith.constant 0 : i32
    %c0_i32_1 = arith.constant 0 : i32
    return %c0_i32, %c0_i32_0 : i32, i32
  }
  func.func @transform_4(%arg0: i32) -> (i32, i32) {
    %c0_i32 = arith.constant 0 : i32
    %c0_i32_0 = arith.constant 0 : i32
    return %arg0, %c0_i32 : i32, i32
  }
  func.func @transform_5(%arg0: i32) -> (i32, i32) {
    %c0_i32 = arith.constant 0 : i32
    %c0_i32_0 = arith.constant 0 : i32
    return %arg0, %c0_i32 : i32, i32
  }
  func.func @transform_6(%arg0: i32) -> (i32, i32) {
    %c0_i32 = arith.constant 0 : i32
    %c0_i32_0 = arith.constant 0 : i32
    return %c0_i32, %arg0 : i32, i32
  }
}

module attributes {stable_mosaic.version = 11 : i64} {
  func.func @_attention_kernel(%arg0: i32, %arg1: i32, %arg2: memref<128x128xf32, #tpu.memory_space<vmem>>, %arg3: memref<1x128xf32, #tpu.memory_space<vmem>>, %arg4: memref<128x128xbf16, #tpu.memory_space<vmem>>, %arg5: memref<128x128xbf16, #tpu.memory_space<vmem>>, %arg6: memref<128x128xi8, #tpu.memory_space<vmem>>, %arg7: memref<128x128xbf16, #tpu.memory_space<vmem>>, %arg8: memref<1x128xbf16, #tpu.memory_space<vmem>>, %arg9: memref<128x128xf32, #tpu.memory_space<vmem>>, %arg10: memref<1x128xf32, #tpu.memory_space<vmem>>, %arg11: memref<1x128xf32, #tpu.memory_space<vmem>>, %arg12: memref<1x128xf32, #tpu.memory_space<vmem>>, %arg13: memref<128x128xf32, #tpu.memory_space<vmem>>, %arg14: memref<128x128xbf16, #tpu.memory_space<vmem>>, %arg15: memref<128x128xf32, #tpu.memory_space<vmem>>, %arg16: memref<128x1xf32, #tpu.memory_space<vmem>>, %arg17: memref<128x1xf32, #tpu.memory_space<vmem>>, %arg18: memref<128x1xf32, #tpu.memory_space<vmem>>, %arg19: memref<128x128xf32, #tpu.memory_space<vmem>>, %arg20: memref<128x128xf32, #tpu.memory_space<vmem>>) attributes {dimension_semantics = [#tpu.dimension_semantics<parallel>, #tpu.dimension_semantics<arbitrary>], iteration_bounds = array<i64: 1, 2>, scalar_prefetch = 0 : i64, scratch_operands = 7 : i64, tpu.core_type = #tpu.core_type<tc>, window_params = [{transform_indices = @transform_0, window_bounds = array<i64: 128, 128>}, {transform_indices = @transform_1, window_bounds = array<i64: 1, 128>}, {transform_indices = @transform_2, window_bounds = array<i64: 128, 128>}, {transform_indices = @transform_3, window_bounds = array<i64: 128, 128>}, {transform_indices = @transform_4, window_bounds = array<i64: 128, 128>}, {pipeline_mode = #tpu.pipeline_mode<synchronous>, transform_indices = @transform_5, window_bounds = array<i64: 128, 128>}, {pipeline_mode = #tpu.pipeline_mode<synchronous>, transform_indices = @transform_6, window_bounds = array<i64: 1, 128>}, {pipeline_mode = #tpu.pipeline_mode<synchronous>, transform_indices = @transform_7, window_bounds = array<i64: 128, 128>}, {pipeline_mode = #tpu.pipeline_mode<synchronous>, transform_indices = @transform_8, window_bounds = array<i64: 1, 128>}, {pipeline_mode = #tpu.pipeline_mode<synchronous>, transform_indices = @transform_9, window_bounds = array<i64: 1, 128>}, {pipeline_mode = #tpu.pipeline_mode<synchronous>, transform_indices = @transform_10, window_bounds = array<i64: 1, 128>}, {transform_indices = @transform_11, window_bounds = array<i64: 128, 128>}]} {
    %c0_i32 = arith.constant 0 : i32
    %0 = arith.cmpi eq, %arg1, %c0_i32 : i32
    %1 = arith.extui %0 : i1 to i32
    %c0_i32_0 = arith.constant 0 : i32
    %2 = arith.cmpi ne, %1, %c0_i32_0 : i32
    scf.if %2 {
      %c0_40 = arith.constant 0 : index
      %c0_41 = arith.constant 0 : index
      %55 = vector.load %arg2[%c0_40, %c0_41] : memref<128x128xf32, #tpu.memory_space<vmem>>, vector<128x128xf32>
      %56 = arith.truncf %55 : vector<128x128xf32> to vector<128x128xbf16>
      %c0_42 = arith.constant 0 : index
      %c0_43 = arith.constant 0 : index
      %57 = vector.load %arg7[%c0_42, %c0_43] : memref<128x128xbf16, #tpu.memory_space<vmem>>, vector<128x128xbf16>
      %cst_44 = arith.constant dense<0.000000e+00> : vector<128x128xf32>
      %58 = tpu.matmul %56, %57, %cst_44 {dimension_numbers = #tpu.dot_dimension_numbers<[1], [0], [0], [1], [0, 0, 1, 1], [], []>} : vector<128x128xbf16>, vector<128x128xbf16>, vector<128x128xf32> -> vector<128x128xf32>
      %c0_45 = arith.constant 0 : index
      %c0_46 = arith.constant 0 : index
      %59 = vector.load %arg8[%c0_45, %c0_46] : memref<1x128xbf16, #tpu.memory_space<vmem>>, vector<1x128xbf16>
      %60 = arith.extf %59 : vector<1x128xbf16> to vector<1x128xf32>
      %61 = vector.broadcast %60 : vector<1x128xf32> to vector<128x128xf32>
      %62 = arith.addf %58, %61 : vector<128x128xf32>
      %63 = arith.truncf %62 : vector<128x128xf32> to vector<128x128xbf16>
      %c0_47 = arith.constant 0 : index
      %c0_48 = arith.constant 0 : index
      %64 = vector.load %arg14[%c0_47, %c0_48] : memref<128x128xbf16, #tpu.memory_space<vmem>>, vector<128x128xbf16>
      tpu.vector_store %arg14[%c0_47, %c0_48], %63 {strides = array<i32>} : memref<128x128xbf16, #tpu.memory_space<vmem>>, vector<128x128xbf16>,
      %c0_49 = arith.constant 0 : index
      %c0_50 = arith.constant 0 : index
      %65 = vector.load %arg9[%c0_49, %c0_50] : memref<128x128xf32, #tpu.memory_space<vmem>>, vector<128x128xf32>
      %cst_51 = arith.constant dense<0.000000e+00> : vector<128x128xf32>
      %66 = tpu.matmul %55, %65, %cst_51 {dimension_numbers = #tpu.dot_dimension_numbers<[1], [0], [0], [1], [0, 0, 1, 1], [], []>} : vector<128x128xf32>, vector<128x128xf32>, vector<128x128xf32> -> vector<128x128xf32>
      %c0_52 = arith.constant 0 : index
      %c0_53 = arith.constant 0 : index
      %67 = vector.load %arg10[%c0_52, %c0_53] : memref<1x128xf32, #tpu.memory_space<vmem>>, vector<1x128xf32>
      %68 = vector.broadcast %67 : vector<1x128xf32> to vector<128x128xf32>
      %69 = arith.addf %66, %68 : vector<128x128xf32>
      %c0_54 = arith.constant 0 : index
      %c0_55 = arith.constant 0 : index
      %70 = vector.load %arg15[%c0_54, %c0_55] : memref<128x128xf32, #tpu.memory_space<vmem>>, vector<128x128xf32>
      tpu.vector_store %arg15[%c0_54, %c0_55], %69 {strides = array<i32>} : memref<128x128xf32, #tpu.memory_space<vmem>>, vector<128x128xf32>,
      %cst_56 = arith.constant 0xFF800000 : f32
      %71 = vector.broadcast %cst_56 : f32 to vector<128x1xf32>
      %c0_57 = arith.constant 0 : index
      %c0_58 = arith.constant 0 : index
      %72 = vector.load %arg16[%c0_57, %c0_58] : memref<128x1xf32, #tpu.memory_space<vmem>>, vector<128x1xf32>
      tpu.vector_store %arg16[%c0_57, %c0_58], %71 {strides = array<i32>} : memref<128x1xf32, #tpu.memory_space<vmem>>, vector<128x1xf32>,
      %cst_59 = arith.constant 0.000000e+00 : f32
      %73 = vector.broadcast %cst_59 : f32 to vector<128x1xf32>
      %c0_60 = arith.constant 0 : index
      %c0_61 = arith.constant 0 : index
      %74 = vector.load %arg17[%c0_60, %c0_61] : memref<128x1xf32, #tpu.memory_space<vmem>>, vector<128x1xf32>
      tpu.vector_store %arg17[%c0_60, %c0_61], %73 {strides = array<i32>} : memref<128x1xf32, #tpu.memory_space<vmem>>, vector<128x1xf32>,
      %cst_62 = arith.constant 0.000000e+00 : f32
      %75 = vector.broadcast %cst_62 : f32 to vector<128x1xf32>
      %c0_63 = arith.constant 0 : index
      %c0_64 = arith.constant 0 : index
      %76 = vector.load %arg18[%c0_63, %c0_64] : memref<128x1xf32, #tpu.memory_space<vmem>>, vector<128x1xf32>
      tpu.vector_store %arg18[%c0_63, %c0_64], %75 {strides = array<i32>} : memref<128x1xf32, #tpu.memory_space<vmem>>, vector<128x1xf32>,
      %cst_65 = arith.constant 0.000000e+00 : f32
      %77 = vector.broadcast %cst_65 : f32 to vector<128x128xf32>
      %c0_66 = arith.constant 0 : index
      %c0_67 = arith.constant 0 : index
      %78 = vector.load %arg19[%c0_66, %c0_67] : memref<128x128xf32, #tpu.memory_space<vmem>>, vector<128x128xf32>
      tpu.vector_store %arg19[%c0_66, %c0_67], %77 {strides = array<i32>} : memref<128x128xf32, #tpu.memory_space<vmem>>, vector<128x128xf32>,
      %cst_68 = arith.constant 0.000000e+00 : f32
      %79 = vector.broadcast %cst_68 : f32 to vector<128x128xf32>
      %c0_69 = arith.constant 0 : index
      %c0_70 = arith.constant 0 : index
      %80 = vector.load %arg20[%c0_69, %c0_70] : memref<128x128xf32, #tpu.memory_space<vmem>>, vector<128x128xf32>
      tpu.vector_store %arg20[%c0_69, %c0_70], %79 {strides = array<i32>} : memref<128x128xf32, #tpu.memory_space<vmem>>, vector<128x128xf32>,
    } else {
    }
    %c0 = arith.constant 0 : index
    %c0_1 = arith.constant 0 : index
    %3 = vector.load %arg4[%c0, %c0_1] : memref<128x128xbf16, #tpu.memory_space<vmem>>, vector<128x128xbf16>
    %c0_2 = arith.constant 0 : index
    %c0_3 = arith.constant 0 : index
    %4 = vector.load %arg5[%c0_2, %c0_3] : memref<128x128xbf16, #tpu.memory_space<vmem>>, vector<128x128xbf16>
    %c0_4 = arith.constant 0 : index
    %c0_5 = arith.constant 0 : index
    %5 = vector.load %arg6[%c0_4, %c0_5] : memref<128x128xi8, #tpu.memory_space<vmem>>, vector<128x128xi8>
    %6 = arith.extsi %5 : vector<128x128xi8> to vector<128x128xi32>
    %c0_i32_6 = arith.constant 0 : i32
    %7 = vector.broadcast %c0_i32_6 : i32 to vector<128x128xi32>
    %8 = arith.cmpi sgt, %6, %7 : vector<128x128xi32>
    %9 = arith.extui %8 : vector<128x128xi1> to vector<128x128xi32>
    %10 = arith.sitofp %9 : vector<128x128xi32> to vector<128x128xf32>
    %c0_7 = arith.constant 0 : index
    %c0_8 = arith.constant 0 : index
    %11 = vector.load %arg14[%c0_7, %c0_8] : memref<128x128xbf16, #tpu.memory_space<vmem>>, vector<128x128xbf16>
    %cst = arith.constant dense<0.000000e+00> : vector<128x128xf32>
    %12 = tpu.matmul %11, %3, %cst {dimension_numbers = #tpu.dot_dimension_numbers<[1], [1], [0], [0], [0, 0, 1, 0], [], []>} : vector<128x128xbf16>, vector<128x128xbf16>, vector<128x128xf32> -> vector<128x128xf32>
    %cst_9 = arith.constant -1.000000e+30 : f32
    %13 = vector.broadcast %cst_9 : f32 to vector<128x128xf32>
    %14 = arith.select %8, %12, %13 : vector<128x128xi1>, vector<128x128xf32>
    %c0_10 = arith.constant 0 : index
    %c0_11 = arith.constant 0 : index
    %15 = vector.load %arg16[%c0_10, %c0_11] : memref<128x1xf32, #tpu.memory_space<vmem>>, vector<128x1xf32>
    %cst_12 = arith.constant dense<0xFF800000> : vector<128xf32>
    %16 = vector.multi_reduction <maximumf>, %14, %cst_12 [1] : vector<128x128xf32> to vector<128xf32>
    %17 = vector.shape_cast %16 : vector<128xf32> to vector<128x1xf32>
    %18 = arith.maximumf %15, %17 : vector<128x1xf32>
    %c0_13 = arith.constant 0 : index
    %c0_14 = arith.constant 0 : index
    %19 = vector.load %arg16[%c0_13, %c0_14] : memref<128x1xf32, #tpu.memory_space<vmem>>, vector<128x1xf32>
    %20 = arith.subf %19, %18 : vector<128x1xf32>
    %21 = math.exp %20 : vector<128x1xf32>
    %22 = vector.broadcast %18 : vector<128x1xf32> to vector<128x128xf32>
    %23 = arith.subf %14, %22 : vector<128x128xf32>
    %24 = math.exp %23 : vector<128x128xf32>
    %c0_15 = arith.constant 0 : index
    %c0_16 = arith.constant 0 : index
    %25 = vector.load %arg17[%c0_15, %c0_16] : memref<128x1xf32, #tpu.memory_space<vmem>>, vector<128x1xf32>
    %26 = arith.mulf %21, %25 : vector<128x1xf32>
    %cst_17 = arith.constant dense<0.000000e+00> : vector<128xf32>
    %27 = vector.multi_reduction <add>, %24, %cst_17 [1] : vector<128x128xf32> to vector<128xf32>
    %28 = vector.shape_cast %27 : vector<128xf32> to vector<128x1xf32>
    %29 = arith.addf %26, %28 : vector<128x1xf32>
    %c0_18 = arith.constant 0 : index
    %c0_19 = arith.constant 0 : index
    %30 = vector.load %arg17[%c0_18, %c0_19] : memref<128x1xf32, #tpu.memory_space<vmem>>, vector<128x1xf32>
    tpu.vector_store %arg17[%c0_18, %c0_19], %29 {strides = array<i32>} : memref<128x1xf32, #tpu.memory_space<vmem>>, vector<128x1xf32>,
    %c0_20 = arith.constant 0 : index
    %c0_21 = arith.constant 0 : index
    %31 = vector.load %arg19[%c0_20, %c0_21] : memref<128x128xf32, #tpu.memory_space<vmem>>, vector<128x128xf32>
    %32 = vector.broadcast %21 : vector<128x1xf32> to vector<128x128xf32>
    %33 = arith.mulf %32, %31 : vector<128x128xf32>
    %34 = arith.truncf %24 : vector<128x128xf32> to vector<128x128xbf16>
    %cst_22 = arith.constant dense<0.000000e+00> : vector<128x128xf32>
    %35 = tpu.matmul %34, %4, %cst_22 {dimension_numbers = #tpu.dot_dimension_numbers<[1], [0], [0], [1], [0, 0, 1, 1], [], []>} : vector<128x128xbf16>, vector<128x128xbf16>, vector<128x128xf32> -> vector<128x128xf32>
    %36 = arith.addf %33, %35 : vector<128x128xf32>
    %c0_23 = arith.constant 0 : index
    %c0_24 = arith.constant 0 : index
    %37 = vector.load %arg19[%c0_23, %c0_24] : memref<128x128xf32, #tpu.memory_space<vmem>>, vector<128x128xf32>
    tpu.vector_store %arg19[%c0_23, %c0_24], %36 {strides = array<i32>} : memref<128x128xf32, #tpu.memory_space<vmem>>, vector<128x128xf32>,
    %c0_25 = arith.constant 0 : index
    %c0_26 = arith.constant 0 : index
    %38 = vector.load %arg16[%c0_25, %c0_26] : memref<128x1xf32, #tpu.memory_space<vmem>>, vector<128x1xf32>
    tpu.vector_store %arg16[%c0_25, %c0_26], %18 {strides = array<i32>} : memref<128x1xf32, #tpu.memory_space<vmem>>, vector<128x1xf32>,
    %c0_27 = arith.constant 0 : index
    %c0_28 = arith.constant 0 : index
    %39 = vector.load %arg3[%c0_27, %c0_28] : memref<1x128xf32, #tpu.memory_space<vmem>>, vector<1x128xf32>
    %40 = vector.broadcast %39 : vector<1x128xf32> to vector<128x128xf32>
    %41 = arith.mulf %10, %40 : vector<128x128xf32>
    %c0_29 = arith.constant 0 : index
    %c0_30 = arith.constant 0 : index
    %42 = vector.load %arg18[%c0_29, %c0_30] : memref<128x1xf32, #tpu.memory_space<vmem>>, vector<128x1xf32>
    %cst_31 = arith.constant dense<0.000000e+00> : vector<128xf32>
    %43 = vector.multi_reduction <add>, %41, %cst_31 [1] : vector<128x128xf32> to vector<128xf32>
    %44 = vector.shape_cast %43 : vector<128xf32> to vector<128x1xf32>
    %45 = arith.addf %42, %44 : vector<128x1xf32>
    %c0_32 = arith.constant 0 : index
    %c0_33 = arith.constant 0 : index
    %46 = vector.load %arg18[%c0_32, %c0_33] : memref<128x1xf32, #tpu.memory_space<vmem>>, vector<128x1xf32>
    tpu.vector_store %arg18[%c0_32, %c0_33], %45 {strides = array<i32>} : memref<128x1xf32, #tpu.memory_space<vmem>>, vector<128x1xf32>,
    %c0_34 = arith.constant 0 : index
    %c0_35 = arith.constant 0 : index
    %47 = vector.load %arg20[%c0_34, %c0_35] : memref<128x128xf32, #tpu.memory_space<vmem>>, vector<128x128xf32>
    %48 = arith.truncf %41 : vector<128x128xf32> to vector<128x128xbf16>
    %cst_36 = arith.constant dense<0.000000e+00> : vector<128x128xf32>
    %49 = tpu.matmul %48, %4, %cst_36 {dimension_numbers = #tpu.dot_dimension_numbers<[1], [0], [0], [1], [0, 0, 1, 1], [], []>} : vector<128x128xbf16>, vector<128x128xbf16>, vector<128x128xf32> -> vector<128x128xf32>
    %50 = arith.addf %47, %49 : vector<128x128xf32>
    %c0_37 = arith.constant 0 : index
    %c0_38 = arith.constant 0 : index
    %51 = vector.load %arg20[%c0_37, %c0_38] : memref<128x128xf32, #tpu.memory_space<vmem>>, vector<128x128xf32>
    tpu.vector_store %arg20[%c0_37, %c0_38], %50 {strides = array<i32>} : memref<128x128xf32, #tpu.memory_space<vmem>>, vector<128x128xf32>,
    %c1_i32 = arith.constant 1 : i32
    %52 = arith.cmpi eq, %arg1, %c1_i32 : i32
    %53 = arith.extui %52 : i1 to i32
    %c0_i32_39 = arith.constant 0 : i32
    %54 = arith.cmpi ne, %53, %c0_i32_39 : i32
    scf.if %54 {
      %c0_40 = arith.constant 0 : index
      %c0_41 = arith.constant 0 : index
      %55 = vector.load %arg19[%c0_40, %c0_41] : memref<128x128xf32, #tpu.memory_space<vmem>>, vector<128x128xf32>
      %c0_42 = arith.constant 0 : index
      %c0_43 = arith.constant 0 : index
      %56 = vector.load %arg17[%c0_42, %c0_43] : memref<128x1xf32, #tpu.memory_space<vmem>>, vector<128x1xf32>
      %57 = tpu.reciprocal %56 {approx = true} : vector<128x1xf32> -> vector<128x1xf32>
      %58 = vector.broadcast %57 : vector<128x1xf32> to vector<128x128xf32>
      %59 = arith.mulf %55, %58 : vector<128x128xf32>
      %c0_44 = arith.constant 0 : index
      %c0_45 = arith.constant 0 : index
      %60 = vector.load %arg20[%c0_44, %c0_45] : memref<128x128xf32, #tpu.memory_space<vmem>>, vector<128x128xf32>
      %c0_46 = arith.constant 0 : index
      %c0_47 = arith.constant 0 : index
      %61 = vector.load %arg18[%c0_46, %c0_47] : memref<128x1xf32, #tpu.memory_space<vmem>>, vector<128x1xf32>
      %cst_48 = arith.constant 1.000000e-30 : f32
      %62 = vector.broadcast %cst_48 : f32 to vector<128x1xf32>
      %63 = arith.maximumf %61, %62 : vector<128x1xf32>
      %64 = tpu.reciprocal %63 {approx = true} : vector<128x1xf32> -> vector<128x1xf32>
      %65 = vector.broadcast %64 : vector<128x1xf32> to vector<128x128xf32>
      %66 = arith.mulf %60, %65 : vector<128x128xf32>
      %cst_49 = arith.constant 5.000000e-01 : f32
      %67 = vector.broadcast %cst_49 : f32 to vector<128x128xf32>
      %68 = arith.mulf %67, %66 : vector<128x128xf32>
      %cst_50 = arith.constant 5.000000e-01 : f32
      %69 = vector.broadcast %cst_50 : f32 to vector<128x128xf32>
      %70 = arith.mulf %69, %59 : vector<128x128xf32>
      %71 = arith.addf %68, %70 : vector<128x128xf32>
      %c0_51 = arith.constant 0 : index
      %c0_52 = arith.constant 0 : index
      %72 = vector.load %arg15[%c0_51, %c0_52] : memref<128x128xf32, #tpu.memory_space<vmem>>, vector<128x128xf32>
      %73 = arith.addf %71, %72 : vector<128x128xf32>
      %cst_53 = arith.constant 0.000000e+00 : f32
      %74 = vector.broadcast %cst_53 : f32 to vector<128x128xf32>
      %75 = arith.maximumf %73, %74 : vector<128x128xf32>
      %cst_54 = arith.constant dense<0.000000e+00> : vector<128xf32>
      %76 = vector.multi_reduction <add>, %75, %cst_54 [1] : vector<128x128xf32> to vector<128xf32>
      %77 = vector.shape_cast %76 : vector<128xf32> to vector<128x1xf32>
      %cst_55 = arith.constant 1.280000e+02 : f32
      %78 = vector.broadcast %cst_55 : f32 to vector<128x1xf32>
      %79 = arith.divf %77, %78 : vector<128x1xf32>
      %80 = vector.broadcast %79 : vector<128x1xf32> to vector<128x128xf32>
      %81 = arith.subf %75, %80 : vector<128x128xf32>
      %82 = arith.mulf %81, %81 : vector<128x128xf32>
      %cst_56 = arith.constant dense<0.000000e+00> : vector<128xf32>
      %83 = vector.multi_reduction <add>, %82, %cst_56 [1] : vector<128x128xf32> to vector<128xf32>
      %84 = vector.shape_cast %83 : vector<128xf32> to vector<128x1xf32>
      %cst_57 = arith.constant 1.280000e+02 : f32
      %85 = vector.broadcast %cst_57 : f32 to vector<128x1xf32>
      %86 = arith.divf %84, %85 : vector<128x1xf32>
      %87 = vector.broadcast %79 : vector<128x1xf32> to vector<128x128xf32>
      %88 = arith.subf %75, %87 : vector<128x128xf32>
      %cst_58 = arith.constant 9.99999974E-6 : f32
      %89 = vector.broadcast %cst_58 : f32 to vector<128x1xf32>
      %90 = arith.addf %86, %89 : vector<128x1xf32>
      %91 = math.rsqrt %90 : vector<128x1xf32>
      %92 = vector.broadcast %91 : vector<128x1xf32> to vector<128x128xf32>
      %93 = arith.mulf %88, %92 : vector<128x128xf32>
      %c0_59 = arith.constant 0 : index
      %c0_60 = arith.constant 0 : index
      %94 = vector.load %arg11[%c0_59, %c0_60] : memref<1x128xf32, #tpu.memory_space<vmem>>, vector<1x128xf32>
      %95 = vector.broadcast %94 : vector<1x128xf32> to vector<128x128xf32>
      %96 = arith.mulf %93, %95 : vector<128x128xf32>
      %c0_61 = arith.constant 0 : index
      %c0_62 = arith.constant 0 : index
      %97 = vector.load %arg12[%c0_61, %c0_62] : memref<1x128xf32, #tpu.memory_space<vmem>>, vector<1x128xf32>
      %98 = vector.broadcast %97 : vector<1x128xf32> to vector<128x128xf32>
      %99 = arith.addf %96, %98 : vector<128x128xf32>
      %c0_63 = arith.constant 0 : index
      %c0_64 = arith.constant 0 : index
      %100 = vector.load %arg13[%c0_63, %c0_64] : memref<128x128xf32, #tpu.memory_space<vmem>>, vector<128x128xf32>
      tpu.vector_store %arg13[%c0_63, %c0_64], %99 {strides = array<i32>} : memref<128x128xf32, #tpu.memory_space<vmem>>, vector<128x128xf32>,
    } else {
    }
    return
  }
  func.func @transform_0(%arg0: i32, %arg1: i32) -> (i32, i32) {
    %c0_i32 = arith.constant 0 : i32
    %c0_i32_0 = arith.constant 0 : i32
    return %arg0, %c0_i32 : i32, i32
  }
  func.func @transform_1(%arg0: i32, %arg1: i32) -> (i32, i32) {
    %c0_i32 = arith.constant 0 : i32
    %c0_i32_0 = arith.constant 0 : i32
    return %c0_i32, %arg1 : i32, i32
  }
  func.func @transform_2(%arg0: i32, %arg1: i32) -> (i32, i32) {
    %c0_i32 = arith.constant 0 : i32
    %c0_i32_0 = arith.constant 0 : i32
    return %arg1, %c0_i32 : i32, i32
  }
  func.func @transform_3(%arg0: i32, %arg1: i32) -> (i32, i32) {
    %c0_i32 = arith.constant 0 : i32
    %c0_i32_0 = arith.constant 0 : i32
    return %arg1, %c0_i32 : i32, i32
  }
  func.func @transform_4(%arg0: i32, %arg1: i32) -> (i32, i32) {
    %c0_i32 = arith.constant 0 : i32
    return %arg0, %arg1 : i32, i32
  }
  func.func @transform_5(%arg0: i32, %arg1: i32) -> (i32, i32) {
    %c0_i32 = arith.constant 0 : i32
    %c0_i32_0 = arith.constant 0 : i32
    %c0_i32_1 = arith.constant 0 : i32
    return %c0_i32, %c0_i32_0 : i32, i32
  }
  func.func @transform_6(%arg0: i32, %arg1: i32) -> (i32, i32) {
    %c0_i32 = arith.constant 0 : i32
    %c0_i32_0 = arith.constant 0 : i32
    %c0_i32_1 = arith.constant 0 : i32
    return %c0_i32, %c0_i32_0 : i32, i32
  }
  func.func @transform_7(%arg0: i32, %arg1: i32) -> (i32, i32) {
    %c0_i32 = arith.constant 0 : i32
    %c0_i32_0 = arith.constant 0 : i32
    %c0_i32_1 = arith.constant 0 : i32
    return %c0_i32, %c0_i32_0 : i32, i32
  }
  func.func @transform_8(%arg0: i32, %arg1: i32) -> (i32, i32) {
    %c0_i32 = arith.constant 0 : i32
    %c0_i32_0 = arith.constant 0 : i32
    %c0_i32_1 = arith.constant 0 : i32
    return %c0_i32, %c0_i32_0 : i32, i32
  }
  func.func @transform_9(%arg0: i32, %arg1: i32) -> (i32, i32) {
    %c0_i32 = arith.constant 0 : i32
    %c0_i32_0 = arith.constant 0 : i32
    %c0_i32_1 = arith.constant 0 : i32
    return %c0_i32, %c0_i32_0 : i32, i32
  }
  func.func @transform_10(%arg0: i32, %arg1: i32) -> (i32, i32) {
    %c0_i32 = arith.constant 0 : i32
    %c0_i32_0 = arith.constant 0 : i32
    %c0_i32_1 = arith.constant 0 : i32
    return %c0_i32, %c0_i32_0 : i32, i32
  }
  func.func @transform_11(%arg0: i32, %arg1: i32) -> (i32, i32) {
    %c0_i32 = arith.constant 0 : i32
    %c0_i32_0 = arith.constant 0 : i32
    return %arg0, %c0_i32 : i32, i32
  }
}

</mosaic_0001>

<llo_original>
// kernel: boot_gcn_layer.4
$region0: #{boot_gcn_layer.4}
  #allocation0 [shape = 'u32[]', space=smem, size = 0x4, offset = 0x4, fixed_abs, tag = 'smem constant byte address 0x4 - core index']
  #allocation1 [shape = 'u32[144,128]{1,0:T(1,128)}', space=vmem, size = 0x12000, scoped, tag = 'internal scratch']
  %s0 = inlined_call_operand.vmem [shape: f32[128,128], index: 0, kind: input, shape index: {}]
  %s1 = inlined_call_operand.vmem [shape: bf16[128,256], index: 1, kind: input, shape index: {}]
  %s2 = inlined_call_operand.vmem [shape: f32[1,256], index: 2, kind: input, shape index: {}]
  %s3 = inlined_call_operand.vmem [shape: f32[1,128], index: 3, kind: input, shape index: {}]
  %s4 = inlined_call_operand.vmem [shape: bf16[128,128], index: 4, kind: output, shape index: {0}]
  %s5 = inlined_call_operand.vmem [shape: bf16[128,128], index: 5, kind: output, shape index: {1}]
  %s6 = inlined_call_operand.vmem [shape: f32[1,128], index: 6, kind: output, shape index: {2}]
  %7 = xla_tuple %s4, %s5, %s6
  %s8 = sld [smem:[#allocation0]]
  $region42: #{boot_gcn_layer.4} parent=0
    _
  %s10 = ssub.s32 1, %s8
  %s11 = scalar_select 0, %s10, %s8
  // Predicated region
  $region2: #{boot_gcn_layer.4} parent=0 // pred_check
    _
  $region3: #{boot_gcn_layer.4} parent=0 // pred_check_branch
    %13 = sbr.rel (0) target = $region5
  $region4: #{boot_gcn_layer.4} parent=0 // pred_region
    _
  $region5: #{boot_gcn_layer.4} parent=0 // pred_fallthru
    _
  // Predicated region
  $region6: #{boot_gcn_layer.4} parent=0 // pred_check
    _
  $region7: #{boot_gcn_layer.4} parent=0 // pred_check_branch
    %15 = sbr.rel (0) target = $region9
  $region8: #{boot_gcn_layer.4} parent=0 // pred_region
    _
  $region9: #{boot_gcn_layer.4} parent=0 // pred_fallthru
    _
  // Predicated region
  $region10: #{boot_gcn_layer.4} parent=0 // pred_check
    _
  $region11: #{boot_gcn_layer.4} parent=0 // pred_check_branch
    %17 = sbr.rel (0) target = $region13
  $region12: #{boot_gcn_layer.4} parent=0 // pred_region
    _
  $region13: #{boot_gcn_layer.4} parent=0 // pred_fallthru
    _
  // Predicated region
  $region14: #{boot_gcn_layer.4} parent=0 // pred_check
    _
  $region15: #{boot_gcn_layer.4} parent=0 // pred_check_branch
    %19 = sbr.rel (0) target = $region17
  $region16: #{boot_gcn_layer.4} parent=0 // pred_region
    _
  $region17: #{boot_gcn_layer.4} parent=0 // pred_fallthru
    _
  %v21 = vld [vmem:[%s0] sm:$0xff]
  %v22 = vld [vmem:[%s0 + $0x8] sm:$0xff]
  %v23 = vld [vmem:[%s0 + $0x10] sm:$0xff]
  %v24 = vld [vmem:[%s0 + $0x18] sm:$0xff]
  %v25 = vld [vmem:[%s0 + $0x20] sm:$0xff]
  %v26 = vld [vmem:[%s0 + $0x28] sm:$0xff]
  %v27 = vld [vmem:[%s0 + $0x30] sm:$0xff]
  %v28 = vld [vmem:[%s0 + $0x38] sm:$0xff]
  %v29 = vld [vmem:[%s0 + $0x40] sm:$0xff]
  %v30 = vld [vmem:[%s0 + $0x48] sm:$0xff]
  %v31 = vld [vmem:[%s0 + $0x50] sm:$0xff]
  %v32 = vld [vmem:[%s0 + $0x58] sm:$0xff]
  %v33 = vld [vmem:[%s0 + $0x60] sm:$0xff]
  %v34 = vld [vmem:[%s0 + $0x68] sm:$0xff]
  %v35 = vld [vmem:[%s0 + $0x70] sm:$0xff]
  %v36 = vld [vmem:[%s0 + $0x78] sm:$0xff]
  %v37 = vpack.c.bf16 %v22, %v21
  %v38 = vpack.c.bf16 %v24, %v23
  %v39 = vpack.c.bf16 %v26, %v25
  %v40 = vpack.c.bf16 %v28, %v27
  %v41 = vpack.c.bf16 %v30, %v29
  %v42 = vpack.c.bf16 %v32, %v31
  %v43 = vpack.c.bf16 %v34, %v33
  %v44 = vpack.c.bf16 %v36, %v35
  %v45 = vld [vmem:[%s1] sm:$0xff]
  %v46 = vld [vmem:[%s1 + $0x8] sm:$0xff]
  %v47 = vld [vmem:[%s1 + $0x10] sm:$0xff]
  %v48 = vld [vmem:[%s1 + $0x18] sm:$0xff]
  %v49 = vld [vmem:[%s1 + $0x20] sm:$0xff]
  %v50 = vld [vmem:[%s1 + $0x28] sm:$0xff]
  %v51 = vld [vmem:[%s1 + $0x30] sm:$0xff]
  %v52 = vld [vmem:[%s1 + $0x38] sm:$0xff]
  %v53 = vld [vmem:[%s1 + $0x40] sm:$0xff]
  %v54 = vld [vmem:[%s1 + $0x48] sm:$0xff]
  %v55 = vld [vmem:[%s1 + $0x50] sm:$0xff]
  %v56 = vld [vmem:[%s1 + $0x58] sm:$0xff]
  %v57 = vld [vmem:[%s1 + $0x60] sm:$0xff]
  %v58 = vld [vmem:[%s1 + $0x68] sm:$0xff]
  %v59 = vld [vmem:[%s1 + $0x70] sm:$0xff]
  %v60 = vld [vmem:[%s1 + $0x78] sm:$0xff]
  %v61 = vld [vmem:[%s2] sm:$0x3]
  %v63 = vlaneseq
  %v64 = vshrl.u32 %v63, 7
  %v65 = vsub.s32 0, %v64
  %v66 = vrot.slane %v61, %v65
  %v67 = vlaneseq
  %v68 = vshrl.u32 %v67, 7
  %v69 = vsub.s32 1, %v68
  %v70 = vrot.slane %v61, %v69
  %v89 = vunpack.c.l.b16 %v45
  %v90 = vunpack.c.h.b16 %v45
  %v91 = vunpack.c.l.b16 %v46
  %v92 = vunpack.c.h.b16 %v46
  %v93 = vunpack.c.l.b16 %v47
  %v94 = vunpack.c.h.b16 %v47
  %v95 = vunpack.c.l.b16 %v48
  %v96 = vunpack.c.h.b16 %v48
  %v97 = vunpack.c.l.b16 %v49
  %v98 = vunpack.c.h.b16 %v49
  %v99 = vunpack.c.l.b16 %v50
  %v100 = vunpack.c.h.b16 %v50
  %v101 = vunpack.c.l.b16 %v51
  %v102 = vunpack.c.h.b16 %v51
  %v103 = vunpack.c.l.b16 %v52
  %v104 = vunpack.c.h.b16 %v52
  %v105 = vunpack.c.l.b16 %v53
  %v106 = vunpack.c.h.b16 %v53
  %v107 = vunpack.c.l.b16 %v54
  %v108 = vunpack.c.h.b16 %v54
  %v109 = vunpack.c.l.b16 %v55
  %v110 = vunpack.c.h.b16 %v55
  %v111 = vunpack.c.l.b16 %v56
  %v112 = vunpack.c.h.b16 %v56
  %v113 = vunpack.c.l.b16 %v57
  %v114 = vunpack.c.h.b16 %v57
  %v115 = vunpack.c.l.b16 %v58
  %v116 = vunpack.c.h.b16 %v58
  %v117 = vunpack.c.l.b16 %v59
  %v118 = vunpack.c.h.b16 %v59
  %v119 = vunpack.c.l.b16 %v60
  %v120 = vunpack.c.h.b16 %v60
  %v121 = vpack.c.b16 %v91, %v89
  %v122 = vpack.c.b16 %v92, %v90
  %v123 = vpack.c.b16 %v95, %v93
  %v124 = vpack.c.b16 %v96, %v94
  %v125 = vpack.c.b16 %v99, %v97
  %v126 = vpack.c.b16 %v100, %v98
  %v127 = vpack.c.b16 %v103, %v101
  %v128 = vpack.c.b16 %v104, %v102
  %v129 = vpack.c.b16 %v107, %v105
  %v130 = vpack.c.b16 %v108, %v106
  %v131 = vpack.c.b16 %v111, %v109
  %v132 = vpack.c.b16 %v112, %v110
  %v133 = vpack.c.b16 %v115, %v113
  %v134 = vpack.c.b16 %v116, %v114
  %v135 = vpack.c.b16 %v119, %v117
  %v136 = vpack.c.b16 %v120, %v118
  %153 = vmatprep.subr.bf16.mxu0 %v136
  %154 = vmatpush1.bf16.msra.mxu0 %v135
  %155 = vmatprep.subr.bf16.mxu0 %v134
  %156 = vmatpush1.bf16.msra.mxu0 %v133
  %157 = vmatprep.subr.bf16.mxu0 %v132
  %158 = vmatpush1.bf16.msra.mxu0 %v131
  %159 = vmatprep.subr.bf16.mxu0 %v130
  %160 = vmatpush1.bf16.msra.mxu0 %v129
  %161 = vmatprep.subr.bf16.mxu0 %v128
  %162 = vmatpush1.bf16.msra.mxu0 %v127
  %163 = vmatprep.subr.bf16.mxu0 %v126
  %164 = vmatpush1.bf16.msra.mxu0 %v125
  %165 = vmatprep.subr.bf16.mxu0 %v124
  %166 = vmatpush1.bf16.msra.mxu0 %v123
  %167 = vmatprep.subr.bf16.mxu0 %v122
  %168 = vmatpush1.bf16.msra.mxu0 %v121
  %169 = vmatprep.subr.bf16.mxu0 0
  %170 = vmatpush2.bf16.msra.mxu0 0
  %171 = vmatprep.subr.bf16.mxu0 0
  %172 = vmatpush2.bf16.msra.mxu0 0
  %173 = vmatprep.subr.bf16.mxu0 0
  %174 = vmatpush2.bf16.msra.mxu0 0
  %175 = vmatprep.subr.bf16.mxu0 0
  %176 = vmatpush2.bf16.msra.mxu0 0
  %177 = vmatprep.subr.bf16.mxu0 0
  %178 = vmatpush2.bf16.msra.mxu0 0
  %179 = vmatprep.subr.bf16.mxu0 0
  %180 = vmatpush2.bf16.msra.mxu0 0
  %181 = vmatprep.subr.bf16.mxu0 0
  %182 = vmatpush2.bf16.msra.mxu0 0
  %183 = vmatprep.subr.bf16.mxu0 0
  %184 = vmatpush2.bf16.msra.mxu0 0
  %185 = vmatprep.mubr.bf16.mxu0 0
  %186 = vmatmul.mubr.bf16.gmra.mxu0 %v37
  %v187 = vpop.f32.mrf.mxu0
  %v188 = vadd.f32 %v66, %v187
  %v189 = vpop.f32.mrf.mxu0
  %v190 = vadd.f32 %v70, %v189
  %v191 = vpop.f32.mrf.mxu0
  %v192 = vadd.f32 %v66, %v191
  %v193 = vpop.f32.mrf.mxu0
  %v194 = vadd.f32 %v70, %v193
  %195 = vmatprep.mubr.bf16.mxu0 0
  %196 = vmatmul.mubr.bf16.gmra.mxu0 %v38
  %v197 = vpop.f32.mrf.mxu0
  %v198 = vadd.f32 %v66, %v197
  %v199 = vpop.f32.mrf.mxu0
  %v200 = vadd.f32 %v70, %v199
  %v201 = vpop.f32.mrf.mxu0
  %v202 = vadd.f32 %v66, %v201
  %v203 = vpop.f32.mrf.mxu0
  %v204 = vadd.f32 %v70, %v203
  %205 = vmatprep.mubr.bf16.mxu0 0
  %206 = vmatmul.mubr.bf16.gmra.mxu0 %v39
  %v207 = vpop.f32.mrf.mxu0
  %v208 = vadd.f32 %v66, %v207
  %v209 = vpop.f32.mrf.mxu0
  %v210 = vadd.f32 %v70, %v209
  %v211 = vpop.f32.mrf.mxu0
  %v212 = vadd.f32 %v66, %v211
  %v213 = vpop.f32.mrf.mxu0
  %v214 = vadd.f32 %v70, %v213
  %215 = vmatprep.mubr.bf16.mxu0 0
  %216 = vmatmul.mubr.bf16.gmra.mxu0 %v40
  %v217 = vpop.f32.mrf.mxu0
  %v218 = vadd.f32 %v66, %v217
  %v219 = vpop.f32.mrf.mxu0
  %v220 = vadd.f32 %v70, %v219
  %v221 = vpop.f32.mrf.mxu0
  %v222 = vadd.f32 %v66, %v221
  %v223 = vpop.f32.mrf.mxu0
  %v224 = vadd.f32 %v70, %v223
  %225 = vmatprep.mubr.bf16.mxu0 0
  %226 = vmatmul.mubr.bf16.gmra.mxu0 %v41
  %v227 = vpop.f32.mrf.mxu0
  %v228 = vadd.f32 %v66, %v227
  %v229 = vpop.f32.mrf.mxu0
  %v230 = vadd.f32 %v70, %v229
  %v231 = vpop.f32.mrf.mxu0
  %v232 = vadd.f32 %v66, %v231
  %v233 = vpop.f32.mrf.mxu0
  %v234 = vadd.f32 %v70, %v233
  %235 = vmatprep.mubr.bf16.mxu0 0
  %236 = vmatmul.mubr.bf16.gmra.mxu0 %v42
  %v237 = vpop.f32.mrf.mxu0
  %v238 = vadd.f32 %v66, %v237
  %v239 = vpop.f32.mrf.mxu0
  %v240 = vadd.f32 %v70, %v239
  %v241 = vpop.f32.mrf.mxu0
  %v242 = vadd.f32 %v66, %v241
  %v243 = vpop.f32.mrf.mxu0
  %v244 = vadd.f32 %v70, %v243
  %245 = vmatprep.mubr.bf16.mxu0 0
  %246 = vmatmul.mubr.bf16.gmra.mxu0 %v43
  %v247 = vpop.f32.mrf.mxu0
  %v248 = vadd.f32 %v66, %v247
  %v249 = vpop.f32.mrf.mxu0
  %v250 = vadd.f32 %v70, %v249
  %v251 = vpop.f32.mrf.mxu0
  %v252 = vadd.f32 %v66, %v251
  %v253 = vpop.f32.mrf.mxu0
  %v254 = vadd.f32 %v70, %v253
  %255 = vmatprep.mubr.bf16.mxu0 0
  %256 = vmatmul.mubr.bf16.gmra.mxu0 %v44
  %v257 = vpop.f32.mrf.mxu0
  %v258 = vadd.f32 %v66, %v257
  %v259 = vpop.f32.mrf.mxu0
  %v260 = vadd.f32 %v70, %v259
  %v261 = vpop.f32.mrf.mxu0
  %v262 = vadd.f32 %v66, %v261
  %v263 = vpop.f32.mrf.mxu0
  %v264 = vadd.f32 %v70, %v263
  %265 = vdwg.mxu0
  %v266 = vpack.c.bf16 %v192, %v188
  %v267 = vpack.c.bf16 %v202, %v198
  %v268 = vpack.c.bf16 %v212, %v208
  %v269 = vpack.c.bf16 %v222, %v218
  %v270 = vpack.c.bf16 %v232, %v228
  %v271 = vpack.c.bf16 %v242, %v238
  %v272 = vpack.c.bf16 %v252, %v248
  %v273 = vpack.c.bf16 %v262, %v258
  %v282 = vunpack.c.l.b16 %v266
  %v283 = vunpack.c.h.b16 %v266
  %v284 = vunpack.c.l.b16 %v267
  %v285 = vunpack.c.h.b16 %v267
  %v286 = vunpack.c.l.b16 %v268
  %v287 = vunpack.c.h.b16 %v268
  %v288 = vunpack.c.l.b16 %v269
  %v289 = vunpack.c.h.b16 %v269
  %v290 = vunpack.c.l.b16 %v270
  %v291 = vunpack.c.h.b16 %v270
  %v292 = vunpack.c.l.b16 %v271
  %v293 = vunpack.c.h.b16 %v271
  %v294 = vunpack.c.l.b16 %v272
  %v295 = vunpack.c.h.b16 %v272
  %v296 = vunpack.c.l.b16 %v273
  %v297 = vunpack.c.h.b16 %v273
  %v298 = vpack.c.b16 %v282, %v282
  %v299 = vpack.c.b16 %v283, %v283
  %v300 = vpack.c.b16 %v284, %v284
  %v301 = vpack.c.b16 %v285, %v285
  %v302 = vpack.c.b16 %v286, %v286
  %v303 = vpack.c.b16 %v287, %v287
  %v304 = vpack.c.b16 %v288, %v288
  %v305 = vpack.c.b16 %v289, %v289
  %v306 = vpack.c.b16 %v290, %v290
  %v307 = vpack.c.b16 %v291, %v291
  %v308 = vpack.c.b16 %v292, %v292
  %v309 = vpack.c.b16 %v293, %v293
  %v310 = vpack.c.b16 %v294, %v294
  %v311 = vpack.c.b16 %v295, %v295
  %v312 = vpack.c.b16 %v296, %v296
  %v313 = vpack.c.b16 %v297, %v297
  %330 = vst [vmem:[%s4] sm:$0xf] %v298
  %331 = vst [vmem:[%s4 + $0x4] sm:$0xf] %v299
  %332 = vst [vmem:[%s4 + $0x8] sm:$0xf] %v300
  %333 = vst [vmem:[%s4 + $0xc] sm:$0xf] %v301
  %334 = vst [vmem:[%s4 + $0x10] sm:$0xf] %v302
  %335 = vst [vmem:[%s4 + $0x14] sm:$0xf] %v303
  %336 = vst [vmem:[%s4 + $0x18] sm:$0xf] %v304
  %337 = vst [vmem:[%s4 + $0x1c] sm:$0xf] %v305
  %338 = vst [vmem:[%s4 + $0x20] sm:$0xf] %v306
  %339 = vst [vmem:[%s4 + $0x24] sm:$0xf] %v307
  %340 = vst [vmem:[%s4 + $0x28] sm:$0xf] %v308
  %341 = vst [vmem:[%s4 + $0x2c] sm:$0xf] %v309
  %342 = vst [vmem:[%s4 + $0x30] sm:$0xf] %v310
  %343 = vst [vmem:[%s4 + $0x34] sm:$0xf] %v311
  %344 = vst [vmem:[%s4 + $0x38] sm:$0xf] %v312
  %345 = vst [vmem:[%s4 + $0x3c] sm:$0xf] %v313
  %v346 = vpack.c.bf16 %v194, %v190
  %v347 = vpack.c.bf16 %v204, %v200
  %v348 = vpack.c.bf16 %v214, %v210
  %v349 = vpack.c.bf16 %v224, %v220
  %v350 = vpack.c.bf16 %v234, %v230
  %v351 = vpack.c.bf16 %v244, %v240
  %v352 = vpack.c.bf16 %v254, %v250
  %v353 = vpack.c.bf16 %v264, %v260
  %v362 = vunpack.c.l.b16 %v346
  %v363 = vunpack.c.h.b16 %v346
  %v364 = vunpack.c.l.b16 %v347
  %v365 = vunpack.c.h.b16 %v347
  %v366 = vunpack.c.l.b16 %v348
  %v367 = vunpack.c.h.b16 %v348
  %v368 = vunpack.c.l.b16 %v349
  %v369 = vunpack.c.h.b16 %v349
  %v370 = vunpack.c.l.b16 %v350
  %v371 = vunpack.c.h.b16 %v350
  %v372 = vunpack.c.l.b16 %v351
  %v373 = vunpack.c.h.b16 %v351
  %v374 = vunpack.c.l.b16 %v352
  %v375 = vunpack.c.h.b16 %v352
  %v376 = vunpack.c.l.b16 %v353
  %v377 = vunpack.c.h.b16 %v353
  %v378 = vpack.c.b16 %v362, %v362
  %v379 = vpack.c.b16 %v363, %v363
  %v380 = vpack.c.b16 %v364, %v364
  %v381 = vpack.c.b16 %v365, %v365
  %v382 = vpack.c.b16 %v366, %v366
  %v383 = vpack.c.b16 %v367, %v367
  %v384 = vpack.c.b16 %v368, %v368
  %v385 = vpack.c.b16 %v369, %v369
  %v386 = vpack.c.b16 %v370, %v370
  %v387 = vpack.c.b16 %v371, %v371
  %v388 = vpack.c.b16 %v372, %v372
  %v389 = vpack.c.b16 %v373, %v373
  %v390 = vpack.c.b16 %v374, %v374
  %v391 = vpack.c.b16 %v375, %v375
  %v392 = vpack.c.b16 %v376, %v376
  %v393 = vpack.c.b16 %v377, %v377
  %410 = vst [vmem:[%s5] sm:$0xf] %v378
  %411 = vst [vmem:[%s5 + $0x4] sm:$0xf] %v379
  %412 = vst [vmem:[%s5 + $0x8] sm:$0xf] %v380
  %413 = vst [vmem:[%s5 + $0xc] sm:$0xf] %v381
  %414 = vst [vmem:[%s5 + $0x10] sm:$0xf] %v382
  %415 = vst [vmem:[%s5 + $0x14] sm:$0xf] %v383
  %416 = vst [vmem:[%s5 + $0x18] sm:$0xf] %v384
  %417 = vst [vmem:[%s5 + $0x1c] sm:$0xf] %v385
  %418 = vst [vmem:[%s5 + $0x20] sm:$0xf] %v386
  %419 = vst [vmem:[%s5 + $0x24] sm:$0xf] %v387
  %420 = vst [vmem:[%s5 + $0x28] sm:$0xf] %v388
  %421 = vst [vmem:[%s5 + $0x2c] sm:$0xf] %v389
  %422 = vst [vmem:[%s5 + $0x30] sm:$0xf] %v390
  %423 = vst [vmem:[%s5 + $0x34] sm:$0xf] %v391
  %424 = vst [vmem:[%s5 + $0x38] sm:$0xf] %v392
  %425 = vst [vmem:[%s5 + $0x3c] sm:$0xf] %v393
  %v426 = vld [vmem:[%s3] sm:$0x1]
  %427 = vmatprep.subr.mxu0 0.0
  %428 = vmatpush1.xpose.msra.mxu0 %v262
  %429 = vmatprep.subr.mxu0 0.0
  %430 = vmatpush1.xpose.msra.mxu0 %v258
  %431 = vmatprep.subr.mxu0 0.0
  %432 = vmatpush1.xpose.msra.mxu0 %v252
  %433 = vmatprep.subr.mxu0 0.0
  %434 = vmatpush1.xpose.msra.mxu0 %v248
  %435 = vmatprep.subr.mxu0 0.0
  %436 = vmatpush1.xpose.msra.mxu0 %v242
  %437 = vmatprep.subr.mxu0 0.0
  %438 = vmatpush1.xpose.msra.mxu0 %v238
  %439 = vmatprep.subr.mxu0 0.0
  %440 = vmatpush1.xpose.msra.mxu0 %v232
  %441 = vmatprep.subr.mxu0 0.0
  %442 = vmatpush1.xpose.msra.mxu0 %v228
  %443 = vmatprep.subr.mxu0 0.0
  %444 = vmatpush1.xpose.msra.mxu0 %v222
  %445 = vmatprep.subr.mxu0 0.0
  %446 = vmatpush1.xpose.msra.mxu0 %v218
  %447 = vmatprep.subr.mxu0 0.0
  %448 = vmatpush1.xpose.msra.mxu0 %v212
  %449 = vmatprep.subr.mxu0 0.0
  %450 = vmatpush1.xpose.msra.mxu0 %v208
  %451 = vmatprep.subr.mxu0 0.0
  %452 = vmatpush1.xpose.msra.mxu0 %v202
  %453 = vmatprep.subr.mxu0 0.0
  %454 = vmatpush1.xpose.msra.mxu0 %v198
  %455 = vmatprep.subr.mxu0 0.0
  %456 = vmatpush1.xpose.msra.mxu0 %v192
  %457 = vmatprep.subr.mxu0 0.0
  %458 = vmatpush1.xpose.msra.mxu0 %v188
  %459 = vmatprep.subr.mxu0 0.0
  %460 = vmatpush2.xpose.msra.mxu0 0.0
  %461 = vmatprep.subr.mxu0 0.0
  %462 = vmatpush2.xpose.msra.mxu0 0.0
  %463 = vmatprep.subr.mxu0 0.0
  %464 = vmatpush2.xpose.msra.mxu0 0.0
  %465 = vmatprep.subr.mxu0 0.0
  %466 = vmatpush2.xpose.msra.mxu0 0.0
  %467 = vmatprep.subr.mxu0 0.0
  %468 = vmatpush2.xpose.msra.mxu0 0.0
  %469 = vmatprep.subr.mxu0 0.0
  %470 = vmatpush2.xpose.msra.mxu0 0.0
  %471 = vmatprep.subr.mxu0 0.0
  %472 = vmatpush2.xpose.msra.mxu0 0.0
  %473 = vmatprep.subr.mxu0 0.0
  %474 = vmatpush2.xpose.msra.mxu0 0.0
  %475 = vmatprep.subr.mxu0 0.0
  %476 = vmatpush2.xpose.msra.mxu0 0.0
  %477 = vmatprep.subr.mxu0 0.0
  %478 = vmatpush2.xpose.msra.mxu0 0.0
  %479 = vmatprep.subr.mxu0 0.0
  %480 = vmatpush2.xpose.msra.mxu0 0.0
  %481 = vmatprep.subr.mxu0 0.0
  %482 = vmatpush2.xpose.msra.mxu0 0.0
  %483 = vmatprep.subr.mxu0 0.0
  %484 = vmatpush2.xpose.msra.mxu0 0.0
  %485 = vmatprep.subr.mxu0 0.0
  %486 = vmatpush2.xpose.msra.mxu0 0.0
  %487 = vmatprep.subr.mxu0 0.0
  %488 = vmatpush2.xpose.msra.mxu0 0.0
  %489 = vmatprep.subr.mxu0 0.0
  %490 = vmatpush2.xpose.msra.mxu0 0.0
  %491 = vmatprep.mubr.f32.mxu0 0.0
  %492 = vmatmul.mubr.f32.gmra.mxu0 %v426
  %v493 = vpop.f32.mrf.mxu0
  %v494 = vadd.f32 0.0, %v493
  %v495 = vpop.f32.mrf.mxu0
  %496 = vdwg.mxu0
  %497 = vst [vmem:[%s6] sm:$0x1] %v494
  // Predicated region
  $region18: #{boot_gcn_layer.4} parent=0 // pred_check
    _
  $region19: #{boot_gcn_layer.4} parent=0 // pred_check_branch
    %499 = sbr.rel (0) target = $region21
  $region20: #{boot_gcn_layer.4} parent=0 // pred_region
    _
  $region21: #{boot_gcn_layer.4} parent=0 // pred_fallthru
    _
  // Predicated region
  $region22: #{boot_gcn_layer.4} parent=0 // pred_check
    _
  $region23: #{boot_gcn_layer.4} parent=0 // pred_check_branch
    %501 = sbr.rel (0) target = $region25
  $region24: #{boot_gcn_layer.4} parent=0 // pred_region
    _
  $region25: #{boot_gcn_layer.4} parent=0 // pred_fallthru
    _
  // Predicated region
  $region26: #{boot_gcn_layer.4} parent=0 // pred_check
    _
  $region27: #{boot_gcn_layer.4} parent=0 // pred_check_branch
    %503 = sbr.rel (0) target = $region29
  $region28: #{boot_gcn_layer.4} parent=0 // pred_region
    _
  $region29: #{boot_gcn_layer.4} parent=0 // pred_fallthru
    _
  // Predicated region
  $region30: #{boot_gcn_layer.4} parent=0 // pred_check
    _
  $region31: #{boot_gcn_layer.4} parent=0 // pred_check_branch
    %505 = sbr.rel (0) target = $region33
  $region32: #{boot_gcn_layer.4} parent=0 // pred_region
    _
  $region33: #{boot_gcn_layer.4} parent=0 // pred_fallthru
    _
  // Predicated region
  $region34: #{boot_gcn_layer.4} parent=0 // pred_check
    _
  $region35: #{boot_gcn_layer.4} parent=0 // pred_check_branch
    %507 = sbr.rel (0) target = $region37
  $region36: #{boot_gcn_layer.4} parent=0 // pred_region
    _
  $region37: #{boot_gcn_layer.4} parent=0 // pred_fallthru
    _
  // Predicated region
  $region38: #{boot_gcn_layer.4} parent=0 // pred_check
    _
  $region39: #{boot_gcn_layer.4} parent=0 // pred_check_branch
    %509 = sbr.rel (0) target = $region41
  $region40: #{boot_gcn_layer.4} parent=0 // pred_region
    _
  $region41: #{boot_gcn_layer.4} parent=0 // pred_fallthru
    _

// kernel: boot_gcn_layer.6
$region0: #{boot_gcn_layer.6}
  #allocation0 [shape = 'u32[]', space=smem, size = 0x4, offset = 0x4, fixed_abs, tag = 'smem constant byte address 0x4 - core index']
  #allocation1 [shape = 'u32[144,128]{1,0:T(1,128)}', space=vmem, size = 0x12000, scoped, tag = 'internal scratch']
  %s0 = inlined_call_operand.vmem [shape: f32[256,128], index: 0, kind: input, shape index: {}]
  %s1 = inlined_call_operand.vmem [shape: bf16[128,256], index: 1, kind: input, shape index: {}]
  %s2 = inlined_call_operand.vmem [shape: f32[1,256], index: 2, kind: input, shape index: {}]
  %s3 = inlined_call_operand.vmem [shape: f32[1,128], index: 3, kind: input, shape index: {}]
  %s4 = inlined_call_operand.vmem [shape: bf16[256,128], index: 4, kind: output, shape index: {0}]
  %s5 = inlined_call_operand.vmem [shape: bf16[256,128], index: 5, kind: output, shape index: {1}]
  %s6 = inlined_call_operand.vmem [shape: f32[1,256], index: 6, kind: output, shape index: {2}]
  %7 = xla_tuple %s4, %s5, %s6
  %s8 = sld [smem:[#allocation0]]
  $region65: #{boot_gcn_layer.6} parent=0
    _
  %s10 = ssub.s32 1, %s8
  %s11 = scalar_select 0, %s10, %s8
  loop: start=0, step=1, limit=4
  $region2: #{boot_gcn_layer.6} parent=0 // loop_pre_header
    _
  $region3: #{boot_gcn_layer.6} parent=0 // loop_header
    %s13 = sphi 0, %s17
    %p14 = scmp.ge.s32.totalorder %s13, 4
    %s23 = sphi 0, %s25
    %s26 = sphi 0, %s23
    %s27 = sphi 0, %s26
    %s43 = sphi 0, %s27
    %s47 = sphi 0, %s47
    %s49 = sphi 0, %s47
    %s50 = sphi 0, %s49
    %s64 = sphi 0, %s50
    %s68 = sphi 0, %s68
    %s70 = sphi 0, %s68
    %s71 = sphi 0, %s70
    %s85 = sphi 0, %s71
    %s89 = sphi 0, %s89
    %s91 = sphi 0, %s89
    %s92 = sphi 0, %s91
    %s106 = sphi 0, %s92
    %s112 = sphi 0, %s114
    %s115 = sphi 0, %s112
    %s116 = sphi 0, %s115
    %s132 = sphi 0, %s116
    %s138 = sphi 0, %s140
    %s141 = sphi 0, %s138
    %s142 = sphi 0, %s141
    %s158 = sphi 0, %s142
    %s164 = sphi 0, %s166
    %s167 = sphi 0, %s164
    %s168 = sphi 0, %s167
    %s184 = sphi 0, %s168
  $region4: #{boot_gcn_layer.6} parent=0 // loop_header_branch
    %16 = sbr.rel (%p14) target = $region8
  $region5: #{boot_gcn_layer.6} parent=0 // loop_body
    %s18 = ssub.s32 %s13, 1
    %s19 = ssub.s32 %s13, 2
    %s20 = sadd.s32 %s13, 1
    %s21 = ssub.s32 %s13, %s20
    %p22 = scmp.eq.s32.totalorder %s21, 0
    %s24 = sadd.s32 %s23, 1
    %s25 = scalar_select %p22, %s23, %s24
    %p28 = pneg %p22
    %p29 = scmp.eq.s32.totalorder %s13, 1
    %p30 = por %p28, %p29
    %p31 = scmp.ne.s32.totalorder %s23, %s26
    %p32 = scmp.eq.s32.totalorder %s13, 0
    %p33 = por %p31, %p32
    %p34 = scmp.ne.s32.totalorder %s23, %s26
    %p35 = scmp.eq.s32.totalorder %s18, 1
    %p36 = por %p34, %p35
    %p37 = scmp.ne.s32.totalorder %s26, %s27
    %p38 = scmp.eq.s32.totalorder %s18, 0
    %p39 = por %p37, %p38
    %p40 = scmp.ne.s32.totalorder %s26, %s27
    %p41 = scmp.eq.s32.totalorder %s19, 1
    %p42 = por %p40, %p41
    %p44 = scmp.ne.s32.totalorder %s27, %s43
    %p45 = scmp.eq.s32.totalorder %s19, 0
    %p46 = por %p44, %p45
    %s48 = sadd.s32 %s47, 1
    %p51 = scmp.eq.s32.totalorder %s13, 1
    %p52 = scmp.ne.s32.totalorder %s47, %s49
    %p53 = scmp.eq.s32.totalorder %s13, 0
    %p54 = por %p52, %p53
    %p55 = scmp.ne.s32.totalorder %s47, %s49
    %p56 = scmp.eq.s32.totalorder %s18, 1
    %p57 = por %p55, %p56
    %p58 = scmp.ne.s32.totalorder %s49, %s50
    %p59 = scmp.eq.s32.totalorder %s18, 0
    %p60 = por %p58, %p59
    %p61 = scmp.ne.s32.totalorder %s49, %s50
    %p62 = scmp.eq.s32.totalorder %s19, 1
    %p63 = por %p61, %p62
    %p65 = scmp.ne.s32.totalorder %s50, %s64
    %p66 = scmp.eq.s32.totalorder %s19, 0
    %p67 = por %p65, %p66
    %s69 = sadd.s32 %s68, 1
    %p72 = scmp.eq.s32.totalorder %s13, 1
    %p73 = scmp.ne.s32.totalorder %s68, %s70
    %p74 = scmp.eq.s32.totalorder %s13, 0
    %p75 = por %p73, %p74
    %p76 = scmp.ne.s32.totalorder %s68, %s70
    %p77 = scmp.eq.s32.totalorder %s18, 1
    %p78 = por %p76, %p77
    %p79 = scmp.ne.s32.totalorder %s70, %s71
    %p80 = scmp.eq.s32.totalorder %s18, 0
    %p81 = por %p79, %p80
    %p82 = scmp.ne.s32.totalorder %s70, %s71
    %p83 = scmp.eq.s32.totalorder %s19, 1
    %p84 = por %p82, %p83
    %p86 = scmp.ne.s32.totalorder %s71, %s85
    %p87 = scmp.eq.s32.totalorder %s19, 0
    %p88 = por %p86, %p87
    %s90 = sadd.s32 %s89, 1
    %p93 = scmp.eq.s32.totalorder %s13, 1
    %p94 = scmp.ne.s32.totalorder %s89, %s91
    %p95 = scmp.eq.s32.totalorder %s13, 0
    %p96 = por %p94, %p95
    %p97 = scmp.ne.s32.totalorder %s89, %s91
    %p98 = scmp.eq.s32.totalorder %s18, 1
    %p99 = por %p97, %p98
    %p100 = scmp.ne.s32.totalorder %s91, %s92
    %p101 = scmp.eq.s32.totalorder %s18, 0
    %p102 = por %p100, %p101
    %p103 = scmp.ne.s32.totalorder %s91, %s92
    %p104 = scmp.eq.s32.totalorder %s19, 1
    %p105 = por %p103, %p104
    %p107 = scmp.ne.s32.totalorder %s92, %s106
    %p108 = scmp.eq.s32.totalorder %s19, 0
    %p109 = por %p107, %p108
    %s110 = ssub.s32 %s13, %s20
    %p111 = scmp.eq.s32.totalorder %s110, 0
    %s113 = sadd.s32 %s112, 1
    %s114 = scalar_select %p111, %s112, %s113
    %p117 = pneg %p111
    %p118 = scmp.eq.s32.totalorder %s13, 1
    %p119 = por %p117, %p118
    %p120 = scmp.ne.s32.totalorder %s112, %s115
    %p121 = scmp.eq.s32.totalorder %s13, 0
    %p122 = por %p120, %p121
    %p123 = scmp.ne.s32.totalorder %s112, %s115
    %p124 = scmp.eq.s32.totalorder %s18, 1
    %p125 = por %p123, %p124
    %p126 = scmp.ne.s32.totalorder %s115, %s116
    %p127 = scmp.eq.s32.totalorder %s18, 0
    %p128 = por %p126, %p127
    %p129 = scmp.ne.s32.totalorder %s115, %s116
    %p130 = scmp.eq.s32.totalorder %s19, 1
    %p131 = por %p129, %p130
    %p133 = scmp.ne.s32.totalorder %s116, %s132
    %p134 = scmp.eq.s32.totalorder %s19, 0
    %p135 = por %p133, %p134
    %s136 = ssub.s32 %s13, %s20
    %p137 = scmp.eq.s32.totalorder %s136, 0
    %s139 = sadd.s32 %s138, 1
    %s140 = scalar_select %p137, %s138, %s139
    %p143 = pneg %p137
    %p144 = scmp.eq.s32.totalorder %s13, 1
    %p145 = por %p143, %p144
    %p146 = scmp.ne.s32.totalorder %s138, %s141
    %p147 = scmp.eq.s32.totalorder %s13, 0
    %p148 = por %p146, %p147
    %p149 = scmp.ne.s32.totalorder %s138, %s141
    %p150 = scmp.eq.s32.totalorder %s18, 1
    %p151 = por %p149, %p150
    %p152 = scmp.ne.s32.totalorder %s141, %s142
    %p153 = scmp.eq.s32.totalorder %s18, 0
    %p154 = por %p152, %p153
    %p155 = scmp.ne.s32.totalorder %s141, %s142
    %p156 = scmp.eq.s32.totalorder %s19, 1
    %p157 = por %p155, %p156
    %p159 = scmp.ne.s32.totalorder %s142, %s158
    %p160 = scmp.eq.s32.totalorder %s19, 0
    %p161 = por %p159, %p160
    %s162 = ssub.s32 %s13, %s20
    %p163 = scmp.eq.s32.totalorder %s162, 0
    %s165 = sadd.s32 %s164, 1
    %s166 = scalar_select %p163, %s164, %s165
    %p169 = pneg %p163
    %p170 = scmp.eq.s32.totalorder %s13, 1
    %p171 = por %p169, %p170
    %p172 = scmp.ne.s32.totalorder %s164, %s167
    %p173 = scmp.eq.s32.totalorder %s13, 0
    %p174 = por %p172, %p173
    %p175 = scmp.ne.s32.totalorder %s164, %s167
    %p176 = scmp.eq.s32.totalorder %s18, 1
    %p177 = por %p175, %p176
    %p178 = scmp.ne.s32.totalorder %s167, %s168
    %p179 = scmp.eq.s32.totalorder %s18, 0
    %p180 = por %p178, %p179
    %p181 = scmp.ne.s32.totalorder %s167, %s168
    %p182 = scmp.eq.s32.totalorder %s19, 1
    %p183 = por %p181, %p182
    %p185 = scmp.ne.s32.totalorder %s168, %s184
    %p186 = scmp.eq.s32.totalorder %s19, 0
    %p187 = por %p185, %p186
    %p188 = scmp.le.s32.totalorder 1, %s13
    %p189 = scmp.lt.s32.totalorder %s13, 3
    %p190 = pnand %p188, %p189
    %p191 = pneg %p190
    // Predicated region
    $region9: #{boot_gcn_layer.6} parent=5 // pred_check
      _
    $region10: #{boot_gcn_layer.6} parent=5 // pred_check_branch
      %193 = sbr.rel (%p190) target = $region12
    $region11: #{boot_gcn_layer.6} parent=5 // pred_region
      %s194 = ssub.s32 %s13, 1
      // Predicated region
      $region13: #{boot_gcn_layer.6} parent=11 // pred_check
        %p195 = pneg %p60
      $region14: #{boot_gcn_layer.6} parent=11 // pred_check_branch
        %197 = sbr.rel (%p195) target = $region16
      $region15: #{boot_gcn_layer.6} parent=11 // pred_region
        _
      $region16: #{boot_gcn_layer.6} parent=11 // pred_fallthru
        _
      // Predicated region
      $region17: #{boot_gcn_layer.6} parent=11 // pred_check
        %p198 = pneg %p81
      $region18: #{boot_gcn_layer.6} parent=11 // pred_check_branch
        %200 = sbr.rel (%p198) target = $region20
      $region19: #{boot_gcn_layer.6} parent=11 // pred_region
        _
      $region20: #{boot_gcn_layer.6} parent=11 // pred_fallthru
        _
      // Predicated region
      $region21: #{boot_gcn_layer.6} parent=11 // pred_check
        %p201 = pneg %p102
      $region22: #{boot_gcn_layer.6} parent=11 // pred_check_branch
        %203 = sbr.rel (%p201) target = $region24
      $region23: #{boot_gcn_layer.6} parent=11 // pred_region
        _
      $region24: #{boot_gcn_layer.6} parent=11 // pred_fallthru
        _
    $region12: #{boot_gcn_layer.6} parent=5 // pred_fallthru
      _
    %p204 = scmp.lt.s32.totalorder %s13, 2
    // Predicated region
    $region25: #{boot_gcn_layer.6} parent=5 // pred_check
      %p205 = pneg %p204
    $region26: #{boot_gcn_layer.6} parent=5 // pred_check_branch
      %207 = sbr.rel (%p205) target = $region28
    $region27: #{boot_gcn_layer.6} parent=5 // pred_region
      // Predicated region
      $region29: #{boot_gcn_layer.6} parent=27 // pred_check
        %p208 = pneg %p33
      $region30: #{boot_gcn_layer.6} parent=27 // pred_check_branch
        %210 = sbr.rel (%p208) target = $region32
      $region31: #{boot_gcn_layer.6} parent=27 // pred_region
        %s211 = smul.u32 16, %s13
        %p212 = scmp.lt.s32.totalorder %s211, 31
        %s213 = scalar_select %p212, %s211, 31
        %s214 = smul.addr %s213, 8
        %s215 = scalar_lea.vmem %s0, %s214
        %s216 = smul.u32 16, %s13
      $region32: #{boot_gcn_layer.6} parent=27 // pred_fallthru
        _
    $region28: #{boot_gcn_layer.6} parent=5 // pred_fallthru
      _
    %p217 = scmp.le.s32.totalorder 1, %s13
    %p218 = scmp.lt.s32.totalorder %s13, 3
    %p219 = pnand %p217, %p218
    %p220 = pneg %p219
    // Predicated region
    $region33: #{boot_gcn_layer.6} parent=5 // pred_check
      _
    $region34: #{boot_gcn_layer.6} parent=5 // pred_check_branch
      %222 = sbr.rel (%p219) target = $region36
    $region35: #{boot_gcn_layer.6} parent=5 // pred_region
      %s223 = ssub.s32 %s13, 1
      %s224 = smul.u32 16, %s18
      %p225 = scmp.lt.s32.totalorder %s224, 31
      %s226 = scalar_select %p225, %s224, 31
      %s227 = smul.addr %s226, 8
      %s228 = scalar_lea.vmem %s0, %s227
      %p229 = pneg %p39
      %p230 = pneg %p36
      %p231 = pneg %p60
      %p232 = pneg %p57
      %p233 = pneg %p81
      %p234 = pneg %p78
      %p235 = pneg %p102
      %p236 = pneg %p99
      %p237 = pneg %p128
      %p238 = pneg %p125
      %s239 = smul.u32 16, %s18
      %p240 = scmp.lt.s32.totalorder %s239, 31
      %s241 = scalar_select %p240, %s239, 31
      %s242 = smul.addr %s241, 4
      %s243 = scalar_lea.vmem %s4, %s242
      %p244 = pneg %p154
      %p245 = pneg %p151
      %s246 = smul.u32 16, %s18
      %p247 = scmp.lt.s32.totalorder %s246, 31
      %s248 = scalar_select %p247, %s246, 31
      %s249 = smul.addr %s248, 4
      %s250 = scalar_lea.vmem %s5, %s249
      %p251 = pneg %p180
      %p252 = pneg %p177
      %p253 = scmp.lt.s32.totalorder %s18, 1
      %s254 = scalar_select %p253, %s18, 1
      %s255 = scalar_lea.vmem %s6, %s254
      %s256 = smul.u32 16, %s18
      %p257 = scmp.lt.s32.totalorder %s256, 31
      %s258 = scalar_select %p257, %s256, 31
      %s259 = smul.addr %s258, 8
      %s260 = scalar_lea.vmem %s0, %s259
      %s261 = smul.u32 16, %s18
      %s262 = smul.u32 16, %s18
      %p263 = scmp.lt.s32.totalorder %s262, 31
      %s264 = scalar_select %p263, %s262, 31
      %s265 = smul.addr %s264, 4
      %s266 = scalar_lea.vmem %s4, %s265
      %s267 = smul.u32 16, %s18
      %s268 = smul.u32 16, %s18
      %p269 = scmp.lt.s32.totalorder %s268, 31
      %s270 = scalar_select %p269, %s268, 31
      %s271 = smul.addr %s270, 4
      %s272 = scalar_lea.vmem %s5, %s271
      %s273 = smul.u32 16, %s18
      %p274 = scmp.lt.s32.totalorder %s18, 1
      %s275 = scalar_select %p274, %s18, 1
      %s276 = scalar_lea.vmem %s6, %s275
      %v278 = vld [vmem:[%s260] sm:$0xff]
      %v279 = vld [vmem:[%s260 + $0x8] sm:$0xff]
      %v280 = vld [vmem:[%s260 + $0x10] sm:$0xff]
      %v281 = vld [vmem:[%s260 + $0x18] sm:$0xff]
      %v282 = vld [vmem:[%s260 + $0x20] sm:$0xff]
      %v283 = vld [vmem:[%s260 + $0x28] sm:$0xff]
      %v284 = vld [vmem:[%s260 + $0x30] sm:$0xff]
      %v285 = vld [vmem:[%s260 + $0x38] sm:$0xff]
      %v286 = vld [vmem:[%s260 + $0x40] sm:$0xff]
      %v287 = vld [vmem:[%s260 + $0x48] sm:$0xff]
      %v288 = vld [vmem:[%s260 + $0x50] sm:$0xff]
      %v289 = vld [vmem:[%s260 + $0x58] sm:$0xff]
      %v290 = vld [vmem:[%s260 + $0x60] sm:$0xff]
      %v291 = vld [vmem:[%s260 + $0x68] sm:$0xff]
      %v292 = vld [vmem:[%s260 + $0x70] sm:$0xff]
      %v293 = vld [vmem:[%s260 + $0x78] sm:$0xff]
      %v294 = vpack.c.bf16 %v279, %v278
      %v295 = vpack.c.bf16 %v281, %v280
      %v296 = vpack.c.bf16 %v283, %v282
      %v297 = vpack.c.bf16 %v285, %v284
      %v298 = vpack.c.bf16 %v287, %v286
      %v299 = vpack.c.bf16 %v289, %v288
      %v300 = vpack.c.bf16 %v291, %v290
      %v301 = vpack.c.bf16 %v293, %v292
      %v302 = vld [vmem:[%s1] sm:$0xff]
      %v303 = vld [vmem:[%s1 + $0x8] sm:$0xff]
      %v304 = vld [vmem:[%s1 + $0x10] sm:$0xff]
      %v305 = vld [vmem:[%s1 + $0x18] sm:$0xff]
      %v306 = vld [vmem:[%s1 + $0x20] sm:$0xff]
      %v307 = vld [vmem:[%s1 + $0x28] sm:$0xff]
      %v308 = vld [vmem:[%s1 + $0x30] sm:$0xff]
      %v309 = vld [vmem:[%s1 + $0x38] sm:$0xff]
      %v310 = vld [vmem:[%s1 + $0x40] sm:$0xff]
      %v311 = vld [vmem:[%s1 + $0x48] sm:$0xff]
      %v312 = vld [vmem:[%s1 + $0x50] sm:$0xff]
      %v313 = vld [vmem:[%s1 + $0x58] sm:$0xff]
      %v314 = vld [vmem:[%s1 + $0x60] sm:$0xff]
      %v315 = vld [vmem:[%s1 + $0x68] sm:$0xff]
      %v316 = vld [vmem:[%s1 + $0x70] sm:$0xff]
      %v317 = vld [vmem:[%s1 + $0x78] sm:$0xff]
      %v318 = vld [vmem:[%s2] sm:$0x3]
      %v320 = vlaneseq
      %v321 = vshrl.u32 %v320, 7
      %v322 = vsub.s32 0, %v321
      %v323 = vrot.slane %v318, %v322
      %v324 = vlaneseq
      %v325 = vshrl.u32 %v324, 7
      %v326 = vsub.s32 1, %v325
      %v327 = vrot.slane %v318, %v326
      %v346 = vunpack.c.l.b16 %v302
      %v347 = vunpack.c.h.b16 %v302
      %v348 = vunpack.c.l.b16 %v303
      %v349 = vunpack.c.h.b16 %v303
      %v350 = vunpack.c.l.b16 %v304
      %v351 = vunpack.c.h.b16 %v304
      %v352 = vunpack.c.l.b16 %v305
      %v353 = vunpack.c.h.b16 %v305
      %v354 = vunpack.c.l.b16 %v306
      %v355 = vunpack.c.h.b16 %v306
      %v356 = vunpack.c.l.b16 %v307
      %v357 = vunpack.c.h.b16 %v307
      %v358 = vunpack.c.l.b16 %v308
      %v359 = vunpack.c.h.b16 %v308
      %v360 = vunpack.c.l.b16 %v309
      %v361 = vunpack.c.h.b16 %v309
      %v362 = vunpack.c.l.b16 %v310
      %v363 = vunpack.c.h.b16 %v310
      %v364 = vunpack.c.l.b16 %v311
      %v365 = vunpack.c.h.b16 %v311
      %v366 = vunpack.c.l.b16 %v312
      %v367 = vunpack.c.h.b16 %v312
      %v368 = vunpack.c.l.b16 %v313
      %v369 = vunpack.c.h.b16 %v313
      %v370 = vunpack.c.l.b16 %v314
      %v371 = vunpack.c.h.b16 %v314
      %v372 = vunpack.c.l.b16 %v315
      %v373 = vunpack.c.h.b16 %v315
      %v374 = vunpack.c.l.b16 %v316
      %v375 = vunpack.c.h.b16 %v316
      %v376 = vunpack.c.l.b16 %v317
      %v377 = vunpack.c.h.b16 %v317
      %v378 = vpack.c.b16 %v348, %v346
      %v379 = vpack.c.b16 %v349, %v347
      %v380 = vpack.c.b16 %v352, %v350
      %v381 = vpack.c.b16 %v353, %v351
      %v382 = vpack.c.b16 %v356, %v354
      %v383 = vpack.c.b16 %v357, %v355
      %v384 = vpack.c.b16 %v360, %v358
      %v385 = vpack.c.b16 %v361, %v359
      %v386 = vpack.c.b16 %v364, %v362
      %v387 = vpack.c.b16 %v365, %v363
      %v388 = vpack.c.b16 %v368, %v366
      %v389 = vpack.c.b16 %v369, %v367
      %v390 = vpack.c.b16 %v372, %v370
      %v391 = vpack.c.b16 %v373, %v371
      %v392 = vpack.c.b16 %v376, %v374
      %v393 = vpack.c.b16 %v377, %v375
      %410 = vmatprep.subr.bf16.mxu0 %v393
      %411 = vmatpush1.bf16.msra.mxu0 %v392
      %412 = vmatprep.subr.bf16.mxu0 %v391
      %413 = vmatpush1.bf16.msra.mxu0 %v390
      %414 = vmatprep.subr.bf16.mxu0 %v389
      %415 = vmatpush1.bf16.msra.mxu0 %v388
      %416 = vmatprep.subr.bf16.mxu0 %v387
      %417 = vmatpush1.bf16.msra.mxu0 %v386
      %418 = vmatprep.subr.bf16.mxu0 %v385
      %419 = vmatpush1.bf16.msra.mxu0 %v384
      %420 = vmatprep.subr.bf16.mxu0 %v383
      %421 = vmatpush1.bf16.msra.mxu0 %v382
      %422 = vmatprep.subr.bf16.mxu0 %v381
      %423 = vmatpush1.bf16.msra.mxu0 %v380
      %424 = vmatprep.subr.bf16.mxu0 %v379
      %425 = vmatpush1.bf16.msra.mxu0 %v378
      %426 = vmatprep.subr.bf16.mxu0 0
      %427 = vmatpush2.bf16.msra.mxu0 0
      %428 = vmatprep.subr.bf16.mxu0 0
      %429 = vmatpush2.bf16.msra.mxu0 0
      %430 = vmatprep.subr.bf16.mxu0 0
      %431 = vmatpush2.bf16.msra.mxu0 0
      %432 = vmatprep.subr.bf16.mxu0 0
      %433 = vmatpush2.bf16.msra.mxu0 0
      %434 = vmatprep.subr.bf16.mxu0 0
      %435 = vmatpush2.bf16.msra.mxu0 0
      %436 = vmatprep.subr.bf16.mxu0 0
      %437 = vmatpush2.bf16.msra.mxu0 0
      %438 = vmatprep.subr.bf16.mxu0 0
      %439 = vmatpush2.bf16.msra.mxu0 0
      %440 = vmatprep.subr.bf16.mxu0 0
      %441 = vmatpush2.bf16.msra.mxu0 0
      %442 = vmatprep.mubr.bf16.mxu0 0
      %443 = vmatmul.mubr.bf16.gmra.mxu0 %v294
      %v444 = vpop.f32.mrf.mxu0
      %v445 = vadd.f32 %v323, %v444
      %v446 = vpop.f32.mrf.mxu0
      %v447 = vadd.f32 %v327, %v446
      %v448 = vpop.f32.mrf.mxu0
      %v449 = vadd.f32 %v323, %v448
      %v450 = vpop.f32.mrf.mxu0
      %v451 = vadd.f32 %v327, %v450
      %452 = vmatprep.mubr.bf16.mxu0 0
      %453 = vmatmul.mubr.bf16.gmra.mxu0 %v295
      %v454 = vpop.f32.mrf.mxu0
      %v455 = vadd.f32 %v323, %v454
      %v456 = vpop.f32.mrf.mxu0
      %v457 = vadd.f32 %v327, %v456
      %v458 = vpop.f32.mrf.mxu0
      %v459 = vadd.f32 %v323, %v458
      %v460 = vpop.f32.mrf.mxu0
      %v461 = vadd.f32 %v327, %v460
      %462 = vmatprep.mubr.bf16.mxu0 0
      %463 = vmatmul.mubr.bf16.gmra.mxu0 %v296
      %v464 = vpop.f32.mrf.mxu0
      %v465 = vadd.f32 %v323, %v464
      %v466 = vpop.f32.mrf.mxu0
      %v467 = vadd.f32 %v327, %v466
      %v468 = vpop.f32.mrf.mxu0
      %v469 = vadd.f32 %v323, %v468
      %v470 = vpop.f32.mrf.mxu0
      %v471 = vadd.f32 %v327, %v470
      %472 = vmatprep.mubr.bf16.mxu0 0
      %473 = vmatmul.mubr.bf16.gmra.mxu0 %v297
      %v474 = vpop.f32.mrf.mxu0
      %v475 = vadd.f32 %v323, %v474
      %v476 = vpop.f32.mrf.mxu0
      %v477 = vadd.f32 %v327, %v476
      %v478 = vpop.f32.mrf.mxu0
      %v479 = vadd.f32 %v323, %v478
      %v480 = vpop.f32.mrf.mxu0
      %v481 = vadd.f32 %v327, %v480
      %482 = vmatprep.mubr.bf16.mxu0 0
      %483 = vmatmul.mubr.bf16.gmra.mxu0 %v298
      %v484 = vpop.f32.mrf.mxu0
      %v485 = vadd.f32 %v323, %v484
      %v486 = vpop.f32.mrf.mxu0
      %v487 = vadd.f32 %v327, %v486
      %v488 = vpop.f32.mrf.mxu0
      %v489 = vadd.f32 %v323, %v488
      %v490 = vpop.f32.mrf.mxu0
      %v491 = vadd.f32 %v327, %v490
      %492 = vmatprep.mubr.bf16.mxu0 0
      %493 = vmatmul.mubr.bf16.gmra.mxu0 %v299
      %v494 = vpop.f32.mrf.mxu0
      %v495 = vadd.f32 %v323, %v494
      %v496 = vpop.f32.mrf.mxu0
      %v497 = vadd.f32 %v327, %v496
      %v498 = vpop.f32.mrf.mxu0
      %v499 = vadd.f32 %v323, %v498
      %v500 = vpop.f32.mrf.mxu0
      %v501 = vadd.f32 %v327, %v500
      %502 = vmatprep.mubr.bf16.mxu0 0
      %503 = vmatmul.mubr.bf16.gmra.mxu0 %v300
      %v504 = vpop.f32.mrf.mxu0
      %v505 = vadd.f32 %v323, %v504
      %v506 = vpop.f32.mrf.mxu0
      %v507 = vadd.f32 %v327, %v506
      %v508 = vpop.f32.mrf.mxu0
      %v509 = vadd.f32 %v323, %v508
      %v510 = vpop.f32.mrf.mxu0
      %v511 = vadd.f32 %v327, %v510
      %512 = vmatprep.mubr.bf16.mxu0 0
      %513 = vmatmul.mubr.bf16.gmra.mxu0 %v301
      %v514 = vpop.f32.mrf.mxu0
      %v515 = vadd.f32 %v323, %v514
      %v516 = vpop.f32.mrf.mxu0
      %v517 = vadd.f32 %v327, %v516
      %v518 = vpop.f32.mrf.mxu0
      %v519 = vadd.f32 %v323, %v518
      %v520 = vpop.f32.mrf.mxu0
      %v521 = vadd.f32 %v327, %v520
      %522 = vdwg.mxu0
      %v523 = vpack.c.bf16 %v449, %v445
      %v524 = vpack.c.bf16 %v459, %v455
      %v525 = vpack.c.bf16 %v469, %v465
      %v526 = vpack.c.bf16 %v479, %v475
      %v527 = vpack.c.bf16 %v489, %v485
      %v528 = vpack.c.bf16 %v499, %v495
      %v529 = vpack.c.bf16 %v509, %v505
      %v530 = vpack.c.bf16 %v519, %v515
      %v539 = vunpack.c.l.b16 %v523
      %v540 = vunpack.c.h.b16 %v523
      %v541 = vunpack.c.l.b16 %v524
      %v542 = vunpack.c.h.b16 %v524
      %v543 = vunpack.c.l.b16 %v525
      %v544 = vunpack.c.h.b16 %v525
      %v545 = vunpack.c.l.b16 %v526
      %v546 = vunpack.c.h.b16 %v526
      %v547 = vunpack.c.l.b16 %v527
      %v548 = vunpack.c.h.b16 %v527
      %v549 = vunpack.c.l.b16 %v528
      %v550 = vunpack.c.h.b16 %v528
      %v551 = vunpack.c.l.b16 %v529
      %v552 = vunpack.c.h.b16 %v529
      %v553 = vunpack.c.l.b16 %v530
      %v554 = vunpack.c.h.b16 %v530
      %v555 = vpack.c.b16 %v539, %v539
      %v556 = vpack.c.b16 %v540, %v540
      %v557 = vpack.c.b16 %v541, %v541
      %v558 = vpack.c.b16 %v542, %v542
      %v559 = vpack.c.b16 %v543, %v543
      %v560 = vpack.c.b16 %v544, %v544
      %v561 = vpack.c.b16 %v545, %v545
      %v562 = vpack.c.b16 %v546, %v546
      %v563 = vpack.c.b16 %v547, %v547
      %v564 = vpack.c.b16 %v548, %v548
      %v565 = vpack.c.b16 %v549, %v549
      %v566 = vpack.c.b16 %v550, %v550
      %v567 = vpack.c.b16 %v551, %v551
      %v568 = vpack.c.b16 %v552, %v552
      %v569 = vpack.c.b16 %v553, %v553
      %v570 = vpack.c.b16 %v554, %v554
      %587 = vst [vmem:[%s266] sm:$0xf] %v555
      %588 = vst [vmem:[%s266 + $0x4] sm:$0xf] %v556
      %589 = vst [vmem:[%s266 + $0x8] sm:$0xf] %v557
      %590 = vst [vmem:[%s266 + $0xc] sm:$0xf] %v558
      %591 = vst [vmem:[%s266 + $0x10] sm:$0xf] %v559
      %592 = vst [vmem:[%s266 + $0x14] sm:$0xf] %v560
      %593 = vst [vmem:[%s266 + $0x18] sm:$0xf] %v561
      %594 = vst [vmem:[%s266 + $0x1c] sm:$0xf] %v562
      %595 = vst [vmem:[%s266 + $0x20] sm:$0xf] %v563
      %596 = vst [vmem:[%s266 + $0x24] sm:$0xf] %v564
      %597 = vst [vmem:[%s266 + $0x28] sm:$0xf] %v565
      %598 = vst [vmem:[%s266 + $0x2c] sm:$0xf] %v566
      %599 = vst [vmem:[%s266 + $0x30] sm:$0xf] %v567
      %600 = vst [vmem:[%s266 + $0x34] sm:$0xf] %v568
      %601 = vst [vmem:[%s266 + $0x38] sm:$0xf] %v569
      %602 = vst [vmem:[%s266 + $0x3c] sm:$0xf] %v570
      %v603 = vpack.c.bf16 %v451, %v447
      %v604 = vpack.c.bf16 %v461, %v457
      %v605 = vpack.c.bf16 %v471, %v467
      %v606 = vpack.c.bf16 %v481, %v477
      %v607 = vpack.c.bf16 %v491, %v487
      %v608 = vpack.c.bf16 %v501, %v497
      %v609 = vpack.c.bf16 %v511, %v507
      %v610 = vpack.c.bf16 %v521, %v517
      %v619 = vunpack.c.l.b16 %v603
      %v620 = vunpack.c.h.b16 %v603
      %v621 = vunpack.c.l.b16 %v604
      %v622 = vunpack.c.h.b16 %v604
      %v623 = vunpack.c.l.b16 %v605
      %v624 = vunpack.c.h.b16 %v605
      %v625 = vunpack.c.l.b16 %v606
      %v626 = vunpack.c.h.b16 %v606
      %v627 = vunpack.c.l.b16 %v607
      %v628 = vunpack.c.h.b16 %v607
      %v629 = vunpack.c.l.b16 %v608
      %v630 = vunpack.c.h.b16 %v608
      %v631 = vunpack.c.l.b16 %v609
      %v632 = vunpack.c.h.b16 %v609
      %v633 = vunpack.c.l.b16 %v610
      %v634 = vunpack.c.h.b16 %v610
      %v635 = vpack.c.b16 %v619, %v619
      %v636 = vpack.c.b16 %v620, %v620
      %v637 = vpack.c.b16 %v621, %v621
      %v638 = vpack.c.b16 %v622, %v622
      %v639 = vpack.c.b16 %v623, %v623
      %v640 = vpack.c.b16 %v624, %v624
      %v641 = vpack.c.b16 %v625, %v625
      %v642 = vpack.c.b16 %v626, %v626
      %v643 = vpack.c.b16 %v627, %v627
      %v644 = vpack.c.b16 %v628, %v628
      %v645 = vpack.c.b16 %v629, %v629
      %v646 = vpack.c.b16 %v630, %v630
      %v647 = vpack.c.b16 %v631, %v631
      %v648 = vpack.c.b16 %v632, %v632
      %v649 = vpack.c.b16 %v633, %v633
      %v650 = vpack.c.b16 %v634, %v634
      %667 = vst [vmem:[%s272] sm:$0xf] %v635
      %668 = vst [vmem:[%s272 + $0x4] sm:$0xf] %v636
      %669 = vst [vmem:[%s272 + $0x8] sm:$0xf] %v637
      %670 = vst [vmem:[%s272 + $0xc] sm:$0xf] %v638
      %671 = vst [vmem:[%s272 + $0x10] sm:$0xf] %v639
      %672 = vst [vmem:[%s272 + $0x14] sm:$0xf] %v640
      %673 = vst [vmem:[%s272 + $0x18] sm:$0xf] %v641
      %674 = vst [vmem:[%s272 + $0x1c] sm:$0xf] %v642
      %675 = vst [vmem:[%s272 + $0x20] sm:$0xf] %v643
      %676 = vst [vmem:[%s272 + $0x24] sm:$0xf] %v644
      %677 = vst [vmem:[%s272 + $0x28] sm:$0xf] %v645
      %678 = vst [vmem:[%s272 + $0x2c] sm:$0xf] %v646
      %679 = vst [vmem:[%s272 + $0x30] sm:$0xf] %v647
      %680 = vst [vmem:[%s272 + $0x34] sm:$0xf] %v648
      %681 = vst [vmem:[%s272 + $0x38] sm:$0xf] %v649
      %682 = vst [vmem:[%s272 + $0x3c] sm:$0xf] %v650
      %v683 = vld [vmem:[%s3] sm:$0x1]
      %684 = vmatprep.subr.mxu0 0.0
      %685 = vmatpush1.xpose.msra.mxu0 %v519
      %686 = vmatprep.subr.mxu0 0.0
      %687 = vmatpush1.xpose.msra.mxu0 %v515
      %688 = vmatprep.subr.mxu0 0.0
      %689 = vmatpush1.xpose.msra.mxu0 %v509
      %690 = vmatprep.subr.mxu0 0.0
      %691 = vmatpush1.xpose.msra.mxu0 %v505
      %692 = vmatprep.subr.mxu0 0.0
      %693 = vmatpush1.xpose.msra.mxu0 %v499
      %694 = vmatprep.subr.mxu0 0.0
      %695 = vmatpush1.xpose.msra.mxu0 %v495
      %696 = vmatprep.subr.mxu0 0.0
      %697 = vmatpush1.xpose.msra.mxu0 %v489
      %698 = vmatprep.subr.mxu0 0.0
      %699 = vmatpush1.xpose.msra.mxu0 %v485
      %700 = vmatprep.subr.mxu0 0.0
      %701 = vmatpush1.xpose.msra.mxu0 %v479
      %702 = vmatprep.subr.mxu0 0.0
      %703 = vmatpush1.xpose.msra.mxu0 %v475
      %704 = vmatprep.subr.mxu0 0.0
      %705 = vmatpush1.xpose.msra.mxu0 %v469
      %706 = vmatprep.subr.mxu0 0.0
      %707 = vmatpush1.xpose.msra.mxu0 %v465
      %708 = vmatprep.subr.mxu0 0.0
      %709 = vmatpush1.xpose.msra.mxu0 %v459
      %710 = vmatprep.subr.mxu0 0.0
      %711 = vmatpush1.xpose.msra.mxu0 %v455
      %712 = vmatprep.subr.mxu0 0.0
      %713 = vmatpush1.xpose.msra.mxu0 %v449
      %714 = vmatprep.subr.mxu0 0.0
      %715 = vmatpush1.xpose.msra.mxu0 %v445
      %716 = vmatprep.subr.mxu0 0.0
      %717 = vmatpush2.xpose.msra.mxu0 0.0
      %718 = vmatprep.subr.mxu0 0.0
      %719 = vmatpush2.xpose.msra.mxu0 0.0
      %720 = vmatprep.subr.mxu0 0.0
      %721 = vmatpush2.xpose.msra.mxu0 0.0
      %722 = vmatprep.subr.mxu0 0.0
      %723 = vmatpush2.xpose.msra.mxu0 0.0
      %724 = vmatprep.subr.mxu0 0.0
      %725 = vmatpush2.xpose.msra.mxu0 0.0
      %726 = vmatprep.subr.mxu0 0.0
      %727 = vmatpush2.xpose.msra.mxu0 0.0
      %728 = vmatprep.subr.mxu0 0.0
      %729 = vmatpush2.xpose.msra.mxu0 0.0
      %730 = vmatprep.subr.mxu0 0.0
      %731 = vmatpush2.xpose.msra.mxu0 0.0
      %732 = vmatprep.subr.mxu0 0.0
      %733 = vmatpush2.xpose.msra.mxu0 0.0
      %734 = vmatprep.subr.mxu0 0.0
      %735 = vmatpush2.xpose.msra.mxu0 0.0
      %736 = vmatprep.subr.mxu0 0.0
      %737 = vmatpush2.xpose.msra.mxu0 0.0
      %738 = vmatprep.subr.mxu0 0.0
      %739 = vmatpush2.xpose.msra.mxu0 0.0
      %740 = vmatprep.subr.mxu0 0.0
      %741 = vmatpush2.xpose.msra.mxu0 0.0
      %742 = vmatprep.subr.mxu0 0.0
      %743 = vmatpush2.xpose.msra.mxu0 0.0
      %744 = vmatprep.subr.mxu0 0.0
      %745 = vmatpush2.xpose.msra.mxu0 0.0
      %746 = vmatprep.subr.mxu0 0.0
      %747 = vmatpush2.xpose.msra.mxu0 0.0
      %748 = vmatprep.mubr.f32.mxu0 0.0
      %749 = vmatmul.mubr.f32.gmra.mxu0 %v683
      %v750 = vpop.f32.mrf.mxu0
      %v751 = vadd.f32 0.0, %v750
      %v752 = vpop.f32.mrf.mxu0
      %753 = vdwg.mxu0
      %754 = vst [vmem:[%s276] sm:$0x1] %v751
      %s755 = smul.u32 16, %s18
      %p756 = scmp.lt.s32.totalorder %s755, 31
      %s757 = scalar_select %p756, %s755, 31
      %s758 = smul.addr %s757, 4
      %s759 = scalar_lea.vmem %s4, %s758
      %s760 = smul.u32 16, %s18
      %p761 = scmp.lt.s32.totalorder %s760, 31
      %s762 = scalar_select %p761, %s760, 31
      %s763 = smul.addr %s762, 4
      %s764 = scalar_lea.vmem %s5, %s763
      %p765 = scmp.lt.s32.totalorder %s18, 1
      %s766 = scalar_select %p765, %s18, 1
      %s767 = scalar_lea.vmem %s6, %s766
      // Predicated region
      $region37: #{boot_gcn_layer.6} parent=35 // pred_check
        %p768 = pneg %p125
      $region38: #{boot_gcn_layer.6} parent=35 // pred_check_branch
        %770 = sbr.rel (%p768) target = $region40
      $region39: #{boot_gcn_layer.6} parent=35 // pred_region
        %s771 = smul.u32 16, %s18
      $region40: #{boot_gcn_layer.6} parent=35 // pred_fallthru
        _
      // Predicated region
      $region41: #{boot_gcn_layer.6} parent=35 // pred_check
        %p772 = pneg %p151
      $region42: #{boot_gcn_layer.6} parent=35 // pred_check_branch
        %774 = sbr.rel (%p772) target = $region44
      $region43: #{boot_gcn_layer.6} parent=35 // pred_region
        %s775 = smul.u32 16, %s18
      $region44: #{boot_gcn_layer.6} parent=35 // pred_fallthru
        _
      // Predicated region
      $region45: #{boot_gcn_layer.6} parent=35 // pred_check
        %p776 = pneg %p177
      $region46: #{boot_gcn_layer.6} parent=35 // pred_check_branch
        %778 = sbr.rel (%p776) target = $region48
      $region47: #{boot_gcn_layer.6} parent=35 // pred_region
        _
      $region48: #{boot_gcn_layer.6} parent=35 // pred_fallthru
        _
    $region36: #{boot_gcn_layer.6} parent=5 // pred_fallthru
      _
    %p779 = scmp.le.s32.totalorder 2, %s13
    // Predicated region
    $region49: #{boot_gcn_layer.6} parent=5 // pred_check
      %p780 = pneg %p779
    $region50: #{boot_gcn_layer.6} parent=5 // pred_check_branch
      %782 = sbr.rel (%p780) target = $region52
    $region51: #{boot_gcn_layer.6} parent=5 // pred_region
      %s783 = ssub.s32 %s13, 2
      // Predicated region
      $region53: #{boot_gcn_layer.6} parent=51 // pred_check
        %p784 = pneg %p131
      $region54: #{boot_gcn_layer.6} parent=51 // pred_check_branch
        %786 = sbr.rel (%p784) target = $region56
      $region55: #{boot_gcn_layer.6} parent=51 // pred_region
        %s787 = smul.u32 16, %s19
        %p788 = scmp.lt.s32.totalorder %s787, 31
        %s789 = scalar_select %p788, %s787, 31
        %s790 = smul.addr %s789, 4
        %s791 = scalar_lea.vmem %s4, %s790
      $region56: #{boot_gcn_layer.6} parent=51 // pred_fallthru
        _
      // Predicated region
      $region57: #{boot_gcn_layer.6} parent=51 // pred_check
        %p792 = pneg %p157
      $region58: #{boot_gcn_layer.6} parent=51 // pred_check_branch
        %794 = sbr.rel (%p792) target = $region60
      $region59: #{boot_gcn_layer.6} parent=51 // pred_region
        %s795 = smul.u32 16, %s19
        %p796 = scmp.lt.s32.totalorder %s795, 31
        %s797 = scalar_select %p796, %s795, 31
        %s798 = smul.addr %s797, 4
        %s799 = scalar_lea.vmem %s5, %s798
      $region60: #{boot_gcn_layer.6} parent=51 // pred_fallthru
        _
      // Predicated region
      $region61: #{boot_gcn_layer.6} parent=51 // pred_check
        %p800 = pneg %p183
      $region62: #{boot_gcn_layer.6} parent=51 // pred_check_branch
        %802 = sbr.rel (%p800) target = $region64
      $region63: #{boot_gcn_layer.6} parent=51 // pred_region
        %p803 = scmp.lt.s32.totalorder %s19, 1
        %s804 = scalar_select %p803, %s19, 1
        %s805 = scalar_lea.vmem %s6, %s804
      $region64: #{boot_gcn_layer.6} parent=51 // pred_fallthru
        _
    $region52: #{boot_gcn_layer.6} parent=5 // pred_fallthru
      _
  $region6: #{boot_gcn_layer.6} parent=0 // loop_footer
    %s17 = sadd.s32 1, %s13
  $region7: #{boot_gcn_layer.6} parent=0 // loop_footer_branch
    %12 = sbr.rel target = $region3
  $region8: #{boot_gcn_layer.6} parent=0 // loop_exit
    _

// kernel: boot_gcn_layer.5
$region0: #{boot_gcn_layer.5}
  #allocation0 [shape = 'u32[]', space=smem, size = 0x4, offset = 0x4, fixed_abs, tag = 'smem constant byte address 0x4 - core index']
  #allocation1 [shape = 'u32[144,128]{1,0:T(1,128)}', space=vmem, size = 0x12000, scoped, tag = 'internal scratch']
  #allocation2 [shape = 'bf16[128,128]{1,0:T(8,128)(2,1)}', space=vmem, size = 0x8000, scoped, tag = 'scratch operand']
  #allocation3 [shape = 'f32[128,128]{1,0:T(8,128)}', space=vmem, size = 0x10000, scoped, tag = 'scratch operand']
  #allocation4 [shape = 'f32[128,1]{1,0:T(8,128)}', space=vmem, size = 0x10000, scoped, tag = 'scratch operand']
  #allocation5 [shape = 'f32[128,1]{1,0:T(8,128)}', space=vmem, size = 0x10000, scoped, tag = 'scratch operand']
  #allocation6 [shape = 'f32[128,1]{1,0:T(8,128)}', space=vmem, size = 0x10000, scoped, tag = 'scratch operand']
  #allocation7 [shape = 'f32[128,128]{1,0:T(8,128)}', space=vmem, size = 0x10000, scoped, tag = 'scratch operand']
  #allocation8 [shape = 'f32[128,128]{1,0:T(8,128)}', space=vmem, size = 0x10000, scoped, tag = 'scratch operand']
  %s0 = inlined_call_operand.vmem [shape: f32[256,128], index: 0, kind: input, shape index: {}]
  %s1 = inlined_call_operand.vmem [shape: f32[1,128], index: 1, kind: input, shape index: {}]
  %s2 = inlined_call_operand.vmem [shape: bf16[128,128], index: 2, kind: input, shape index: {}]
  %s3 = inlined_call_operand.vmem [shape: bf16[128,128], index: 3, kind: input, shape index: {}]
  %s4 = inlined_call_operand.vmem [shape: s8[256,128], index: 4, kind: input, shape index: {}]
  %s5 = inlined_call_operand.vmem [shape: bf16[128,128], index: 5, kind: input, shape index: {}]
  %s6 = inlined_call_operand.vmem [shape: bf16[1,128], index: 6, kind: input, shape index: {}]
  %s7 = inlined_call_operand.vmem [shape: f32[128,128], index: 7, kind: input, shape index: {}]
  %s8 = inlined_call_operand.vmem [shape: f32[1,128], index: 8, kind: input, shape index: {}]
  %s9 = inlined_call_operand.vmem [shape: f32[1,128], index: 9, kind: input, shape index: {}]
  %s10 = inlined_call_operand.vmem [shape: f32[1,128], index: 10, kind: input, shape index: {}]
  %s11 = inlined_call_operand.vmem [shape: f32[256,128], index: 11, kind: output, shape index: {}]
  %s12 = sld [smem:[#allocation0]]
  $region85: #{boot_gcn_layer.5} parent=0
    _
  %s14 = ssub.s32 1, %s12
  %s15 = scalar_select 0, %s14, %s12
  loop: start=0, step=1, limit=4
  $region2: #{boot_gcn_layer.5} parent=0 // loop_pre_header
    _
  $region3: #{boot_gcn_layer.5} parent=0 // loop_header
    %s17 = sphi 0, %s21
    %p18 = scmp.ge.s32.totalorder %s17, 4
    %s24 = sphi 0, %s36
    %s25 = sphi 0, %s32
    %s26 = sphi 0, %s24
    %s27 = sphi 0, %s25
    %s28 = sphi 0, %s26
    %s29 = sphi 0, %s27
    %s39 = sphi 0, %s41
    %s42 = sphi 0, %s39
    %s43 = sphi 0, %s42
    %s59 = sphi 0, %s43
    %s65 = sphi 0, %s67
    %s68 = sphi 0, %s65
    %s69 = sphi 0, %s68
    %s85 = sphi 0, %s69
    %s91 = sphi 0, %s93
    %s94 = sphi 0, %s91
    %s95 = sphi 0, %s94
    %s111 = sphi 0, %s95
    %s117 = sphi 0, %s119
    %s120 = sphi 0, %s117
    %s121 = sphi 0, %s120
    %s137 = sphi 0, %s121
    %s145 = sphi 0, %s147
    %s148 = sphi 0, %s145
    %s149 = sphi 0, %s148
    %s165 = sphi 0, %s149
    %s169 = sphi 0, %s169
    %s171 = sphi 0, %s169
    %s172 = sphi 0, %s171
    %s186 = sphi 0, %s172
    %s190 = sphi 0, %s190
    %s192 = sphi 0, %s190
    %s193 = sphi 0, %s192
    %s207 = sphi 0, %s193
    %s211 = sphi 0, %s211
    %s213 = sphi 0, %s211
    %s214 = sphi 0, %s213
    %s228 = sphi 0, %s214
    %s232 = sphi 0, %s232
    %s234 = sphi 0, %s232
    %s235 = sphi 0, %s234
    %s249 = sphi 0, %s235
    %s253 = sphi 0, %s253
    %s255 = sphi 0, %s253
    %s256 = sphi 0, %s255
    %s270 = sphi 0, %s256
    %s274 = sphi 0, %s274
    %s276 = sphi 0, %s274
    %s277 = sphi 0, %s276
    %s291 = sphi 0, %s277
    %s297 = sphi 0, %s299
    %s300 = sphi 0, %s297
    %s301 = sphi 0, %s300
    %s317 = sphi 0, %s301
  $region4: #{boot_gcn_layer.5} parent=0 // loop_header_branch
    %20 = sbr.rel (%p18) target = $region8
  $region5: #{boot_gcn_layer.5} parent=0 // loop_body
    %s22 = ssub.s32 %s17, 1
    %s23 = ssub.s32 %s17, 2
    %s30 = sadd.s32 1, %s25
    %p31 = scmp.ge.s32.totalorder %s30, 1
    %s32 = scalar_select %p31, 0, %s30
    %s33 = sadd.s32 1, %s24
    %s34 = scalar_select %p31, %s33, %s24
    %p35 = scmp.ge.s32.totalorder %s34, 2
    %s36 = scalar_select %p35, 0, %s34
    %s37 = ssub.s32 %s24, %s36
    %p38 = scmp.eq.s32.totalorder %s37, 0
    %s40 = sadd.s32 %s39, 1
    %s41 = scalar_select %p38, %s39, %s40
    %p44 = pneg %p38
    %p45 = scmp.eq.s32.totalorder %s17, 1
    %p46 = por %p44, %p45
    %p47 = scmp.ne.s32.totalorder %s39, %s42
    %p48 = scmp.eq.s32.totalorder %s17, 0
    %p49 = por %p47, %p48
    %p50 = scmp.ne.s32.totalorder %s39, %s42
    %p51 = scmp.eq.s32.totalorder %s22, 1
    %p52 = por %p50, %p51
    %p53 = scmp.ne.s32.totalorder %s42, %s43
    %p54 = scmp.eq.s32.totalorder %s22, 0
    %p55 = por %p53, %p54
    %p56 = scmp.ne.s32.totalorder %s42, %s43
    %p57 = scmp.eq.s32.totalorder %s23, 1
    %p58 = por %p56, %p57
    %p60 = scmp.ne.s32.totalorder %s43, %s59
    %p61 = scmp.eq.s32.totalorder %s23, 0
    %p62 = por %p60, %p61
    %s63 = ssub.s32 %s25, %s32
    %p64 = scmp.eq.s32.totalorder %s63, 0
    %s66 = sadd.s32 %s65, 1
    %s67 = scalar_select %p64, %s65, %s66
    %p70 = pneg %p64
    %p71 = scmp.eq.s32.totalorder %s17, 1
    %p72 = por %p70, %p71
    %p73 = scmp.ne.s32.totalorder %s65, %s68
    %p74 = scmp.eq.s32.totalorder %s17, 0
    %p75 = por %p73, %p74
    %p76 = scmp.ne.s32.totalorder %s65, %s68
    %p77 = scmp.eq.s32.totalorder %s22, 1
    %p78 = por %p76, %p77
    %p79 = scmp.ne.s32.totalorder %s68, %s69
    %p80 = scmp.eq.s32.totalorder %s22, 0
    %p81 = por %p79, %p80
    %p82 = scmp.ne.s32.totalorder %s68, %s69
    %p83 = scmp.eq.s32.totalorder %s23, 1
    %p84 = por %p82, %p83
    %p86 = scmp.ne.s32.totalorder %s69, %s85
    %p87 = scmp.eq.s32.totalorder %s23, 0
    %p88 = por %p86, %p87
    %s89 = ssub.s32 %s25, %s32
    %p90 = scmp.eq.s32.totalorder %s89, 0
    %s92 = sadd.s32 %s91, 1
    %s93 = scalar_select %p90, %s91, %s92
    %p96 = pneg %p90
    %p97 = scmp.eq.s32.totalorder %s17, 1
    %p98 = por %p96, %p97
    %p99 = scmp.ne.s32.totalorder %s91, %s94
    %p100 = scmp.eq.s32.totalorder %s17, 0
    %p101 = por %p99, %p100
    %p102 = scmp.ne.s32.totalorder %s91, %s94
    %p103 = scmp.eq.s32.totalorder %s22, 1
    %p104 = por %p102, %p103
    %p105 = scmp.ne.s32.totalorder %s94, %s95
    %p106 = scmp.eq.s32.totalorder %s22, 0
    %p107 = por %p105, %p106
    %p108 = scmp.ne.s32.totalorder %s94, %s95
    %p109 = scmp.eq.s32.totalorder %s23, 1
    %p110 = por %p108, %p109
    %p112 = scmp.ne.s32.totalorder %s95, %s111
    %p113 = scmp.eq.s32.totalorder %s23, 0
    %p114 = por %p112, %p113
    %s115 = ssub.s32 %s25, %s32
    %p116 = scmp.eq.s32.totalorder %s115, 0
    %s118 = sadd.s32 %s117, 1
    %s119 = scalar_select %p116, %s117, %s118
    %p122 = pneg %p116
    %p123 = scmp.eq.s32.totalorder %s17, 1
    %p124 = por %p122, %p123
    %p125 = scmp.ne.s32.totalorder %s117, %s120
    %p126 = scmp.eq.s32.totalorder %s17, 0
    %p127 = por %p125, %p126
    %p128 = scmp.ne.s32.totalorder %s117, %s120
    %p129 = scmp.eq.s32.totalorder %s22, 1
    %p130 = por %p128, %p129
    %p131 = scmp.ne.s32.totalorder %s120, %s121
    %p132 = scmp.eq.s32.totalorder %s22, 0
    %p133 = por %p131, %p132
    %p134 = scmp.ne.s32.totalorder %s120, %s121
    %p135 = scmp.eq.s32.totalorder %s23, 1
    %p136 = por %p134, %p135
    %p138 = scmp.ne.s32.totalorder %s121, %s137
    %p139 = scmp.eq.s32.totalorder %s23, 0
    %p140 = por %p138, %p139
    %s141 = ssub.s32 %s24, %s36
    %s142 = ssub.s32 %s25, %s32
    %s143 = sor.u32 %s141, %s142
    %p144 = scmp.eq.s32.totalorder %s143, 0
    %s146 = sadd.s32 %s145, 1
    %s147 = scalar_select %p144, %s145, %s146
    %p150 = pneg %p144
    %p151 = scmp.eq.s32.totalorder %s17, 1
    %p152 = por %p150, %p151
    %p153 = scmp.ne.s32.totalorder %s145, %s148
    %p154 = scmp.eq.s32.totalorder %s17, 0
    %p155 = por %p153, %p154
    %p156 = scmp.ne.s32.totalorder %s145, %s148
    %p157 = scmp.eq.s32.totalorder %s22, 1
    %p158 = por %p156, %p157
    %p159 = scmp.ne.s32.totalorder %s148, %s149
    %p160 = scmp.eq.s32.totalorder %s22, 0
    %p161 = por %p159, %p160
    %p162 = scmp.ne.s32.totalorder %s148, %s149
    %p163 = scmp.eq.s32.totalorder %s23, 1
    %p164 = por %p162, %p163
    %p166 = scmp.ne.s32.totalorder %s149, %s165
    %p167 = scmp.eq.s32.totalorder %s23, 0
    %p168 = por %p166, %p167
    %s170 = sadd.s32 %s169, 1
    %p173 = scmp.eq.s32.totalorder %s17, 1
    %p174 = scmp.ne.s32.totalorder %s169, %s171
    %p175 = scmp.eq.s32.totalorder %s17, 0
    %p176 = por %p174, %p175
    %p177 = scmp.ne.s32.totalorder %s169, %s171
    %p178 = scmp.eq.s32.totalorder %s22, 1
    %p179 = por %p177, %p178
    %p180 = scmp.ne.s32.totalorder %s171, %s172
    %p181 = scmp.eq.s32.totalorder %s22, 0
    %p182 = por %p180, %p181
    %p183 = scmp.ne.s32.totalorder %s171, %s172
    %p184 = scmp.eq.s32.totalorder %s23, 1
    %p185 = por %p183, %p184
    %p187 = scmp.ne.s32.totalorder %s172, %s186
    %p188 = scmp.eq.s32.totalorder %s23, 0
    %p189 = por %p187, %p188
    %s191 = sadd.s32 %s190, 1
    %p194 = scmp.eq.s32.totalorder %s17, 1
    %p195 = scmp.ne.s32.totalorder %s190, %s192
    %p196 = scmp.eq.s32.totalorder %s17, 0
    %p197 = por %p195, %p196
    %p198 = scmp.ne.s32.totalorder %s190, %s192
    %p199 = scmp.eq.s32.totalorder %s22, 1
    %p200 = por %p198, %p199
    %p201 = scmp.ne.s32.totalorder %s192, %s193
    %p202 = scmp.eq.s32.totalorder %s22, 0
    %p203 = por %p201, %p202
    %p204 = scmp.ne.s32.totalorder %s192, %s193
    %p205 = scmp.eq.s32.totalorder %s23, 1
    %p206 = por %p204, %p205
    %p208 = scmp.ne.s32.totalorder %s193, %s207
    %p209 = scmp.eq.s32.totalorder %s23, 0
    %p210 = por %p208, %p209
    %s212 = sadd.s32 %s211, 1
    %p215 = scmp.eq.s32.totalorder %s17, 1
    %p216 = scmp.ne.s32.totalorder %s211, %s213
    %p217 = scmp.eq.s32.totalorder %s17, 0
    %p218 = por %p216, %p217
    %p219 = scmp.ne.s32.totalorder %s211, %s213
    %p220 = scmp.eq.s32.totalorder %s22, 1
    %p221 = por %p219, %p220
    %p222 = scmp.ne.s32.totalorder %s213, %s214
    %p223 = scmp.eq.s32.totalorder %s22, 0
    %p224 = por %p222, %p223
    %p225 = scmp.ne.s32.totalorder %s213, %s214
    %p226 = scmp.eq.s32.totalorder %s23, 1
    %p227 = por %p225, %p226
    %p229 = scmp.ne.s32.totalorder %s214, %s228
    %p230 = scmp.eq.s32.totalorder %s23, 0
    %p231 = por %p229, %p230
    %s233 = sadd.s32 %s232, 1
    %p236 = scmp.eq.s32.totalorder %s17, 1
    %p237 = scmp.ne.s32.totalorder %s232, %s234
    %p238 = scmp.eq.s32.totalorder %s17, 0
    %p239 = por %p237, %p238
    %p240 = scmp.ne.s32.totalorder %s232, %s234
    %p241 = scmp.eq.s32.totalorder %s22, 1
    %p242 = por %p240, %p241
    %p243 = scmp.ne.s32.totalorder %s234, %s235
    %p244 = scmp.eq.s32.totalorder %s22, 0
    %p245 = por %p243, %p244
    %p246 = scmp.ne.s32.totalorder %s234, %s235
    %p247 = scmp.eq.s32.totalorder %s23, 1
    %p248 = por %p246, %p247
    %p250 = scmp.ne.s32.totalorder %s235, %s249
    %p251 = scmp.eq.s32.totalorder %s23, 0
    %p252 = por %p250, %p251
    %s254 = sadd.s32 %s253, 1
    %p257 = scmp.eq.s32.totalorder %s17, 1
    %p258 = scmp.ne.s32.totalorder %s253, %s255
    %p259 = scmp.eq.s32.totalorder %s17, 0
    %p260 = por %p258, %p259
    %p261 = scmp.ne.s32.totalorder %s253, %s255
    %p262 = scmp.eq.s32.totalorder %s22, 1
    %p263 = por %p261, %p262
    %p264 = scmp.ne.s32.totalorder %s255, %s256
    %p265 = scmp.eq.s32.totalorder %s22, 0
    %p266 = por %p264, %p265
    %p267 = scmp.ne.s32.totalorder %s255, %s256
    %p268 = scmp.eq.s32.totalorder %s23, 1
    %p269 = por %p267, %p268
    %p271 = scmp.ne.s32.totalorder %s256, %s270
    %p272 = scmp.eq.s32.totalorder %s23, 0
    %p273 = por %p271, %p272
    %s275 = sadd.s32 %s274, 1
    %p278 = scmp.eq.s32.totalorder %s17, 1
    %p279 = scmp.ne.s32.totalorder %s274, %s276
    %p280 = scmp.eq.s32.totalorder %s17, 0
    %p281 = por %p279, %p280
    %p282 = scmp.ne.s32.totalorder %s274, %s276
    %p283 = scmp.eq.s32.totalorder %s22, 1
    %p284 = por %p282, %p283
    %p285 = scmp.ne.s32.totalorder %s276, %s277
    %p286 = scmp.eq.s32.totalorder %s22, 0
    %p287 = por %p285, %p286
    %p288 = scmp.ne.s32.totalorder %s276, %s277
    %p289 = scmp.eq.s32.totalorder %s23, 1
    %p290 = por %p288, %p289
    %p292 = scmp.ne.s32.totalorder %s277, %s291
    %p293 = scmp.eq.s32.totalorder %s23, 0
    %p294 = por %p292, %p293
    %s295 = ssub.s32 %s24, %s36
    %p296 = scmp.eq.s32.totalorder %s295, 0
    %s298 = sadd.s32 %s297, 1
    %s299 = scalar_select %p296, %s297, %s298
    %p302 = pneg %p296
    %p303 = scmp.eq.s32.totalorder %s17, 1
    %p304 = por %p302, %p303
    %p305 = scmp.ne.s32.totalorder %s297, %s300
    %p306 = scmp.eq.s32.totalorder %s17, 0
    %p307 = por %p305, %p306
    %p308 = scmp.ne.s32.totalorder %s297, %s300
    %p309 = scmp.eq.s32.totalorder %s22, 1
    %p310 = por %p308, %p309
    %p311 = scmp.ne.s32.totalorder %s300, %s301
    %p312 = scmp.eq.s32.totalorder %s22, 0
    %p313 = por %p311, %p312
    %p314 = scmp.ne.s32.totalorder %s300, %s301
    %p315 = scmp.eq.s32.totalorder %s23, 1
    %p316 = por %p314, %p315
    %p318 = scmp.ne.s32.totalorder %s301, %s317
    %p319 = scmp.eq.s32.totalorder %s23, 0
    %p320 = por %p318, %p319
    %p321 = scmp.le.s32.totalorder 1, %s17
    %p322 = scmp.lt.s32.totalorder %s17, 3
    %p323 = pnand %p321, %p322
    %p324 = pneg %p323
    // Predicated region
    $region9: #{boot_gcn_layer.5} parent=5 // pred_check
      _
    $region10: #{boot_gcn_layer.5} parent=5 // pred_check_branch
      %326 = sbr.rel (%p323) target = $region12
    $region11: #{boot_gcn_layer.5} parent=5 // pred_region
      %s327 = ssub.s32 %s17, 1
      // Predicated region
      $region13: #{boot_gcn_layer.5} parent=11 // pred_check
        %p328 = pneg %p81
      $region14: #{boot_gcn_layer.5} parent=11 // pred_check_branch
        %330 = sbr.rel (%p328) target = $region16
      $region15: #{boot_gcn_layer.5} parent=11 // pred_region
        %p331 = scmp.lt.s32.totalorder %s27, 0
        %s332 = scalar_select %p331, %s27, 0
        %s333 = scalar_lea.vmem %s1, %s332
      $region16: #{boot_gcn_layer.5} parent=11 // pred_fallthru
        _
      // Predicated region
      $region17: #{boot_gcn_layer.5} parent=11 // pred_check
        %p334 = pneg %p107
      $region18: #{boot_gcn_layer.5} parent=11 // pred_check_branch
        %336 = sbr.rel (%p334) target = $region20
      $region19: #{boot_gcn_layer.5} parent=11 // pred_region
        %s337 = smul.u32 16, %s27
        %p338 = scmp.lt.s32.totalorder %s337, 15
        %s339 = scalar_select %p338, %s337, 15
        %s340 = smul.addr %s339, 4
        %s341 = scalar_lea.vmem %s2, %s340
        %s342 = smul.u32 16, %s27
      $region20: #{boot_gcn_layer.5} parent=11 // pred_fallthru
        _
      // Predicated region
      $region21: #{boot_gcn_layer.5} parent=11 // pred_check
        %p343 = pneg %p133
      $region22: #{boot_gcn_layer.5} parent=11 // pred_check_branch
        %345 = sbr.rel (%p343) target = $region24
      $region23: #{boot_gcn_layer.5} parent=11 // pred_region
        %s346 = smul.u32 16, %s27
        %p347 = scmp.lt.s32.totalorder %s346, 15
        %s348 = scalar_select %p347, %s346, 15
        %s349 = smul.addr %s348, 4
        %s350 = scalar_lea.vmem %s3, %s349
        %s351 = smul.u32 16, %s27
      $region24: #{boot_gcn_layer.5} parent=11 // pred_fallthru
        _
      // Predicated region
      $region25: #{boot_gcn_layer.5} parent=11 // pred_check
        %p352 = pneg %p182
      $region26: #{boot_gcn_layer.5} parent=11 // pred_check_branch
        %354 = sbr.rel (%p352) target = $region28
      $region27: #{boot_gcn_layer.5} parent=11 // pred_region
        _
      $region28: #{boot_gcn_layer.5} parent=11 // pred_fallthru
        _
      // Predicated region
      $region29: #{boot_gcn_layer.5} parent=11 // pred_check
        %p355 = pneg %p203
      $region30: #{boot_gcn_layer.5} parent=11 // pred_check_branch
        %357 = sbr.rel (%p355) target = $region32
      $region31: #{boot_gcn_layer.5} parent=11 // pred_region
        _
      $region32: #{boot_gcn_layer.5} parent=11 // pred_fallthru
        _
      // Predicated region
      $region33: #{boot_gcn_layer.5} parent=11 // pred_check
        %p358 = pneg %p224
      $region34: #{boot_gcn_layer.5} parent=11 // pred_check_branch
        %360 = sbr.rel (%p358) target = $region36
      $region35: #{boot_gcn_layer.5} parent=11 // pred_region
        _
      $region36: #{boot_gcn_layer.5} parent=11 // pred_fallthru
        _
      // Predicated region
      $region37: #{boot_gcn_layer.5} parent=11 // pred_check
        %p361 = pneg %p245
      $region38: #{boot_gcn_layer.5} parent=11 // pred_check_branch
        %363 = sbr.rel (%p361) target = $region40
      $region39: #{boot_gcn_layer.5} parent=11 // pred_region
        _
      $region40: #{boot_gcn_layer.5} parent=11 // pred_fallthru
        _
      // Predicated region
      $region41: #{boot_gcn_layer.5} parent=11 // pred_check
        %p364 = pneg %p266
      $region42: #{boot_gcn_layer.5} parent=11 // pred_check_branch
        %366 = sbr.rel (%p364) target = $region44
      $region43: #{boot_gcn_layer.5} parent=11 // pred_region
        _
      $region44: #{boot_gcn_layer.5} parent=11 // pred_fallthru
        _
      // Predicated region
      $region45: #{boot_gcn_layer.5} parent=11 // pred_check
        %p367 = pneg %p287
      $region46: #{boot_gcn_layer.5} parent=11 // pred_check_branch
        %369 = sbr.rel (%p367) target = $region48
      $region47: #{boot_gcn_layer.5} parent=11 // pred_region
        _
      $region48: #{boot_gcn_layer.5} parent=11 // pred_fallthru
        _
    $region12: #{boot_gcn_layer.5} parent=5 // pred_fallthru
      _
    %p370 = scmp.lt.s32.totalorder %s17, 2
    // Predicated region
    $region49: #{boot_gcn_layer.5} parent=5 // pred_check
      %p371 = pneg %p370
    $region50: #{boot_gcn_layer.5} parent=5 // pred_check_branch
      %373 = sbr.rel (%p371) target = $region52
    $region51: #{boot_gcn_layer.5} parent=5 // pred_region
      // Predicated region
      $region53: #{boot_gcn_layer.5} parent=51 // pred_check
        %p374 = pneg %p49
      $region54: #{boot_gcn_layer.5} parent=51 // pred_check_branch
        %376 = sbr.rel (%p374) target = $region56
      $region55: #{boot_gcn_layer.5} parent=51 // pred_region
        %s377 = smul.u32 16, %s24
        %p378 = scmp.lt.s32.totalorder %s377, 31
        %s379 = scalar_select %p378, %s377, 31
        %s380 = smul.addr %s379, 8
        %s381 = scalar_lea.vmem %s0, %s380
        %s382 = smul.u32 16, %s24
      $region56: #{boot_gcn_layer.5} parent=51 // pred_fallthru
        _
      // Predicated region
      $region57: #{boot_gcn_layer.5} parent=51 // pred_check
        %p383 = pneg %p155
      $region58: #{boot_gcn_layer.5} parent=51 // pred_check_branch
        %385 = sbr.rel (%p383) target = $region60
      $region59: #{boot_gcn_layer.5} parent=51 // pred_region
        %s386 = smul.u32 4, %s24
        %p387 = scmp.lt.s32.totalorder %s386, 7
        %s388 = scalar_select %p387, %s386, 7
        %p389 = scmp.lt.s32.totalorder %s25, 0
        %s390 = scalar_select %p389, %s25, 0
        %s391 = sadd.s32 %s390, %s388
        %s392 = smul.addr %s391, 8
        %s393 = scalar_lea.vmem %s4, %s392
        %s394 = smul.u32 4, %s24
      $region60: #{boot_gcn_layer.5} parent=51 // pred_fallthru
        _
    $region52: #{boot_gcn_layer.5} parent=5 // pred_fallthru
      _
    %p395 = scmp.le.s32.totalorder 1, %s17
    %p396 = scmp.lt.s32.totalorder %s17, 3
    %p397 = pnand %p395, %p396
    %p398 = pneg %p397
    // Predicated region
    $region61: #{boot_gcn_layer.5} parent=5 // pred_check
      _
    $region62: #{boot_gcn_layer.5} parent=5 // pred_check_branch
      %400 = sbr.rel (%p397) target = $region64
    $region63: #{boot_gcn_layer.5} parent=5 // pred_region
      %s401 = ssub.s32 %s17, 1
      %s402 = smul.u32 16, %s26
      %p403 = scmp.lt.s32.totalorder %s402, 31
      %s404 = scalar_select %p403, %s402, 31
      %s405 = smul.addr %s404, 8
      %s406 = scalar_lea.vmem %s0, %s405
      %p407 = pneg %p55
      %p408 = pneg %p52
      %p409 = scmp.lt.s32.totalorder %s27, 0
      %s410 = scalar_select %p409, %s27, 0
      %s411 = scalar_lea.vmem %s1, %s410
      %p412 = pneg %p81
      %p413 = pneg %p78
      %s414 = smul.u32 16, %s27
      %p415 = scmp.lt.s32.totalorder %s414, 15
      %s416 = scalar_select %p415, %s414, 15
      %s417 = smul.addr %s416, 4
      %s418 = scalar_lea.vmem %s2, %s417
      %p419 = pneg %p107
      %p420 = pneg %p104
      %s421 = smul.u32 16, %s27
      %p422 = scmp.lt.s32.totalorder %s421, 15
      %s423 = scalar_select %p422, %s421, 15
      %s424 = smul.addr %s423, 4
      %s425 = scalar_lea.vmem %s3, %s424
      %p426 = pneg %p133
      %p427 = pneg %p130
      %s428 = smul.u32 4, %s26
      %p429 = scmp.lt.s32.totalorder %s428, 7
      %s430 = scalar_select %p429, %s428, 7
      %p431 = scmp.lt.s32.totalorder %s27, 0
      %s432 = scalar_select %p431, %s27, 0
      %s433 = sadd.s32 %s432, %s430
      %s434 = smul.addr %s433, 8
      %s435 = scalar_lea.vmem %s4, %s434
      %p436 = pneg %p161
      %p437 = pneg %p158
      %p438 = pneg %p182
      %p439 = pneg %p179
      %p440 = pneg %p203
      %p441 = pneg %p200
      %p442 = pneg %p224
      %p443 = pneg %p221
      %p444 = pneg %p245
      %p445 = pneg %p242
      %p446 = pneg %p266
      %p447 = pneg %p263
      %p448 = pneg %p287
      %p449 = pneg %p284
      %p450 = pneg %p313
      %p451 = pneg %p310
      %s452 = smul.u32 16, %s26
      %p453 = scmp.lt.s32.totalorder %s452, 31
      %s454 = scalar_select %p453, %s452, 31
      %s455 = smul.addr %s454, 8
      %s456 = scalar_lea.vmem %s11, %s455
      %s457 = smul.u32 16, %s26
      %p458 = scmp.lt.s32.totalorder %s457, 31
      %s459 = scalar_select %p458, %s457, 31
      %s460 = smul.addr %s459, 8
      %s461 = scalar_lea.vmem %s0, %s460
      %s462 = smul.u32 16, %s26
      %p463 = scmp.lt.s32.totalorder %s27, 0
      %s464 = scalar_select %p463, %s27, 0
      %s465 = scalar_lea.vmem %s1, %s464
      %s466 = smul.u32 16, %s27
      %p467 = scmp.lt.s32.totalorder %s466, 15
      %s468 = scalar_select %p467, %s466, 15
      %s469 = smul.addr %s468, 4
      %s470 = scalar_lea.vmem %s2, %s469
      %s471 = smul.u32 16, %s27
      %s472 = smul.u32 16, %s27
      %p473 = scmp.lt.s32.totalorder %s472, 15
      %s474 = scalar_select %p473, %s472, 15
      %s475 = smul.addr %s474, 4
      %s476 = scalar_lea.vmem %s3, %s475
      %s477 = smul.u32 16, %s27
      %s478 = smul.u32 4, %s26
      %p479 = scmp.lt.s32.totalorder %s478, 7
      %s480 = scalar_select %p479, %s478, 7
      %p481 = scmp.lt.s32.totalorder %s27, 0
      %s482 = scalar_select %p481, %s27, 0
      %s483 = sadd.s32 %s482, %s480
      %s484 = smul.addr %s483, 8
      %s485 = scalar_lea.vmem %s4, %s484
      %s486 = smul.u32 4, %s26
      %s487 = smul.u32 16, %s26
      %p488 = scmp.lt.s32.totalorder %s487, 31
      %s489 = scalar_select %p488, %s487, 31
      %s490 = smul.addr %s489, 8
      %s491 = scalar_lea.vmem %s11, %s490
      %s492 = smul.u32 16, %s26
      %p494 = scmp.eq.s32.totalorder %s27, 0
      // Predicated region
      $region65: #{boot_gcn_layer.5} parent=63 // pred_check
        %p495 = pneg %p494
      $region66: #{boot_gcn_layer.5} parent=63 // pred_check_branch
        %497 = sbr.rel (%p495) target = $region68
      $region67: #{boot_gcn_layer.5} parent=63 // pred_region
        %v498 = vld [vmem:[%s461] sm:$0xff]
        %v499 = vld [vmem:[%s461 + $0x8] sm:$0xff]
        %v500 = vld [vmem:[%s461 + $0x10] sm:$0xff]
        %v501 = vld [vmem:[%s461 + $0x18] sm:$0xff]
        %v502 = vld [vmem:[%s461 + $0x20] sm:$0xff]
        %v503 = vld [vmem:[%s461 + $0x28] sm:$0xff]
        %v504 = vld [vmem:[%s461 + $0x30] sm:$0xff]
        %v505 = vld [vmem:[%s461 + $0x38] sm:$0xff]
        %v506 = vld [vmem:[%s461 + $0x40] sm:$0xff]
        %v507 = vld [vmem:[%s461 + $0x48] sm:$0xff]
        %v508 = vld [vmem:[%s461 + $0x50] sm:$0xff]
        %v509 = vld [vmem:[%s461 + $0x58] sm:$0xff]
        %v510 = vld [vmem:[%s461 + $0x60] sm:$0xff]
        %v511 = vld [vmem:[%s461 + $0x68] sm:$0xff]
        %v512 = vld [vmem:[%s461 + $0x70] sm:$0xff]
        %v513 = vld [vmem:[%s461 + $0x78] sm:$0xff]
        %v514 = vpack.c.bf16 %v499, %v498
        %v515 = vpack.c.bf16 %v501, %v500
        %v516 = vpack.c.bf16 %v503, %v502
        %v517 = vpack.c.bf16 %v505, %v504
        %v518 = vpack.c.bf16 %v507, %v506
        %v519 = vpack.c.bf16 %v509, %v508
        %v520 = vpack.c.bf16 %v511, %v510
        %v521 = vpack.c.bf16 %v513, %v512
        %v522 = vld [vmem:[%s5] sm:$0xf]
        %v523 = vld [vmem:[%s5 + $0x4] sm:$0xf]
        %v524 = vld [vmem:[%s5 + $0x8] sm:$0xf]
        %v525 = vld [vmem:[%s5 + $0xc] sm:$0xf]
        %v526 = vld [vmem:[%s5 + $0x10] sm:$0xf]
        %v527 = vld [vmem:[%s5 + $0x14] sm:$0xf]
        %v528 = vld [vmem:[%s5 + $0x18] sm:$0xf]
        %v529 = vld [vmem:[%s5 + $0x1c] sm:$0xf]
        %v530 = vld [vmem:[%s5 + $0x20] sm:$0xf]
        %v531 = vld [vmem:[%s5 + $0x24] sm:$0xf]
        %v532 = vld [vmem:[%s5 + $0x28] sm:$0xf]
        %v533 = vld [vmem:[%s5 + $0x2c] sm:$0xf]
        %v534 = vld [vmem:[%s5 + $0x30] sm:$0xf]
        %v535 = vld [vmem:[%s5 + $0x34] sm:$0xf]
        %v536 = vld [vmem:[%s5 + $0x38] sm:$0xf]
        %v537 = vld [vmem:[%s5 + $0x3c] sm:$0xf]
        %v538 = vld [vmem:[%s6] sm:$0x1]
        %v539 = vunpack.c.l.bf16 %v538
        %v540 = vlaneseq
        %v541 = vshrl.u32 %v540, 7
        %v542 = vsub.s32 0, %v541
        %v543 = vrot.slane %v539, %v542
        %v560 = vunpack.c.l.b16 %v522
        %v561 = vunpack.c.l.b16 %v523
        %v562 = vunpack.c.l.b16 %v524
        %v563 = vunpack.c.l.b16 %v525
        %v564 = vunpack.c.l.b16 %v526
        %v565 = vunpack.c.l.b16 %v527
        %v566 = vunpack.c.l.b16 %v528
        %v567 = vunpack.c.l.b16 %v529
        %v568 = vunpack.c.l.b16 %v530
        %v569 = vunpack.c.l.b16 %v531
        %v570 = vunpack.c.l.b16 %v532
        %v571 = vunpack.c.l.b16 %v533
        %v572 = vunpack.c.l.b16 %v534
        %v573 = vunpack.c.l.b16 %v535
        %v574 = vunpack.c.l.b16 %v536
        %v575 = vunpack.c.l.b16 %v537
        %v576 = vpack.c.b16 %v561, %v560
        %v577 = vpack.c.b16 %v563, %v562
        %v578 = vpack.c.b16 %v565, %v564
        %v579 = vpack.c.b16 %v567, %v566
        %v580 = vpack.c.b16 %v569, %v568
        %v581 = vpack.c.b16 %v571, %v570
        %v582 = vpack.c.b16 %v573, %v572
        %v583 = vpack.c.b16 %v575, %v574
        %592 = vmatprep.subr.bf16.mxu0 0
        %593 = vmatpush1.bf16.msra.mxu0 %v583
        %594 = vmatprep.subr.bf16.mxu0 0
        %595 = vmatpush1.bf16.msra.mxu0 %v582
        %596 = vmatprep.subr.bf16.mxu0 0
        %597 = vmatpush1.bf16.msra.mxu0 %v581
        %598 = vmatprep.subr.bf16.mxu0 0
        %599 = vmatpush1.bf16.msra.mxu0 %v580
        %600 = vmatprep.subr.bf16.mxu0 0
        %601 = vmatpush1.bf16.msra.mxu0 %v579
        %602 = vmatprep.subr.bf16.mxu0 0
        %603 = vmatpush1.bf16.msra.mxu0 %v578
        %604 = vmatprep.subr.bf16.mxu0 0
        %605 = vmatpush1.bf16.msra.mxu0 %v577
        %606 = vmatprep.subr.bf16.mxu0 0
        %607 = vmatpush1.bf16.msra.mxu0 %v576
        %608 = vmatprep.subr.bf16.mxu0 0
        %609 = vmatpush2.bf16.msra.mxu0 0
        %610 = vmatprep.subr.bf16.mxu0 0
        %611 = vmatpush2.bf16.msra.mxu0 0
        %612 = vmatprep.subr.bf16.mxu0 0
        %613 = vmatpush2.bf16.msra.mxu0 0
        %614 = vmatprep.subr.bf16.mxu0 0
        %615 = vmatpush2.bf16.msra.mxu0 0
        %616 = vmatprep.subr.bf16.mxu0 0
        %617 = vmatpush2.bf16.msra.mxu0 0
        %618 = vmatprep.subr.bf16.mxu0 0
        %619 = vmatpush2.bf16.msra.mxu0 0
        %620 = vmatprep.subr.bf16.mxu0 0
        %621 = vmatpush2.bf16.msra.mxu0 0
        %622 = vmatprep.subr.bf16.mxu0 0
        %623 = vmatpush2.bf16.msra.mxu0 0
        %624 = vmatprep.mubr.bf16.mxu0 0
        %625 = vmatmul.mubr.bf16.gmra.mxu0 %v514
        %v626 = vpop.f32.mrf.mxu0
        %v627 = vadd.f32 %v543, %v626
        %v628 = vpop.f32.mrf.mxu0
        %v629 = vpop.f32.mrf.mxu0
        %v630 = vadd.f32 %v543, %v629
        %v631 = vpop.f32.mrf.mxu0
        %632 = vmatprep.mubr.bf16.mxu0 0
        %633 = vmatmul.mubr.bf16.gmra.mxu0 %v515
        %v634 = vpop.f32.mrf.mxu0
        %v635 = vadd.f32 %v543, %v634
        %v636 = vpop.f32.mrf.mxu0
        %v637 = vpop.f32.mrf.mxu0
        %v638 = vadd.f32 %v543, %v637
        %v639 = vpop.f32.mrf.mxu0
        %640 = vmatprep.mubr.bf16.mxu0 0
        %641 = vmatmul.mubr.bf16.gmra.mxu0 %v516
        %v642 = vpop.f32.mrf.mxu0
        %v643 = vadd.f32 %v543, %v642
        %v644 = vpop.f32.mrf.mxu0
        %v645 = vpop.f32.mrf.mxu0
        %v646 = vadd.f32 %v543, %v645
        %v647 = vpop.f32.mrf.mxu0
        %648 = vmatprep.mubr.bf16.mxu0 0
        %649 = vmatmul.mubr.bf16.gmra.mxu0 %v517
        %v650 = vpop.f32.mrf.mxu0
        %v651 = vadd.f32 %v543, %v650
        %v652 = vpop.f32.mrf.mxu0
        %v653 = vpop.f32.mrf.mxu0
        %v654 = vadd.f32 %v543, %v653
        %v655 = vpop.f32.mrf.mxu0
        %656 = vmatprep.mubr.bf16.mxu0 0
        %657 = vmatmul.mubr.bf16.gmra.mxu0 %v518
        %v658 = vpop.f32.mrf.mxu0
        %v659 = vadd.f32 %v543, %v658
        %v660 = vpop.f32.mrf.mxu0
        %v661 = vpop.f32.mrf.mxu0
        %v662 = vadd.f32 %v543, %v661
        %v663 = vpop.f32.mrf.mxu0
        %664 = vmatprep.mubr.bf16.mxu0 0
        %665 = vmatmul.mubr.bf16.gmra.mxu0 %v519
        %v666 = vpop.f32.mrf.mxu0
        %v667 = vadd.f32 %v543, %v666
        %v668 = vpop.f32.mrf.mxu0
        %v669 = vpop.f32.mrf.mxu0
        %v670 = vadd.f32 %v543, %v669
        %v671 = vpop.f32.mrf.mxu0
        %672 = vmatprep.mubr.bf16.mxu0 0
        %673 = vmatmul.mubr.bf16.gmra.mxu0 %v520
        %v674 = vpop.f32.mrf.mxu0
        %v675 = vadd.f32 %v543, %v674
        %v676 = vpop.f32.mrf.mxu0
        %v677 = vpop.f32.mrf.mxu0
        %v678 = vadd.f32 %v543, %v677
        %v679 = vpop.f32.mrf.mxu0
        %680 = vmatprep.mubr.bf16.mxu0 0
        %681 = vmatmul.mubr.bf16.gmra.mxu0 %v521
        %v682 = vpop.f32.mrf.mxu0
        %v683 = vadd.f32 %v543, %v682
        %v684 = vpop.f32.mrf.mxu0
        %v685 = vpop.f32.mrf.mxu0
        %v686 = vadd.f32 %v543, %v685
        %v687 = vpop.f32.mrf.mxu0
        %688 = vdwg.mxu0
        %v689 = vpack.c.bf16 %v630, %v627
        %v690 = vpack.c.bf16 %v638, %v635
        %v691 = vpack.c.bf16 %v646, %v643
        %v692 = vpack.c.bf16 %v654, %v651
        %v693 = vpack.c.bf16 %v662, %v659
        %v694 = vpack.c.bf16 %v670, %v667
        %v695 = vpack.c.bf16 %v678, %v675
        %v696 = vpack.c.bf16 %v686, %v683
        %v705 = vunpack.c.l.b16 %v689
        %v706 = vunpack.c.h.b16 %v689
        %v707 = vunpack.c.l.b16 %v690
        %v708 = vunpack.c.h.b16 %v690
        %v709 = vunpack.c.l.b16 %v691
        %v710 = vunpack.c.h.b16 %v691
        %v711 = vunpack.c.l.b16 %v692
        %v712 = vunpack.c.h.b16 %v692
        %v713 = vunpack.c.l.b16 %v693
        %v714 = vunpack.c.h.b16 %v693
        %v715 = vunpack.c.l.b16 %v694
        %v716 = vunpack.c.h.b16 %v694
        %v717 = vunpack.c.l.b16 %v695
        %v718 = vunpack.c.h.b16 %v695
        %v719 = vunpack.c.l.b16 %v696
        %v720 = vunpack.c.h.b16 %v696
        %v721 = vpack.c.b16 %v705, %v705
        %v722 = vpack.c.b16 %v706, %v706
        %v723 = vpack.c.b16 %v707, %v707
        %v724 = vpack.c.b16 %v708, %v708
        %v725 = vpack.c.b16 %v709, %v709
        %v726 = vpack.c.b16 %v710, %v710
        %v727 = vpack.c.b16 %v711, %v711
        %v728 = vpack.c.b16 %v712, %v712
        %v729 = vpack.c.b16 %v713, %v713
        %v730 = vpack.c.b16 %v714, %v714
        %v731 = vpack.c.b16 %v715, %v715
        %v732 = vpack.c.b16 %v716, %v716
        %v733 = vpack.c.b16 %v717, %v717
        %v734 = vpack.c.b16 %v718, %v718
        %v735 = vpack.c.b16 %v719, %v719
        %v736 = vpack.c.b16 %v720, %v720
        %753 = vst [vmem:[#allocation2] sm:$0xf] %v721
        %754 = vst [vmem:[#allocation2 + $0x4] sm:$0xf] %v722
        %755 = vst [vmem:[#allocation2 + $0x8] sm:$0xf] %v723
        %756 = vst [vmem:[#allocation2 + $0xc] sm:$0xf] %v724
        %757 = vst [vmem:[#allocation2 + $0x10] sm:$0xf] %v725
        %758 = vst [vmem:[#allocation2 + $0x14] sm:$0xf] %v726
        %759 = vst [vmem:[#allocation2 + $0x18] sm:$0xf] %v727
        %760 = vst [vmem:[#allocation2 + $0x1c] sm:$0xf] %v728
        %761 = vst [vmem:[#allocation2 + $0x20] sm:$0xf] %v729
        %762 = vst [vmem:[#allocation2 + $0x24] sm:$0xf] %v730
        %763 = vst [vmem:[#allocation2 + $0x28] sm:$0xf] %v731
        %764 = vst [vmem:[#allocation2 + $0x2c] sm:$0xf] %v732
        %765 = vst [vmem:[#allocation2 + $0x30] sm:$0xf] %v733
        %766 = vst [vmem:[#allocation2 + $0x34] sm:$0xf] %v734
        %767 = vst [vmem:[#allocation2 + $0x38] sm:$0xf] %v735
        %768 = vst [vmem:[#allocation2 + $0x3c] sm:$0xf] %v736
        %v769 = vld [vmem:[%s7] sm:$0xff]
        %v770 = vld [vmem:[%s7 + $0x8] sm:$0xff]
        %v771 = vld [vmem:[%s7 + $0x10] sm:$0xff]
        %v772 = vld [vmem:[%s7 + $0x18] sm:$0xff]
        %v773 = vld [vmem:[%s7 + $0x20] sm:$0xff]
        %v774 = vld [vmem:[%s7 + $0x28] sm:$0xff]
        %v775 = vld [vmem:[%s7 + $0x30] sm:$0xff]
        %v776 = vld [vmem:[%s7 + $0x38] sm:$0xff]
        %v777 = vld [vmem:[%s7 + $0x40] sm:$0xff]
        %v778 = vld [vmem:[%s7 + $0x48] sm:$0xff]
        %v779 = vld [vmem:[%s7 + $0x50] sm:$0xff]
        %v780 = vld [vmem:[%s7 + $0x58] sm:$0xff]
        %v781 = vld [vmem:[%s7 + $0x60] sm:$0xff]
        %v782 = vld [vmem:[%s7 + $0x68] sm:$0xff]
        %v783 = vld [vmem:[%s7 + $0x70] sm:$0xff]
        %v784 = vld [vmem:[%s7 + $0x78] sm:$0xff]
        %v785 = vld [vmem:[%s8] sm:$0x1]
        %v787 = vlaneseq
        %v788 = vshrl.u32 %v787, 7
        %v789 = vsub.s32 0, %v788
        %v790 = vrot.slane %v785, %v789
        %792 = vmatprep.subr.mxu0 0.0
        %793 = vmatpush1.msra.mxu0 %v784
        %794 = vmatprep.subr.mxu0 0.0
        %795 = vmatpush1.msra.mxu0 %v783
        %796 = vmatprep.subr.mxu0 0.0
        %797 = vmatpush1.msra.mxu0 %v782
        %798 = vmatprep.subr.mxu0 0.0
        %799 = vmatpush1.msra.mxu0 %v781
        %800 = vmatprep.subr.mxu0 0.0
        %801 = vmatpush1.msra.mxu0 %v780
        %802 = vmatprep.subr.mxu0 0.0
        %803 = vmatpush1.msra.mxu0 %v779
        %804 = vmatprep.subr.mxu0 0.0
        %805 = vmatpush1.msra.mxu0 %v778
        %806 = vmatprep.subr.mxu0 0.0
        %807 = vmatpush1.msra.mxu0 %v777
        %808 = vmatprep.subr.mxu0 0.0
        %809 = vmatpush1.msra.mxu0 %v776
        %810 = vmatprep.subr.mxu0 0.0
        %811 = vmatpush1.msra.mxu0 %v775
        %812 = vmatprep.subr.mxu0 0.0
        %813 = vmatpush1.msra.mxu0 %v774
        %814 = vmatprep.subr.mxu0 0.0
        %815 = vmatpush1.msra.mxu0 %v773
        %816 = vmatprep.subr.mxu0 0.0
        %817 = vmatpush1.msra.mxu0 %v772
        %818 = vmatprep.subr.mxu0 0.0
        %819 = vmatpush1.msra.mxu0 %v771
        %820 = vmatprep.subr.mxu0 0.0
        %821 = vmatpush1.msra.mxu0 %v770
        %822 = vmatprep.subr.mxu0 0.0
        %823 = vmatpush1.msra.mxu0 %v769
        %824 = vmatprep.subr.mxu0 0.0
        %825 = vmatpush2.msra.mxu0 0.0
        %826 = vmatprep.subr.mxu0 0.0
        %827 = vmatpush2.msra.mxu0 0.0
        %828 = vmatprep.subr.mxu0 0.0
        %829 = vmatpush2.msra.mxu0 0.0
        %830 = vmatprep.subr.mxu0 0.0
        %831 = vmatpush2.msra.mxu0 0.0
        %832 = vmatprep.subr.mxu0 0.0
        %833 = vmatpush2.msra.mxu0 0.0
        %834 = vmatprep.subr.mxu0 0.0
        %835 = vmatpush2.msra.mxu0 0.0
        %836 = vmatprep.subr.mxu0 0.0
        %837 = vmatpush2.msra.mxu0 0.0
        %838 = vmatprep.subr.mxu0 0.0
        %839 = vmatpush2.msra.mxu0 0.0
        %840 = vmatprep.subr.mxu0 0.0
        %841 = vmatpush2.msra.mxu0 0.0
        %842 = vmatprep.subr.mxu0 0.0
        %843 = vmatpush2.msra.mxu0 0.0
        %844 = vmatprep.subr.mxu0 0.0
        %845 = vmatpush2.msra.mxu0 0.0
        %846 = vmatprep.subr.mxu0 0.0
        %847 = vmatpush2.msra.mxu0 0.0
        %848 = vmatprep.subr.mxu0 0.0
        %849 = vmatpush2.msra.mxu0 0.0
        %850 = vmatprep.subr.mxu0 0.0
        %851 = vmatpush2.msra.mxu0 0.0
        %852 = vmatprep.subr.mxu0 0.0
        %853 = vmatpush2.msra.mxu0 0.0
        %854 = vmatprep.subr.mxu0 0.0
        %855 = vmatpush2.msra.mxu0 0.0
        %856 = vmatprep.mubr.f32.mxu0 0.0
        %857 = vmatmul.mubr.f32.gmra.mxu0 %v498
        %v858 = vpop.f32.mrf.mxu0
        %v859 = vadd.f32 %v790, %v858
        %v860 = vpop.f32.mrf.mxu0
        %861 = vmatprep.mubr.f32.mxu0 0.0
        %862 = vmatmul.mubr.f32.gmra.mxu0 %v499
        %v863 = vpop.f32.mrf.mxu0
        %v864 = vadd.f32 %v790, %v863
        %v865 = vpop.f32.mrf.mxu0
        %866 = vmatprep.mubr.f32.mxu0 0.0
        %867 = vmatmul.mubr.f32.gmra.mxu0 %v500
        %v868 = vpop.f32.mrf.mxu0
        %v869 = vadd.f32 %v790, %v868
        %v870 = vpop.f32.mrf.mxu0
        %871 = vmatprep.mubr.f32.mxu0 0.0
        %872 = vmatmul.mubr.f32.gmra.mxu0 %v501
        %v873 = vpop.f32.mrf.mxu0
        %v874 = vadd.f32 %v790, %v873
        %v875 = vpop.f32.mrf.mxu0
        %876 = vmatprep.mubr.f32.mxu0 0.0
        %877 = vmatmul.mubr.f32.gmra.mxu0 %v502
        %v878 = vpop.f32.mrf.mxu0
        %v879 = vadd.f32 %v790, %v878
        %v880 = vpop.f32.mrf.mxu0
        %881 = vmatprep.mubr.f32.mxu0 0.0
        %882 = vmatmul.mubr.f32.gmra.mxu0 %v503
        %v883 = vpop.f32.mrf.mxu0
        %v884 = vadd.f32 %v790, %v883
        %v885 = vpop.f32.mrf.mxu0
        %886 = vmatprep.mubr.f32.mxu0 0.0
        %887 = vmatmul.mubr.f32.gmra.mxu0 %v504
        %v888 = vpop.f32.mrf.mxu0
        %v889 = vadd.f32 %v790, %v888
        %v890 = vpop.f32.mrf.mxu0
        %891 = vmatprep.mubr.f32.mxu0 0.0
        %892 = vmatmul.mubr.f32.gmra.mxu0 %v505
        %v893 = vpop.f32.mrf.mxu0
        %v894 = vadd.f32 %v790, %v893
        %v895 = vpop.f32.mrf.mxu0
        %896 = vmatprep.mubr.f32.mxu0 0.0
        %897 = vmatmul.mubr.f32.gmra.mxu0 %v506
        %v898 = vpop.f32.mrf.mxu0
        %v899 = vadd.f32 %v790, %v898
        %v900 = vpop.f32.mrf.mxu0
        %901 = vmatprep.mubr.f32.mxu0 0.0
        %902 = vmatmul.mubr.f32.gmra.mxu0 %v507
        %v903 = vpop.f32.mrf.mxu0
        %v904 = vadd.f32 %v790, %v903
        %v905 = vpop.f32.mrf.mxu0
        %906 = vmatprep.mubr.f32.mxu0 0.0
        %907 = vmatmul.mubr.f32.gmra.mxu0 %v508
        %v908 = vpop.f32.mrf.mxu0
        %v909 = vadd.f32 %v790, %v908
        %v910 = vpop.f32.mrf.mxu0
        %911 = vmatprep.mubr.f32.mxu0 0.0
        %912 = vmatmul.mubr.f32.gmra.mxu0 %v509
        %v913 = vpop.f32.mrf.mxu0
        %v914 = vadd.f32 %v790, %v913
        %v915 = vpop.f32.mrf.mxu0
        %916 = vmatprep.mubr.f32.mxu0 0.0
        %917 = vmatmul.mubr.f32.gmra.mxu0 %v510
        %v918 = vpop.f32.mrf.mxu0
        %v919 = vadd.f32 %v790, %v918
        %v920 = vpop.f32.mrf.mxu0
        %921 = vmatprep.mubr.f32.mxu0 0.0
        %922 = vmatmul.mubr.f32.gmra.mxu0 %v511
        %v923 = vpop.f32.mrf.mxu0
        %v924 = vadd.f32 %v790, %v923
        %v925 = vpop.f32.mrf.mxu0
        %926 = vmatprep.mubr.f32.mxu0 0.0
        %927 = vmatmul.mubr.f32.gmra.mxu0 %v512
        %v928 = vpop.f32.mrf.mxu0
        %v929 = vadd.f32 %v790, %v928
        %v930 = vpop.f32.mrf.mxu0
        %931 = vmatprep.mubr.f32.mxu0 0.0
        %932 = vmatmul.mubr.f32.gmra.mxu0 %v513
        %v933 = vpop.f32.mrf.mxu0
        %v934 = vadd.f32 %v790, %v933
        %v935 = vpop.f32.mrf.mxu0
        %936 = vdwg.mxu0
        %937 = vst [vmem:[#allocation3] sm:$0xff] %v859
        %938 = vst [vmem:[#allocation3 + $0x8] sm:$0xff] %v864
        %939 = vst [vmem:[#allocation3 + $0x10] sm:$0xff] %v869
        %940 = vst [vmem:[#allocation3 + $0x18] sm:$0xff] %v874
        %941 = vst [vmem:[#allocation3 + $0x20] sm:$0xff] %v879
        %942 = vst [vmem:[#allocation3 + $0x28] sm:$0xff] %v884
        %943 = vst [vmem:[#allocation3 + $0x30] sm:$0xff] %v889
        %944 = vst [vmem:[#allocation3 + $0x38] sm:$0xff] %v894
        %945 = vst [vmem:[#allocation3 + $0x40] sm:$0xff] %v899
        %946 = vst [vmem:[#allocation3 + $0x48] sm:$0xff] %v904
        %947 = vst [vmem:[#allocation3 + $0x50] sm:$0xff] %v909
        %948 = vst [vmem:[#allocation3 + $0x58] sm:$0xff] %v914
        %949 = vst [vmem:[#allocation3 + $0x60] sm:$0xff] %v919
        %950 = vst [vmem:[#allocation3 + $0x68] sm:$0xff] %v924
        %951 = vst [vmem:[#allocation3 + $0x70] sm:$0xff] %v929
        %952 = vst [vmem:[#allocation3 + $0x78] sm:$0xff] %v934
        %vm953 = vcmask 7168
        %954 = vst.msk [vmem:[#allocation4] sm:$0xff] %vm953, -inf
        %955 = vst.msk [vmem:[#allocation4 + $0x8] sm:$0xff] %vm953, -inf
        %956 = vst.msk [vmem:[#allocation4 + $0x10] sm:$0xff] %vm953, -inf
        %957 = vst.msk [vmem:[#allocation4 + $0x18] sm:$0xff] %vm953, -inf
        %958 = vst.msk [vmem:[#allocation4 + $0x20] sm:$0xff] %vm953, -inf
        %959 = vst.msk [vmem:[#allocation4 + $0x28] sm:$0xff] %vm953, -inf
        %960 = vst.msk [vmem:[#allocation4 + $0x30] sm:$0xff] %vm953, -inf
        %961 = vst.msk [vmem:[#allocation4 + $0x38] sm:$0xff] %vm953, -inf
        %962 = vst.msk [vmem:[#allocation4 + $0x40] sm:$0xff] %vm953, -inf
        %963 = vst.msk [vmem:[#allocation4 + $0x48] sm:$0xff] %vm953, -inf
        %964 = vst.msk [vmem:[#allocation4 + $0x50] sm:$0xff] %vm953, -inf
        %965 = vst.msk [vmem:[#allocation4 + $0x58] sm:$0xff] %vm953, -inf
        %966 = vst.msk [vmem:[#allocation4 + $0x60] sm:$0xff] %vm953, -inf
        %967 = vst.msk [vmem:[#allocation4 + $0x68] sm:$0xff] %vm953, -inf
        %968 = vst.msk [vmem:[#allocation4 + $0x70] sm:$0xff] %vm953, -inf
        %969 = vst.msk [vmem:[#allocation4 + $0x78] sm:$0xff] %vm953, -inf
        %970 = vst.msk [vmem:[#allocation5] sm:$0xff] %vm953, 0.0
        %971 = vst.msk [vmem:[#allocation5 + $0x8] sm:$0xff] %vm953, 0.0
        %972 = vst.msk [vmem:[#allocation5 + $0x10] sm:$0xff] %vm953, 0.0
        %973 = vst.msk [vmem:[#allocation5 + $0x18] sm:$0xff] %vm953, 0.0
        %974 = vst.msk [vmem:[#allocation5 + $0x20] sm:$0xff] %vm953, 0.0
        %975 = vst.msk [vmem:[#allocation5 + $0x28] sm:$0xff] %vm953, 0.0
        %976 = vst.msk [vmem:[#allocation5 + $0x30] sm:$0xff] %vm953, 0.0
        %977 = vst.msk [vmem:[#allocation5 + $0x38] sm:$0xff] %vm953, 0.0
        %978 = vst.msk [vmem:[#allocation5 + $0x40] sm:$0xff] %vm953, 0.0
        %979 = vst.msk [vmem:[#allocation5 + $0x48] sm:$0xff] %vm953, 0.0
        %980 = vst.msk [vmem:[#allocation5 + $0x50] sm:$0xff] %vm953, 0.0
        %981 = vst.msk [vmem:[#allocation5 + $0x58] sm:$0xff] %vm953, 0.0
        %982 = vst.msk [vmem:[#allocation5 + $0x60] sm:$0xff] %vm953, 0.0
        %983 = vst.msk [vmem:[#allocation5 + $0x68] sm:$0xff] %vm953, 0.0
        %984 = vst.msk [vmem:[#allocation5 + $0x70] sm:$0xff] %vm953, 0.0
        %985 = vst.msk [vmem:[#allocation5 + $0x78] sm:$0xff] %vm953, 0.0
        %986 = vst.msk [vmem:[#allocation6] sm:$0xff] %vm953, 0.0
        %987 = vst.msk [vmem:[#allocation6 + $0x8] sm:$0xff] %vm953, 0.0
        %988 = vst.msk [vmem:[#allocation6 + $0x10] sm:$0xff] %vm953, 0.0
        %989 = vst.msk [vmem:[#allocation6 + $0x18] sm:$0xff] %vm953, 0.0
        %990 = vst.msk [vmem:[#allocation6 + $0x20] sm:$0xff] %vm953, 0.0
        %991 = vst.msk [vmem:[#allocation6 + $0x28] sm:$0xff] %vm953, 0.0
        %992 = vst.msk [vmem:[#allocation6 + $0x30] sm:$0xff] %vm953, 0.0
        %993 = vst.msk [vmem:[#allocation6 + $0x38] sm:$0xff] %vm953, 0.0
        %994 = vst.msk [vmem:[#allocation6 + $0x40] sm:$0xff] %vm953, 0.0
        %995 = vst.msk [vmem:[#allocation6 + $0x48] sm:$0xff] %vm953, 0.0
        %996 = vst.msk [vmem:[#allocation6 + $0x50] sm:$0xff] %vm953, 0.0
        %997 = vst.msk [vmem:[#allocation6 + $0x58] sm:$0xff] %vm953, 0.0
        %998 = vst.msk [vmem:[#allocation6 + $0x60] sm:$0xff] %vm953, 0.0
        %999 = vst.msk [vmem:[#allocation6 + $0x68] sm:$0xff] %vm953, 0.0
        %1000 = vst.msk [vmem:[#allocation6 + $0x70] sm:$0xff] %vm953, 0.0
        %1001 = vst.msk [vmem:[#allocation6 + $0x78] sm:$0xff] %vm953, 0.0
        %1002 = vst [vmem:[#allocation7] sm:$0xff] 0.0
        %1003 = vst [vmem:[#allocation7 + $0x8] sm:$0xff] 0.0
        %1004 = vst [vmem:[#allocation7 + $0x10] sm:$0xff] 0.0
        %1005 = vst [vmem:[#allocation7 + $0x18] sm:$0xff] 0.0
        %1006 = vst [vmem:[#allocation7 + $0x20] sm:$0xff] 0.0
        %1007 = vst [vmem:[#allocation7 + $0x28] sm:$0xff] 0.0
        %1008 = vst [vmem:[#allocation7 + $0x30] sm:$0xff] 0.0
        %1009 = vst [vmem:[#allocation7 + $0x38] sm:$0xff] 0.0
        %1010 = vst [vmem:[#allocation7 + $0x40] sm:$0xff] 0.0
        %1011 = vst [vmem:[#allocation7 + $0x48] sm:$0xff] 0.0
        %1012 = vst [vmem:[#allocation7 + $0x50] sm:$0xff] 0.0
        %1013 = vst [vmem:[#allocation7 + $0x58] sm:$0xff] 0.0
        %1014 = vst [vmem:[#allocation7 + $0x60] sm:$0xff] 0.0
        %1015 = vst [vmem:[#allocation7 + $0x68] sm:$0xff] 0.0
        %1016 = vst [vmem:[#allocation7 + $0x70] sm:$0xff] 0.0
        %1017 = vst [vmem:[#allocation7 + $0x78] sm:$0xff] 0.0
        %1018 = vst [vmem:[#allocation8] sm:$0xff] 0.0
        %1019 = vst [vmem:[#allocation8 + $0x8] sm:$0xff] 0.0
        %1020 = vst [vmem:[#allocation8 + $0x10] sm:$0xff] 0.0
        %1021 = vst [vmem:[#allocation8 + $0x18] sm:$0xff] 0.0
        %1022 = vst [vmem:[#allocation8 + $0x20] sm:$0xff] 0.0
        %1023 = vst [vmem:[#allocation8 + $0x28] sm:$0xff] 0.0
        %1024 = vst [vmem:[#allocation8 + $0x30] sm:$0xff] 0.0
        %1025 = vst [vmem:[#allocation8 + $0x38] sm:$0xff] 0.0
        %1026 = vst [vmem:[#allocation8 + $0x40] sm:$0xff] 0.0
        %1027 = vst [vmem:[#allocation8 + $0x48] sm:$0xff] 0.0
        %1028 = vst [vmem:[#allocation8 + $0x50] sm:$0xff] 0.0
        %1029 = vst [vmem:[#allocation8 + $0x58] sm:$0xff] 0.0
        %1030 = vst [vmem:[#allocation8 + $0x60] sm:$0xff] 0.0
        %1031 = vst [vmem:[#allocation8 + $0x68] sm:$0xff] 0.0
        %1032 = vst [vmem:[#allocation8 + $0x70] sm:$0xff] 0.0
        %1033 = vst [vmem:[#allocation8 + $0x78] sm:$0xff] 0.0
      $region68: #{boot_gcn_layer.5} parent=63 // pred_fallthru
        _
      %v1034 = vld [vmem:[%s470] sm:$0xf]
      %v1035 = vld [vmem:[%s470 + $0x4] sm:$0xf]
      %v1036 = vld [vmem:[%s470 + $0x8] sm:$0xf]
      %v1037 = vld [vmem:[%s470 + $0xc] sm:$0xf]
      %v1038 = vld [vmem:[%s470 + $0x10] sm:$0xf]
      %v1039 = vld [vmem:[%s470 + $0x14] sm:$0xf]
      %v1040 = vld [vmem:[%s470 + $0x18] sm:$0xf]
      %v1041 = vld [vmem:[%s470 + $0x1c] sm:$0xf]
      %v1042 = vld [vmem:[%s470 + $0x20] sm:$0xf]
      %v1043 = vld [vmem:[%s470 + $0x24] sm:$0xf]
      %v1044 = vld [vmem:[%s470 + $0x28] sm:$0xf]
      %v1045 = vld [vmem:[%s470 + $0x2c] sm:$0xf]
      %v1046 = vld [vmem:[%s470 + $0x30] sm:$0xf]
      %v1047 = vld [vmem:[%s470 + $0x34] sm:$0xf]
      %v1048 = vld [vmem:[%s470 + $0x38] sm:$0xf]
      %v1049 = vld [vmem:[%s470 + $0x3c] sm:$0xf]
      %v1050 = vld [vmem:[%s476] sm:$0xf]
      %v1051 = vld [vmem:[%s476 + $0x4] sm:$0xf]
      %v1052 = vld [vmem:[%s476 + $0x8] sm:$0xf]
      %v1053 = vld [vmem:[%s476 + $0xc] sm:$0xf]
      %v1054 = vld [vmem:[%s476 + $0x10] sm:$0xf]
      %v1055 = vld [vmem:[%s476 + $0x14] sm:$0xf]
      %v1056 = vld [vmem:[%s476 + $0x18] sm:$0xf]
      %v1057 = vld [vmem:[%s476 + $0x1c] sm:$0xf]
      %v1058 = vld [vmem:[%s476 + $0x20] sm:$0xf]
      %v1059 = vld [vmem:[%s476 + $0x24] sm:$0xf]
      %v1060 = vld [vmem:[%s476 + $0x28] sm:$0xf]
      %v1061 = vld [vmem:[%s476 + $0x2c] sm:$0xf]
      %v1062 = vld [vmem:[%s476 + $0x30] sm:$0xf]
      %v1063 = vld [vmem:[%s476 + $0x34] sm:$0xf]
      %v1064 = vld [vmem:[%s476 + $0x38] sm:$0xf]
      %v1065 = vld [vmem:[%s476 + $0x3c] sm:$0xf]
      %v1066 = vld [vmem:[%s485] sm:$0xff]
      %v1067 = vld [vmem:[%s485 + $0x8] sm:$0xff]
      %v1068 = vld [vmem:[%s485 + $0x10] sm:$0xff]
      %v1069 = vld [vmem:[%s485 + $0x18] sm:$0xff]
      %v1070 = vunpack.c.0.s8 %v1066
      %v1071 = vunpack.c.1.s8 %v1066
      %v1072 = vunpack.c.2.s8 %v1066
      %v1073 = vunpack.c.3.s8 %v1066
      %v1074 = vunpack.c.0.s8 %v1067
      %v1075 = vunpack.c.1.s8 %v1067
      %v1076 = vunpack.c.2.s8 %v1067
      %v1077 = vunpack.c.3.s8 %v1067
      %v1078 = vunpack.c.0.s8 %v1068
      %v1079 = vunpack.c.1.s8 %v1068
      %v1080 = vunpack.c.2.s8 %v1068
      %v1081 = vunpack.c.3.s8 %v1068
      %v1082 = vunpack.c.0.s8 %v1069
      %v1083 = vunpack.c.1.s8 %v1069
      %v1084 = vunpack.c.2.s8 %v1069
      %v1085 = vunpack.c.3.s8 %v1069
      %vm1086 = vcmp.gt.s32.totalorder %v1070, 0
      %vm1087 = vcmp.gt.s32.totalorder %v1071, 0
      %vm1088 = vcmp.gt.s32.totalorder %v1072, 0
      %vm1089 = vcmp.gt.s32.totalorder %v1073, 0
      %vm1090 = vcmp.gt.s32.totalorder %v1074, 0
      %vm1091 = vcmp.gt.s32.totalorder %v1075, 0
      %vm1092 = vcmp.gt.s32.totalorder %v1076, 0
      %vm1093 = vcmp.gt.s32.totalorder %v1077, 0
      %vm1094 = vcmp.gt.s32.totalorder %v1078, 0
      %vm1095 = vcmp.gt.s32.totalorder %v1079, 0
      %vm1096 = vcmp.gt.s32.totalorder %v1080, 0
      %vm1097 = vcmp.gt.s32.totalorder %v1081, 0
      %vm1098 = vcmp.gt.s32.totalorder %v1082, 0
      %vm1099 = vcmp.gt.s32.totalorder %v1083, 0
      %vm1100 = vcmp.gt.s32.totalorder %v1084, 0
      %vm1101 = vcmp.gt.s32.totalorder %v1085, 0
      %v1102 = vsel %vm1086, 1, 0
      %v1103 = vsel %vm1087, 1, 0
      %v1104 = vsel %vm1088, 1, 0
      %v1105 = vsel %vm1089, 1, 0
      %v1106 = vsel %vm1090, 1, 0
      %v1107 = vsel %vm1091, 1, 0
      %v1108 = vsel %vm1092, 1, 0
      %v1109 = vsel %vm1093, 1, 0
      %v1110 = vsel %vm1094, 1, 0
      %v1111 = vsel %vm1095, 1, 0
      %v1112 = vsel %vm1096, 1, 0
      %v1113 = vsel %vm1097, 1, 0
      %v1114 = vsel %vm1098, 1, 0
      %v1115 = vsel %vm1099, 1, 0
      %v1116 = vsel %vm1100, 1, 0
      %v1117 = vsel %vm1101, 1, 0
      %v1118 = vcvt.s32.f32 %v1102
      %v1119 = vcvt.s32.f32 %v1103
      %v1120 = vcvt.s32.f32 %v1104
      %v1121 = vcvt.s32.f32 %v1105
      %v1122 = vcvt.s32.f32 %v1106
      %v1123 = vcvt.s32.f32 %v1107
      %v1124 = vcvt.s32.f32 %v1108
      %v1125 = vcvt.s32.f32 %v1109
      %v1126 = vcvt.s32.f32 %v1110
      %v1127 = vcvt.s32.f32 %v1111
      %v1128 = vcvt.s32.f32 %v1112
      %v1129 = vcvt.s32.f32 %v1113
      %v1130 = vcvt.s32.f32 %v1114
      %v1131 = vcvt.s32.f32 %v1115
      %v1132 = vcvt.s32.f32 %v1116
      %v1133 = vcvt.s32.f32 %v1117
      %v1134 = vld [vmem:[#allocation2] sm:$0xf]
      %v1135 = vld [vmem:[#allocation2 + $0x4] sm:$0xf]
      %v1136 = vld [vmem:[#allocation2 + $0x8] sm:$0xf]
      %v1137 = vld [vmem:[#allocation2 + $0xc] sm:$0xf]
      %v1138 = vld [vmem:[#allocation2 + $0x10] sm:$0xf]
      %v1139 = vld [vmem:[#allocation2 + $0x14] sm:$0xf]
      %v1140 = vld [vmem:[#allocation2 + $0x18] sm:$0xf]
      %v1141 = vld [vmem:[#allocation2 + $0x1c] sm:$0xf]
      %v1142 = vld [vmem:[#allocation2 + $0x20] sm:$0xf]
      %v1143 = vld [vmem:[#allocation2 + $0x24] sm:$0xf]
      %v1144 = vld [vmem:[#allocation2 + $0x28] sm:$0xf]
      %v1145 = vld [vmem:[#allocation2 + $0x2c] sm:$0xf]
      %v1146 = vld [vmem:[#allocation2 + $0x30] sm:$0xf]
      %v1147 = vld [vmem:[#allocation2 + $0x34] sm:$0xf]
      %v1148 = vld [vmem:[#allocation2 + $0x38] sm:$0xf]
      %v1149 = vld [vmem:[#allocation2 + $0x3c] sm:$0xf]
      %v1166 = vunpack.c.l.b16 %v1134
      %v1167 = vunpack.c.l.b16 %v1135
      %v1168 = vunpack.c.l.b16 %v1136
      %v1169 = vunpack.c.l.b16 %v1137
      %v1170 = vunpack.c.l.b16 %v1138
      %v1171 = vunpack.c.l.b16 %v1139
      %v1172 = vunpack.c.l.b16 %v1140
      %v1173 = vunpack.c.l.b16 %v1141
      %v1174 = vunpack.c.l.b16 %v1142
      %v1175 = vunpack.c.l.b16 %v1143
      %v1176 = vunpack.c.l.b16 %v1144
      %v1177 = vunpack.c.l.b16 %v1145
      %v1178 = vunpack.c.l.b16 %v1146
      %v1179 = vunpack.c.l.b16 %v1147
      %v1180 = vunpack.c.l.b16 %v1148
      %v1181 = vunpack.c.l.b16 %v1149
      %v1182 = vpack.c.b16 %v1167, %v1166
      %v1183 = vpack.c.b16 %v1169, %v1168
      %v1184 = vpack.c.b16 %v1171, %v1170
      %v1185 = vpack.c.b16 %v1173, %v1172
      %v1186 = vpack.c.b16 %v1175, %v1174
      %v1187 = vpack.c.b16 %v1177, %v1176
      %v1188 = vpack.c.b16 %v1179, %v1178
      %v1189 = vpack.c.b16 %v1181, %v1180
      %v1214 = vunpack.c.l.b16 %v1034
      %v1215 = vunpack.c.l.b16 %v1035
      %v1216 = vunpack.c.l.b16 %v1036
      %v1217 = vunpack.c.l.b16 %v1037
      %v1218 = vunpack.c.l.b16 %v1038
      %v1219 = vunpack.c.l.b16 %v1039
      %v1220 = vunpack.c.l.b16 %v1040
      %v1221 = vunpack.c.l.b16 %v1041
      %v1222 = vunpack.c.l.b16 %v1042
      %v1223 = vunpack.c.l.b16 %v1043
      %v1224 = vunpack.c.l.b16 %v1044
      %v1225 = vunpack.c.l.b16 %v1045
      %v1226 = vunpack.c.l.b16 %v1046
      %v1227 = vunpack.c.l.b16 %v1047
      %v1228 = vunpack.c.l.b16 %v1048
      %v1229 = vunpack.c.l.b16 %v1049
      %v1230 = vpack.c.b16 %v1215, %v1214
      %v1231 = vpack.c.b16 %v1217, %v1216
      %v1232 = vpack.c.b16 %v1219, %v1218
      %v1233 = vpack.c.b16 %v1221, %v1220
      %v1234 = vpack.c.b16 %v1223, %v1222
      %v1235 = vpack.c.b16 %v1225, %v1224
      %v1236 = vpack.c.b16 %v1227, %v1226
      %v1237 = vpack.c.b16 %v1229, %v1228
      %1246 = vmatprep.subr.bf16.mxu0 0
      %1247 = vmatpush1.bf16.xpose.msra.mxu0 %v1237
      %1248 = vmatprep.subr.bf16.mxu0 0
      %1249 = vmatpush1.bf16.xpose.msra.mxu0 %v1236
      %1250 = vmatprep.subr.bf16.mxu0 0
      %1251 = vmatpush1.bf16.xpose.msra.mxu0 %v1235
      %1252 = vmatprep.subr.bf16.mxu0 0
      %1253 = vmatpush1.bf16.xpose.msra.mxu0 %v1234
      %1254 = vmatprep.subr.bf16.mxu0 0
      %1255 = vmatpush1.bf16.xpose.msra.mxu0 %v1233
      %1256 = vmatprep.subr.bf16.mxu0 0
      %1257 = vmatpush1.bf16.xpose.msra.mxu0 %v1232
      %1258 = vmatprep.subr.bf16.mxu0 0
      %1259 = vmatpush1.bf16.xpose.msra.mxu0 %v1231
      %1260 = vmatprep.subr.bf16.mxu0 0
      %1261 = vmatpush1.bf16.xpose.msra.mxu0 %v1230
      %1262 = vmatprep.subr.bf16.mxu0 0
      %1263 = vmatpush2.bf16.xpose.msra.mxu0 0
      %1264 = vmatprep.subr.bf16.mxu0 0
      %1265 = vmatpush2.bf16.xpose.msra.mxu0 0
      %1266 = vmatprep.subr.bf16.mxu0 0
      %1267 = vmatpush2.bf16.xpose.msra.mxu0 0
      %1268 = vmatprep.subr.bf16.mxu0 0
      %1269 = vmatpush2.bf16.xpose.msra.mxu0 0
      %1270 = vmatprep.subr.bf16.mxu0 0
      %1271 = vmatpush2.bf16.xpose.msra.mxu0 0
      %1272 = vmatprep.subr.bf16.mxu0 0
      %1273 = vmatpush2.bf16.xpose.msra.mxu0 0
      %1274 = vmatprep.subr.bf16.mxu0 0
      %1275 = vmatpush2.bf16.xpose.msra.mxu0 0
      %1276 = vmatprep.subr.bf16.mxu0 0
      %1277 = vmatpush2.bf16.xpose.msra.mxu0 0
      %1278 = vmatprep.mubr.bf16.mxu0 0
      %1279 = vmatmul.mubr.bf16.gmra.mxu0 %v1182
      %v1280 = vpop.f32.mrf.mxu0
      %v1281 = vadd.f32 0.0, %v1280
      %v1282 = vpop.f32.mrf.mxu0
      %v1283 = vpop.f32.mrf.mxu0
      %v1284 = vadd.f32 0.0, %v1283
      %v1285 = vpop.f32.mrf.mxu0
      %1286 = vmatprep.mubr.bf16.mxu0 0
      %1287 = vmatmul.mubr.bf16.gmra.mxu0 %v1183
      %v1288 = vpop.f32.mrf.mxu0
      %v1289 = vadd.f32 0.0, %v1288
      %v1290 = vpop.f32.mrf.mxu0
      %v1291 = vpop.f32.mrf.mxu0
      %v1292 = vadd.f32 0.0, %v1291
      %v1293 = vpop.f32.mrf.mxu0
      %1294 = vmatprep.mubr.bf16.mxu0 0
      %1295 = vmatmul.mubr.bf16.gmra.mxu0 %v1184
      %v1296 = vpop.f32.mrf.mxu0
      %v1297 = vadd.f32 0.0, %v1296
      %v1298 = vpop.f32.mrf.mxu0
      %v1299 = vpop.f32.mrf.mxu0
      %v1300 = vadd.f32 0.0, %v1299
      %v1301 = vpop.f32.mrf.mxu0
      %1302 = vmatprep.mubr.bf16.mxu0 0
      %1303 = vmatmul.mubr.bf16.gmra.mxu0 %v1185
      %v1304 = vpop.f32.mrf.mxu0
      %v1305 = vadd.f32 0.0, %v1304
      %v1306 = vpop.f32.mrf.mxu0
      %v1307 = vpop.f32.mrf.mxu0
      %v1308 = vadd.f32 0.0, %v1307
      %v1309 = vpop.f32.mrf.mxu0
      %1310 = vmatprep.mubr.bf16.mxu0 0
      %1311 = vmatmul.mubr.bf16.gmra.mxu0 %v1186
      %v1312 = vpop.f32.mrf.mxu0
      %v1313 = vadd.f32 0.0, %v1312
      %v1314 = vpop.f32.mrf.mxu0
      %v1315 = vpop.f32.mrf.mxu0
      %v1316 = vadd.f32 0.0, %v1315
      %v1317 = vpop.f32.mrf.mxu0
      %1318 = vmatprep.mubr.bf16.mxu0 0
      %1319 = vmatmul.mubr.bf16.gmra.mxu0 %v1187
      %v1320 = vpop.f32.mrf.mxu0
      %v1321 = vadd.f32 0.0, %v1320
      %v1322 = vpop.f32.mrf.mxu0
      %v1323 = vpop.f32.mrf.mxu0
      %v1324 = vadd.f32 0.0, %v1323
      %v1325 = vpop.f32.mrf.mxu0
      %1326 = vmatprep.mubr.bf16.mxu0 0
      %1327 = vmatmul.mubr.bf16.gmra.mxu0 %v1188
      %v1328 = vpop.f32.mrf.mxu0
      %v1329 = vadd.f32 0.0, %v1328
      %v1330 = vpop.f32.mrf.mxu0
      %v1331 = vpop.f32.mrf.mxu0
      %v1332 = vadd.f32 0.0, %v1331
      %v1333 = vpop.f32.mrf.mxu0
      %1334 = vmatprep.mubr.bf16.mxu0 0
      %1335 = vmatmul.mubr.bf16.gmra.mxu0 %v1189
      %v1336 = vpop.f32.mrf.mxu0
      %v1337 = vadd.f32 0.0, %v1336
      %v1338 = vpop.f32.mrf.mxu0
      %v1339 = vpop.f32.mrf.mxu0
      %v1340 = vadd.f32 0.0, %v1339
      %v1341 = vpop.f32.mrf.mxu0
      %1342 = vdwg.mxu0
      %v1343 = vsel %vm1086, %v1281, -1e+30
      %v1344 = vsel %vm1087, %v1284, -1e+30
      %v1345 = vsel %vm1088, %v1289, -1e+30
      %v1346 = vsel %vm1089, %v1292, -1e+30
      %v1347 = vsel %vm1090, %v1297, -1e+30
      %v1348 = vsel %vm1091, %v1300, -1e+30
      %v1349 = vsel %vm1092, %v1305, -1e+30
      %v1350 = vsel %vm1093, %v1308, -1e+30
      %v1351 = vsel %vm1094, %v1313, -1e+30
      %v1352 = vsel %vm1095, %v1316, -1e+30
      %v1353 = vsel %vm1096, %v1321, -1e+30
      %v1354 = vsel %vm1097, %v1324, -1e+30
      %v1355 = vsel %vm1098, %v1329, -1e+30
      %v1356 = vsel %vm1099, %v1332, -1e+30
      %v1357 = vsel %vm1100, %v1337, -1e+30
      %v1358 = vsel %vm1101, %v1340, -1e+30
      %v1359 = vld [vmem:[#allocation4] sm:$0xff]
      %v1360 = vld [vmem:[#allocation4 + $0x8] sm:$0xff]
      %v1361 = vld [vmem:[#allocation4 + $0x10] sm:$0xff]
      %v1362 = vld [vmem:[#allocation4 + $0x18] sm:$0xff]
      %v1363 = vld [vmem:[#allocation4 + $0x20] sm:$0xff]
      %v1364 = vld [vmem:[#allocation4 + $0x28] sm:$0xff]
      %v1365 = vld [vmem:[#allocation4 + $0x30] sm:$0xff]
      %v1366 = vld [vmem:[#allocation4 + $0x38] sm:$0xff]
      %v1367 = vld [vmem:[#allocation4 + $0x40] sm:$0xff]
      %v1368 = vld [vmem:[#allocation4 + $0x48] sm:$0xff]
      %v1369 = vld [vmem:[#allocation4 + $0x50] sm:$0xff]
      %v1370 = vld [vmem:[#allocation4 + $0x58] sm:$0xff]
      %v1371 = vld [vmem:[#allocation4 + $0x60] sm:$0xff]
      %v1372 = vld [vmem:[#allocation4 + $0x68] sm:$0xff]
      %v1373 = vld [vmem:[#allocation4 + $0x70] sm:$0xff]
      %v1374 = vld [vmem:[#allocation4 + $0x78] sm:$0xff]
      %1375 = vmax.xlane.f32.xlu0 %v1343
      %v1376 = vpop.xlane.xlu0 %1375
      %1377 = vmax.xlane.f32.xlu0 %v1344
      %v1378 = vpop.xlane.xlu0 %1377
      %1379 = vmax.xlane.f32.xlu0 %v1345
      %v1380 = vpop.xlane.xlu0 %1379
      %1381 = vmax.xlane.f32.xlu0 %v1346
      %v1382 = vpop.xlane.xlu0 %1381
      %1383 = vmax.xlane.f32.xlu0 %v1347
      %v1384 = vpop.xlane.xlu0 %1383
      %1385 = vmax.xlane.f32.xlu0 %v1348
      %v1386 = vpop.xlane.xlu0 %1385
      %1387 = vmax.xlane.f32.xlu0 %v1349
      %v1388 = vpop.xlane.xlu0 %1387
      %1389 = vmax.xlane.f32.xlu0 %v1350
      %v1390 = vpop.xlane.xlu0 %1389
      %1391 = vmax.xlane.f32.xlu0 %v1351
      %v1392 = vpop.xlane.xlu0 %1391
      %1393 = vmax.xlane.f32.xlu0 %v1352
      %v1394 = vpop.xlane.xlu0 %1393
      %1395 = vmax.xlane.f32.xlu0 %v1353
      %v1396 = vpop.xlane.xlu0 %1395
      %1397 = vmax.xlane.f32.xlu0 %v1354
      %v1398 = vpop.xlane.xlu0 %1397
      %1399 = vmax.xlane.f32.xlu0 %v1355
      %v1400 = vpop.xlane.xlu0 %1399
      %1401 = vmax.xlane.f32.xlu0 %v1356
      %v1402 = vpop.xlane.xlu0 %1401
      %1403 = vmax.xlane.f32.xlu0 %v1357
      %v1404 = vpop.xlane.xlu0 %1403
      %1405 = vmax.xlane.f32.xlu0 %v1358
      %v1406 = vpop.xlane.xlu0 %1405
      %v1407 = vmax.f32 %v1359, %v1376
      %v1408 = vmax.f32 %v1360, %v1378
      %v1409 = vmax.f32 %v1361, %v1380
      %v1410 = vmax.f32 %v1362, %v1382
      %v1411 = vmax.f32 %v1363, %v1384
      %v1412 = vmax.f32 %v1364, %v1386
      %v1413 = vmax.f32 %v1365, %v1388
      %v1414 = vmax.f32 %v1366, %v1390
      %v1415 = vmax.f32 %v1367, %v1392
      %v1416 = vmax.f32 %v1368, %v1394
      %v1417 = vmax.f32 %v1369, %v1396
      %v1418 = vmax.f32 %v1370, %v1398
      %v1419 = vmax.f32 %v1371, %v1400
      %v1420 = vmax.f32 %v1372, %v1402
      %v1421 = vmax.f32 %v1373, %v1404
      %v1422 = vmax.f32 %v1374, %v1406
      %v1423 = vsub.f32 %v1359, %v1407
      %v1424 = vsub.f32 %v1360, %v1408
      %v1425 = vsub.f32 %v1361, %v1409
      %v1426 = vsub.f32 %v1362, %v1410
      %v1427 = vsub.f32 %v1363, %v1411
      %v1428 = vsub.f32 %v1364, %v1412
      %v1429 = vsub.f32 %v1365, %v1413
      %v1430 = vsub.f32 %v1366, %v1414
      %v1431 = vsub.f32 %v1367, %v1415
      %v1432 = vsub.f32 %v1368, %v1416
      %v1433 = vsub.f32 %v1369, %v1417
      %v1434 = vsub.f32 %v1370, %v1418
      %v1435 = vsub.f32 %v1371, %v1419
      %v1436 = vsub.f32 %v1372, %v1420
      %v1437 = vsub.f32 %v1373, %v1421
      %v1438 = vsub.f32 %v1374, %v1422
      %v1439 = vmul.f32 %v1423, 1.442695
      %v1440 = vpow.pop %v1439
      %v1441 = vmul.f32 %v1424, 1.442695
      %v1442 = vpow.pop %v1441
      %v1443 = vmul.f32 %v1425, 1.442695
      %v1444 = vpow.pop %v1443
      %v1445 = vmul.f32 %v1426, 1.442695
      %v1446 = vpow.pop %v1445
      %v1447 = vmul.f32 %v1427, 1.442695
      %v1448 = vpow.pop %v1447
      %v1449 = vmul.f32 %v1428, 1.442695
      %v1450 = vpow.pop %v1449
      %v1451 = vmul.f32 %v1429, 1.442695
      %v1452 = vpow.pop %v1451
      %v1453 = vmul.f32 %v1430, 1.442695
      %v1454 = vpow.pop %v1453
      %v1455 = vmul.f32 %v1431, 1.442695
      %v1456 = vpow.pop %v1455
      %v1457 = vmul.f32 %v1432, 1.442695
      %v1458 = vpow.pop %v1457
      %v1459 = vmul.f32 %v1433, 1.442695
      %v1460 = vpow.pop %v1459
      %v1461 = vmul.f32 %v1434, 1.442695
      %v1462 = vpow.pop %v1461
      %v1463 = vmul.f32 %v1435, 1.442695
      %v1464 = vpow.pop %v1463
      %v1465 = vmul.f32 %v1436, 1.442695
      %v1466 = vpow.pop %v1465
      %v1467 = vmul.f32 %v1437, 1.442695
      %v1468 = vpow.pop %v1467
      %v1469 = vmul.f32 %v1438, 1.442695
      %v1470 = vpow.pop %v1469
      %1472 = vset.pattern.permute.xlu0 0
      %1473 = vperm.xlu0 %1472, %v1407
      %v1474 = vpop.permute.xlu0 %1473
      %1477 = vset.pattern.permute.xlu0 0
      %1478 = vperm.xlu0 %1477, %v1408
      %v1479 = vpop.permute.xlu0 %1478
      %1482 = vset.pattern.permute.xlu0 0
      %1483 = vperm.xlu0 %1482, %v1409
      %v1484 = vpop.permute.xlu0 %1483
      %1487 = vset.pattern.permute.xlu0 0
      %1488 = vperm.xlu0 %1487, %v1410
      %v1489 = vpop.permute.xlu0 %1488
      %1492 = vset.pattern.permute.xlu0 0
      %1493 = vperm.xlu0 %1492, %v1411
      %v1494 = vpop.permute.xlu0 %1493
      %1497 = vset.pattern.permute.xlu0 0
      %1498 = vperm.xlu0 %1497, %v1412
      %v1499 = vpop.permute.xlu0 %1498
      %1502 = vset.pattern.permute.xlu0 0
      %1503 = vperm.xlu0 %1502, %v1413
      %v1504 = vpop.permute.xlu0 %1503
      %1507 = vset.pattern.permute.xlu0 0
      %1508 = vperm.xlu0 %1507, %v1414
      %v1509 = vpop.permute.xlu0 %1508
      %1512 = vset.pattern.permute.xlu0 0
      %1513 = vperm.xlu0 %1512, %v1415
      %v1514 = vpop.permute.xlu0 %1513
      %1517 = vset.pattern.permute.xlu0 0
      %1518 = vperm.xlu0 %1517, %v1416
      %v1519 = vpop.permute.xlu0 %1518
      %1522 = vset.pattern.permute.xlu0 0
      %1523 = vperm.xlu0 %1522, %v1417
      %v1524 = vpop.permute.xlu0 %1523
      %1527 = vset.pattern.permute.xlu0 0
      %1528 = vperm.xlu0 %1527, %v1418
      %v1529 = vpop.permute.xlu0 %1528
      %1532 = vset.pattern.permute.xlu0 0
      %1533 = vperm.xlu0 %1532, %v1419
      %v1534 = vpop.permute.xlu0 %1533
      %1537 = vset.pattern.permute.xlu0 0
      %1538 = vperm.xlu0 %1537, %v1420
      %v1539 = vpop.permute.xlu0 %1538
      %1542 = vset.pattern.permute.xlu0 0
      %1543 = vperm.xlu0 %1542, %v1421
      %v1544 = vpop.permute.xlu0 %1543
      %1547 = vset.pattern.permute.xlu0 0
      %1548 = vperm.xlu0 %1547, %v1422
      %v1549 = vpop.permute.xlu0 %1548
      %v1551 = vsub.f32 %v1343, %v1474
      %v1552 = vsub.f32 %v1344, %v1479
      %v1553 = vsub.f32 %v1345, %v1484
      %v1554 = vsub.f32 %v1346, %v1489
      %v1555 = vsub.f32 %v1347, %v1494
      %v1556 = vsub.f32 %v1348, %v1499
      %v1557 = vsub.f32 %v1349, %v1504
      %v1558 = vsub.f32 %v1350, %v1509
      %v1559 = vsub.f32 %v1351, %v1514
      %v1560 = vsub.f32 %v1352, %v1519
      %v1561 = vsub.f32 %v1353, %v1524
      %v1562 = vsub.f32 %v1354, %v1529
      %v1563 = vsub.f32 %v1355, %v1534
      %v1564 = vsub.f32 %v1356, %v1539
      %v1565 = vsub.f32 %v1357, %v1544
      %v1566 = vsub.f32 %v1358, %v1549
      %v1567 = vmul.f32 %v1551, 1.442695
      %v1568 = vpow.pop %v1567
      %v1569 = vmul.f32 %v1552, 1.442695
      %v1570 = vpow.pop %v1569
      %v1571 = vmul.f32 %v1553, 1.442695
      %v1572 = vpow.pop %v1571
      %v1573 = vmul.f32 %v1554, 1.442695
      %v1574 = vpow.pop %v1573
      %v1575 = vmul.f32 %v1555, 1.442695
      %v1576 = vpow.pop %v1575
      %v1577 = vmul.f32 %v1556, 1.442695
      %v1578 = vpow.pop %v1577
      %v1579 = vmul.f32 %v1557, 1.442695
      %v1580 = vpow.pop %v1579
      %v1581 = vmul.f32 %v1558, 1.442695
      %v1582 = vpow.pop %v1581
      %v1583 = vmul.f32 %v1559, 1.442695
      %v1584 = vpow.pop %v1583
      %v1585 = vmul.f32 %v1560, 1.442695
      %v1586 = vpow.pop %v1585
      %v1587 = vmul.f32 %v1561, 1.442695
      %v1588 = vpow.pop %v1587
      %v1589 = vmul.f32 %v1562, 1.442695
      %v1590 = vpow.pop %v1589
      %v1591 = vmul.f32 %v1563, 1.442695
      %v1592 = vpow.pop %v1591
      %v1593 = vmul.f32 %v1564, 1.442695
      %v1594 = vpow.pop %v1593
      %v1595 = vmul.f32 %v1565, 1.442695
      %v1596 = vpow.pop %v1595
      %v1597 = vmul.f32 %v1566, 1.442695
      %v1598 = vpow.pop %v1597
      %v1599 = vld [vmem:[#allocation5] sm:$0xff]
      %v1600 = vld [vmem:[#allocation5 + $0x8] sm:$0xff]
      %v1601 = vld [vmem:[#allocation5 + $0x10] sm:$0xff]
      %v1602 = vld [vmem:[#allocation5 + $0x18] sm:$0xff]
      %v1603 = vld [vmem:[#allocation5 + $0x20] sm:$0xff]
      %v1604 = vld [vmem:[#allocation5 + $0x28] sm:$0xff]
      %v1605 = vld [vmem:[#allocation5 + $0x30] sm:$0xff]
      %v1606 = vld [vmem:[#allocation5 + $0x38] sm:$0xff]
      %v1607 = vld [vmem:[#allocation5 + $0x40] sm:$0xff]
      %v1608 = vld [vmem:[#allocation5 + $0x48] sm:$0xff]
      %v1609 = vld [vmem:[#allocation5 + $0x50] sm:$0xff]
      %v1610 = vld [vmem:[#allocation5 + $0x58] sm:$0xff]
      %v1611 = vld [vmem:[#allocation5 + $0x60] sm:$0xff]
      %v1612 = vld [vmem:[#allocation5 + $0x68] sm:$0xff]
      %v1613 = vld [vmem:[#allocation5 + $0x70] sm:$0xff]
      %v1614 = vld [vmem:[#allocation5 + $0x78] sm:$0xff]
      %v1615 = vmul.f32 %v1440, %v1599
      %v1616 = vmul.f32 %v1442, %v1600
      %v1617 = vmul.f32 %v1444, %v1601
      %v1618 = vmul.f32 %v1446, %v1602
      %v1619 = vmul.f32 %v1448, %v1603
      %v1620 = vmul.f32 %v1450, %v1604
      %v1621 = vmul.f32 %v1452, %v1605
      %v1622 = vmul.f32 %v1454, %v1606
      %v1623 = vmul.f32 %v1456, %v1607
      %v1624 = vmul.f32 %v1458, %v1608
      %v1625 = vmul.f32 %v1460, %v1609
      %v1626 = vmul.f32 %v1462, %v1610
      %v1627 = vmul.f32 %v1464, %v1611
      %v1628 = vmul.f32 %v1466, %v1612
      %v1629 = vmul.f32 %v1468, %v1613
      %v1630 = vmul.f32 %v1470, %v1614
      %1631 = vadd.xlane.f32.xlu0 %v1568
      %v1632 = vpop.xlane.xlu0 %1631
      %1633 = vadd.xlane.f32.xlu0 %v1570
      %v1634 = vpop.xlane.xlu0 %1633
      %1635 = vadd.xlane.f32.xlu0 %v1572
      %v1636 = vpop.xlane.xlu0 %1635
      %1637 = vadd.xlane.f32.xlu0 %v1574
      %v1638 = vpop.xlane.xlu0 %1637
      %1639 = vadd.xlane.f32.xlu0 %v1576
      %v1640 = vpop.xlane.xlu0 %1639
      %1641 = vadd.xlane.f32.xlu0 %v1578
      %v1642 = vpop.xlane.xlu0 %1641
      %1643 = vadd.xlane.f32.xlu0 %v1580
      %v1644 = vpop.xlane.xlu0 %1643
      %1645 = vadd.xlane.f32.xlu0 %v1582
      %v1646 = vpop.xlane.xlu0 %1645
      %1647 = vadd.xlane.f32.xlu0 %v1584
      %v1648 = vpop.xlane.xlu0 %1647
      %1649 = vadd.xlane.f32.xlu0 %v1586
      %v1650 = vpop.xlane.xlu0 %1649
      %1651 = vadd.xlane.f32.xlu0 %v1588
      %v1652 = vpop.xlane.xlu0 %1651
      %1653 = vadd.xlane.f32.xlu0 %v1590
      %v1654 = vpop.xlane.xlu0 %1653
      %1655 = vadd.xlane.f32.xlu0 %v1592
      %v1656 = vpop.xlane.xlu0 %1655
      %1657 = vadd.xlane.f32.xlu0 %v1594
      %v1658 = vpop.xlane.xlu0 %1657
      %1659 = vadd.xlane.f32.xlu0 %v1596
      %v1660 = vpop.xlane.xlu0 %1659
      %1661 = vadd.xlane.f32.xlu0 %v1598
      %v1662 = vpop.xlane.xlu0 %1661
      %v1663 = vadd.f32 %v1615, %v1632
      %v1664 = vadd.f32 %v1616, %v1634
      %v1665 = vadd.f32 %v1617, %v1636
      %v1666 = vadd.f32 %v1618, %v1638
      %v1667 = vadd.f32 %v1619, %v1640
      %v1668 = vadd.f32 %v1620, %v1642
      %v1669 = vadd.f32 %v1621, %v1644
      %v1670 = vadd.f32 %v1622, %v1646
      %v1671 = vadd.f32 %v1623, %v1648
      %v1672 = vadd.f32 %v1624, %v1650
      %v1673 = vadd.f32 %v1625, %v1652
      %v1674 = vadd.f32 %v1626, %v1654
      %v1675 = vadd.f32 %v1627, %v1656
      %v1676 = vadd.f32 %v1628, %v1658
      %v1677 = vadd.f32 %v1629, %v1660
      %v1678 = vadd.f32 %v1630, %v1662
      %vm1679 = vcmask 7168
      %1680 = vst.msk [vmem:[#allocation5] sm:$0xff] %vm1679, %v1663
      %1681 = vst.msk [vmem:[#allocation5 + $0x8] sm:$0xff] %vm1679, %v1664
      %1682 = vst.msk [vmem:[#allocation5 + $0x10] sm:$0xff] %vm1679, %v1665
      %1683 = vst.msk [vmem:[#allocation5 + $0x18] sm:$0xff] %vm1679, %v1666
      %1684 = vst.msk [vmem:[#allocation5 + $0x20] sm:$0xff] %vm1679, %v1667
      %1685 = vst.msk [vmem:[#allocation5 + $0x28] sm:$0xff] %vm1679, %v1668
      %1686 = vst.msk [vmem:[#allocation5 + $0x30] sm:$0xff] %vm1679, %v1669
      %1687 = vst.msk [vmem:[#allocation5 + $0x38] sm:$0xff] %vm1679, %v1670
      %1688 = vst.msk [vmem:[#allocation5 + $0x40] sm:$0xff] %vm1679, %v1671
      %1689 = vst.msk [vmem:[#allocation5 + $0x48] sm:$0xff] %vm1679, %v1672
      %1690 = vst.msk [vmem:[#allocation5 + $0x50] sm:$0xff] %vm1679, %v1673
      %1691 = vst.msk [vmem:[#allocation5 + $0x58] sm:$0xff] %vm1679, %v1674
      %1692 = vst.msk [vmem:[#allocation5 + $0x60] sm:$0xff] %vm1679, %v1675
      %1693 = vst.msk [vmem:[#allocation5 + $0x68] sm:$0xff] %vm1679, %v1676
      %1694 = vst.msk [vmem:[#allocation5 + $0x70] sm:$0xff] %vm1679, %v1677
      %1695 = vst.msk [vmem:[#allocation5 + $0x78] sm:$0xff] %vm1679, %v1678
      %v1696 = vld [vmem:[#allocation7] sm:$0xff]
      %v1697 = vld [vmem:[#allocation7 + $0x8] sm:$0xff]
      %v1698 = vld [vmem:[#allocation7 + $0x10] sm:$0xff]
      %v1699 = vld [vmem:[#allocation7 + $0x18] sm:$0xff]
      %v1700 = vld [vmem:[#allocation7 + $0x20] sm:$0xff]
      %v1701 = vld [vmem:[#allocation7 + $0x28] sm:$0xff]
      %v1702 = vld [vmem:[#allocation7 + $0x30] sm:$0xff]
      %v1703 = vld [vmem:[#allocation7 + $0x38] sm:$0xff]
      %v1704 = vld [vmem:[#allocation7 + $0x40] sm:$0xff]
      %v1705 = vld [vmem:[#allocation7 + $0x48] sm:$0xff]
      %v1706 = vld [vmem:[#allocation7 + $0x50] sm:$0xff]
      %v1707 = vld [vmem:[#allocation7 + $0x58] sm:$0xff]
      %v1708 = vld [vmem:[#allocation7 + $0x60] sm:$0xff]
      %v1709 = vld [vmem:[#allocation7 + $0x68] sm:$0xff]
      %v1710 = vld [vmem:[#allocation7 + $0x70] sm:$0xff]
      %v1711 = vld [vmem:[#allocation7 + $0x78] sm:$0xff]
      %1713 = vset.pattern.permute.xlu0 0
      %1714 = vperm.xlu0 %1713, %v1440
      %v1715 = vpop.permute.xlu0 %1714
      %1718 = vset.pattern.permute.xlu0 0
      %1719 = vperm.xlu0 %1718, %v1442
      %v1720 = vpop.permute.xlu0 %1719
      %1723 = vset.pattern.permute.xlu0 0
      %1724 = vperm.xlu0 %1723, %v1444
      %v1725 = vpop.permute.xlu0 %1724
      %1728 = vset.pattern.permute.xlu0 0
      %1729 = vperm.xlu0 %1728, %v1446
      %v1730 = vpop.permute.xlu0 %1729
      %1733 = vset.pattern.permute.xlu0 0
      %1734 = vperm.xlu0 %1733, %v1448
      %v1735 = vpop.permute.xlu0 %1734
      %1738 = vset.pattern.permute.xlu0 0
      %1739 = vperm.xlu0 %1738, %v1450
      %v1740 = vpop.permute.xlu0 %1739
      %1743 = vset.pattern.permute.xlu0 0
      %1744 = vperm.xlu0 %1743, %v1452
      %v1745 = vpop.permute.xlu0 %1744
      %1748 = vset.pattern.permute.xlu0 0
      %1749 = vperm.xlu0 %1748, %v1454
      %v1750 = vpop.permute.xlu0 %1749
      %1753 = vset.pattern.permute.xlu0 0
      %1754 = vperm.xlu0 %1753, %v1456
      %v1755 = vpop.permute.xlu0 %1754
      %1758 = vset.pattern.permute.xlu0 0
      %1759 = vperm.xlu0 %1758, %v1458
      %v1760 = vpop.permute.xlu0 %1759
      %1763 = vset.pattern.permute.xlu0 0
      %1764 = vperm.xlu0 %1763, %v1460
      %v1765 = vpop.permute.xlu0 %1764
      %1768 = vset.pattern.permute.xlu0 0
      %1769 = vperm.xlu0 %1768, %v1462
      %v1770 = vpop.permute.xlu0 %1769
      %1773 = vset.pattern.permute.xlu0 0
      %1774 = vperm.xlu0 %1773, %v1464
      %v1775 = vpop.permute.xlu0 %1774
      %1778 = vset.pattern.permute.xlu0 0
      %1779 = vperm.xlu0 %1778, %v1466
      %v1780 = vpop.permute.xlu0 %1779
      %1783 = vset.pattern.permute.xlu0 0
      %1784 = vperm.xlu0 %1783, %v1468
      %v1785 = vpop.permute.xlu0 %1784
      %1788 = vset.pattern.permute.xlu0 0
      %1789 = vperm.xlu0 %1788, %v1470
      %v1790 = vpop.permute.xlu0 %1789
      %v1792 = vmul.f32 %v1715, %v1696
      %v1793 = vmul.f32 %v1720, %v1697
      %v1794 = vmul.f32 %v1725, %v1698
      %v1795 = vmul.f32 %v1730, %v1699
      %v1796 = vmul.f32 %v1735, %v1700
      %v1797 = vmul.f32 %v1740, %v1701
      %v1798 = vmul.f32 %v1745, %v1702
      %v1799 = vmul.f32 %v1750, %v1703
      %v1800 = vmul.f32 %v1755, %v1704
      %v1801 = vmul.f32 %v1760, %v1705
      %v1802 = vmul.f32 %v1765, %v1706
      %v1803 = vmul.f32 %v1770, %v1707
      %v1804 = vmul.f32 %v1775, %v1708
      %v1805 = vmul.f32 %v1780, %v1709
      %v1806 = vmul.f32 %v1785, %v1710
      %v1807 = vmul.f32 %v1790, %v1711
      %v1808 = vpack.c.bf16 %v1570, %v1568
      %v1809 = vpack.c.bf16 %v1574, %v1572
      %v1810 = vpack.c.bf16 %v1578, %v1576
      %v1811 = vpack.c.bf16 %v1582, %v1580
      %v1812 = vpack.c.bf16 %v1586, %v1584
      %v1813 = vpack.c.bf16 %v1590, %v1588
      %v1814 = vpack.c.bf16 %v1594, %v1592
      %v1815 = vpack.c.bf16 %v1598, %v1596
      %v1832 = vunpack.c.l.b16 %v1050
      %v1833 = vunpack.c.l.b16 %v1051
      %v1834 = vunpack.c.l.b16 %v1052
      %v1835 = vunpack.c.l.b16 %v1053
      %v1836 = vunpack.c.l.b16 %v1054
      %v1837 = vunpack.c.l.b16 %v1055
      %v1838 = vunpack.c.l.b16 %v1056
      %v1839 = vunpack.c.l.b16 %v1057
      %v1840 = vunpack.c.l.b16 %v1058
      %v1841 = vunpack.c.l.b16 %v1059
      %v1842 = vunpack.c.l.b16 %v1060
      %v1843 = vunpack.c.l.b16 %v1061
      %v1844 = vunpack.c.l.b16 %v1062
      %v1845 = vunpack.c.l.b16 %v1063
      %v1846 = vunpack.c.l.b16 %v1064
      %v1847 = vunpack.c.l.b16 %v1065
      %v1848 = vpack.c.b16 %v1833, %v1832
      %v1849 = vpack.c.b16 %v1835, %v1834
      %v1850 = vpack.c.b16 %v1837, %v1836
      %v1851 = vpack.c.b16 %v1839, %v1838
      %v1852 = vpack.c.b16 %v1841, %v1840
      %v1853 = vpack.c.b16 %v1843, %v1842
      %v1854 = vpack.c.b16 %v1845, %v1844
      %v1855 = vpack.c.b16 %v1847, %v1846
      %1864 = vmatprep.subr.bf16.mxu0 0
      %1865 = vmatpush1.bf16.msra.mxu0 %v1855
      %1866 = vmatprep.subr.bf16.mxu0 0
      %1867 = vmatpush1.bf16.msra.mxu0 %v1854
      %1868 = vmatprep.subr.bf16.mxu0 0
      %1869 = vmatpush1.bf16.msra.mxu0 %v1853
      %1870 = vmatprep.subr.bf16.mxu0 0
      %1871 = vmatpush1.bf16.msra.mxu0 %v1852
      %1872 = vmatprep.subr.bf16.mxu0 0
      %1873 = vmatpush1.bf16.msra.mxu0 %v1851
      %1874 = vmatprep.subr.bf16.mxu0 0
      %1875 = vmatpush1.bf16.msra.mxu0 %v1850
      %1876 = vmatprep.subr.bf16.mxu0 0
      %1877 = vmatpush1.bf16.msra.mxu0 %v1849
      %1878 = vmatprep.subr.bf16.mxu0 0
      %1879 = vmatpush1.bf16.msra.mxu0 %v1848
      %1880 = vmatprep.subr.bf16.mxu0 0
      %1881 = vmatpush2.bf16.msra.mxu0 0
      %1882 = vmatprep.subr.bf16.mxu0 0
      %1883 = vmatpush2.bf16.msra.mxu0 0
      %1884 = vmatprep.subr.bf16.mxu0 0
      %1885 = vmatpush2.bf16.msra.mxu0 0
      %1886 = vmatprep.subr.bf16.mxu0 0
      %1887 = vmatpush2.bf16.msra.mxu0 0
      %1888 = vmatprep.subr.bf16.mxu0 0
      %1889 = vmatpush2.bf16.msra.mxu0 0
      %1890 = vmatprep.subr.bf16.mxu0 0
      %1891 = vmatpush2.bf16.msra.mxu0 0
      %1892 = vmatprep.subr.bf16.mxu0 0
      %1893 = vmatpush2.bf16.msra.mxu0 0
      %1894 = vmatprep.subr.bf16.mxu0 0
      %1895 = vmatpush2.bf16.msra.mxu0 0
      %1896 = vmatprep.mubr.bf16.mxu0 0
      %1897 = vmatmul.mubr.bf16.gmra.mxu0 %v1808
      %v1898 = vpop.f32.mrf.mxu0
      %v1899 = vadd.f32 0.0, %v1898
      %v1900 = vpop.f32.mrf.mxu0
      %v1901 = vpop.f32.mrf.mxu0
      %v1902 = vadd.f32 0.0, %v1901
      %v1903 = vpop.f32.mrf.mxu0
      %1904 = vmatprep.mubr.bf16.mxu0 0
      %1905 = vmatmul.mubr.bf16.gmra.mxu0 %v1809
      %v1906 = vpop.f32.mrf.mxu0
      %v1907 = vadd.f32 0.0, %v1906
      %v1908 = vpop.f32.mrf.mxu0
      %v1909 = vpop.f32.mrf.mxu0
      %v1910 = vadd.f32 0.0, %v1909
      %v1911 = vpop.f32.mrf.mxu0
      %1912 = vmatprep.mubr.bf16.mxu0 0
      %1913 = vmatmul.mubr.bf16.gmra.mxu0 %v1810
      %v1914 = vpop.f32.mrf.mxu0
      %v1915 = vadd.f32 0.0, %v1914
      %v1916 = vpop.f32.mrf.mxu0
      %v1917 = vpop.f32.mrf.mxu0
      %v1918 = vadd.f32 0.0, %v1917
      %v1919 = vpop.f32.mrf.mxu0
      %1920 = vmatprep.mubr.bf16.mxu0 0
      %1921 = vmatmul.mubr.bf16.gmra.mxu0 %v1811
      %v1922 = vpop.f32.mrf.mxu0
      %v1923 = vadd.f32 0.0, %v1922
      %v1924 = vpop.f32.mrf.mxu0
      %v1925 = vpop.f32.mrf.mxu0
      %v1926 = vadd.f32 0.0, %v1925
      %v1927 = vpop.f32.mrf.mxu0
      %1928 = vmatprep.mubr.bf16.mxu0 0
      %1929 = vmatmul.mubr.bf16.gmra.mxu0 %v1812
      %v1930 = vpop.f32.mrf.mxu0
      %v1931 = vadd.f32 0.0, %v1930
      %v1932 = vpop.f32.mrf.mxu0
      %v1933 = vpop.f32.mrf.mxu0
      %v1934 = vadd.f32 0.0, %v1933
      %v1935 = vpop.f32.mrf.mxu0
      %1936 = vmatprep.mubr.bf16.mxu0 0
      %1937 = vmatmul.mubr.bf16.gmra.mxu0 %v1813
      %v1938 = vpop.f32.mrf.mxu0
      %v1939 = vadd.f32 0.0, %v1938
      %v1940 = vpop.f32.mrf.mxu0
      %v1941 = vpop.f32.mrf.mxu0
      %v1942 = vadd.f32 0.0, %v1941
      %v1943 = vpop.f32.mrf.mxu0
      %1944 = vmatprep.mubr.bf16.mxu0 0
      %1945 = vmatmul.mubr.bf16.gmra.mxu0 %v1814
      %v1946 = vpop.f32.mrf.mxu0
      %v1947 = vadd.f32 0.0, %v1946
      %v1948 = vpop.f32.mrf.mxu0
      %v1949 = vpop.f32.mrf.mxu0
      %v1950 = vadd.f32 0.0, %v1949
      %v1951 = vpop.f32.mrf.mxu0
      %1952 = vmatprep.mubr.bf16.mxu0 0
      %1953 = vmatmul.mubr.bf16.gmra.mxu0 %v1815
      %v1954 = vpop.f32.mrf.mxu0
      %v1955 = vadd.f32 0.0, %v1954
      %v1956 = vpop.f32.mrf.mxu0
      %v1957 = vpop.f32.mrf.mxu0
      %v1958 = vadd.f32 0.0, %v1957
      %v1959 = vpop.f32.mrf.mxu0
      %1960 = vdwg.mxu0
      %v1961 = vadd.f32 %v1792, %v1899
      %v1962 = vadd.f32 %v1793, %v1902
      %v1963 = vadd.f32 %v1794, %v1907
      %v1964 = vadd.f32 %v1795, %v1910
      %v1965 = vadd.f32 %v1796, %v1915
      %v1966 = vadd.f32 %v1797, %v1918
      %v1967 = vadd.f32 %v1798, %v1923
      %v1968 = vadd.f32 %v1799, %v1926
      %v1969 = vadd.f32 %v1800, %v1931
      %v1970 = vadd.f32 %v1801, %v1934
      %v1971 = vadd.f32 %v1802, %v1939
      %v1972 = vadd.f32 %v1803, %v1942
      %v1973 = vadd.f32 %v1804, %v1947
      %v1974 = vadd.f32 %v1805, %v1950
      %v1975 = vadd.f32 %v1806, %v1955
      %v1976 = vadd.f32 %v1807, %v1958
      %1977 = vst [vmem:[#allocation7] sm:$0xff] %v1961
      %1978 = vst [vmem:[#allocation7 + $0x8] sm:$0xff] %v1962
      %1979 = vst [vmem:[#allocation7 + $0x10] sm:$0xff] %v1963
      %1980 = vst [vmem:[#allocation7 + $0x18] sm:$0xff] %v1964
      %1981 = vst [vmem:[#allocation7 + $0x20] sm:$0xff] %v1965
      %1982 = vst [vmem:[#allocation7 + $0x28] sm:$0xff] %v1966
      %1983 = vst [vmem:[#allocation7 + $0x30] sm:$0xff] %v1967
      %1984 = vst [vmem:[#allocation7 + $0x38] sm:$0xff] %v1968
      %1985 = vst [vmem:[#allocation7 + $0x40] sm:$0xff] %v1969
      %1986 = vst [vmem:[#allocation7 + $0x48] sm:$0xff] %v1970
      %1987 = vst [vmem:[#allocation7 + $0x50] sm:$0xff] %v1971
      %1988 = vst [vmem:[#allocation7 + $0x58] sm:$0xff] %v1972
      %1989 = vst [vmem:[#allocation7 + $0x60] sm:$0xff] %v1973
      %1990 = vst [vmem:[#allocation7 + $0x68] sm:$0xff] %v1974
      %1991 = vst [vmem:[#allocation7 + $0x70] sm:$0xff] %v1975
      %1992 = vst [vmem:[#allocation7 + $0x78] sm:$0xff] %v1976
      %1993 = vst.msk [vmem:[#allocation4] sm:$0xff] %vm1679, %v1407
      %1994 = vst.msk [vmem:[#allocation4 + $0x8] sm:$0xff] %vm1679, %v1408
      %1995 = vst.msk [vmem:[#allocation4 + $0x10] sm:$0xff] %vm1679, %v1409
      %1996 = vst.msk [vmem:[#allocation4 + $0x18] sm:$0xff] %vm1679, %v1410
      %1997 = vst.msk [vmem:[#allocation4 + $0x20] sm:$0xff] %vm1679, %v1411
      %1998 = vst.msk [vmem:[#allocation4 + $0x28] sm:$0xff] %vm1679, %v1412
      %1999 = vst.msk [vmem:[#allocation4 + $0x30] sm:$0xff] %vm1679, %v1413
      %2000 = vst.msk [vmem:[#allocation4 + $0x38] sm:$0xff] %vm1679, %v1414
      %2001 = vst.msk [vmem:[#allocation4 + $0x40] sm:$0xff] %vm1679, %v1415
      %2002 = vst.msk [vmem:[#allocation4 + $0x48] sm:$0xff] %vm1679, %v1416
      %2003 = vst.msk [vmem:[#allocation4 + $0x50] sm:$0xff] %vm1679, %v1417
      %2004 = vst.msk [vmem:[#allocation4 + $0x58] sm:$0xff] %vm1679, %v1418
      %2005 = vst.msk [vmem:[#allocation4 + $0x60] sm:$0xff] %vm1679, %v1419
      %2006 = vst.msk [vmem:[#allocation4 + $0x68] sm:$0xff] %vm1679, %v1420
      %2007 = vst.msk [vmem:[#allocation4 + $0x70] sm:$0xff] %vm1679, %v1421
      %2008 = vst.msk [vmem:[#allocation4 + $0x78] sm:$0xff] %vm1679, %v1422
      %v2009 = vld [vmem:[%s465] sm:$0x1]
      %v2011 = vlaneseq
      %v2012 = vshrl.u32 %v2011, 7
      %v2013 = vsub.s32 0, %v2012
      %v2014 = vrot.slane %v2009, %v2013
      %v2016 = vmul.f32 %v1118, %v2014
      %v2017 = vmul.f32 %v1119, %v2014
      %v2018 = vmul.f32 %v1120, %v2014
      %v2019 = vmul.f32 %v1121, %v2014
      %v2020 = vmul.f32 %v1122, %v2014
      %v2021 = vmul.f32 %v1123, %v2014
      %v2022 = vmul.f32 %v1124, %v2014
      %v2023 = vmul.f32 %v1125, %v2014
      %v2024 = vmul.f32 %v1126, %v2014
      %v2025 = vmul.f32 %v1127, %v2014
      %v2026 = vmul.f32 %v1128, %v2014
      %v2027 = vmul.f32 %v1129, %v2014
      %v2028 = vmul.f32 %v1130, %v2014
      %v2029 = vmul.f32 %v1131, %v2014
      %v2030 = vmul.f32 %v1132, %v2014
      %v2031 = vmul.f32 %v1133, %v2014
      %v2032 = vld [vmem:[#allocation6] sm:$0xff]
      %v2033 = vld [vmem:[#allocation6 + $0x8] sm:$0xff]
      %v2034 = vld [vmem:[#allocation6 + $0x10] sm:$0xff]
      %v2035 = vld [vmem:[#allocation6 + $0x18] sm:$0xff]
      %v2036 = vld [vmem:[#allocation6 + $0x20] sm:$0xff]
      %v2037 = vld [vmem:[#allocation6 + $0x28] sm:$0xff]
      %v2038 = vld [vmem:[#allocation6 + $0x30] sm:$0xff]
      %v2039 = vld [vmem:[#allocation6 + $0x38] sm:$0xff]
      %v2040 = vld [vmem:[#allocation6 + $0x40] sm:$0xff]
      %v2041 = vld [vmem:[#allocation6 + $0x48] sm:$0xff]
      %v2042 = vld [vmem:[#allocation6 + $0x50] sm:$0xff]
      %v2043 = vld [vmem:[#allocation6 + $0x58] sm:$0xff]
      %v2044 = vld [vmem:[#allocation6 + $0x60] sm:$0xff]
      %v2045 = vld [vmem:[#allocation6 + $0x68] sm:$0xff]
      %v2046 = vld [vmem:[#allocation6 + $0x70] sm:$0xff]
      %v2047 = vld [vmem:[#allocation6 + $0x78] sm:$0xff]
      %2048 = vadd.xlane.f32.xlu0 %v2016
      %v2049 = vpop.xlane.xlu0 %2048
      %2050 = vadd.xlane.f32.xlu0 %v2017
      %v2051 = vpop.xlane.xlu0 %2050
      %2052 = vadd.xlane.f32.xlu0 %v2018
      %v2053 = vpop.xlane.xlu0 %2052
      %2054 = vadd.xlane.f32.xlu0 %v2019
      %v2055 = vpop.xlane.xlu0 %2054
      %2056 = vadd.xlane.f32.xlu0 %v2020
      %v2057 = vpop.xlane.xlu0 %2056
      %2058 = vadd.xlane.f32.xlu0 %v2021
      %v2059 = vpop.xlane.xlu0 %2058
      %2060 = vadd.xlane.f32.xlu0 %v2022
      %v2061 = vpop.xlane.xlu0 %2060
      %2062 = vadd.xlane.f32.xlu0 %v2023
      %v2063 = vpop.xlane.xlu0 %2062
      %2064 = vadd.xlane.f32.xlu0 %v2024
      %v2065 = vpop.xlane.xlu0 %2064
      %2066 = vadd.xlane.f32.xlu0 %v2025
      %v2067 = vpop.xlane.xlu0 %2066
      %2068 = vadd.xlane.f32.xlu0 %v2026
      %v2069 = vpop.xlane.xlu0 %2068
      %2070 = vadd.xlane.f32.xlu0 %v2027
      %v2071 = vpop.xlane.xlu0 %2070
      %2072 = vadd.xlane.f32.xlu0 %v2028
      %v2073 = vpop.xlane.xlu0 %2072
      %2074 = vadd.xlane.f32.xlu0 %v2029
      %v2075 = vpop.xlane.xlu0 %2074
      %2076 = vadd.xlane.f32.xlu0 %v2030
      %v2077 = vpop.xlane.xlu0 %2076
      %2078 = vadd.xlane.f32.xlu0 %v2031
      %v2079 = vpop.xlane.xlu0 %2078
      %v2080 = vadd.f32 %v2032, %v2049
      %v2081 = vadd.f32 %v2033, %v2051
      %v2082 = vadd.f32 %v2034, %v2053
      %v2083 = vadd.f32 %v2035, %v2055
      %v2084 = vadd.f32 %v2036, %v2057
      %v2085 = vadd.f32 %v2037, %v2059
      %v2086 = vadd.f32 %v2038, %v2061
      %v2087 = vadd.f32 %v2039, %v2063
      %v2088 = vadd.f32 %v2040, %v2065
      %v2089 = vadd.f32 %v2041, %v2067
      %v2090 = vadd.f32 %v2042, %v2069
      %v2091 = vadd.f32 %v2043, %v2071
      %v2092 = vadd.f32 %v2044, %v2073
      %v2093 = vadd.f32 %v2045, %v2075
      %v2094 = vadd.f32 %v2046, %v2077
      %v2095 = vadd.f32 %v2047, %v2079
      %2096 = vst.msk [vmem:[#allocation6] sm:$0xff] %vm1679, %v2080
      %2097 = vst.msk [vmem:[#allocation6 + $0x8] sm:$0xff] %vm1679, %v2081
      %2098 = vst.msk [vmem:[#allocation6 + $0x10] sm:$0xff] %vm1679, %v2082
      %2099 = vst.msk [vmem:[#allocation6 + $0x18] sm:$0xff] %vm1679, %v2083
      %2100 = vst.msk [vmem:[#allocation6 + $0x20] sm:$0xff] %vm1679, %v2084
      %2101 = vst.msk [vmem:[#allocation6 + $0x28] sm:$0xff] %vm1679, %v2085
      %2102 = vst.msk [vmem:[#allocation6 + $0x30] sm:$0xff] %vm1679, %v2086
      %2103 = vst.msk [vmem:[#allocation6 + $0x38] sm:$0xff] %vm1679, %v2087
      %2104 = vst.msk [vmem:[#allocation6 + $0x40] sm:$0xff] %vm1679, %v2088
      %2105 = vst.msk [vmem:[#allocation6 + $0x48] sm:$0xff] %vm1679, %v2089
      %2106 = vst.msk [vmem:[#allocation6 + $0x50] sm:$0xff] %vm1679, %v2090
      %2107 = vst.msk [vmem:[#allocation6 + $0x58] sm:$0xff] %vm1679, %v2091
      %2108 = vst.msk [vmem:[#allocation6 + $0x60] sm:$0xff] %vm1679, %v2092
      %2109 = vst.msk [vmem:[#allocation6 + $0x68] sm:$0xff] %vm1679, %v2093
      %2110 = vst.msk [vmem:[#allocation6 + $0x70] sm:$0xff] %vm1679, %v2094
      %2111 = vst.msk [vmem:[#allocation6 + $0x78] sm:$0xff] %vm1679, %v2095
      %v2112 = vld [vmem:[#allocation8] sm:$0xff]
      %v2113 = vld [vmem:[#allocation8 + $0x8] sm:$0xff]
      %v2114 = vld [vmem:[#allocation8 + $0x10] sm:$0xff]
      %v2115 = vld [vmem:[#allocation8 + $0x18] sm:$0xff]
      %v2116 = vld [vmem:[#allocation8 + $0x20] sm:$0xff]
      %v2117 = vld [vmem:[#allocation8 + $0x28] sm:$0xff]
      %v2118 = vld [vmem:[#allocation8 + $0x30] sm:$0xff]
      %v2119 = vld [vmem:[#allocation8 + $0x38] sm:$0xff]
      %v2120 = vld [vmem:[#allocation8 + $0x40] sm:$0xff]
      %v2121 = vld [vmem:[#allocation8 + $0x48] sm:$0xff]
      %v2122 = vld [vmem:[#allocation8 + $0x50] sm:$0xff]
      %v2123 = vld [vmem:[#allocation8 + $0x58] sm:$0xff]
      %v2124 = vld [vmem:[#allocation8 + $0x60] sm:$0xff]
      %v2125 = vld [vmem:[#allocation8 + $0x68] sm:$0xff]
      %v2126 = vld [vmem:[#allocation8 + $0x70] sm:$0xff]
      %v2127 = vld [vmem:[#allocation8 + $0x78] sm:$0xff]
      %v2128 = vpack.c.bf16 %v2017, %v2016
      %v2129 = vpack.c.bf16 %v2019, %v2018
      %v2130 = vpack.c.bf16 %v2021, %v2020
      %v2131 = vpack.c.bf16 %v2023, %v2022
      %v2132 = vpack.c.bf16 %v2025, %v2024
      %v2133 = vpack.c.bf16 %v2027, %v2026
      %v2134 = vpack.c.bf16 %v2029, %v2028
      %v2135 = vpack.c.bf16 %v2031, %v2030
      %2136 = vmatprep.subr.bf16.mxu0 0
      %2137 = vmatpush1.bf16.msra.mxu0 %v1855
      %2138 = vmatprep.subr.bf16.mxu0 0
      %2139 = vmatpush1.bf16.msra.mxu0 %v1854
      %2140 = vmatprep.subr.bf16.mxu0 0
      %2141 = vmatpush1.bf16.msra.mxu0 %v1853
      %2142 = vmatprep.subr.bf16.mxu0 0
      %2143 = vmatpush1.bf16.msra.mxu0 %v1852
      %2144 = vmatprep.subr.bf16.mxu0 0
      %2145 = vmatpush1.bf16.msra.mxu0 %v1851
      %2146 = vmatprep.subr.bf16.mxu0 0
      %2147 = vmatpush1.bf16.msra.mxu0 %v1850
      %2148 = vmatprep.subr.bf16.mxu0 0
      %2149 = vmatpush1.bf16.msra.mxu0 %v1849
      %2150 = vmatprep.subr.bf16.mxu0 0
      %2151 = vmatpush1.bf16.msra.mxu0 %v1848
      %2152 = vmatprep.subr.bf16.mxu0 0
      %2153 = vmatpush2.bf16.msra.mxu0 0
      %2154 = vmatprep.subr.bf16.mxu0 0
      %2155 = vmatpush2.bf16.msra.mxu0 0
      %2156 = vmatprep.subr.bf16.mxu0 0
      %2157 = vmatpush2.bf16.msra.mxu0 0
      %2158 = vmatprep.subr.bf16.mxu0 0
      %2159 = vmatpush2.bf16.msra.mxu0 0
      %2160 = vmatprep.subr.bf16.mxu0 0
      %2161 = vmatpush2.bf16.msra.mxu0 0
      %2162 = vmatprep.subr.bf16.mxu0 0
      %2163 = vmatpush2.bf16.msra.mxu0 0
      %2164 = vmatprep.subr.bf16.mxu0 0
      %2165 = vmatpush2.bf16.msra.mxu0 0
      %2166 = vmatprep.subr.bf16.mxu0 0
      %2167 = vmatpush2.bf16.msra.mxu0 0
      %2168 = vmatprep.mubr.bf16.mxu0 0
      %2169 = vmatmul.mubr.bf16.gmra.mxu0 %v2128
      %v2170 = vpop.f32.mrf.mxu0
      %v2171 = vadd.f32 0.0, %v2170
      %v2172 = vpop.f32.mrf.mxu0
      %v2173 = vpop.f32.mrf.mxu0
      %v2174 = vadd.f32 0.0, %v2173
      %v2175 = vpop.f32.mrf.mxu0
      %2176 = vmatprep.mubr.bf16.mxu0 0
      %2177 = vmatmul.mubr.bf16.gmra.mxu0 %v2129
      %v2178 = vpop.f32.mrf.mxu0
      %v2179 = vadd.f32 0.0, %v2178
      %v2180 = vpop.f32.mrf.mxu0
      %v2181 = vpop.f32.mrf.mxu0
      %v2182 = vadd.f32 0.0, %v2181
      %v2183 = vpop.f32.mrf.mxu0
      %2184 = vmatprep.mubr.bf16.mxu0 0
      %2185 = vmatmul.mubr.bf16.gmra.mxu0 %v2130
      %v2186 = vpop.f32.mrf.mxu0
      %v2187 = vadd.f32 0.0, %v2186
      %v2188 = vpop.f32.mrf.mxu0
      %v2189 = vpop.f32.mrf.mxu0
      %v2190 = vadd.f32 0.0, %v2189
      %v2191 = vpop.f32.mrf.mxu0
      %2192 = vmatprep.mubr.bf16.mxu0 0
      %2193 = vmatmul.mubr.bf16.gmra.mxu0 %v2131
      %v2194 = vpop.f32.mrf.mxu0
      %v2195 = vadd.f32 0.0, %v2194
      %v2196 = vpop.f32.mrf.mxu0
      %v2197 = vpop.f32.mrf.mxu0
      %v2198 = vadd.f32 0.0, %v2197
      %v2199 = vpop.f32.mrf.mxu0
      %2200 = vmatprep.mubr.bf16.mxu0 0
      %2201 = vmatmul.mubr.bf16.gmra.mxu0 %v2132
      %v2202 = vpop.f32.mrf.mxu0
      %v2203 = vadd.f32 0.0, %v2202
      %v2204 = vpop.f32.mrf.mxu0
      %v2205 = vpop.f32.mrf.mxu0
      %v2206 = vadd.f32 0.0, %v2205
      %v2207 = vpop.f32.mrf.mxu0
      %2208 = vmatprep.mubr.bf16.mxu0 0
      %2209 = vmatmul.mubr.bf16.gmra.mxu0 %v2133
      %v2210 = vpop.f32.mrf.mxu0
      %v2211 = vadd.f32 0.0, %v2210
      %v2212 = vpop.f32.mrf.mxu0
      %v2213 = vpop.f32.mrf.mxu0
      %v2214 = vadd.f32 0.0, %v2213
      %v2215 = vpop.f32.mrf.mxu0
      %2216 = vmatprep.mubr.bf16.mxu0 0
      %2217 = vmatmul.mubr.bf16.gmra.mxu0 %v2134
      %v2218 = vpop.f32.mrf.mxu0
      %v2219 = vadd.f32 0.0, %v2218
      %v2220 = vpop.f32.mrf.mxu0
      %v2221 = vpop.f32.mrf.mxu0
      %v2222 = vadd.f32 0.0, %v2221
      %v2223 = vpop.f32.mrf.mxu0
      %2224 = vmatprep.mubr.bf16.mxu0 0
      %2225 = vmatmul.mubr.bf16.gmra.mxu0 %v2135
      %v2226 = vpop.f32.mrf.mxu0
      %v2227 = vadd.f32 0.0, %v2226
      %v2228 = vpop.f32.mrf.mxu0
      %v2229 = vpop.f32.mrf.mxu0
      %v2230 = vadd.f32 0.0, %v2229
      %v2231 = vpop.f32.mrf.mxu0
      %2232 = vdwg.mxu0
      %v2233 = vadd.f32 %v2112, %v2171
      %v2234 = vadd.f32 %v2113, %v2174
      %v2235 = vadd.f32 %v2114, %v2179
      %v2236 = vadd.f32 %v2115, %v2182
      %v2237 = vadd.f32 %v2116, %v2187
      %v2238 = vadd.f32 %v2117, %v2190
      %v2239 = vadd.f32 %v2118, %v2195
      %v2240 = vadd.f32 %v2119, %v2198
      %v2241 = vadd.f32 %v2120, %v2203
      %v2242 = vadd.f32 %v2121, %v2206
      %v2243 = vadd.f32 %v2122, %v2211
      %v2244 = vadd.f32 %v2123, %v2214
      %v2245 = vadd.f32 %v2124, %v2219
      %v2246 = vadd.f32 %v2125, %v2222
      %v2247 = vadd.f32 %v2126, %v2227
      %v2248 = vadd.f32 %v2127, %v2230
      %2249 = vst [vmem:[#allocation8] sm:$0xff] %v2233
      %2250 = vst [vmem:[#allocation8 + $0x8] sm:$0xff] %v2234
      %2251 = vst [vmem:[#allocation8 + $0x10] sm:$0xff] %v2235
      %2252 = vst [vmem:[#allocation8 + $0x18] sm:$0xff] %v2236
      %2253 = vst [vmem:[#allocation8 + $0x20] sm:$0xff] %v2237
      %2254 = vst [vmem:[#allocation8 + $0x28] sm:$0xff] %v2238
      %2255 = vst [vmem:[#allocation8 + $0x30] sm:$0xff] %v2239
      %2256 = vst [vmem:[#allocation8 + $0x38] sm:$0xff] %v2240
      %2257 = vst [vmem:[#allocation8 + $0x40] sm:$0xff] %v2241
      %2258 = vst [vmem:[#allocation8 + $0x48] sm:$0xff] %v2242
      %2259 = vst [vmem:[#allocation8 + $0x50] sm:$0xff] %v2243
      %2260 = vst [vmem:[#allocation8 + $0x58] sm:$0xff] %v2244
      %2261 = vst [vmem:[#allocation8 + $0x60] sm:$0xff] %v2245
      %2262 = vst [vmem:[#allocation8 + $0x68] sm:$0xff] %v2246
      %2263 = vst [vmem:[#allocation8 + $0x70] sm:$0xff] %v2247
      %2264 = vst [vmem:[#allocation8 + $0x78] sm:$0xff] %v2248
      // Predicated region
      $region69: #{boot_gcn_layer.5} parent=63 // pred_check
        %p2265 = pneg %p494
      $region70: #{boot_gcn_layer.5} parent=63 // pred_check_branch
        %2267 = sbr.rel (%p2265) target = $region72
      $region71: #{boot_gcn_layer.5} parent=63 // pred_region
        %v2268 = vld [vmem:[#allocation7] sm:$0xff]
        %v2269 = vld [vmem:[#allocation7 + $0x8] sm:$0xff]
        %v2270 = vld [vmem:[#allocation7 + $0x10] sm:$0xff]
        %v2271 = vld [vmem:[#allocation7 + $0x18] sm:$0xff]
        %v2272 = vld [vmem:[#allocation7 + $0x20] sm:$0xff]
        %v2273 = vld [vmem:[#allocation7 + $0x28] sm:$0xff]
        %v2274 = vld [vmem:[#allocation7 + $0x30] sm:$0xff]
        %v2275 = vld [vmem:[#allocation7 + $0x38] sm:$0xff]
        %v2276 = vld [vmem:[#allocation7 + $0x40] sm:$0xff]
        %v2277 = vld [vmem:[#allocation7 + $0x48] sm:$0xff]
        %v2278 = vld [vmem:[#allocation7 + $0x50] sm:$0xff]
        %v2279 = vld [vmem:[#allocation7 + $0x58] sm:$0xff]
        %v2280 = vld [vmem:[#allocation7 + $0x60] sm:$0xff]
        %v2281 = vld [vmem:[#allocation7 + $0x68] sm:$0xff]
        %v2282 = vld [vmem:[#allocation7 + $0x70] sm:$0xff]
        %v2283 = vld [vmem:[#allocation7 + $0x78] sm:$0xff]
        %v2284 = vld [vmem:[#allocation5] sm:$0xff]
        %v2285 = vld [vmem:[#allocation5 + $0x8] sm:$0xff]
        %v2286 = vld [vmem:[#allocation5 + $0x10] sm:$0xff]
        %v2287 = vld [vmem:[#allocation5 + $0x18] sm:$0xff]
        %v2288 = vld [vmem:[#allocation5 + $0x20] sm:$0xff]
        %v2289 = vld [vmem:[#allocation5 + $0x28] sm:$0xff]
        %v2290 = vld [vmem:[#allocation5 + $0x30] sm:$0xff]
        %v2291 = vld [vmem:[#allocation5 + $0x38] sm:$0xff]
        %v2292 = vld [vmem:[#allocation5 + $0x40] sm:$0xff]
        %v2293 = vld [vmem:[#allocation5 + $0x48] sm:$0xff]
        %v2294 = vld [vmem:[#allocation5 + $0x50] sm:$0xff]
        %v2295 = vld [vmem:[#allocation5 + $0x58] sm:$0xff]
        %v2296 = vld [vmem:[#allocation5 + $0x60] sm:$0xff]
        %v2297 = vld [vmem:[#allocation5 + $0x68] sm:$0xff]
        %v2298 = vld [vmem:[#allocation5 + $0x70] sm:$0xff]
        %v2299 = vld [vmem:[#allocation5 + $0x78] sm:$0xff]
        %v2300 = vrcp.pop %v2284
        %v2301 = vrcp.pop %v2285
        %v2302 = vrcp.pop %v2286
        %v2303 = vrcp.pop %v2287
        %v2304 = vrcp.pop %v2288
        %v2305 = vrcp.pop %v2289
        %v2306 = vrcp.pop %v2290
        %v2307 = vrcp.pop %v2291
        %v2308 = vrcp.pop %v2292
        %v2309 = vrcp.pop %v2293
        %v2310 = vrcp.pop %v2294
        %v2311 = vrcp.pop %v2295
        %v2312 = vrcp.pop %v2296
        %v2313 = vrcp.pop %v2297
        %v2314 = vrcp.pop %v2298
        %v2315 = vrcp.pop %v2299
        %2317 = vset.pattern.permute.xlu0 0
        %2318 = vperm.xlu0 %2317, %v2300
        %v2319 = vpop.permute.xlu0 %2318
        %2322 = vset.pattern.permute.xlu0 0
        %2323 = vperm.xlu0 %2322, %v2301
        %v2324 = vpop.permute.xlu0 %2323
        %2327 = vset.pattern.permute.xlu0 0
        %2328 = vperm.xlu0 %2327, %v2302
        %v2329 = vpop.permute.xlu0 %2328
        %2332 = vset.pattern.permute.xlu0 0
        %2333 = vperm.xlu0 %2332, %v2303
        %v2334 = vpop.permute.xlu0 %2333
        %2337 = vset.pattern.permute.xlu0 0
        %2338 = vperm.xlu0 %2337, %v2304
        %v2339 = vpop.permute.xlu0 %2338
        %2342 = vset.pattern.permute.xlu0 0
        %2343 = vperm.xlu0 %2342, %v2305
        %v2344 = vpop.permute.xlu0 %2343
        %2347 = vset.pattern.permute.xlu0 0
        %2348 = vperm.xlu0 %2347, %v2306
        %v2349 = vpop.permute.xlu0 %2348
        %2352 = vset.pattern.permute.xlu0 0
        %2353 = vperm.xlu0 %2352, %v2307
        %v2354 = vpop.permute.xlu0 %2353
        %2357 = vset.pattern.permute.xlu0 0
        %2358 = vperm.xlu0 %2357, %v2308
        %v2359 = vpop.permute.xlu0 %2358
        %2362 = vset.pattern.permute.xlu0 0
        %2363 = vperm.xlu0 %2362, %v2309
        %v2364 = vpop.permute.xlu0 %2363
        %2367 = vset.pattern.permute.xlu0 0
        %2368 = vperm.xlu0 %2367, %v2310
        %v2369 = vpop.permute.xlu0 %2368
        %2372 = vset.pattern.permute.xlu0 0
        %2373 = vperm.xlu0 %2372, %v2311
        %v2374 = vpop.permute.xlu0 %2373
        %2377 = vset.pattern.permute.xlu0 0
        %2378 = vperm.xlu0 %2377, %v2312
        %v2379 = vpop.permute.xlu0 %2378
        %2382 = vset.pattern.permute.xlu0 0
        %2383 = vperm.xlu0 %2382, %v2313
        %v2384 = vpop.permute.xlu0 %2383
        %2387 = vset.pattern.permute.xlu0 0
        %2388 = vperm.xlu0 %2387, %v2314
        %v2389 = vpop.permute.xlu0 %2388
        %2392 = vset.pattern.permute.xlu0 0
        %2393 = vperm.xlu0 %2392, %v2315
        %v2394 = vpop.permute.xlu0 %2393
        %v2396 = vmul.f32 %v2268, %v2319
        %v2397 = vmul.f32 %v2269, %v2324
        %v2398 = vmul.f32 %v2270, %v2329
        %v2399 = vmul.f32 %v2271, %v2334
        %v2400 = vmul.f32 %v2272, %v2339
        %v2401 = vmul.f32 %v2273, %v2344
        %v2402 = vmul.f32 %v2274, %v2349
        %v2403 = vmul.f32 %v2275, %v2354
        %v2404 = vmul.f32 %v2276, %v2359
        %v2405 = vmul.f32 %v2277, %v2364
        %v2406 = vmul.f32 %v2278, %v2369
        %v2407 = vmul.f32 %v2279, %v2374
        %v2408 = vmul.f32 %v2280, %v2379
        %v2409 = vmul.f32 %v2281, %v2384
        %v2410 = vmul.f32 %v2282, %v2389
        %v2411 = vmul.f32 %v2283, %v2394
        %v2412 = vld [vmem:[#allocation8] sm:$0xff]
        %v2413 = vld [vmem:[#allocation8 + $0x8] sm:$0xff]
        %v2414 = vld [vmem:[#allocation8 + $0x10] sm:$0xff]
        %v2415 = vld [vmem:[#allocation8 + $0x18] sm:$0xff]
        %v2416 = vld [vmem:[#allocation8 + $0x20] sm:$0xff]
        %v2417 = vld [vmem:[#allocation8 + $0x28] sm:$0xff]
        %v2418 = vld [vmem:[#allocation8 + $0x30] sm:$0xff]
        %v2419 = vld [vmem:[#allocation8 + $0x38] sm:$0xff]
        %v2420 = vld [vmem:[#allocation8 + $0x40] sm:$0xff]
        %v2421 = vld [vmem:[#allocation8 + $0x48] sm:$0xff]
        %v2422 = vld [vmem:[#allocation8 + $0x50] sm:$0xff]
        %v2423 = vld [vmem:[#allocation8 + $0x58] sm:$0xff]
        %v2424 = vld [vmem:[#allocation8 + $0x60] sm:$0xff]
        %v2425 = vld [vmem:[#allocation8 + $0x68] sm:$0xff]
        %v2426 = vld [vmem:[#allocation8 + $0x70] sm:$0xff]
        %v2427 = vld [vmem:[#allocation8 + $0x78] sm:$0xff]
        %v2428 = vld [vmem:[#allocation6] sm:$0xff]
        %v2429 = vld [vmem:[#allocation6 + $0x8] sm:$0xff]
        %v2430 = vld [vmem:[#allocation6 + $0x10] sm:$0xff]
        %v2431 = vld [vmem:[#allocation6 + $0x18] sm:$0xff]
        %v2432 = vld [vmem:[#allocation6 + $0x20] sm:$0xff]
        %v2433 = vld [vmem:[#allocation6 + $0x28] sm:$0xff]
        %v2434 = vld [vmem:[#allocation6 + $0x30] sm:$0xff]
        %v2435 = vld [vmem:[#allocation6 + $0x38] sm:$0xff]
        %v2436 = vld [vmem:[#allocation6 + $0x40] sm:$0xff]
        %v2437 = vld [vmem:[#allocation6 + $0x48] sm:$0xff]
        %v2438 = vld [vmem:[#allocation6 + $0x50] sm:$0xff]
        %v2439 = vld [vmem:[#allocation6 + $0x58] sm:$0xff]
        %v2440 = vld [vmem:[#allocation6 + $0x60] sm:$0xff]
        %v2441 = vld [vmem:[#allocation6 + $0x68] sm:$0xff]
        %v2442 = vld [vmem:[#allocation6 + $0x70] sm:$0xff]
        %v2443 = vld [vmem:[#allocation6 + $0x78] sm:$0xff]
        %v2444 = vmax.f32 %v2428, 1e-30
        %v2445 = vmax.f32 %v2429, 1e-30
        %v2446 = vmax.f32 %v2430, 1e-30
        %v2447 = vmax.f32 %v2431, 1e-30
        %v2448 = vmax.f32 %v2432, 1e-30
        %v2449 = vmax.f32 %v2433, 1e-30
        %v2450 = vmax.f32 %v2434, 1e-30
        %v2451 = vmax.f32 %v2435, 1e-30
        %v2452 = vmax.f32 %v2436, 1e-30
        %v2453 = vmax.f32 %v2437, 1e-30
        %v2454 = vmax.f32 %v2438, 1e-30
        %v2455 = vmax.f32 %v2439, 1e-30
        %v2456 = vmax.f32 %v2440, 1e-30
        %v2457 = vmax.f32 %v2441, 1e-30
        %v2458 = vmax.f32 %v2442, 1e-30
        %v2459 = vmax.f32 %v2443, 1e-30
        %v2460 = vrcp.pop %v2444
        %v2461 = vrcp.pop %v2445
        %v2462 = vrcp.pop %v2446
        %v2463 = vrcp.pop %v2447
        %v2464 = vrcp.pop %v2448
        %v2465 = vrcp.pop %v2449
        %v2466 = vrcp.pop %v2450
        %v2467 = vrcp.pop %v2451
        %v2468 = vrcp.pop %v2452
        %v2469 = vrcp.pop %v2453
        %v2470 = vrcp.pop %v2454
        %v2471 = vrcp.pop %v2455
        %v2472 = vrcp.pop %v2456
        %v2473 = vrcp.pop %v2457
        %v2474 = vrcp.pop %v2458
        %v2475 = vrcp.pop %v2459
        %2477 = vset.pattern.permute.xlu0 0
        %2478 = vperm.xlu0 %2477, %v2460
        %v2479 = vpop.permute.xlu0 %2478
        %2482 = vset.pattern.permute.xlu0 0
        %2483 = vperm.xlu0 %2482, %v2461
        %v2484 = vpop.permute.xlu0 %2483
        %2487 = vset.pattern.permute.xlu0 0
        %2488 = vperm.xlu0 %2487, %v2462
        %v2489 = vpop.permute.xlu0 %2488
        %2492 = vset.pattern.permute.xlu0 0
        %2493 = vperm.xlu0 %2492, %v2463
        %v2494 = vpop.permute.xlu0 %2493
        %2497 = vset.pattern.permute.xlu0 0
        %2498 = vperm.xlu0 %2497, %v2464
        %v2499 = vpop.permute.xlu0 %2498
        %2502 = vset.pattern.permute.xlu0 0
        %2503 = vperm.xlu0 %2502, %v2465
        %v2504 = vpop.permute.xlu0 %2503
        %2507 = vset.pattern.permute.xlu0 0
        %2508 = vperm.xlu0 %2507, %v2466
        %v2509 = vpop.permute.xlu0 %2508
        %2512 = vset.pattern.permute.xlu0 0
        %2513 = vperm.xlu0 %2512, %v2467
        %v2514 = vpop.permute.xlu0 %2513
        %2517 = vset.pattern.permute.xlu0 0
        %2518 = vperm.xlu0 %2517, %v2468
        %v2519 = vpop.permute.xlu0 %2518
        %2522 = vset.pattern.permute.xlu0 0
        %2523 = vperm.xlu0 %2522, %v2469
        %v2524 = vpop.permute.xlu0 %2523
        %2527 = vset.pattern.permute.xlu0 0
        %2528 = vperm.xlu0 %2527, %v2470
        %v2529 = vpop.permute.xlu0 %2528
        %2532 = vset.pattern.permute.xlu0 0
        %2533 = vperm.xlu0 %2532, %v2471
        %v2534 = vpop.permute.xlu0 %2533
        %2537 = vset.pattern.permute.xlu0 0
        %2538 = vperm.xlu0 %2537, %v2472
        %v2539 = vpop.permute.xlu0 %2538
        %2542 = vset.pattern.permute.xlu0 0
        %2543 = vperm.xlu0 %2542, %v2473
        %v2544 = vpop.permute.xlu0 %2543
        %2547 = vset.pattern.permute.xlu0 0
        %2548 = vperm.xlu0 %2547, %v2474
        %v2549 = vpop.permute.xlu0 %2548
        %2552 = vset.pattern.permute.xlu0 0
        %2553 = vperm.xlu0 %2552, %v2475
        %v2554 = vpop.permute.xlu0 %2553
        %v2556 = vmul.f32 %v2412, %v2479
        %v2557 = vmul.f32 %v2413, %v2484
        %v2558 = vmul.f32 %v2414, %v2489
        %v2559 = vmul.f32 %v2415, %v2494
        %v2560 = vmul.f32 %v2416, %v2499
        %v2561 = vmul.f32 %v2417, %v2504
        %v2562 = vmul.f32 %v2418, %v2509
        %v2563 = vmul.f32 %v2419, %v2514
        %v2564 = vmul.f32 %v2420, %v2519
        %v2565 = vmul.f32 %v2421, %v2524
        %v2566 = vmul.f32 %v2422, %v2529
        %v2567 = vmul.f32 %v2423, %v2534
        %v2568 = vmul.f32 %v2424, %v2539
        %v2569 = vmul.f32 %v2425, %v2544
        %v2570 = vmul.f32 %v2426, %v2549
        %v2571 = vmul.f32 %v2427, %v2554
        %v2572 = vmul.f32 %v2556, 0.5
        %v2573 = vmul.f32 %v2557, 0.5
        %v2574 = vmul.f32 %v2558, 0.5
        %v2575 = vmul.f32 %v2559, 0.5
        %v2576 = vmul.f32 %v2560, 0.5
        %v2577 = vmul.f32 %v2561, 0.5
        %v2578 = vmul.f32 %v2562, 0.5
        %v2579 = vmul.f32 %v2563, 0.5
        %v2580 = vmul.f32 %v2564, 0.5
        %v2581 = vmul.f32 %v2565, 0.5
        %v2582 = vmul.f32 %v2566, 0.5
        %v2583 = vmul.f32 %v2567, 0.5
        %v2584 = vmul.f32 %v2568, 0.5
        %v2585 = vmul.f32 %v2569, 0.5
        %v2586 = vmul.f32 %v2570, 0.5
        %v2587 = vmul.f32 %v2571, 0.5
        %v2588 = vmul.f32 %v2396, 0.5
        %v2589 = vmul.f32 %v2397, 0.5
        %v2590 = vmul.f32 %v2398, 0.5
        %v2591 = vmul.f32 %v2399, 0.5
        %v2592 = vmul.f32 %v2400, 0.5
        %v2593 = vmul.f32 %v2401, 0.5
        %v2594 = vmul.f32 %v2402, 0.5
        %v2595 = vmul.f32 %v2403, 0.5
        %v2596 = vmul.f32 %v2404, 0.5
        %v2597 = vmul.f32 %v2405, 0.5
        %v2598 = vmul.f32 %v2406, 0.5
        %v2599 = vmul.f32 %v2407, 0.5
        %v2600 = vmul.f32 %v2408, 0.5
        %v2601 = vmul.f32 %v2409, 0.5
        %v2602 = vmul.f32 %v2410, 0.5
        %v2603 = vmul.f32 %v2411, 0.5
        %v2604 = vadd.f32 %v2572, %v2588
        %v2605 = vadd.f32 %v2573, %v2589
        %v2606 = vadd.f32 %v2574, %v2590
        %v2607 = vadd.f32 %v2575, %v2591
        %v2608 = vadd.f32 %v2576, %v2592
        %v2609 = vadd.f32 %v2577, %v2593
        %v2610 = vadd.f32 %v2578, %v2594
        %v2611 = vadd.f32 %v2579, %v2595
        %v2612 = vadd.f32 %v2580, %v2596
        %v2613 = vadd.f32 %v2581, %v2597
        %v2614 = vadd.f32 %v2582, %v2598
        %v2615 = vadd.f32 %v2583, %v2599
        %v2616 = vadd.f32 %v2584, %v2600
        %v2617 = vadd.f32 %v2585, %v2601
        %v2618 = vadd.f32 %v2586, %v2602
        %v2619 = vadd.f32 %v2587, %v2603
        %v2620 = vld [vmem:[#allocation3] sm:$0xff]
        %v2621 = vld [vmem:[#allocation3 + $0x8] sm:$0xff]
        %v2622 = vld [vmem:[#allocation3 + $0x10] sm:$0xff]
        %v2623 = vld [vmem:[#allocation3 + $0x18] sm:$0xff]
        %v2624 = vld [vmem:[#allocation3 + $0x20] sm:$0xff]
        %v2625 = vld [vmem:[#allocation3 + $0x28] sm:$0xff]
        %v2626 = vld [vmem:[#allocation3 + $0x30] sm:$0xff]
        %v2627 = vld [vmem:[#allocation3 + $0x38] sm:$0xff]
        %v2628 = vld [vmem:[#allocation3 + $0x40] sm:$0xff]
        %v2629 = vld [vmem:[#allocation3 + $0x48] sm:$0xff]
        %v2630 = vld [vmem:[#allocation3 + $0x50] sm:$0xff]
        %v2631 = vld [vmem:[#allocation3 + $0x58] sm:$0xff]
        %v2632 = vld [vmem:[#allocation3 + $0x60] sm:$0xff]
        %v2633 = vld [vmem:[#allocation3 + $0x68] sm:$0xff]
        %v2634 = vld [vmem:[#allocation3 + $0x70] sm:$0xff]
        %v2635 = vld [vmem:[#allocation3 + $0x78] sm:$0xff]
        %v2636 = vadd.f32 %v2604, %v2620
        %v2637 = vadd.f32 %v2605, %v2621
        %v2638 = vadd.f32 %v2606, %v2622
        %v2639 = vadd.f32 %v2607, %v2623
        %v2640 = vadd.f32 %v2608, %v2624
        %v2641 = vadd.f32 %v2609, %v2625
        %v2642 = vadd.f32 %v2610, %v2626
        %v2643 = vadd.f32 %v2611, %v2627
        %v2644 = vadd.f32 %v2612, %v2628
        %v2645 = vadd.f32 %v2613, %v2629
        %v2646 = vadd.f32 %v2614, %v2630
        %v2647 = vadd.f32 %v2615, %v2631
        %v2648 = vadd.f32 %v2616, %v2632
        %v2649 = vadd.f32 %v2617, %v2633
        %v2650 = vadd.f32 %v2618, %v2634
        %v2651 = vadd.f32 %v2619, %v2635
        %v2652 = vmax.f32 %v2636, 0.0
        %v2653 = vmax.f32 %v2637, 0.0
        %v2654 = vmax.f32 %v2638, 0.0
        %v2655 = vmax.f32 %v2639, 0.0
        %v2656 = vmax.f32 %v2640, 0.0
        %v2657 = vmax.f32 %v2641, 0.0
        %v2658 = vmax.f32 %v2642, 0.0
        %v2659 = vmax.f32 %v2643, 0.0
        %v2660 = vmax.f32 %v2644, 0.0
        %v2661 = vmax.f32 %v2645, 0.0
        %v2662 = vmax.f32 %v2646, 0.0
        %v2663 = vmax.f32 %v2647, 0.0
        %v2664 = vmax.f32 %v2648, 0.0
        %v2665 = vmax.f32 %v2649, 0.0
        %v2666 = vmax.f32 %v2650, 0.0
        %v2667 = vmax.f32 %v2651, 0.0
        %2668 = vadd.xlane.f32.xlu0 %v2652
        %v2669 = vpop.xlane.xlu0 %2668
        %2670 = vadd.xlane.f32.xlu0 %v2653
        %v2671 = vpop.xlane.xlu0 %2670
        %2672 = vadd.xlane.f32.xlu0 %v2654
        %v2673 = vpop.xlane.xlu0 %2672
        %2674 = vadd.xlane.f32.xlu0 %v2655
        %v2675 = vpop.xlane.xlu0 %2674
        %2676 = vadd.xlane.f32.xlu0 %v2656
        %v2677 = vpop.xlane.xlu0 %2676
        %2678 = vadd.xlane.f32.xlu0 %v2657
        %v2679 = vpop.xlane.xlu0 %2678
        %2680 = vadd.xlane.f32.xlu0 %v2658
        %v2681 = vpop.xlane.xlu0 %2680
        %2682 = vadd.xlane.f32.xlu0 %v2659
        %v2683 = vpop.xlane.xlu0 %2682
        %2684 = vadd.xlane.f32.xlu0 %v2660
        %v2685 = vpop.xlane.xlu0 %2684
        %2686 = vadd.xlane.f32.xlu0 %v2661
        %v2687 = vpop.xlane.xlu0 %2686
        %2688 = vadd.xlane.f32.xlu0 %v2662
        %v2689 = vpop.xlane.xlu0 %2688
        %2690 = vadd.xlane.f32.xlu0 %v2663
        %v2691 = vpop.xlane.xlu0 %2690
        %2692 = vadd.xlane.f32.xlu0 %v2664
        %v2693 = vpop.xlane.xlu0 %2692
        %2694 = vadd.xlane.f32.xlu0 %v2665
        %v2695 = vpop.xlane.xlu0 %2694
        %2696 = vadd.xlane.f32.xlu0 %v2666
        %v2697 = vpop.xlane.xlu0 %2696
        %2698 = vadd.xlane.f32.xlu0 %v2667
        %v2699 = vpop.xlane.xlu0 %2698
        %v2700 = vrcp.pop 128.0
        %v2701 = vmul.f32 %v2669, %v2700
        %v2702 = vmul.f32 %v2671, %v2700
        %v2703 = vmul.f32 %v2673, %v2700
        %v2704 = vmul.f32 %v2675, %v2700
        %v2705 = vmul.f32 %v2677, %v2700
        %v2706 = vmul.f32 %v2679, %v2700
        %v2707 = vmul.f32 %v2681, %v2700
        %v2708 = vmul.f32 %v2683, %v2700
        %v2709 = vmul.f32 %v2685, %v2700
        %v2710 = vmul.f32 %v2687, %v2700
        %v2711 = vmul.f32 %v2689, %v2700
        %v2712 = vmul.f32 %v2691, %v2700
        %v2713 = vmul.f32 %v2693, %v2700
        %v2714 = vmul.f32 %v2695, %v2700
        %v2715 = vmul.f32 %v2697, %v2700
        %v2716 = vmul.f32 %v2699, %v2700
        %v2717 = vsub.f32 %v2652, %v2701
        %v2718 = vsub.f32 %v2653, %v2702
        %v2719 = vsub.f32 %v2654, %v2703
        %v2720 = vsub.f32 %v2655, %v2704
        %v2721 = vsub.f32 %v2656, %v2705
        %v2722 = vsub.f32 %v2657, %v2706
        %v2723 = vsub.f32 %v2658, %v2707
        %v2724 = vsub.f32 %v2659, %v2708
        %v2725 = vsub.f32 %v2660, %v2709
        %v2726 = vsub.f32 %v2661, %v2710
        %v2727 = vsub.f32 %v2662, %v2711
        %v2728 = vsub.f32 %v2663, %v2712
        %v2729 = vsub.f32 %v2664, %v2713
        %v2730 = vsub.f32 %v2665, %v2714
        %v2731 = vsub.f32 %v2666, %v2715
        %v2732 = vsub.f32 %v2667, %v2716
        %v2733 = vmul.f32 %v2717, %v2717
        %v2734 = vmul.f32 %v2718, %v2718
        %v2735 = vmul.f32 %v2719, %v2719
        %v2736 = vmul.f32 %v2720, %v2720
        %v2737 = vmul.f32 %v2721, %v2721
        %v2738 = vmul.f32 %v2722, %v2722
        %v2739 = vmul.f32 %v2723, %v2723
        %v2740 = vmul.f32 %v2724, %v2724
        %v2741 = vmul.f32 %v2725, %v2725
        %v2742 = vmul.f32 %v2726, %v2726
        %v2743 = vmul.f32 %v2727, %v2727
        %v2744 = vmul.f32 %v2728, %v2728
        %v2745 = vmul.f32 %v2729, %v2729
        %v2746 = vmul.f32 %v2730, %v2730
        %v2747 = vmul.f32 %v2731, %v2731
        %v2748 = vmul.f32 %v2732, %v2732
        %2749 = vadd.xlane.f32.xlu0 %v2733
        %v2750 = vpop.xlane.xlu0 %2749
        %2751 = vadd.xlane.f32.xlu0 %v2734
        %v2752 = vpop.xlane.xlu0 %2751
        %2753 = vadd.xlane.f32.xlu0 %v2735
        %v2754 = vpop.xlane.xlu0 %2753
        %2755 = vadd.xlane.f32.xlu0 %v2736
        %v2756 = vpop.xlane.xlu0 %2755
        %2757 = vadd.xlane.f32.xlu0 %v2737
        %v2758 = vpop.xlane.xlu0 %2757
        %2759 = vadd.xlane.f32.xlu0 %v2738
        %v2760 = vpop.xlane.xlu0 %2759
        %2761 = vadd.xlane.f32.xlu0 %v2739
        %v2762 = vpop.xlane.xlu0 %2761
        %2763 = vadd.xlane.f32.xlu0 %v2740
        %v2764 = vpop.xlane.xlu0 %2763
        %2765 = vadd.xlane.f32.xlu0 %v2741
        %v2766 = vpop.xlane.xlu0 %2765
        %2767 = vadd.xlane.f32.xlu0 %v2742
        %v2768 = vpop.xlane.xlu0 %2767
        %2769 = vadd.xlane.f32.xlu0 %v2743
        %v2770 = vpop.xlane.xlu0 %2769
        %2771 = vadd.xlane.f32.xlu0 %v2744
        %v2772 = vpop.xlane.xlu0 %2771
        %2773 = vadd.xlane.f32.xlu0 %v2745
        %v2774 = vpop.xlane.xlu0 %2773
        %2775 = vadd.xlane.f32.xlu0 %v2746
        %v2776 = vpop.xlane.xlu0 %2775
        %2777 = vadd.xlane.f32.xlu0 %v2747
        %v2778 = vpop.xlane.xlu0 %2777
        %2779 = vadd.xlane.f32.xlu0 %v2748
        %v2780 = vpop.xlane.xlu0 %2779
        %v2781 = vmul.f32 %v2750, %v2700
        %v2782 = vmul.f32 %v2752, %v2700
        %v2783 = vmul.f32 %v2754, %v2700
        %v2784 = vmul.f32 %v2756, %v2700
        %v2785 = vmul.f32 %v2758, %v2700
        %v2786 = vmul.f32 %v2760, %v2700
        %v2787 = vmul.f32 %v2762, %v2700
        %v2788 = vmul.f32 %v2764, %v2700
        %v2789 = vmul.f32 %v2766, %v2700
        %v2790 = vmul.f32 %v2768, %v2700
        %v2791 = vmul.f32 %v2770, %v2700
        %v2792 = vmul.f32 %v2772, %v2700
        %v2793 = vmul.f32 %v2774, %v2700
        %v2794 = vmul.f32 %v2776, %v2700
        %v2795 = vmul.f32 %v2778, %v2700
        %v2796 = vmul.f32 %v2780, %v2700
        %v2797 = vadd.f32 %v2781, 1e-05
        %v2798 = vadd.f32 %v2782, 1e-05
        %v2799 = vadd.f32 %v2783, 1e-05
        %v2800 = vadd.f32 %v2784, 1e-05
        %v2801 = vadd.f32 %v2785, 1e-05
        %v2802 = vadd.f32 %v2786, 1e-05
        %v2803 = vadd.f32 %v2787, 1e-05
        %v2804 = vadd.f32 %v2788, 1e-05
        %v2805 = vadd.f32 %v2789, 1e-05
        %v2806 = vadd.f32 %v2790, 1e-05
        %v2807 = vadd.f32 %v2791, 1e-05
        %v2808 = vadd.f32 %v2792, 1e-05
        %v2809 = vadd.f32 %v2793, 1e-05
        %v2810 = vadd.f32 %v2794, 1e-05
        %v2811 = vadd.f32 %v2795, 1e-05
        %v2812 = vadd.f32 %v2796, 1e-05
        %v2813 = vrsqrt.pop %v2797
        %v2814 = vrsqrt.pop %v2798
        %v2815 = vrsqrt.pop %v2799
        %v2816 = vrsqrt.pop %v2800
        %v2817 = vrsqrt.pop %v2801
        %v2818 = vrsqrt.pop %v2802
        %v2819 = vrsqrt.pop %v2803
        %v2820 = vrsqrt.pop %v2804
        %v2821 = vrsqrt.pop %v2805
        %v2822 = vrsqrt.pop %v2806
        %v2823 = vrsqrt.pop %v2807
        %v2824 = vrsqrt.pop %v2808
        %v2825 = vrsqrt.pop %v2809
        %v2826 = vrsqrt.pop %v2810
        %v2827 = vrsqrt.pop %v2811
        %v2828 = vrsqrt.pop %v2812
        %v2829 = vmul.f32 %v2717, %v2813
        %v2830 = vmul.f32 %v2718, %v2814
        %v2831 = vmul.f32 %v2719, %v2815
        %v2832 = vmul.f32 %v2720, %v2816
        %v2833 = vmul.f32 %v2721, %v2817
        %v2834 = vmul.f32 %v2722, %v2818
        %v2835 = vmul.f32 %v2723, %v2819
        %v2836 = vmul.f32 %v2724, %v2820
        %v2837 = vmul.f32 %v2725, %v2821
        %v2838 = vmul.f32 %v2726, %v2822
        %v2839 = vmul.f32 %v2727, %v2823
        %v2840 = vmul.f32 %v2728, %v2824
        %v2841 = vmul.f32 %v2729, %v2825
        %v2842 = vmul.f32 %v2730, %v2826
        %v2843 = vmul.f32 %v2731, %v2827
        %v2844 = vmul.f32 %v2732, %v2828
        %v2845 = vld [vmem:[%s9] sm:$0x1]
        %v2847 = vlaneseq
        %v2848 = vshrl.u32 %v2847, 7
        %v2849 = vsub.s32 0, %v2848
        %v2850 = vrot.slane %v2845, %v2849
        %v2852 = vmul.f32 %v2829, %v2850
        %v2853 = vmul.f32 %v2830, %v2850
        %v2854 = vmul.f32 %v2831, %v2850
        %v2855 = vmul.f32 %v2832, %v2850
        %v2856 = vmul.f32 %v2833, %v2850
        %v2857 = vmul.f32 %v2834, %v2850
        %v2858 = vmul.f32 %v2835, %v2850
        %v2859 = vmul.f32 %v2836, %v2850
        %v2860 = vmul.f32 %v2837, %v2850
        %v2861 = vmul.f32 %v2838, %v2850
        %v2862 = vmul.f32 %v2839, %v2850
        %v2863 = vmul.f32 %v2840, %v2850
        %v2864 = vmul.f32 %v2841, %v2850
        %v2865 = vmul.f32 %v2842, %v2850
        %v2866 = vmul.f32 %v2843, %v2850
        %v2867 = vmul.f32 %v2844, %v2850
        %v2868 = vld [vmem:[%s10] sm:$0x1]
        %v2870 = vlaneseq
        %v2871 = vshrl.u32 %v2870, 7
        %v2872 = vsub.s32 0, %v2871
        %v2873 = vrot.slane %v2868, %v2872
        %v2875 = vadd.f32 %v2852, %v2873
        %v2876 = vadd.f32 %v2853, %v2873
        %v2877 = vadd.f32 %v2854, %v2873
        %v2878 = vadd.f32 %v2855, %v2873
        %v2879 = vadd.f32 %v2856, %v2873
        %v2880 = vadd.f32 %v2857, %v2873
        %v2881 = vadd.f32 %v2858, %v2873
        %v2882 = vadd.f32 %v2859, %v2873
        %v2883 = vadd.f32 %v2860, %v2873
        %v2884 = vadd.f32 %v2861, %v2873
        %v2885 = vadd.f32 %v2862, %v2873
        %v2886 = vadd.f32 %v2863, %v2873
        %v2887 = vadd.f32 %v2864, %v2873
        %v2888 = vadd.f32 %v2865, %v2873
        %v2889 = vadd.f32 %v2866, %v2873
        %v2890 = vadd.f32 %v2867, %v2873
        %2891 = vst [vmem:[%s491] sm:$0xff] %v2875
        %2892 = vst [vmem:[%s491 + $0x8] sm:$0xff] %v2876
        %2893 = vst [vmem:[%s491 + $0x10] sm:$0xff] %v2877
        %2894 = vst [vmem:[%s491 + $0x18] sm:$0xff] %v2878
        %2895 = vst [vmem:[%s491 + $0x20] sm:$0xff] %v2879
        %2896 = vst [vmem:[%s491 + $0x28] sm:$0xff] %v2880
        %2897 = vst [vmem:[%s491 + $0x30] sm:$0xff] %v2881
        %2898 = vst [vmem:[%s491 + $0x38] sm:$0xff] %v2882
        %2899 = vst [vmem:[%s491 + $0x40] sm:$0xff] %v2883
        %2900 = vst [vmem:[%s491 + $0x48] sm:$0xff] %v2884
        %2901 = vst [vmem:[%s491 + $0x50] sm:$0xff] %v2885
        %2902 = vst [vmem:[%s491 + $0x58] sm:$0xff] %v2886
        %2903 = vst [vmem:[%s491 + $0x60] sm:$0xff] %v2887
        %2904 = vst [vmem:[%s491 + $0x68] sm:$0xff] %v2888
        %2905 = vst [vmem:[%s491 + $0x70] sm:$0xff] %v2889
        %2906 = vst [vmem:[%s491 + $0x78] sm:$0xff] %v2890
      $region72: #{boot_gcn_layer.5} parent=63 // pred_fallthru
        _
      %s2907 = smul.u32 16, %s26
      %p2908 = scmp.lt.s32.totalorder %s2907, 31
      %s2909 = scalar_select %p2908, %s2907, 31
      %s2910 = smul.addr %s2909, 8
      %s2911 = scalar_lea.vmem %s11, %s2910
      // Predicated region
      $region73: #{boot_gcn_layer.5} parent=63 // pred_check
        %p2912 = pneg %p310
      $region74: #{boot_gcn_layer.5} parent=63 // pred_check_branch
        %2914 = sbr.rel (%p2912) target = $region76
      $region75: #{boot_gcn_layer.5} parent=63 // pred_region
        %s2915 = smul.u32 16, %s26
      $region76: #{boot_gcn_layer.5} parent=63 // pred_fallthru
        _
    $region64: #{boot_gcn_layer.5} parent=5 // pred_fallthru
      _
    %p2916 = scmp.le.s32.totalorder 2, %s17
    // Predicated region
    $region77: #{boot_gcn_layer.5} parent=5 // pred_check
      %p2917 = pneg %p2916
    $region78: #{boot_gcn_layer.5} parent=5 // pred_check_branch
      %2919 = sbr.rel (%p2917) target = $region80
    $region79: #{boot_gcn_layer.5} parent=5 // pred_region
      %s2920 = ssub.s32 %s17, 2
      // Predicated region
      $region81: #{boot_gcn_layer.5} parent=79 // pred_check
        %p2921 = pneg %p316
      $region82: #{boot_gcn_layer.5} parent=79 // pred_check_branch
        %2923 = sbr.rel (%p2921) target = $region84
      $region83: #{boot_gcn_layer.5} parent=79 // pred_region
        %s2924 = smul.u32 16, %s28
        %p2925 = scmp.lt.s32.totalorder %s2924, 31
        %s2926 = scalar_select %p2925, %s2924, 31
        %s2927 = smul.addr %s2926, 8
        %s2928 = scalar_lea.vmem %s11, %s2927
      $region84: #{boot_gcn_layer.5} parent=79 // pred_fallthru
        _
    $region80: #{boot_gcn_layer.5} parent=5 // pred_fallthru
      _
  $region6: #{boot_gcn_layer.5} parent=0 // loop_footer
    %s21 = sadd.s32 1, %s17
  $region7: #{boot_gcn_layer.5} parent=0 // loop_footer_branch
    %16 = sbr.rel target = $region3
  $region8: #{boot_gcn_layer.5} parent=0 // loop_exit
    _

// kernel: boot_gcn_layer.7
$region0: #{boot_gcn_layer.7}
  #allocation0 [shape = 'u32[]', space=smem, size = 0x4, offset = 0x4, fixed_abs, tag = 'smem constant byte address 0x4 - core index']
  #allocation1 [shape = 'u32[144,128]{1,0:T(1,128)}', space=vmem, size = 0x12000, scoped, tag = 'internal scratch']
  #allocation2 [shape = 'bf16[128,128]{1,0:T(8,128)(2,1)}', space=vmem, size = 0x8000, scoped, tag = 'scratch operand']
  #allocation3 [shape = 'f32[128,128]{1,0:T(8,128)}', space=vmem, size = 0x10000, scoped, tag = 'scratch operand']
  #allocation4 [shape = 'f32[128,1]{1,0:T(8,128)}', space=vmem, size = 0x10000, scoped, tag = 'scratch operand']
  #allocation5 [shape = 'f32[128,1]{1,0:T(8,128)}', space=vmem, size = 0x10000, scoped, tag = 'scratch operand']
  #allocation6 [shape = 'f32[128,1]{1,0:T(8,128)}', space=vmem, size = 0x10000, scoped, tag = 'scratch operand']
  #allocation7 [shape = 'f32[128,128]{1,0:T(8,128)}', space=vmem, size = 0x10000, scoped, tag = 'scratch operand']
  #allocation8 [shape = 'f32[128,128]{1,0:T(8,128)}', space=vmem, size = 0x10000, scoped, tag = 'scratch operand']
  %s0 = inlined_call_operand.vmem [shape: f32[128,128], index: 0, kind: input, shape index: {}]
  %s1 = inlined_call_operand.vmem [shape: f32[1,256], index: 1, kind: input, shape index: {}]
  %s2 = inlined_call_operand.vmem [shape: bf16[256,128], index: 2, kind: input, shape index: {}]
  %s3 = inlined_call_operand.vmem [shape: bf16[256,128], index: 3, kind: input, shape index: {}]
  %s4 = inlined_call_operand.vmem [shape: s8[128,256], index: 4, kind: input, shape index: {}]
  %s5 = inlined_call_operand.vmem [shape: bf16[128,128], index: 5, kind: input, shape index: {}]
  %s6 = inlined_call_operand.vmem [shape: bf16[1,128], index: 6, kind: input, shape index: {}]
  %s7 = inlined_call_operand.vmem [shape: f32[128,128], index: 7, kind: input, shape index: {}]
  %s8 = inlined_call_operand.vmem [shape: f32[1,128], index: 8, kind: input, shape index: {}]
  %s9 = inlined_call_operand.vmem [shape: f32[1,128], index: 9, kind: input, shape index: {}]
  %s10 = inlined_call_operand.vmem [shape: f32[1,128], index: 10, kind: input, shape index: {}]
  %s11 = inlined_call_operand.hbm [shape: f32[128,128], index: 11, kind: output, shape index: {}]
  %s12 = sld [smem:[#allocation0]]
  $region123: #{boot_gcn_layer.7} parent=0
    _
  %s14 = ssub.s32 1, %s12
  %s15 = scalar_select 0, %s14, %s12
  $region1: #{boot_gcn_layer.7} parent=0
    #allocation9 [shape = 'u8[32768]{0}', space=vmem, size = 0x8000, scoped, tag = 'input window, operand 4']
    #allocation10 [shape = 'u8[65536]{0}', space=vmem, size = 0x10000, scoped, tag = 'output window, operand 0, single buffered']
    #allocation11 [shape = 's32[2]{0}', space=sflag, size = 0x8, scoped, tag = 'scoped memory for boot_gcn_layer.7']
    %16 = vsyncpa [#allocation11], 0
    loop: start=0, step=1, limit=4
    $region2: #{boot_gcn_layer.7} parent=1 // loop_pre_header
      _
    $region3: #{boot_gcn_layer.7} parent=1 // loop_header
      %s18 = sphi 0, %s22
      %p19 = scmp.ge.s32.totalorder %s18, 4
      %s25 = sphi 0, %s37
      %s26 = sphi 0, %s33
      %s27 = sphi 0, %s25
      %s28 = sphi 0, %s26
      %s29 = sphi 0, %s27
      %s30 = sphi 0, %s28
      %s40 = sphi 0, %s42
      %s43 = sphi 0, %s40
      %s44 = sphi 0, %s43
      %s60 = sphi 0, %s44
      %s66 = sphi 0, %s68
      %s69 = sphi 0, %s66
      %s70 = sphi 0, %s69
      %s86 = sphi 0, %s70
      %s92 = sphi 0, %s94
      %s95 = sphi 0, %s92
      %s96 = sphi 0, %s95
      %s112 = sphi 0, %s96
      %s118 = sphi 0, %s120
      %s121 = sphi 0, %s118
      %s122 = sphi 0, %s121
      %s138 = sphi 0, %s122
      %s146 = sphi 0, %s148
      %s149 = sphi 0, %s146
      %s150 = sphi 0, %s149
      %s166 = sphi 0, %s150
      %s170 = sphi 0, %s170
      %s172 = sphi 0, %s170
      %s173 = sphi 0, %s172
      %s187 = sphi 0, %s173
      %s191 = sphi 0, %s191
      %s193 = sphi 0, %s191
      %s194 = sphi 0, %s193
      %s208 = sphi 0, %s194
      %s212 = sphi 0, %s212
      %s214 = sphi 0, %s212
      %s215 = sphi 0, %s214
      %s229 = sphi 0, %s215
      %s233 = sphi 0, %s233
      %s235 = sphi 0, %s233
      %s236 = sphi 0, %s235
      %s250 = sphi 0, %s236
      %s254 = sphi 0, %s254
      %s256 = sphi 0, %s254
      %s257 = sphi 0, %s256
      %s271 = sphi 0, %s257
      %s275 = sphi 0, %s275
      %s277 = sphi 0, %s275
      %s278 = sphi 0, %s277
      %s292 = sphi 0, %s278
      %s298 = sphi 0, %s300
      %s301 = sphi 0, %s298
      %s302 = sphi 0, %s301
      %s318 = sphi 0, %s302
    $region4: #{boot_gcn_layer.7} parent=1 // loop_header_branch
      %21 = sbr.rel (%p19) target = $region8
    $region5: #{boot_gcn_layer.7} parent=1 // loop_body
      %s23 = ssub.s32 %s18, 1
      %s24 = ssub.s32 %s18, 2
      %s31 = sadd.s32 1, %s26
      %p32 = scmp.ge.s32.totalorder %s31, 2
      %s33 = scalar_select %p32, 0, %s31
      %s34 = sadd.s32 1, %s25
      %s35 = scalar_select %p32, %s34, %s25
      %p36 = scmp.ge.s32.totalorder %s35, 1
      %s37 = scalar_select %p36, 0, %s35
      %s38 = ssub.s32 %s25, %s37
      %p39 = scmp.eq.s32.totalorder %s38, 0
      %s41 = sadd.s32 %s40, 1
      %s42 = scalar_select %p39, %s40, %s41
      %p45 = pneg %p39
      %p46 = scmp.eq.s32.totalorder %s18, 1
      %p47 = por %p45, %p46
      %p48 = scmp.ne.s32.totalorder %s40, %s43
      %p49 = scmp.eq.s32.totalorder %s18, 0
      %p50 = por %p48, %p49
      %p51 = scmp.ne.s32.totalorder %s40, %s43
      %p52 = scmp.eq.s32.totalorder %s23, 1
      %p53 = por %p51, %p52
      %p54 = scmp.ne.s32.totalorder %s43, %s44
      %p55 = scmp.eq.s32.totalorder %s23, 0
      %p56 = por %p54, %p55
      %p57 = scmp.ne.s32.totalorder %s43, %s44
      %p58 = scmp.eq.s32.totalorder %s24, 1
      %p59 = por %p57, %p58
      %p61 = scmp.ne.s32.totalorder %s44, %s60
      %p62 = scmp.eq.s32.totalorder %s24, 0
      %p63 = por %p61, %p62
      %s64 = ssub.s32 %s26, %s33
      %p65 = scmp.eq.s32.totalorder %s64, 0
      %s67 = sadd.s32 %s66, 1
      %s68 = scalar_select %p65, %s66, %s67
      %p71 = pneg %p65
      %p72 = scmp.eq.s32.totalorder %s18, 1
      %p73 = por %p71, %p72
      %p74 = scmp.ne.s32.totalorder %s66, %s69
      %p75 = scmp.eq.s32.totalorder %s18, 0
      %p76 = por %p74, %p75
      %p77 = scmp.ne.s32.totalorder %s66, %s69
      %p78 = scmp.eq.s32.totalorder %s23, 1
      %p79 = por %p77, %p78
      %p80 = scmp.ne.s32.totalorder %s69, %s70
      %p81 = scmp.eq.s32.totalorder %s23, 0
      %p82 = por %p80, %p81
      %p83 = scmp.ne.s32.totalorder %s69, %s70
      %p84 = scmp.eq.s32.totalorder %s24, 1
      %p85 = por %p83, %p84
      %p87 = scmp.ne.s32.totalorder %s70, %s86
      %p88 = scmp.eq.s32.totalorder %s24, 0
      %p89 = por %p87, %p88
      %s90 = ssub.s32 %s26, %s33
      %p91 = scmp.eq.s32.totalorder %s90, 0
      %s93 = sadd.s32 %s92, 1
      %s94 = scalar_select %p91, %s92, %s93
      %p97 = pneg %p91
      %p98 = scmp.eq.s32.totalorder %s18, 1
      %p99 = por %p97, %p98
      %p100 = scmp.ne.s32.totalorder %s92, %s95
      %p101 = scmp.eq.s32.totalorder %s18, 0
      %p102 = por %p100, %p101
      %p103 = scmp.ne.s32.totalorder %s92, %s95
      %p104 = scmp.eq.s32.totalorder %s23, 1
      %p105 = por %p103, %p104
      %p106 = scmp.ne.s32.totalorder %s95, %s96
      %p107 = scmp.eq.s32.totalorder %s23, 0
      %p108 = por %p106, %p107
      %p109 = scmp.ne.s32.totalorder %s95, %s96
      %p110 = scmp.eq.s32.totalorder %s24, 1
      %p111 = por %p109, %p110
      %p113 = scmp.ne.s32.totalorder %s96, %s112
      %p114 = scmp.eq.s32.totalorder %s24, 0
      %p115 = por %p113, %p114
      %s116 = ssub.s32 %s26, %s33
      %p117 = scmp.eq.s32.totalorder %s116, 0
      %s119 = sadd.s32 %s118, 1
      %s120 = scalar_select %p117, %s118, %s119
      %p123 = pneg %p117
      %p124 = scmp.eq.s32.totalorder %s18, 1
      %p125 = por %p123, %p124
      %p126 = scmp.ne.s32.totalorder %s118, %s121
      %p127 = scmp.eq.s32.totalorder %s18, 0
      %p128 = por %p126, %p127
      %p129 = scmp.ne.s32.totalorder %s118, %s121
      %p130 = scmp.eq.s32.totalorder %s23, 1
      %p131 = por %p129, %p130
      %p132 = scmp.ne.s32.totalorder %s121, %s122
      %p133 = scmp.eq.s32.totalorder %s23, 0
      %p134 = por %p132, %p133
      %p135 = scmp.ne.s32.totalorder %s121, %s122
      %p136 = scmp.eq.s32.totalorder %s24, 1
      %p137 = por %p135, %p136
      %p139 = scmp.ne.s32.totalorder %s122, %s138
      %p140 = scmp.eq.s32.totalorder %s24, 0
      %p141 = por %p139, %p140
      %s142 = ssub.s32 %s25, %s37
      %s143 = ssub.s32 %s26, %s33
      %s144 = sor.u32 %s142, %s143
      %p145 = scmp.eq.s32.totalorder %s144, 0
      %s147 = sadd.s32 %s146, 1
      %s148 = scalar_select %p145, %s146, %s147
      %p151 = pneg %p145
      %p152 = scmp.eq.s32.totalorder %s18, 1
      %p153 = por %p151, %p152
      %p154 = scmp.ne.s32.totalorder %s146, %s149
      %p155 = scmp.eq.s32.totalorder %s18, 0
      %p156 = por %p154, %p155
      %p157 = scmp.ne.s32.totalorder %s146, %s149
      %p158 = scmp.eq.s32.totalorder %s23, 1
      %p159 = por %p157, %p158
      %p160 = scmp.ne.s32.totalorder %s149, %s150
      %p161 = scmp.eq.s32.totalorder %s23, 0
      %p162 = por %p160, %p161
      %p163 = scmp.ne.s32.totalorder %s149, %s150
      %p164 = scmp.eq.s32.totalorder %s24, 1
      %p165 = por %p163, %p164
      %p167 = scmp.ne.s32.totalorder %s150, %s166
      %p168 = scmp.eq.s32.totalorder %s24, 0
      %p169 = por %p167, %p168
      %s171 = sadd.s32 %s170, 1
      %p174 = scmp.eq.s32.totalorder %s18, 1
      %p175 = scmp.ne.s32.totalorder %s170, %s172
      %p176 = scmp.eq.s32.totalorder %s18, 0
      %p177 = por %p175, %p176
      %p178 = scmp.ne.s32.totalorder %s170, %s172
      %p179 = scmp.eq.s32.totalorder %s23, 1
      %p180 = por %p178, %p179
      %p181 = scmp.ne.s32.totalorder %s172, %s173
      %p182 = scmp.eq.s32.totalorder %s23, 0
      %p183 = por %p181, %p182
      %p184 = scmp.ne.s32.totalorder %s172, %s173
      %p185 = scmp.eq.s32.totalorder %s24, 1
      %p186 = por %p184, %p185
      %p188 = scmp.ne.s32.totalorder %s173, %s187
      %p189 = scmp.eq.s32.totalorder %s24, 0
      %p190 = por %p188, %p189
      %s192 = sadd.s32 %s191, 1
      %p195 = scmp.eq.s32.totalorder %s18, 1
      %p196 = scmp.ne.s32.totalorder %s191, %s193
      %p197 = scmp.eq.s32.totalorder %s18, 0
      %p198 = por %p196, %p197
      %p199 = scmp.ne.s32.totalorder %s191, %s193
      %p200 = scmp.eq.s32.totalorder %s23, 1
      %p201 = por %p199, %p200
      %p202 = scmp.ne.s32.totalorder %s193, %s194
      %p203 = scmp.eq.s32.totalorder %s23, 0
      %p204 = por %p202, %p203
      %p205 = scmp.ne.s32.totalorder %s193, %s194
      %p206 = scmp.eq.s32.totalorder %s24, 1
      %p207 = por %p205, %p206
      %p209 = scmp.ne.s32.totalorder %s194, %s208
      %p210 = scmp.eq.s32.totalorder %s24, 0
      %p211 = por %p209, %p210
      %s213 = sadd.s32 %s212, 1
      %p216 = scmp.eq.s32.totalorder %s18, 1
      %p217 = scmp.ne.s32.totalorder %s212, %s214
      %p218 = scmp.eq.s32.totalorder %s18, 0
      %p219 = por %p217, %p218
      %p220 = scmp.ne.s32.totalorder %s212, %s214
      %p221 = scmp.eq.s32.totalorder %s23, 1
      %p222 = por %p220, %p221
      %p223 = scmp.ne.s32.totalorder %s214, %s215
      %p224 = scmp.eq.s32.totalorder %s23, 0
      %p225 = por %p223, %p224
      %p226 = scmp.ne.s32.totalorder %s214, %s215
      %p227 = scmp.eq.s32.totalorder %s24, 1
      %p228 = por %p226, %p227
      %p230 = scmp.ne.s32.totalorder %s215, %s229
      %p231 = scmp.eq.s32.totalorder %s24, 0
      %p232 = por %p230, %p231
      %s234 = sadd.s32 %s233, 1
      %p237 = scmp.eq.s32.totalorder %s18, 1
      %p238 = scmp.ne.s32.totalorder %s233, %s235
      %p239 = scmp.eq.s32.totalorder %s18, 0
      %p240 = por %p238, %p239
      %p241 = scmp.ne.s32.totalorder %s233, %s235
      %p242 = scmp.eq.s32.totalorder %s23, 1
      %p243 = por %p241, %p242
      %p244 = scmp.ne.s32.totalorder %s235, %s236
      %p245 = scmp.eq.s32.totalorder %s23, 0
      %p246 = por %p244, %p245
      %p247 = scmp.ne.s32.totalorder %s235, %s236
      %p248 = scmp.eq.s32.totalorder %s24, 1
      %p249 = por %p247, %p248
      %p251 = scmp.ne.s32.totalorder %s236, %s250
      %p252 = scmp.eq.s32.totalorder %s24, 0
      %p253 = por %p251, %p252
      %s255 = sadd.s32 %s254, 1
      %p258 = scmp.eq.s32.totalorder %s18, 1
      %p259 = scmp.ne.s32.totalorder %s254, %s256
      %p260 = scmp.eq.s32.totalorder %s18, 0
      %p261 = por %p259, %p260
      %p262 = scmp.ne.s32.totalorder %s254, %s256
      %p263 = scmp.eq.s32.totalorder %s23, 1
      %p264 = por %p262, %p263
      %p265 = scmp.ne.s32.totalorder %s256, %s257
      %p266 = scmp.eq.s32.totalorder %s23, 0
      %p267 = por %p265, %p266
      %p268 = scmp.ne.s32.totalorder %s256, %s257
      %p269 = scmp.eq.s32.totalorder %s24, 1
      %p270 = por %p268, %p269
      %p272 = scmp.ne.s32.totalorder %s257, %s271
      %p273 = scmp.eq.s32.totalorder %s24, 0
      %p274 = por %p272, %p273
      %s276 = sadd.s32 %s275, 1
      %p279 = scmp.eq.s32.totalorder %s18, 1
      %p280 = scmp.ne.s32.totalorder %s275, %s277
      %p281 = scmp.eq.s32.totalorder %s18, 0
      %p282 = por %p280, %p281
      %p283 = scmp.ne.s32.totalorder %s275, %s277
      %p284 = scmp.eq.s32.totalorder %s23, 1
      %p285 = por %p283, %p284
      %p286 = scmp.ne.s32.totalorder %s277, %s278
      %p287 = scmp.eq.s32.totalorder %s23, 0
      %p288 = por %p286, %p287
      %p289 = scmp.ne.s32.totalorder %s277, %s278
      %p290 = scmp.eq.s32.totalorder %s24, 1
      %p291 = por %p289, %p290
      %p293 = scmp.ne.s32.totalorder %s278, %s292
      %p294 = scmp.eq.s32.totalorder %s24, 0
      %p295 = por %p293, %p294
      %s296 = ssub.s32 %s25, %s37
      %p297 = scmp.eq.s32.totalorder %s296, 0
      %s299 = sadd.s32 %s298, 1
      %s300 = scalar_select %p297, %s298, %s299
      %p303 = pneg %p297
      %p304 = scmp.eq.s32.totalorder %s18, 1
      %p305 = por %p303, %p304
      %p306 = scmp.ne.s32.totalorder %s298, %s301
      %p307 = scmp.eq.s32.totalorder %s18, 0
      %p308 = por %p306, %p307
      %p309 = scmp.ne.s32.totalorder %s298, %s301
      %p310 = scmp.eq.s32.totalorder %s23, 1
      %p311 = por %p309, %p310
      %p312 = scmp.ne.s32.totalorder %s301, %s302
      %p313 = scmp.eq.s32.totalorder %s23, 0
      %p314 = por %p312, %p313
      %p315 = scmp.ne.s32.totalorder %s301, %s302
      %p316 = scmp.eq.s32.totalorder %s24, 1
      %p317 = por %p315, %p316
      %p319 = scmp.ne.s32.totalorder %s302, %s318
      %p320 = scmp.eq.s32.totalorder %s24, 0
      %p321 = por %p319, %p320
      %p322 = scmp.le.s32.totalorder 1, %s18
      %p323 = scmp.lt.s32.totalorder %s18, 3
      %p324 = pnand %p322, %p323
      %p325 = pneg %p324
      // Predicated region
      $region9: #{boot_gcn_layer.7} parent=5 // pred_check
        _
      $region10: #{boot_gcn_layer.7} parent=5 // pred_check_branch
        %327 = sbr.rel (%p324) target = $region12
      $region11: #{boot_gcn_layer.7} parent=5 // pred_region
        %s328 = ssub.s32 %s18, 1
        // Predicated region
        $region13: #{boot_gcn_layer.7} parent=11 // pred_check
          %p329 = pneg %p56
        $region14: #{boot_gcn_layer.7} parent=11 // pred_check_branch
          %331 = sbr.rel (%p329) target = $region16
        $region15: #{boot_gcn_layer.7} parent=11 // pred_region
          %s332 = smul.u32 16, %s27
          %p333 = scmp.lt.s32.totalorder %s332, 15
          %s334 = scalar_select %p333, %s332, 15
          %s335 = smul.addr %s334, 8
          %s336 = scalar_lea.vmem %s0, %s335
          %s337 = smul.u32 16, %s27
        $region16: #{boot_gcn_layer.7} parent=11 // pred_fallthru
          _
        // Predicated region
        $region17: #{boot_gcn_layer.7} parent=11 // pred_check
          %p338 = pneg %p183
        $region18: #{boot_gcn_layer.7} parent=11 // pred_check_branch
          %340 = sbr.rel (%p338) target = $region20
        $region19: #{boot_gcn_layer.7} parent=11 // pred_region
          _
        $region20: #{boot_gcn_layer.7} parent=11 // pred_fallthru
          _
        // Predicated region
        $region21: #{boot_gcn_layer.7} parent=11 // pred_check
          %p341 = pneg %p204
        $region22: #{boot_gcn_layer.7} parent=11 // pred_check_branch
          %343 = sbr.rel (%p341) target = $region24
        $region23: #{boot_gcn_layer.7} parent=11 // pred_region
          _
        $region24: #{boot_gcn_layer.7} parent=11 // pred_fallthru
          _
        // Predicated region
        $region25: #{boot_gcn_layer.7} parent=11 // pred_check
          %p344 = pneg %p225
        $region26: #{boot_gcn_layer.7} parent=11 // pred_check_branch
          %346 = sbr.rel (%p344) target = $region28
        $region27: #{boot_gcn_layer.7} parent=11 // pred_region
          _
        $region28: #{boot_gcn_layer.7} parent=11 // pred_fallthru
          _
        // Predicated region
        $region29: #{boot_gcn_layer.7} parent=11 // pred_check
          %p347 = pneg %p246
        $region30: #{boot_gcn_layer.7} parent=11 // pred_check_branch
          %349 = sbr.rel (%p347) target = $region32
        $region31: #{boot_gcn_layer.7} parent=11 // pred_region
          _
        $region32: #{boot_gcn_layer.7} parent=11 // pred_fallthru
          _
        // Predicated region
        $region33: #{boot_gcn_layer.7} parent=11 // pred_check
          %p350 = pneg %p267
        $region34: #{boot_gcn_layer.7} parent=11 // pred_check_branch
          %352 = sbr.rel (%p350) target = $region36
        $region35: #{boot_gcn_layer.7} parent=11 // pred_region
          _
        $region36: #{boot_gcn_layer.7} parent=11 // pred_fallthru
          _
        // Predicated region
        $region37: #{boot_gcn_layer.7} parent=11 // pred_check
          %p353 = pneg %p288
        $region38: #{boot_gcn_layer.7} parent=11 // pred_check_branch
          %355 = sbr.rel (%p353) target = $region40
        $region39: #{boot_gcn_layer.7} parent=11 // pred_region
          _
        $region40: #{boot_gcn_layer.7} parent=11 // pred_fallthru
          _
      $region12: #{boot_gcn_layer.7} parent=5 // pred_fallthru
        _
      %p356 = scmp.lt.s32.totalorder %s18, 2
      // Predicated region
      $region41: #{boot_gcn_layer.7} parent=5 // pred_check
        %p357 = pneg %p356
      $region42: #{boot_gcn_layer.7} parent=5 // pred_check_branch
        %359 = sbr.rel (%p357) target = $region44
      $region43: #{boot_gcn_layer.7} parent=5 // pred_region
        // Predicated region
        $region45: #{boot_gcn_layer.7} parent=43 // pred_check
          %p360 = pneg %p76
        $region46: #{boot_gcn_layer.7} parent=43 // pred_check_branch
          %362 = sbr.rel (%p360) target = $region48
        $region47: #{boot_gcn_layer.7} parent=43 // pred_region
          %p363 = scmp.lt.s32.totalorder %s26, 1
          %s364 = scalar_select %p363, %s26, 1
          %s365 = scalar_lea.vmem %s1, %s364
        $region48: #{boot_gcn_layer.7} parent=43 // pred_fallthru
          _
        // Predicated region
        $region49: #{boot_gcn_layer.7} parent=43 // pred_check
          %p366 = pneg %p102
        $region50: #{boot_gcn_layer.7} parent=43 // pred_check_branch
          %368 = sbr.rel (%p366) target = $region52
        $region51: #{boot_gcn_layer.7} parent=43 // pred_region
          %s369 = smul.u32 16, %s26
          %p370 = scmp.lt.s32.totalorder %s369, 31
          %s371 = scalar_select %p370, %s369, 31
          %s372 = smul.addr %s371, 4
          %s373 = scalar_lea.vmem %s2, %s372
          %s374 = smul.u32 16, %s26
        $region52: #{boot_gcn_layer.7} parent=43 // pred_fallthru
          _
        // Predicated region
        $region53: #{boot_gcn_layer.7} parent=43 // pred_check
          %p375 = pneg %p128
        $region54: #{boot_gcn_layer.7} parent=43 // pred_check_branch
          %377 = sbr.rel (%p375) target = $region56
        $region55: #{boot_gcn_layer.7} parent=43 // pred_region
          %s378 = smul.u32 16, %s26
          %p379 = scmp.lt.s32.totalorder %s378, 31
          %s380 = scalar_select %p379, %s378, 31
          %s381 = smul.addr %s380, 4
          %s382 = scalar_lea.vmem %s3, %s381
          %s383 = smul.u32 16, %s26
        $region56: #{boot_gcn_layer.7} parent=43 // pred_fallthru
          _
        // Predicated region
        $region57: #{boot_gcn_layer.7} parent=43 // pred_check
          %p384 = pneg %p156
        $region58: #{boot_gcn_layer.7} parent=43 // pred_check_branch
          %386 = sbr.rel (%p384) target = $region60
        $region59: #{boot_gcn_layer.7} parent=43 // pred_region
          %s387 = sand.u32 %s146, 1
          %s388 = sand.u32 %s146, 1
          %s389 = smul.addr %s388, 32
          %s390 = scalar_lea.vmem [#allocation9], %s389
          %s391 = smul.u32 4, %s25
          %s392 = smul.addr %s391, 2
          %s393 = sadd.s32 %s26, %s392
          %s394 = smul.addr %s393, 8
          %s395 = scalar_lea.vmem %s4, %s394
          // Predicated region
          $region61: #{boot_gcn_layer.7} parent=59 // pred_check
            _
          $region62: #{boot_gcn_layer.7} parent=59 // pred_check_branch
            %397 = sbr.rel (0) target = $region64
          $region63: #{boot_gcn_layer.7} parent=59 // pred_region
            // Predicated region
            $region65: #{boot_gcn_layer.7} parent=63 // pred_check
              _
            $region66: #{boot_gcn_layer.7} parent=63 // pred_check_branch
              %399 = sbr.rel (0) target = $region68
            $region67: #{boot_gcn_layer.7} parent=63 // pred_region
              // Predicated region
              $region80: #{boot_gcn_layer.7} parent=67 // pred_check
                _
              $region81: #{boot_gcn_layer.7} parent=67 // pred_check_branch
                %421 = sbr.rel (0) target = $region83
              $region82: #{boot_gcn_layer.7} parent=67 // pred_region
                loop: start=0, step=1, limit=1
                $region84: #{boot_gcn_layer.7} parent=82 // loop_pre_header
                  _
                $region85: #{boot_gcn_layer.7} parent=82 // loop_header
                  %s423 = sphi 0, %s427
                  %p424 = scmp.ge.s32.totalorder %s423, 1
                  %s428 = sphi %s395, %s395
                  %s429 = sphi %s390, %s390
                $region86: #{boot_gcn_layer.7} parent=82 // loop_header_branch
                  %426 = sbr.rel (%p424) target = $region90
                $region87: #{boot_gcn_layer.7} parent=82 // loop_body
                  %v430 = vld [vmem:[%s428] sm:$0xff]
                  %431 = vst [vmem:[%s429] sm:$0xff] %v430
                  %v432 = vld [vmem:[%s428 + $0x10] sm:$0xff]
                  %433 = vst [vmem:[%s429 + $0x8] sm:$0xff] %v432
                  %v434 = vld [vmem:[%s428 + $0x20] sm:$0xff]
                  %435 = vst [vmem:[%s429 + $0x10] sm:$0xff] %v434
                  %v436 = vld [vmem:[%s428 + $0x30] sm:$0xff]
                  %437 = vst [vmem:[%s429 + $0x18] sm:$0xff] %v436
                $region88: #{boot_gcn_layer.7} parent=82 // loop_footer
                  %s427 = sadd.s32 1, %s423
                $region89: #{boot_gcn_layer.7} parent=82 // loop_footer_branch
                  %422 = sbr.rel target = $region85
                $region90: #{boot_gcn_layer.7} parent=82 // loop_exit
                  _
              $region83: #{boot_gcn_layer.7} parent=67 // pred_fallthru
                _
              // Predicated region
              $region91: #{boot_gcn_layer.7} parent=67 // pred_check
                _
              $region92: #{boot_gcn_layer.7} parent=67 // pred_check_branch
                %439 = sbr.rel target = $region94
              $region93: #{boot_gcn_layer.7} parent=67 // pred_region
                _
              $region94: #{boot_gcn_layer.7} parent=67 // pred_fallthru
                _
            $region68: #{boot_gcn_layer.7} parent=63 // pred_fallthru
              _
            // Predicated region
            $region69: #{boot_gcn_layer.7} parent=63 // pred_check
              _
            $region70: #{boot_gcn_layer.7} parent=63 // pred_check_branch
              %401 = sbr.rel target = $region72
            $region71: #{boot_gcn_layer.7} parent=63 // pred_region
              %s403 = ssub.s32 256, 1
              loop: start=0, step=1, limit=1
              $region73: #{boot_gcn_layer.7} parent=71 // loop_pre_header
                _
              $region74: #{boot_gcn_layer.7} parent=71 // loop_header
                %s405 = sphi 0, %s409
                %p406 = scmp.ge.s32.totalorder %s405, 1
                %s410 = sphi %s395, %s395
                %s411 = sphi %s390, %s390
              $region75: #{boot_gcn_layer.7} parent=71 // loop_header_branch
                %408 = sbr.rel (%p406) target = $region79
              $region76: #{boot_gcn_layer.7} parent=71 // loop_body
                %v412 = vld [vmem:[%s410] sm:%s403]
                %413 = vst [vmem:[%s411] sm:%s403] %v412
                %v414 = vld [vmem:[%s410 + $0x10] sm:%s403]
                %415 = vst [vmem:[%s411 + $0x8] sm:%s403] %v414
                %v416 = vld [vmem:[%s410 + $0x20] sm:%s403]
                %417 = vst [vmem:[%s411 + $0x10] sm:%s403] %v416
                %v418 = vld [vmem:[%s410 + $0x30] sm:%s403]
                %419 = vst [vmem:[%s411 + $0x18] sm:%s403] %v418
              $region77: #{boot_gcn_layer.7} parent=71 // loop_footer
                %s409 = sadd.s32 1, %s405
              $region78: #{boot_gcn_layer.7} parent=71 // loop_footer_branch
                %404 = sbr.rel target = $region74
              $region79: #{boot_gcn_layer.7} parent=71 // loop_exit
                _
            $region72: #{boot_gcn_layer.7} parent=63 // pred_fallthru
              _
          $region64: #{boot_gcn_layer.7} parent=59 // pred_fallthru
            _
          %440 = vnop
        $region60: #{boot_gcn_layer.7} parent=43 // pred_fallthru
          _
      $region44: #{boot_gcn_layer.7} parent=5 // pred_fallthru
        _
      %p441 = scmp.le.s32.totalorder 1, %s18
      %p442 = scmp.lt.s32.totalorder %s18, 3
      %p443 = pnand %p441, %p442
      %p444 = pneg %p443
      // Predicated region
      $region95: #{boot_gcn_layer.7} parent=5 // pred_check
        _
      $region96: #{boot_gcn_layer.7} parent=5 // pred_check_branch
        %446 = sbr.rel (%p443) target = $region98
      $region97: #{boot_gcn_layer.7} parent=5 // pred_region
        %s447 = ssub.s32 %s18, 1
        %s448 = sand.u32 %s149, 1
        %s449 = sand.u32 %s149, 1
        %s450 = smul.addr %s449, 32
        %s451 = scalar_lea.vmem [#allocation9], %s450
        // Predicated region
        $region99: #{boot_gcn_layer.7} parent=97 // pred_check
          %p452 = pneg %p162
        $region100: #{boot_gcn_layer.7} parent=97 // pred_check_branch
          %454 = sbr.rel (%p452) target = $region102
        $region101: #{boot_gcn_layer.7} parent=97 // pred_region
          _
        $region102: #{boot_gcn_layer.7} parent=97 // pred_fallthru
          _
        %s455 = smul.u32 16, %s27
        %p456 = scmp.lt.s32.totalorder %s455, 15
        %s457 = scalar_select %p456, %s455, 15
        %s458 = smul.addr %s457, 8
        %s459 = scalar_lea.vmem %s0, %s458
        %p460 = pneg %p56
        %p461 = pneg %p53
        %p462 = scmp.lt.s32.totalorder %s28, 1
        %s463 = scalar_select %p462, %s28, 1
        %s464 = scalar_lea.vmem %s1, %s463
        %p465 = pneg %p82
        %p466 = pneg %p79
        %s467 = smul.u32 16, %s28
        %p468 = scmp.lt.s32.totalorder %s467, 31
        %s469 = scalar_select %p468, %s467, 31
        %s470 = smul.addr %s469, 4
        %s471 = scalar_lea.vmem %s2, %s470
        %p472 = pneg %p108
        %p473 = pneg %p105
        %s474 = smul.u32 16, %s28
        %p475 = scmp.lt.s32.totalorder %s474, 31
        %s476 = scalar_select %p475, %s474, 31
        %s477 = smul.addr %s476, 4
        %s478 = scalar_lea.vmem %s3, %s477
        %p479 = pneg %p134
        %p480 = pneg %p131
        %s481 = sand.u32 %s149, 1
        %s482 = sand.u32 %s149, 1
        %s483 = smul.addr %s482, 32
        %s484 = scalar_lea.vmem [#allocation9], %s483
        %p485 = pneg %p162
        %p486 = pneg %p159
        %p487 = pneg %p183
        %p488 = pneg %p180
        %p489 = pneg %p204
        %p490 = pneg %p201
        %p491 = pneg %p225
        %p492 = pneg %p222
        %p493 = pneg %p246
        %p494 = pneg %p243
        %p495 = pneg %p267
        %p496 = pneg %p264
        %p497 = pneg %p288
        %p498 = pneg %p285
        %p499 = pneg %p314
        %p500 = pneg %p311
        %s501 = smul.u32 16, %s27
        %p502 = scmp.lt.s32.totalorder %s501, 15
        %s503 = scalar_select %p502, %s501, 15
        %s504 = smul.addr %s503, 8
        %s505 = scalar_lea.vmem %s0, %s504
        %s506 = smul.u32 16, %s27
        %p507 = scmp.lt.s32.totalorder %s28, 1
        %s508 = scalar_select %p507, %s28, 1
        %s509 = scalar_lea.vmem %s1, %s508
        %s510 = smul.u32 16, %s28
        %p511 = scmp.lt.s32.totalorder %s510, 31
        %s512 = scalar_select %p511, %s510, 31
        %s513 = smul.addr %s512, 4
        %s514 = scalar_lea.vmem %s2, %s513
        %s515 = smul.u32 16, %s28
        %s516 = smul.u32 16, %s28
        %p517 = scmp.lt.s32.totalorder %s516, 31
        %s518 = scalar_select %p517, %s516, 31
        %s519 = smul.addr %s518, 4
        %s520 = scalar_lea.vmem %s3, %s519
        %s521 = smul.u32 16, %s28
        %s522 = smul.u32 4, %s27
        %s523 = smul.u32 16, %s27
        %p525 = scmp.eq.s32.totalorder %s28, 0
        // Predicated region
        $region103: #{boot_gcn_layer.7} parent=97 // pred_check
          %p526 = pneg %p525
        $region104: #{boot_gcn_layer.7} parent=97 // pred_check_branch
          %528 = sbr.rel (%p526) target = $region106
        $region105: #{boot_gcn_layer.7} parent=97 // pred_region
          %v529 = vld [vmem:[%s505] sm:$0xff]
          %v530 = vld [vmem:[%s505 + $0x8] sm:$0xff]
          %v531 = vld [vmem:[%s505 + $0x10] sm:$0xff]
          %v532 = vld [vmem:[%s505 + $0x18] sm:$0xff]
          %v533 = vld [vmem:[%s505 + $0x20] sm:$0xff]
          %v534 = vld [vmem:[%s505 + $0x28] sm:$0xff]
          %v535 = vld [vmem:[%s505 + $0x30] sm:$0xff]
          %v536 = vld [vmem:[%s505 + $0x38] sm:$0xff]
          %v537 = vld [vmem:[%s505 + $0x40] sm:$0xff]
          %v538 = vld [vmem:[%s505 + $0x48] sm:$0xff]
          %v539 = vld [vmem:[%s505 + $0x50] sm:$0xff]
          %v540 = vld [vmem:[%s505 + $0x58] sm:$0xff]
          %v541 = vld [vmem:[%s505 + $0x60] sm:$0xff]
          %v542 = vld [vmem:[%s505 + $0x68] sm:$0xff]
          %v543 = vld [vmem:[%s505 + $0x70] sm:$0xff]
          %v544 = vld [vmem:[%s505 + $0x78] sm:$0xff]
          %v545 = vpack.c.bf16 %v530, %v529
          %v546 = vpack.c.bf16 %v532, %v531
          %v547 = vpack.c.bf16 %v534, %v533
          %v548 = vpack.c.bf16 %v536, %v535
          %v549 = vpack.c.bf16 %v538, %v537
          %v550 = vpack.c.bf16 %v540, %v539
          %v551 = vpack.c.bf16 %v542, %v541
          %v552 = vpack.c.bf16 %v544, %v543
          %v553 = vld [vmem:[%s5] sm:$0xf]
          %v554 = vld [vmem:[%s5 + $0x4] sm:$0xf]
          %v555 = vld [vmem:[%s5 + $0x8] sm:$0xf]
          %v556 = vld [vmem:[%s5 + $0xc] sm:$0xf]
          %v557 = vld [vmem:[%s5 + $0x10] sm:$0xf]
          %v558 = vld [vmem:[%s5 + $0x14] sm:$0xf]
          %v559 = vld [vmem:[%s5 + $0x18] sm:$0xf]
          %v560 = vld [vmem:[%s5 + $0x1c] sm:$0xf]
          %v561 = vld [vmem:[%s5 + $0x20] sm:$0xf]
          %v562 = vld [vmem:[%s5 + $0x24] sm:$0xf]
          %v563 = vld [vmem:[%s5 + $0x28] sm:$0xf]
          %v564 = vld [vmem:[%s5 + $0x2c] sm:$0xf]
          %v565 = vld [vmem:[%s5 + $0x30] sm:$0xf]
          %v566 = vld [vmem:[%s5 + $0x34] sm:$0xf]
          %v567 = vld [vmem:[%s5 + $0x38] sm:$0xf]
          %v568 = vld [vmem:[%s5 + $0x3c] sm:$0xf]
          %v569 = vld [vmem:[%s6] sm:$0x1]
          %v570 = vunpack.c.l.bf16 %v569
          %v571 = vlaneseq
          %v572 = vshrl.u32 %v571, 7
          %v573 = vsub.s32 0, %v572
          %v574 = vrot.slane %v570, %v573
          %v591 = vunpack.c.l.b16 %v553
          %v592 = vunpack.c.l.b16 %v554
          %v593 = vunpack.c.l.b16 %v555
          %v594 = vunpack.c.l.b16 %v556
          %v595 = vunpack.c.l.b16 %v557
          %v596 = vunpack.c.l.b16 %v558
          %v597 = vunpack.c.l.b16 %v559
          %v598 = vunpack.c.l.b16 %v560
          %v599 = vunpack.c.l.b16 %v561
          %v600 = vunpack.c.l.b16 %v562
          %v601 = vunpack.c.l.b16 %v563
          %v602 = vunpack.c.l.b16 %v564
          %v603 = vunpack.c.l.b16 %v565
          %v604 = vunpack.c.l.b16 %v566
          %v605 = vunpack.c.l.b16 %v567
          %v606 = vunpack.c.l.b16 %v568
          %v607 = vpack.c.b16 %v592, %v591
          %v608 = vpack.c.b16 %v594, %v593
          %v609 = vpack.c.b16 %v596, %v595
          %v610 = vpack.c.b16 %v598, %v597
          %v611 = vpack.c.b16 %v600, %v599
          %v612 = vpack.c.b16 %v602, %v601
          %v613 = vpack.c.b16 %v604, %v603
          %v614 = vpack.c.b16 %v606, %v605
          %623 = vmatprep.subr.bf16.mxu0 0
          %624 = vmatpush1.bf16.msra.mxu0 %v614
          %625 = vmatprep.subr.bf16.mxu0 0
          %626 = vmatpush1.bf16.msra.mxu0 %v613
          %627 = vmatprep.subr.bf16.mxu0 0
          %628 = vmatpush1.bf16.msra.mxu0 %v612
          %629 = vmatprep.subr.bf16.mxu0 0
          %630 = vmatpush1.bf16.msra.mxu0 %v611
          %631 = vmatprep.subr.bf16.mxu0 0
          %632 = vmatpush1.bf16.msra.mxu0 %v610
          %633 = vmatprep.subr.bf16.mxu0 0
          %634 = vmatpush1.bf16.msra.mxu0 %v609
          %635 = vmatprep.subr.bf16.mxu0 0
          %636 = vmatpush1.bf16.msra.mxu0 %v608
          %637 = vmatprep.subr.bf16.mxu0 0
          %638 = vmatpush1.bf16.msra.mxu0 %v607
          %639 = vmatprep.subr.bf16.mxu0 0
          %640 = vmatpush2.bf16.msra.mxu0 0
          %641 = vmatprep.subr.bf16.mxu0 0
          %642 = vmatpush2.bf16.msra.mxu0 0
          %643 = vmatprep.subr.bf16.mxu0 0
          %644 = vmatpush2.bf16.msra.mxu0 0
          %645 = vmatprep.subr.bf16.mxu0 0
          %646 = vmatpush2.bf16.msra.mxu0 0
          %647 = vmatprep.subr.bf16.mxu0 0
          %648 = vmatpush2.bf16.msra.mxu0 0
          %649 = vmatprep.subr.bf16.mxu0 0
          %650 = vmatpush2.bf16.msra.mxu0 0
          %651 = vmatprep.subr.bf16.mxu0 0
          %652 = vmatpush2.bf16.msra.mxu0 0
          %653 = vmatprep.subr.bf16.mxu0 0
          %654 = vmatpush2.bf16.msra.mxu0 0
          %655 = vmatprep.mubr.bf16.mxu0 0
          %656 = vmatmul.mubr.bf16.gmra.mxu0 %v545
          %v657 = vpop.f32.mrf.mxu0
          %v658 = vadd.f32 %v574, %v657
          %v659 = vpop.f32.mrf.mxu0
          %v660 = vpop.f32.mrf.mxu0
          %v661 = vadd.f32 %v574, %v660
          %v662 = vpop.f32.mrf.mxu0
          %663 = vmatprep.mubr.bf16.mxu0 0
          %664 = vmatmul.mubr.bf16.gmra.mxu0 %v546
          %v665 = vpop.f32.mrf.mxu0
          %v666 = vadd.f32 %v574, %v665
          %v667 = vpop.f32.mrf.mxu0
          %v668 = vpop.f32.mrf.mxu0
          %v669 = vadd.f32 %v574, %v668
          %v670 = vpop.f32.mrf.mxu0
          %671 = vmatprep.mubr.bf16.mxu0 0
          %672 = vmatmul.mubr.bf16.gmra.mxu0 %v547
          %v673 = vpop.f32.mrf.mxu0
          %v674 = vadd.f32 %v574, %v673
          %v675 = vpop.f32.mrf.mxu0
          %v676 = vpop.f32.mrf.mxu0
          %v677 = vadd.f32 %v574, %v676
          %v678 = vpop.f32.mrf.mxu0
          %679 = vmatprep.mubr.bf16.mxu0 0
          %680 = vmatmul.mubr.bf16.gmra.mxu0 %v548
          %v681 = vpop.f32.mrf.mxu0
          %v682 = vadd.f32 %v574, %v681
          %v683 = vpop.f32.mrf.mxu0
          %v684 = vpop.f32.mrf.mxu0
          %v685 = vadd.f32 %v574, %v684
          %v686 = vpop.f32.mrf.mxu0
          %687 = vmatprep.mubr.bf16.mxu0 0
          %688 = vmatmul.mubr.bf16.gmra.mxu0 %v549
          %v689 = vpop.f32.mrf.mxu0
          %v690 = vadd.f32 %v574, %v689
          %v691 = vpop.f32.mrf.mxu0
          %v692 = vpop.f32.mrf.mxu0
          %v693 = vadd.f32 %v574, %v692
          %v694 = vpop.f32.mrf.mxu0
          %695 = vmatprep.mubr.bf16.mxu0 0
          %696 = vmatmul.mubr.bf16.gmra.mxu0 %v550
          %v697 = vpop.f32.mrf.mxu0
          %v698 = vadd.f32 %v574, %v697
          %v699 = vpop.f32.mrf.mxu0
          %v700 = vpop.f32.mrf.mxu0
          %v701 = vadd.f32 %v574, %v700
          %v702 = vpop.f32.mrf.mxu0
          %703 = vmatprep.mubr.bf16.mxu0 0
          %704 = vmatmul.mubr.bf16.gmra.mxu0 %v551
          %v705 = vpop.f32.mrf.mxu0
          %v706 = vadd.f32 %v574, %v705
          %v707 = vpop.f32.mrf.mxu0
          %v708 = vpop.f32.mrf.mxu0
          %v709 = vadd.f32 %v574, %v708
          %v710 = vpop.f32.mrf.mxu0
          %711 = vmatprep.mubr.bf16.mxu0 0
          %712 = vmatmul.mubr.bf16.gmra.mxu0 %v552
          %v713 = vpop.f32.mrf.mxu0
          %v714 = vadd.f32 %v574, %v713
          %v715 = vpop.f32.mrf.mxu0
          %v716 = vpop.f32.mrf.mxu0
          %v717 = vadd.f32 %v574, %v716
          %v718 = vpop.f32.mrf.mxu0
          %719 = vdwg.mxu0
          %v720 = vpack.c.bf16 %v661, %v658
          %v721 = vpack.c.bf16 %v669, %v666
          %v722 = vpack.c.bf16 %v677, %v674
          %v723 = vpack.c.bf16 %v685, %v682
          %v724 = vpack.c.bf16 %v693, %v690
          %v725 = vpack.c.bf16 %v701, %v698
          %v726 = vpack.c.bf16 %v709, %v706
          %v727 = vpack.c.bf16 %v717, %v714
          %v736 = vunpack.c.l.b16 %v720
          %v737 = vunpack.c.h.b16 %v720
          %v738 = vunpack.c.l.b16 %v721
          %v739 = vunpack.c.h.b16 %v721
          %v740 = vunpack.c.l.b16 %v722
          %v741 = vunpack.c.h.b16 %v722
          %v742 = vunpack.c.l.b16 %v723
          %v743 = vunpack.c.h.b16 %v723
          %v744 = vunpack.c.l.b16 %v724
          %v745 = vunpack.c.h.b16 %v724
          %v746 = vunpack.c.l.b16 %v725
          %v747 = vunpack.c.h.b16 %v725
          %v748 = vunpack.c.l.b16 %v726
          %v749 = vunpack.c.h.b16 %v726
          %v750 = vunpack.c.l.b16 %v727
          %v751 = vunpack.c.h.b16 %v727
          %v752 = vpack.c.b16 %v736, %v736
          %v753 = vpack.c.b16 %v737, %v737
          %v754 = vpack.c.b16 %v738, %v738
          %v755 = vpack.c.b16 %v739, %v739
          %v756 = vpack.c.b16 %v740, %v740
          %v757 = vpack.c.b16 %v741, %v741
          %v758 = vpack.c.b16 %v742, %v742
          %v759 = vpack.c.b16 %v743, %v743
          %v760 = vpack.c.b16 %v744, %v744
          %v761 = vpack.c.b16 %v745, %v745
          %v762 = vpack.c.b16 %v746, %v746
          %v763 = vpack.c.b16 %v747, %v747
          %v764 = vpack.c.b16 %v748, %v748
          %v765 = vpack.c.b16 %v749, %v749
          %v766 = vpack.c.b16 %v750, %v750
          %v767 = vpack.c.b16 %v751, %v751
          %784 = vst [vmem:[#allocation2] sm:$0xf] %v752
          %785 = vst [vmem:[#allocation2 + $0x4] sm:$0xf] %v753
          %786 = vst [vmem:[#allocation2 + $0x8] sm:$0xf] %v754
          %787 = vst [vmem:[#allocation2 + $0xc] sm:$0xf] %v755
          %788 = vst [vmem:[#allocation2 + $0x10] sm:$0xf] %v756
          %789 = vst [vmem:[#allocation2 + $0x14] sm:$0xf] %v757
          %790 = vst [vmem:[#allocation2 + $0x18] sm:$0xf] %v758
          %791 = vst [vmem:[#allocation2 + $0x1c] sm:$0xf] %v759
          %792 = vst [vmem:[#allocation2 + $0x20] sm:$0xf] %v760
          %793 = vst [vmem:[#allocation2 + $0x24] sm:$0xf] %v761
          %794 = vst [vmem:[#allocation2 + $0x28] sm:$0xf] %v762
          %795 = vst [vmem:[#allocation2 + $0x2c] sm:$0xf] %v763
          %796 = vst [vmem:[#allocation2 + $0x30] sm:$0xf] %v764
          %797 = vst [vmem:[#allocation2 + $0x34] sm:$0xf] %v765
          %798 = vst [vmem:[#allocation2 + $0x38] sm:$0xf] %v766
          %799 = vst [vmem:[#allocation2 + $0x3c] sm:$0xf] %v767
          %v800 = vld [vmem:[%s7] sm:$0xff]
          %v801 = vld [vmem:[%s7 + $0x8] sm:$0xff]
          %v802 = vld [vmem:[%s7 + $0x10] sm:$0xff]
          %v803 = vld [vmem:[%s7 + $0x18] sm:$0xff]
          %v804 = vld [vmem:[%s7 + $0x20] sm:$0xff]
          %v805 = vld [vmem:[%s7 + $0x28] sm:$0xff]
          %v806 = vld [vmem:[%s7 + $0x30] sm:$0xff]
          %v807 = vld [vmem:[%s7 + $0x38] sm:$0xff]
          %v808 = vld [vmem:[%s7 + $0x40] sm:$0xff]
          %v809 = vld [vmem:[%s7 + $0x48] sm:$0xff]
          %v810 = vld [vmem:[%s7 + $0x50] sm:$0xff]
          %v811 = vld [vmem:[%s7 + $0x58] sm:$0xff]
          %v812 = vld [vmem:[%s7 + $0x60] sm:$0xff]
          %v813 = vld [vmem:[%s7 + $0x68] sm:$0xff]
          %v814 = vld [vmem:[%s7 + $0x70] sm:$0xff]
          %v815 = vld [vmem:[%s7 + $0x78] sm:$0xff]
          %v816 = vld [vmem:[%s8] sm:$0x1]
          %v818 = vlaneseq
          %v819 = vshrl.u32 %v818, 7
          %v820 = vsub.s32 0, %v819
          %v821 = vrot.slane %v816, %v820
          %823 = vmatprep.subr.mxu0 0.0
          %824 = vmatpush1.msra.mxu0 %v815
          %825 = vmatprep.subr.mxu0 0.0
          %826 = vmatpush1.msra.mxu0 %v814
          %827 = vmatprep.subr.mxu0 0.0
          %828 = vmatpush1.msra.mxu0 %v813
          %829 = vmatprep.subr.mxu0 0.0
          %830 = vmatpush1.msra.mxu0 %v812
          %831 = vmatprep.subr.mxu0 0.0
          %832 = vmatpush1.msra.mxu0 %v811
          %833 = vmatprep.subr.mxu0 0.0
          %834 = vmatpush1.msra.mxu0 %v810
          %835 = vmatprep.subr.mxu0 0.0
          %836 = vmatpush1.msra.mxu0 %v809
          %837 = vmatprep.subr.mxu0 0.0
          %838 = vmatpush1.msra.mxu0 %v808
          %839 = vmatprep.subr.mxu0 0.0
          %840 = vmatpush1.msra.mxu0 %v807
          %841 = vmatprep.subr.mxu0 0.0
          %842 = vmatpush1.msra.mxu0 %v806
          %843 = vmatprep.subr.mxu0 0.0
          %844 = vmatpush1.msra.mxu0 %v805
          %845 = vmatprep.subr.mxu0 0.0
          %846 = vmatpush1.msra.mxu0 %v804
          %847 = vmatprep.subr.mxu0 0.0
          %848 = vmatpush1.msra.mxu0 %v803
          %849 = vmatprep.subr.mxu0 0.0
          %850 = vmatpush1.msra.mxu0 %v802
          %851 = vmatprep.subr.mxu0 0.0
          %852 = vmatpush1.msra.mxu0 %v801
          %853 = vmatprep.subr.mxu0 0.0
          %854 = vmatpush1.msra.mxu0 %v800
          %855 = vmatprep.subr.mxu0 0.0
          %856 = vmatpush2.msra.mxu0 0.0
          %857 = vmatprep.subr.mxu0 0.0
          %858 = vmatpush2.msra.mxu0 0.0
          %859 = vmatprep.subr.mxu0 0.0
          %860 = vmatpush2.msra.mxu0 0.0
          %861 = vmatprep.subr.mxu0 0.0
          %862 = vmatpush2.msra.mxu0 0.0
          %863 = vmatprep.subr.mxu0 0.0
          %864 = vmatpush2.msra.mxu0 0.0
          %865 = vmatprep.subr.mxu0 0.0
          %866 = vmatpush2.msra.mxu0 0.0
          %867 = vmatprep.subr.mxu0 0.0
          %868 = vmatpush2.msra.mxu0 0.0
          %869 = vmatprep.subr.mxu0 0.0
          %870 = vmatpush2.msra.mxu0 0.0
          %871 = vmatprep.subr.mxu0 0.0
          %872 = vmatpush2.msra.mxu0 0.0
          %873 = vmatprep.subr.mxu0 0.0
          %874 = vmatpush2.msra.mxu0 0.0
          %875 = vmatprep.subr.mxu0 0.0
          %876 = vmatpush2.msra.mxu0 0.0
          %877 = vmatprep.subr.mxu0 0.0
          %878 = vmatpush2.msra.mxu0 0.0
          %879 = vmatprep.subr.mxu0 0.0
          %880 = vmatpush2.msra.mxu0 0.0
          %881 = vmatprep.subr.mxu0 0.0
          %882 = vmatpush2.msra.mxu0 0.0
          %883 = vmatprep.subr.mxu0 0.0
          %884 = vmatpush2.msra.mxu0 0.0
          %885 = vmatprep.subr.mxu0 0.0
          %886 = vmatpush2.msra.mxu0 0.0
          %887 = vmatprep.mubr.f32.mxu0 0.0
          %888 = vmatmul.mubr.f32.gmra.mxu0 %v529
          %v889 = vpop.f32.mrf.mxu0
          %v890 = vadd.f32 %v821, %v889
          %v891 = vpop.f32.mrf.mxu0
          %892 = vmatprep.mubr.f32.mxu0 0.0
          %893 = vmatmul.mubr.f32.gmra.mxu0 %v530
          %v894 = vpop.f32.mrf.mxu0
          %v895 = vadd.f32 %v821, %v894
          %v896 = vpop.f32.mrf.mxu0
          %897 = vmatprep.mubr.f32.mxu0 0.0
          %898 = vmatmul.mubr.f32.gmra.mxu0 %v531
          %v899 = vpop.f32.mrf.mxu0
          %v900 = vadd.f32 %v821, %v899
          %v901 = vpop.f32.mrf.mxu0
          %902 = vmatprep.mubr.f32.mxu0 0.0
          %903 = vmatmul.mubr.f32.gmra.mxu0 %v532
          %v904 = vpop.f32.mrf.mxu0
          %v905 = vadd.f32 %v821, %v904
          %v906 = vpop.f32.mrf.mxu0
          %907 = vmatprep.mubr.f32.mxu0 0.0
          %908 = vmatmul.mubr.f32.gmra.mxu0 %v533
          %v909 = vpop.f32.mrf.mxu0
          %v910 = vadd.f32 %v821, %v909
          %v911 = vpop.f32.mrf.mxu0
          %912 = vmatprep.mubr.f32.mxu0 0.0
          %913 = vmatmul.mubr.f32.gmra.mxu0 %v534
          %v914 = vpop.f32.mrf.mxu0
          %v915 = vadd.f32 %v821, %v914
          %v916 = vpop.f32.mrf.mxu0
          %917 = vmatprep.mubr.f32.mxu0 0.0
          %918 = vmatmul.mubr.f32.gmra.mxu0 %v535
          %v919 = vpop.f32.mrf.mxu0
          %v920 = vadd.f32 %v821, %v919
          %v921 = vpop.f32.mrf.mxu0
          %922 = vmatprep.mubr.f32.mxu0 0.0
          %923 = vmatmul.mubr.f32.gmra.mxu0 %v536
          %v924 = vpop.f32.mrf.mxu0
          %v925 = vadd.f32 %v821, %v924
          %v926 = vpop.f32.mrf.mxu0
          %927 = vmatprep.mubr.f32.mxu0 0.0
          %928 = vmatmul.mubr.f32.gmra.mxu0 %v537
          %v929 = vpop.f32.mrf.mxu0
          %v930 = vadd.f32 %v821, %v929
          %v931 = vpop.f32.mrf.mxu0
          %932 = vmatprep.mubr.f32.mxu0 0.0
          %933 = vmatmul.mubr.f32.gmra.mxu0 %v538
          %v934 = vpop.f32.mrf.mxu0
          %v935 = vadd.f32 %v821, %v934
          %v936 = vpop.f32.mrf.mxu0
          %937 = vmatprep.mubr.f32.mxu0 0.0
          %938 = vmatmul.mubr.f32.gmra.mxu0 %v539
          %v939 = vpop.f32.mrf.mxu0
          %v940 = vadd.f32 %v821, %v939
          %v941 = vpop.f32.mrf.mxu0
          %942 = vmatprep.mubr.f32.mxu0 0.0
          %943 = vmatmul.mubr.f32.gmra.mxu0 %v540
          %v944 = vpop.f32.mrf.mxu0
          %v945 = vadd.f32 %v821, %v944
          %v946 = vpop.f32.mrf.mxu0
          %947 = vmatprep.mubr.f32.mxu0 0.0
          %948 = vmatmul.mubr.f32.gmra.mxu0 %v541
          %v949 = vpop.f32.mrf.mxu0
          %v950 = vadd.f32 %v821, %v949
          %v951 = vpop.f32.mrf.mxu0
          %952 = vmatprep.mubr.f32.mxu0 0.0
          %953 = vmatmul.mubr.f32.gmra.mxu0 %v542
          %v954 = vpop.f32.mrf.mxu0
          %v955 = vadd.f32 %v821, %v954
          %v956 = vpop.f32.mrf.mxu0
          %957 = vmatprep.mubr.f32.mxu0 0.0
          %958 = vmatmul.mubr.f32.gmra.mxu0 %v543
          %v959 = vpop.f32.mrf.mxu0
          %v960 = vadd.f32 %v821, %v959
          %v961 = vpop.f32.mrf.mxu0
          %962 = vmatprep.mubr.f32.mxu0 0.0
          %963 = vmatmul.mubr.f32.gmra.mxu0 %v544
          %v964 = vpop.f32.mrf.mxu0
          %v965 = vadd.f32 %v821, %v964
          %v966 = vpop.f32.mrf.mxu0
          %967 = vdwg.mxu0
          %968 = vst [vmem:[#allocation3] sm:$0xff] %v890
          %969 = vst [vmem:[#allocation3 + $0x8] sm:$0xff] %v895
          %970 = vst [vmem:[#allocation3 + $0x10] sm:$0xff] %v900
          %971 = vst [vmem:[#allocation3 + $0x18] sm:$0xff] %v905
          %972 = vst [vmem:[#allocation3 + $0x20] sm:$0xff] %v910
          %973 = vst [vmem:[#allocation3 + $0x28] sm:$0xff] %v915
          %974 = vst [vmem:[#allocation3 + $0x30] sm:$0xff] %v920
          %975 = vst [vmem:[#allocation3 + $0x38] sm:$0xff] %v925
          %976 = vst [vmem:[#allocation3 + $0x40] sm:$0xff] %v930
          %977 = vst [vmem:[#allocation3 + $0x48] sm:$0xff] %v935
          %978 = vst [vmem:[#allocation3 + $0x50] sm:$0xff] %v940
          %979 = vst [vmem:[#allocation3 + $0x58] sm:$0xff] %v945
          %980 = vst [vmem:[#allocation3 + $0x60] sm:$0xff] %v950
          %981 = vst [vmem:[#allocation3 + $0x68] sm:$0xff] %v955
          %982 = vst [vmem:[#allocation3 + $0x70] sm:$0xff] %v960
          %983 = vst [vmem:[#allocation3 + $0x78] sm:$0xff] %v965
          %vm984 = vcmask 7168
          %985 = vst.msk [vmem:[#allocation4] sm:$0xff] %vm984, -inf
          %986 = vst.msk [vmem:[#allocation4 + $0x8] sm:$0xff] %vm984, -inf
          %987 = vst.msk [vmem:[#allocation4 + $0x10] sm:$0xff] %vm984, -inf
          %988 = vst.msk [vmem:[#allocation4 + $0x18] sm:$0xff] %vm984, -inf
          %989 = vst.msk [vmem:[#allocation4 + $0x20] sm:$0xff] %vm984, -inf
          %990 = vst.msk [vmem:[#allocation4 + $0x28] sm:$0xff] %vm984, -inf
          %991 = vst.msk [vmem:[#allocation4 + $0x30] sm:$0xff] %vm984, -inf
          %992 = vst.msk [vmem:[#allocation4 + $0x38] sm:$0xff] %vm984, -inf
          %993 = vst.msk [vmem:[#allocation4 + $0x40] sm:$0xff] %vm984, -inf
          %994 = vst.msk [vmem:[#allocation4 + $0x48] sm:$0xff] %vm984, -inf
          %995 = vst.msk [vmem:[#allocation4 + $0x50] sm:$0xff] %vm984, -inf
          %996 = vst.msk [vmem:[#allocation4 + $0x58] sm:$0xff] %vm984, -inf
          %997 = vst.msk [vmem:[#allocation4 + $0x60] sm:$0xff] %vm984, -inf
          %998 = vst.msk [vmem:[#allocation4 + $0x68] sm:$0xff] %vm984, -inf
          %999 = vst.msk [vmem:[#allocation4 + $0x70] sm:$0xff] %vm984, -inf
          %1000 = vst.msk [vmem:[#allocation4 + $0x78] sm:$0xff] %vm984, -inf
          %1001 = vst.msk [vmem:[#allocation5] sm:$0xff] %vm984, 0.0
          %1002 = vst.msk [vmem:[#allocation5 + $0x8] sm:$0xff] %vm984, 0.0
          %1003 = vst.msk [vmem:[#allocation5 + $0x10] sm:$0xff] %vm984, 0.0
          %1004 = vst.msk [vmem:[#allocation5 + $0x18] sm:$0xff] %vm984, 0.0
          %1005 = vst.msk [vmem:[#allocation5 + $0x20] sm:$0xff] %vm984, 0.0
          %1006 = vst.msk [vmem:[#allocation5 + $0x28] sm:$0xff] %vm984, 0.0
          %1007 = vst.msk [vmem:[#allocation5 + $0x30] sm:$0xff] %vm984, 0.0
          %1008 = vst.msk [vmem:[#allocation5 + $0x38] sm:$0xff] %vm984, 0.0
          %1009 = vst.msk [vmem:[#allocation5 + $0x40] sm:$0xff] %vm984, 0.0
          %1010 = vst.msk [vmem:[#allocation5 + $0x48] sm:$0xff] %vm984, 0.0
          %1011 = vst.msk [vmem:[#allocation5 + $0x50] sm:$0xff] %vm984, 0.0
          %1012 = vst.msk [vmem:[#allocation5 + $0x58] sm:$0xff] %vm984, 0.0
          %1013 = vst.msk [vmem:[#allocation5 + $0x60] sm:$0xff] %vm984, 0.0
          %1014 = vst.msk [vmem:[#allocation5 + $0x68] sm:$0xff] %vm984, 0.0
          %1015 = vst.msk [vmem:[#allocation5 + $0x70] sm:$0xff] %vm984, 0.0
          %1016 = vst.msk [vmem:[#allocation5 + $0x78] sm:$0xff] %vm984, 0.0
          %1017 = vst.msk [vmem:[#allocation6] sm:$0xff] %vm984, 0.0
          %1018 = vst.msk [vmem:[#allocation6 + $0x8] sm:$0xff] %vm984, 0.0
          %1019 = vst.msk [vmem:[#allocation6 + $0x10] sm:$0xff] %vm984, 0.0
          %1020 = vst.msk [vmem:[#allocation6 + $0x18] sm:$0xff] %vm984, 0.0
          %1021 = vst.msk [vmem:[#allocation6 + $0x20] sm:$0xff] %vm984, 0.0
          %1022 = vst.msk [vmem:[#allocation6 + $0x28] sm:$0xff] %vm984, 0.0
          %1023 = vst.msk [vmem:[#allocation6 + $0x30] sm:$0xff] %vm984, 0.0
          %1024 = vst.msk [vmem:[#allocation6 + $0x38] sm:$0xff] %vm984, 0.0
          %1025 = vst.msk [vmem:[#allocation6 + $0x40] sm:$0xff] %vm984, 0.0
          %1026 = vst.msk [vmem:[#allocation6 + $0x48] sm:$0xff] %vm984, 0.0
          %1027 = vst.msk [vmem:[#allocation6 + $0x50] sm:$0xff] %vm984, 0.0
          %1028 = vst.msk [vmem:[#allocation6 + $0x58] sm:$0xff] %vm984, 0.0
          %1029 = vst.msk [vmem:[#allocation6 + $0x60] sm:$0xff] %vm984, 0.0
          %1030 = vst.msk [vmem:[#allocation6 + $0x68] sm:$0xff] %vm984, 0.0
          %1031 = vst.msk [vmem:[#allocation6 + $0x70] sm:$0xff] %vm984, 0.0
          %1032 = vst.msk [vmem:[#allocation6 + $0x78] sm:$0xff] %vm984, 0.0
          %1033 = vst [vmem:[#allocation7] sm:$0xff] 0.0
          %1034 = vst [vmem:[#allocation7 + $0x8] sm:$0xff] 0.0
          %1035 = vst [vmem:[#allocation7 + $0x10] sm:$0xff] 0.0
          %1036 = vst [vmem:[#allocation7 + $0x18] sm:$0xff] 0.0
          %1037 = vst [vmem:[#allocation7 + $0x20] sm:$0xff] 0.0
          %1038 = vst [vmem:[#allocation7 + $0x28] sm:$0xff] 0.0
          %1039 = vst [vmem:[#allocation7 + $0x30] sm:$0xff] 0.0
          %1040 = vst [vmem:[#allocation7 + $0x38] sm:$0xff] 0.0
          %1041 = vst [vmem:[#allocation7 + $0x40] sm:$0xff] 0.0
          %1042 = vst [vmem:[#allocation7 + $0x48] sm:$0xff] 0.0
          %1043 = vst [vmem:[#allocation7 + $0x50] sm:$0xff] 0.0
          %1044 = vst [vmem:[#allocation7 + $0x58] sm:$0xff] 0.0
          %1045 = vst [vmem:[#allocation7 + $0x60] sm:$0xff] 0.0
          %1046 = vst [vmem:[#allocation7 + $0x68] sm:$0xff] 0.0
          %1047 = vst [vmem:[#allocation7 + $0x70] sm:$0xff] 0.0
          %1048 = vst [vmem:[#allocation7 + $0x78] sm:$0xff] 0.0
          %1049 = vst [vmem:[#allocation8] sm:$0xff] 0.0
          %1050 = vst [vmem:[#allocation8 + $0x8] sm:$0xff] 0.0
          %1051 = vst [vmem:[#allocation8 + $0x10] sm:$0xff] 0.0
          %1052 = vst [vmem:[#allocation8 + $0x18] sm:$0xff] 0.0
          %1053 = vst [vmem:[#allocation8 + $0x20] sm:$0xff] 0.0
          %1054 = vst [vmem:[#allocation8 + $0x28] sm:$0xff] 0.0
          %1055 = vst [vmem:[#allocation8 + $0x30] sm:$0xff] 0.0
          %1056 = vst [vmem:[#allocation8 + $0x38] sm:$0xff] 0.0
          %1057 = vst [vmem:[#allocation8 + $0x40] sm:$0xff] 0.0
          %1058 = vst [vmem:[#allocation8 + $0x48] sm:$0xff] 0.0
          %1059 = vst [vmem:[#allocation8 + $0x50] sm:$0xff] 0.0
          %1060 = vst [vmem:[#allocation8 + $0x58] sm:$0xff] 0.0
          %1061 = vst [vmem:[#allocation8 + $0x60] sm:$0xff] 0.0
          %1062 = vst [vmem:[#allocation8 + $0x68] sm:$0xff] 0.0
          %1063 = vst [vmem:[#allocation8 + $0x70] sm:$0xff] 0.0
          %1064 = vst [vmem:[#allocation8 + $0x78] sm:$0xff] 0.0
        $region106: #{boot_gcn_layer.7} parent=97 // pred_fallthru
          _
        %v1065 = vld [vmem:[%s514] sm:$0xf]
        %v1066 = vld [vmem:[%s514 + $0x4] sm:$0xf]
        %v1067 = vld [vmem:[%s514 + $0x8] sm:$0xf]
        %v1068 = vld [vmem:[%s514 + $0xc] sm:$0xf]
        %v1069 = vld [vmem:[%s514 + $0x10] sm:$0xf]
        %v1070 = vld [vmem:[%s514 + $0x14] sm:$0xf]
        %v1071 = vld [vmem:[%s514 + $0x18] sm:$0xf]
        %v1072 = vld [vmem:[%s514 + $0x1c] sm:$0xf]
        %v1073 = vld [vmem:[%s514 + $0x20] sm:$0xf]
        %v1074 = vld [vmem:[%s514 + $0x24] sm:$0xf]
        %v1075 = vld [vmem:[%s514 + $0x28] sm:$0xf]
        %v1076 = vld [vmem:[%s514 + $0x2c] sm:$0xf]
        %v1077 = vld [vmem:[%s514 + $0x30] sm:$0xf]
        %v1078 = vld [vmem:[%s514 + $0x34] sm:$0xf]
        %v1079 = vld [vmem:[%s514 + $0x38] sm:$0xf]
        %v1080 = vld [vmem:[%s514 + $0x3c] sm:$0xf]
        %v1081 = vld [vmem:[%s520] sm:$0xf]
        %v1082 = vld [vmem:[%s520 + $0x4] sm:$0xf]
        %v1083 = vld [vmem:[%s520 + $0x8] sm:$0xf]
        %v1084 = vld [vmem:[%s520 + $0xc] sm:$0xf]
        %v1085 = vld [vmem:[%s520 + $0x10] sm:$0xf]
        %v1086 = vld [vmem:[%s520 + $0x14] sm:$0xf]
        %v1087 = vld [vmem:[%s520 + $0x18] sm:$0xf]
        %v1088 = vld [vmem:[%s520 + $0x1c] sm:$0xf]
        %v1089 = vld [vmem:[%s520 + $0x20] sm:$0xf]
        %v1090 = vld [vmem:[%s520 + $0x24] sm:$0xf]
        %v1091 = vld [vmem:[%s520 + $0x28] sm:$0xf]
        %v1092 = vld [vmem:[%s520 + $0x2c] sm:$0xf]
        %v1093 = vld [vmem:[%s520 + $0x30] sm:$0xf]
        %v1094 = vld [vmem:[%s520 + $0x34] sm:$0xf]
        %v1095 = vld [vmem:[%s520 + $0x38] sm:$0xf]
        %v1096 = vld [vmem:[%s520 + $0x3c] sm:$0xf]
        %v1097 = vld [vmem:[%s451] sm:$0xff]
        %v1098 = vld [vmem:[%s451 + $0x8] sm:$0xff]
        %v1099 = vld [vmem:[%s451 + $0x10] sm:$0xff]
        %v1100 = vld [vmem:[%s451 + $0x18] sm:$0xff]
        %v1101 = vunpack.c.0.s8 %v1097
        %v1102 = vunpack.c.1.s8 %v1097
        %v1103 = vunpack.c.2.s8 %v1097
        %v1104 = vunpack.c.3.s8 %v1097
        %v1105 = vunpack.c.0.s8 %v1098
        %v1106 = vunpack.c.1.s8 %v1098
        %v1107 = vunpack.c.2.s8 %v1098
        %v1108 = vunpack.c.3.s8 %v1098
        %v1109 = vunpack.c.0.s8 %v1099
        %v1110 = vunpack.c.1.s8 %v1099
        %v1111 = vunpack.c.2.s8 %v1099
        %v1112 = vunpack.c.3.s8 %v1099
        %v1113 = vunpack.c.0.s8 %v1100
        %v1114 = vunpack.c.1.s8 %v1100
        %v1115 = vunpack.c.2.s8 %v1100
        %v1116 = vunpack.c.3.s8 %v1100
        %vm1117 = vcmp.gt.s32.totalorder %v1101, 0
        %vm1118 = vcmp.gt.s32.totalorder %v1102, 0
        %vm1119 = vcmp.gt.s32.totalorder %v1103, 0
        %vm1120 = vcmp.gt.s32.totalorder %v1104, 0
        %vm1121 = vcmp.gt.s32.totalorder %v1105, 0
        %vm1122 = vcmp.gt.s32.totalorder %v1106, 0
        %vm1123 = vcmp.gt.s32.totalorder %v1107, 0
        %vm1124 = vcmp.gt.s32.totalorder %v1108, 0
        %vm1125 = vcmp.gt.s32.totalorder %v1109, 0
        %vm1126 = vcmp.gt.s32.totalorder %v1110, 0
        %vm1127 = vcmp.gt.s32.totalorder %v1111, 0
        %vm1128 = vcmp.gt.s32.totalorder %v1112, 0
        %vm1129 = vcmp.gt.s32.totalorder %v1113, 0
        %vm1130 = vcmp.gt.s32.totalorder %v1114, 0
        %vm1131 = vcmp.gt.s32.totalorder %v1115, 0
        %vm1132 = vcmp.gt.s32.totalorder %v1116, 0
        %v1133 = vsel %vm1117, 1, 0
        %v1134 = vsel %vm1118, 1, 0
        %v1135 = vsel %vm1119, 1, 0
        %v1136 = vsel %vm1120, 1, 0
        %v1137 = vsel %vm1121, 1, 0
        %v1138 = vsel %vm1122, 1, 0
        %v1139 = vsel %vm1123, 1, 0
        %v1140 = vsel %vm1124, 1, 0
        %v1141 = vsel %vm1125, 1, 0
        %v1142 = vsel %vm1126, 1, 0
        %v1143 = vsel %vm1127, 1, 0
        %v1144 = vsel %vm1128, 1, 0
        %v1145 = vsel %vm1129, 1, 0
        %v1146 = vsel %vm1130, 1, 0
        %v1147 = vsel %vm1131, 1, 0
        %v1148 = vsel %vm1132, 1, 0
        %v1149 = vcvt.s32.f32 %v1133
        %v1150 = vcvt.s32.f32 %v1134
        %v1151 = vcvt.s32.f32 %v1135
        %v1152 = vcvt.s32.f32 %v1136
        %v1153 = vcvt.s32.f32 %v1137
        %v1154 = vcvt.s32.f32 %v1138
        %v1155 = vcvt.s32.f32 %v1139
        %v1156 = vcvt.s32.f32 %v1140
        %v1157 = vcvt.s32.f32 %v1141
        %v1158 = vcvt.s32.f32 %v1142
        %v1159 = vcvt.s32.f32 %v1143
        %v1160 = vcvt.s32.f32 %v1144
        %v1161 = vcvt.s32.f32 %v1145
        %v1162 = vcvt.s32.f32 %v1146
        %v1163 = vcvt.s32.f32 %v1147
        %v1164 = vcvt.s32.f32 %v1148
        %v1165 = vld [vmem:[#allocation2] sm:$0xf]
        %v1166 = vld [vmem:[#allocation2 + $0x4] sm:$0xf]
        %v1167 = vld [vmem:[#allocation2 + $0x8] sm:$0xf]
        %v1168 = vld [vmem:[#allocation2 + $0xc] sm:$0xf]
        %v1169 = vld [vmem:[#allocation2 + $0x10] sm:$0xf]
        %v1170 = vld [vmem:[#allocation2 + $0x14] sm:$0xf]
        %v1171 = vld [vmem:[#allocation2 + $0x18] sm:$0xf]
        %v1172 = vld [vmem:[#allocation2 + $0x1c] sm:$0xf]
        %v1173 = vld [vmem:[#allocation2 + $0x20] sm:$0xf]
        %v1174 = vld [vmem:[#allocation2 + $0x24] sm:$0xf]
        %v1175 = vld [vmem:[#allocation2 + $0x28] sm:$0xf]
        %v1176 = vld [vmem:[#allocation2 + $0x2c] sm:$0xf]
        %v1177 = vld [vmem:[#allocation2 + $0x30] sm:$0xf]
        %v1178 = vld [vmem:[#allocation2 + $0x34] sm:$0xf]
        %v1179 = vld [vmem:[#allocation2 + $0x38] sm:$0xf]
        %v1180 = vld [vmem:[#allocation2 + $0x3c] sm:$0xf]
        %v1197 = vunpack.c.l.b16 %v1165
        %v1198 = vunpack.c.l.b16 %v1166
        %v1199 = vunpack.c.l.b16 %v1167
        %v1200 = vunpack.c.l.b16 %v1168
        %v1201 = vunpack.c.l.b16 %v1169
        %v1202 = vunpack.c.l.b16 %v1170
        %v1203 = vunpack.c.l.b16 %v1171
        %v1204 = vunpack.c.l.b16 %v1172
        %v1205 = vunpack.c.l.b16 %v1173
        %v1206 = vunpack.c.l.b16 %v1174
        %v1207 = vunpack.c.l.b16 %v1175
        %v1208 = vunpack.c.l.b16 %v1176
        %v1209 = vunpack.c.l.b16 %v1177
        %v1210 = vunpack.c.l.b16 %v1178
        %v1211 = vunpack.c.l.b16 %v1179
        %v1212 = vunpack.c.l.b16 %v1180
        %v1213 = vpack.c.b16 %v1198, %v1197
        %v1214 = vpack.c.b16 %v1200, %v1199
        %v1215 = vpack.c.b16 %v1202, %v1201
        %v1216 = vpack.c.b16 %v1204, %v1203
        %v1217 = vpack.c.b16 %v1206, %v1205
        %v1218 = vpack.c.b16 %v1208, %v1207
        %v1219 = vpack.c.b16 %v1210, %v1209
        %v1220 = vpack.c.b16 %v1212, %v1211
        %v1245 = vunpack.c.l.b16 %v1065
        %v1246 = vunpack.c.l.b16 %v1066
        %v1247 = vunpack.c.l.b16 %v1067
        %v1248 = vunpack.c.l.b16 %v1068
        %v1249 = vunpack.c.l.b16 %v1069
        %v1250 = vunpack.c.l.b16 %v1070
        %v1251 = vunpack.c.l.b16 %v1071
        %v1252 = vunpack.c.l.b16 %v1072
        %v1253 = vunpack.c.l.b16 %v1073
        %v1254 = vunpack.c.l.b16 %v1074
        %v1255 = vunpack.c.l.b16 %v1075
        %v1256 = vunpack.c.l.b16 %v1076
        %v1257 = vunpack.c.l.b16 %v1077
        %v1258 = vunpack.c.l.b16 %v1078
        %v1259 = vunpack.c.l.b16 %v1079
        %v1260 = vunpack.c.l.b16 %v1080
        %v1261 = vpack.c.b16 %v1246, %v1245
        %v1262 = vpack.c.b16 %v1248, %v1247
        %v1263 = vpack.c.b16 %v1250, %v1249
        %v1264 = vpack.c.b16 %v1252, %v1251
        %v1265 = vpack.c.b16 %v1254, %v1253
        %v1266 = vpack.c.b16 %v1256, %v1255
        %v1267 = vpack.c.b16 %v1258, %v1257
        %v1268 = vpack.c.b16 %v1260, %v1259
        %1277 = vmatprep.subr.bf16.mxu0 0
        %1278 = vmatpush1.bf16.xpose.msra.mxu0 %v1268
        %1279 = vmatprep.subr.bf16.mxu0 0
        %1280 = vmatpush1.bf16.xpose.msra.mxu0 %v1267
        %1281 = vmatprep.subr.bf16.mxu0 0
        %1282 = vmatpush1.bf16.xpose.msra.mxu0 %v1266
        %1283 = vmatprep.subr.bf16.mxu0 0
        %1284 = vmatpush1.bf16.xpose.msra.mxu0 %v1265
        %1285 = vmatprep.subr.bf16.mxu0 0
        %1286 = vmatpush1.bf16.xpose.msra.mxu0 %v1264
        %1287 = vmatprep.subr.bf16.mxu0 0
        %1288 = vmatpush1.bf16.xpose.msra.mxu0 %v1263
        %1289 = vmatprep.subr.bf16.mxu0 0
        %1290 = vmatpush1.bf16.xpose.msra.mxu0 %v1262
        %1291 = vmatprep.subr.bf16.mxu0 0
        %1292 = vmatpush1.bf16.xpose.msra.mxu0 %v1261
        %1293 = vmatprep.subr.bf16.mxu0 0
        %1294 = vmatpush2.bf16.xpose.msra.mxu0 0
        %1295 = vmatprep.subr.bf16.mxu0 0
        %1296 = vmatpush2.bf16.xpose.msra.mxu0 0
        %1297 = vmatprep.subr.bf16.mxu0 0
        %1298 = vmatpush2.bf16.xpose.msra.mxu0 0
        %1299 = vmatprep.subr.bf16.mxu0 0
        %1300 = vmatpush2.bf16.xpose.msra.mxu0 0
        %1301 = vmatprep.subr.bf16.mxu0 0
        %1302 = vmatpush2.bf16.xpose.msra.mxu0 0
        %1303 = vmatprep.subr.bf16.mxu0 0
        %1304 = vmatpush2.bf16.xpose.msra.mxu0 0
        %1305 = vmatprep.subr.bf16.mxu0 0
        %1306 = vmatpush2.bf16.xpose.msra.mxu0 0
        %1307 = vmatprep.subr.bf16.mxu0 0
        %1308 = vmatpush2.bf16.xpose.msra.mxu0 0
        %1309 = vmatprep.mubr.bf16.mxu0 0
        %1310 = vmatmul.mubr.bf16.gmra.mxu0 %v1213
        %v1311 = vpop.f32.mrf.mxu0
        %v1312 = vadd.f32 0.0, %v1311
        %v1313 = vpop.f32.mrf.mxu0
        %v1314 = vpop.f32.mrf.mxu0
        %v1315 = vadd.f32 0.0, %v1314
        %v1316 = vpop.f32.mrf.mxu0
        %1317 = vmatprep.mubr.bf16.mxu0 0
        %1318 = vmatmul.mubr.bf16.gmra.mxu0 %v1214
        %v1319 = vpop.f32.mrf.mxu0
        %v1320 = vadd.f32 0.0, %v1319
        %v1321 = vpop.f32.mrf.mxu0
        %v1322 = vpop.f32.mrf.mxu0
        %v1323 = vadd.f32 0.0, %v1322
        %v1324 = vpop.f32.mrf.mxu0
        %1325 = vmatprep.mubr.bf16.mxu0 0
        %1326 = vmatmul.mubr.bf16.gmra.mxu0 %v1215
        %v1327 = vpop.f32.mrf.mxu0
        %v1328 = vadd.f32 0.0, %v1327
        %v1329 = vpop.f32.mrf.mxu0
        %v1330 = vpop.f32.mrf.mxu0
        %v1331 = vadd.f32 0.0, %v1330
        %v1332 = vpop.f32.mrf.mxu0
        %1333 = vmatprep.mubr.bf16.mxu0 0
        %1334 = vmatmul.mubr.bf16.gmra.mxu0 %v1216
        %v1335 = vpop.f32.mrf.mxu0
        %v1336 = vadd.f32 0.0, %v1335
        %v1337 = vpop.f32.mrf.mxu0
        %v1338 = vpop.f32.mrf.mxu0
        %v1339 = vadd.f32 0.0, %v1338
        %v1340 = vpop.f32.mrf.mxu0
        %1341 = vmatprep.mubr.bf16.mxu0 0
        %1342 = vmatmul.mubr.bf16.gmra.mxu0 %v1217
        %v1343 = vpop.f32.mrf.mxu0
        %v1344 = vadd.f32 0.0, %v1343
        %v1345 = vpop.f32.mrf.mxu0
        %v1346 = vpop.f32.mrf.mxu0
        %v1347 = vadd.f32 0.0, %v1346
        %v1348 = vpop.f32.mrf.mxu0
        %1349 = vmatprep.mubr.bf16.mxu0 0
        %1350 = vmatmul.mubr.bf16.gmra.mxu0 %v1218
        %v1351 = vpop.f32.mrf.mxu0
        %v1352 = vadd.f32 0.0, %v1351
        %v1353 = vpop.f32.mrf.mxu0
        %v1354 = vpop.f32.mrf.mxu0
        %v1355 = vadd.f32 0.0, %v1354
        %v1356 = vpop.f32.mrf.mxu0
        %1357 = vmatprep.mubr.bf16.mxu0 0
        %1358 = vmatmul.mubr.bf16.gmra.mxu0 %v1219
        %v1359 = vpop.f32.mrf.mxu0
        %v1360 = vadd.f32 0.0, %v1359
        %v1361 = vpop.f32.mrf.mxu0
        %v1362 = vpop.f32.mrf.mxu0
        %v1363 = vadd.f32 0.0, %v1362
        %v1364 = vpop.f32.mrf.mxu0
        %1365 = vmatprep.mubr.bf16.mxu0 0
        %1366 = vmatmul.mubr.bf16.gmra.mxu0 %v1220
        %v1367 = vpop.f32.mrf.mxu0
        %v1368 = vadd.f32 0.0, %v1367
        %v1369 = vpop.f32.mrf.mxu0
        %v1370 = vpop.f32.mrf.mxu0
        %v1371 = vadd.f32 0.0, %v1370
        %v1372 = vpop.f32.mrf.mxu0
        %1373 = vdwg.mxu0
        %v1374 = vsel %vm1117, %v1312, -1e+30
        %v1375 = vsel %vm1118, %v1315, -1e+30
        %v1376 = vsel %vm1119, %v1320, -1e+30
        %v1377 = vsel %vm1120, %v1323, -1e+30
        %v1378 = vsel %vm1121, %v1328, -1e+30
        %v1379 = vsel %vm1122, %v1331, -1e+30
        %v1380 = vsel %vm1123, %v1336, -1e+30
        %v1381 = vsel %vm1124, %v1339, -1e+30
        %v1382 = vsel %vm1125, %v1344, -1e+30
        %v1383 = vsel %vm1126, %v1347, -1e+30
        %v1384 = vsel %vm1127, %v1352, -1e+30
        %v1385 = vsel %vm1128, %v1355, -1e+30
        %v1386 = vsel %vm1129, %v1360, -1e+30
        %v1387 = vsel %vm1130, %v1363, -1e+30
        %v1388 = vsel %vm1131, %v1368, -1e+30
        %v1389 = vsel %vm1132, %v1371, -1e+30
        %v1390 = vld [vmem:[#allocation4] sm:$0xff]
        %v1391 = vld [vmem:[#allocation4 + $0x8] sm:$0xff]
        %v1392 = vld [vmem:[#allocation4 + $0x10] sm:$0xff]
        %v1393 = vld [vmem:[#allocation4 + $0x18] sm:$0xff]
        %v1394 = vld [vmem:[#allocation4 + $0x20] sm:$0xff]
        %v1395 = vld [vmem:[#allocation4 + $0x28] sm:$0xff]
        %v1396 = vld [vmem:[#allocation4 + $0x30] sm:$0xff]
        %v1397 = vld [vmem:[#allocation4 + $0x38] sm:$0xff]
        %v1398 = vld [vmem:[#allocation4 + $0x40] sm:$0xff]
        %v1399 = vld [vmem:[#allocation4 + $0x48] sm:$0xff]
        %v1400 = vld [vmem:[#allocation4 + $0x50] sm:$0xff]
        %v1401 = vld [vmem:[#allocation4 + $0x58] sm:$0xff]
        %v1402 = vld [vmem:[#allocation4 + $0x60] sm:$0xff]
        %v1403 = vld [vmem:[#allocation4 + $0x68] sm:$0xff]
        %v1404 = vld [vmem:[#allocation4 + $0x70] sm:$0xff]
        %v1405 = vld [vmem:[#allocation4 + $0x78] sm:$0xff]
        %1406 = vmax.xlane.f32.xlu0 %v1374
        %v1407 = vpop.xlane.xlu0 %1406
        %1408 = vmax.xlane.f32.xlu0 %v1375
        %v1409 = vpop.xlane.xlu0 %1408
        %1410 = vmax.xlane.f32.xlu0 %v1376
        %v1411 = vpop.xlane.xlu0 %1410
        %1412 = vmax.xlane.f32.xlu0 %v1377
        %v1413 = vpop.xlane.xlu0 %1412
        %1414 = vmax.xlane.f32.xlu0 %v1378
        %v1415 = vpop.xlane.xlu0 %1414
        %1416 = vmax.xlane.f32.xlu0 %v1379
        %v1417 = vpop.xlane.xlu0 %1416
        %1418 = vmax.xlane.f32.xlu0 %v1380
        %v1419 = vpop.xlane.xlu0 %1418
        %1420 = vmax.xlane.f32.xlu0 %v1381
        %v1421 = vpop.xlane.xlu0 %1420
        %1422 = vmax.xlane.f32.xlu0 %v1382
        %v1423 = vpop.xlane.xlu0 %1422
        %1424 = vmax.xlane.f32.xlu0 %v1383
        %v1425 = vpop.xlane.xlu0 %1424
        %1426 = vmax.xlane.f32.xlu0 %v1384
        %v1427 = vpop.xlane.xlu0 %1426
        %1428 = vmax.xlane.f32.xlu0 %v1385
        %v1429 = vpop.xlane.xlu0 %1428
        %1430 = vmax.xlane.f32.xlu0 %v1386
        %v1431 = vpop.xlane.xlu0 %1430
        %1432 = vmax.xlane.f32.xlu0 %v1387
        %v1433 = vpop.xlane.xlu0 %1432
        %1434 = vmax.xlane.f32.xlu0 %v1388
        %v1435 = vpop.xlane.xlu0 %1434
        %1436 = vmax.xlane.f32.xlu0 %v1389
        %v1437 = vpop.xlane.xlu0 %1436
        %v1438 = vmax.f32 %v1390, %v1407
        %v1439 = vmax.f32 %v1391, %v1409
        %v1440 = vmax.f32 %v1392, %v1411
        %v1441 = vmax.f32 %v1393, %v1413
        %v1442 = vmax.f32 %v1394, %v1415
        %v1443 = vmax.f32 %v1395, %v1417
        %v1444 = vmax.f32 %v1396, %v1419
        %v1445 = vmax.f32 %v1397, %v1421
        %v1446 = vmax.f32 %v1398, %v1423
        %v1447 = vmax.f32 %v1399, %v1425
        %v1448 = vmax.f32 %v1400, %v1427
        %v1449 = vmax.f32 %v1401, %v1429
        %v1450 = vmax.f32 %v1402, %v1431
        %v1451 = vmax.f32 %v1403, %v1433
        %v1452 = vmax.f32 %v1404, %v1435
        %v1453 = vmax.f32 %v1405, %v1437
        %v1454 = vsub.f32 %v1390, %v1438
        %v1455 = vsub.f32 %v1391, %v1439
        %v1456 = vsub.f32 %v1392, %v1440
        %v1457 = vsub.f32 %v1393, %v1441
        %v1458 = vsub.f32 %v1394, %v1442
        %v1459 = vsub.f32 %v1395, %v1443
        %v1460 = vsub.f32 %v1396, %v1444
        %v1461 = vsub.f32 %v1397, %v1445
        %v1462 = vsub.f32 %v1398, %v1446
        %v1463 = vsub.f32 %v1399, %v1447
        %v1464 = vsub.f32 %v1400, %v1448
        %v1465 = vsub.f32 %v1401, %v1449
        %v1466 = vsub.f32 %v1402, %v1450
        %v1467 = vsub.f32 %v1403, %v1451
        %v1468 = vsub.f32 %v1404, %v1452
        %v1469 = vsub.f32 %v1405, %v1453
        %v1470 = vmul.f32 %v1454, 1.442695
        %v1471 = vpow.pop %v1470
        %v1472 = vmul.f32 %v1455, 1.442695
        %v1473 = vpow.pop %v1472
        %v1474 = vmul.f32 %v1456, 1.442695
        %v1475 = vpow.pop %v1474
        %v1476 = vmul.f32 %v1457, 1.442695
        %v1477 = vpow.pop %v1476
        %v1478 = vmul.f32 %v1458, 1.442695
        %v1479 = vpow.pop %v1478
        %v1480 = vmul.f32 %v1459, 1.442695
        %v1481 = vpow.pop %v1480
        %v1482 = vmul.f32 %v1460, 1.442695
        %v1483 = vpow.pop %v1482
        %v1484 = vmul.f32 %v1461, 1.442695
        %v1485 = vpow.pop %v1484
        %v1486 = vmul.f32 %v1462, 1.442695
        %v1487 = vpow.pop %v1486
        %v1488 = vmul.f32 %v1463, 1.442695
        %v1489 = vpow.pop %v1488
        %v1490 = vmul.f32 %v1464, 1.442695
        %v1491 = vpow.pop %v1490
        %v1492 = vmul.f32 %v1465, 1.442695
        %v1493 = vpow.pop %v1492
        %v1494 = vmul.f32 %v1466, 1.442695
        %v1495 = vpow.pop %v1494
        %v1496 = vmul.f32 %v1467, 1.442695
        %v1497 = vpow.pop %v1496
        %v1498 = vmul.f32 %v1468, 1.442695
        %v1499 = vpow.pop %v1498
        %v1500 = vmul.f32 %v1469, 1.442695
        %v1501 = vpow.pop %v1500
        %1503 = vset.pattern.permute.xlu0 0
        %1504 = vperm.xlu0 %1503, %v1438
        %v1505 = vpop.permute.xlu0 %1504
        %1508 = vset.pattern.permute.xlu0 0
        %1509 = vperm.xlu0 %1508, %v1439
        %v1510 = vpop.permute.xlu0 %1509
        %1513 = vset.pattern.permute.xlu0 0
        %1514 = vperm.xlu0 %1513, %v1440
        %v1515 = vpop.permute.xlu0 %1514
        %1518 = vset.pattern.permute.xlu0 0
        %1519 = vperm.xlu0 %1518, %v1441
        %v1520 = vpop.permute.xlu0 %1519
        %1523 = vset.pattern.permute.xlu0 0
        %1524 = vperm.xlu0 %1523, %v1442
        %v1525 = vpop.permute.xlu0 %1524
        %1528 = vset.pattern.permute.xlu0 0
        %1529 = vperm.xlu0 %1528, %v1443
        %v1530 = vpop.permute.xlu0 %1529
        %1533 = vset.pattern.permute.xlu0 0
        %1534 = vperm.xlu0 %1533, %v1444
        %v1535 = vpop.permute.xlu0 %1534
        %1538 = vset.pattern.permute.xlu0 0
        %1539 = vperm.xlu0 %1538, %v1445
        %v1540 = vpop.permute.xlu0 %1539
        %1543 = vset.pattern.permute.xlu0 0
        %1544 = vperm.xlu0 %1543, %v1446
        %v1545 = vpop.permute.xlu0 %1544
        %1548 = vset.pattern.permute.xlu0 0
        %1549 = vperm.xlu0 %1548, %v1447
        %v1550 = vpop.permute.xlu0 %1549
        %1553 = vset.pattern.permute.xlu0 0
        %1554 = vperm.xlu0 %1553, %v1448
        %v1555 = vpop.permute.xlu0 %1554
        %1558 = vset.pattern.permute.xlu0 0
        %1559 = vperm.xlu0 %1558, %v1449
        %v1560 = vpop.permute.xlu0 %1559
        %1563 = vset.pattern.permute.xlu0 0
        %1564 = vperm.xlu0 %1563, %v1450
        %v1565 = vpop.permute.xlu0 %1564
        %1568 = vset.pattern.permute.xlu0 0
        %1569 = vperm.xlu0 %1568, %v1451
        %v1570 = vpop.permute.xlu0 %1569
        %1573 = vset.pattern.permute.xlu0 0
        %1574 = vperm.xlu0 %1573, %v1452
        %v1575 = vpop.permute.xlu0 %1574
        %1578 = vset.pattern.permute.xlu0 0
        %1579 = vperm.xlu0 %1578, %v1453
        %v1580 = vpop.permute.xlu0 %1579
        %v1582 = vsub.f32 %v1374, %v1505
        %v1583 = vsub.f32 %v1375, %v1510
        %v1584 = vsub.f32 %v1376, %v1515
        %v1585 = vsub.f32 %v1377, %v1520
        %v1586 = vsub.f32 %v1378, %v1525
        %v1587 = vsub.f32 %v1379, %v1530
        %v1588 = vsub.f32 %v1380, %v1535
        %v1589 = vsub.f32 %v1381, %v1540
        %v1590 = vsub.f32 %v1382, %v1545
        %v1591 = vsub.f32 %v1383, %v1550
        %v1592 = vsub.f32 %v1384, %v1555
        %v1593 = vsub.f32 %v1385, %v1560
        %v1594 = vsub.f32 %v1386, %v1565
        %v1595 = vsub.f32 %v1387, %v1570
        %v1596 = vsub.f32 %v1388, %v1575
        %v1597 = vsub.f32 %v1389, %v1580
        %v1598 = vmul.f32 %v1582, 1.442695
        %v1599 = vpow.pop %v1598
        %v1600 = vmul.f32 %v1583, 1.442695
        %v1601 = vpow.pop %v1600
        %v1602 = vmul.f32 %v1584, 1.442695
        %v1603 = vpow.pop %v1602
        %v1604 = vmul.f32 %v1585, 1.442695
        %v1605 = vpow.pop %v1604
        %v1606 = vmul.f32 %v1586, 1.442695
        %v1607 = vpow.pop %v1606
        %v1608 = vmul.f32 %v1587, 1.442695
        %v1609 = vpow.pop %v1608
        %v1610 = vmul.f32 %v1588, 1.442695
        %v1611 = vpow.pop %v1610
        %v1612 = vmul.f32 %v1589, 1.442695
        %v1613 = vpow.pop %v1612
        %v1614 = vmul.f32 %v1590, 1.442695
        %v1615 = vpow.pop %v1614
        %v1616 = vmul.f32 %v1591, 1.442695
        %v1617 = vpow.pop %v1616
        %v1618 = vmul.f32 %v1592, 1.442695
        %v1619 = vpow.pop %v1618
        %v1620 = vmul.f32 %v1593, 1.442695
        %v1621 = vpow.pop %v1620
        %v1622 = vmul.f32 %v1594, 1.442695
        %v1623 = vpow.pop %v1622
        %v1624 = vmul.f32 %v1595, 1.442695
        %v1625 = vpow.pop %v1624
        %v1626 = vmul.f32 %v1596, 1.442695
        %v1627 = vpow.pop %v1626
        %v1628 = vmul.f32 %v1597, 1.442695
        %v1629 = vpow.pop %v1628
        %v1630 = vld [vmem:[#allocation5] sm:$0xff]
        %v1631 = vld [vmem:[#allocation5 + $0x8] sm:$0xff]
        %v1632 = vld [vmem:[#allocation5 + $0x10] sm:$0xff]
        %v1633 = vld [vmem:[#allocation5 + $0x18] sm:$0xff]
        %v1634 = vld [vmem:[#allocation5 + $0x20] sm:$0xff]
        %v1635 = vld [vmem:[#allocation5 + $0x28] sm:$0xff]
        %v1636 = vld [vmem:[#allocation5 + $0x30] sm:$0xff]
        %v1637 = vld [vmem:[#allocation5 + $0x38] sm:$0xff]
        %v1638 = vld [vmem:[#allocation5 + $0x40] sm:$0xff]
        %v1639 = vld [vmem:[#allocation5 + $0x48] sm:$0xff]
        %v1640 = vld [vmem:[#allocation5 + $0x50] sm:$0xff]
        %v1641 = vld [vmem:[#allocation5 + $0x58] sm:$0xff]
        %v1642 = vld [vmem:[#allocation5 + $0x60] sm:$0xff]
        %v1643 = vld [vmem:[#allocation5 + $0x68] sm:$0xff]
        %v1644 = vld [vmem:[#allocation5 + $0x70] sm:$0xff]
        %v1645 = vld [vmem:[#allocation5 + $0x78] sm:$0xff]
        %v1646 = vmul.f32 %v1471, %v1630
        %v1647 = vmul.f32 %v1473, %v1631
        %v1648 = vmul.f32 %v1475, %v1632
        %v1649 = vmul.f32 %v1477, %v1633
        %v1650 = vmul.f32 %v1479, %v1634
        %v1651 = vmul.f32 %v1481, %v1635
        %v1652 = vmul.f32 %v1483, %v1636
        %v1653 = vmul.f32 %v1485, %v1637
        %v1654 = vmul.f32 %v1487, %v1638
        %v1655 = vmul.f32 %v1489, %v1639
        %v1656 = vmul.f32 %v1491, %v1640
        %v1657 = vmul.f32 %v1493, %v1641
        %v1658 = vmul.f32 %v1495, %v1642
        %v1659 = vmul.f32 %v1497, %v1643
        %v1660 = vmul.f32 %v1499, %v1644
        %v1661 = vmul.f32 %v1501, %v1645
        %1662 = vadd.xlane.f32.xlu0 %v1599
        %v1663 = vpop.xlane.xlu0 %1662
        %1664 = vadd.xlane.f32.xlu0 %v1601
        %v1665 = vpop.xlane.xlu0 %1664
        %1666 = vadd.xlane.f32.xlu0 %v1603
        %v1667 = vpop.xlane.xlu0 %1666
        %1668 = vadd.xlane.f32.xlu0 %v1605
        %v1669 = vpop.xlane.xlu0 %1668
        %1670 = vadd.xlane.f32.xlu0 %v1607
        %v1671 = vpop.xlane.xlu0 %1670
        %1672 = vadd.xlane.f32.xlu0 %v1609
        %v1673 = vpop.xlane.xlu0 %1672
        %1674 = vadd.xlane.f32.xlu0 %v1611
        %v1675 = vpop.xlane.xlu0 %1674
        %1676 = vadd.xlane.f32.xlu0 %v1613
        %v1677 = vpop.xlane.xlu0 %1676
        %1678 = vadd.xlane.f32.xlu0 %v1615
        %v1679 = vpop.xlane.xlu0 %1678
        %1680 = vadd.xlane.f32.xlu0 %v1617
        %v1681 = vpop.xlane.xlu0 %1680
        %1682 = vadd.xlane.f32.xlu0 %v1619
        %v1683 = vpop.xlane.xlu0 %1682
        %1684 = vadd.xlane.f32.xlu0 %v1621
        %v1685 = vpop.xlane.xlu0 %1684
        %1686 = vadd.xlane.f32.xlu0 %v1623
        %v1687 = vpop.xlane.xlu0 %1686
        %1688 = vadd.xlane.f32.xlu0 %v1625
        %v1689 = vpop.xlane.xlu0 %1688
        %1690 = vadd.xlane.f32.xlu0 %v1627
        %v1691 = vpop.xlane.xlu0 %1690
        %1692 = vadd.xlane.f32.xlu0 %v1629
        %v1693 = vpop.xlane.xlu0 %1692
        %v1694 = vadd.f32 %v1646, %v1663
        %v1695 = vadd.f32 %v1647, %v1665
        %v1696 = vadd.f32 %v1648, %v1667
        %v1697 = vadd.f32 %v1649, %v1669
        %v1698 = vadd.f32 %v1650, %v1671
        %v1699 = vadd.f32 %v1651, %v1673
        %v1700 = vadd.f32 %v1652, %v1675
        %v1701 = vadd.f32 %v1653, %v1677
        %v1702 = vadd.f32 %v1654, %v1679
        %v1703 = vadd.f32 %v1655, %v1681
        %v1704 = vadd.f32 %v1656, %v1683
        %v1705 = vadd.f32 %v1657, %v1685
        %v1706 = vadd.f32 %v1658, %v1687
        %v1707 = vadd.f32 %v1659, %v1689
        %v1708 = vadd.f32 %v1660, %v1691
        %v1709 = vadd.f32 %v1661, %v1693
        %vm1710 = vcmask 7168
        %1711 = vst.msk [vmem:[#allocation5] sm:$0xff] %vm1710, %v1694
        %1712 = vst.msk [vmem:[#allocation5 + $0x8] sm:$0xff] %vm1710, %v1695
        %1713 = vst.msk [vmem:[#allocation5 + $0x10] sm:$0xff] %vm1710, %v1696
        %1714 = vst.msk [vmem:[#allocation5 + $0x18] sm:$0xff] %vm1710, %v1697
        %1715 = vst.msk [vmem:[#allocation5 + $0x20] sm:$0xff] %vm1710, %v1698
        %1716 = vst.msk [vmem:[#allocation5 + $0x28] sm:$0xff] %vm1710, %v1699
        %1717 = vst.msk [vmem:[#allocation5 + $0x30] sm:$0xff] %vm1710, %v1700
        %1718 = vst.msk [vmem:[#allocation5 + $0x38] sm:$0xff] %vm1710, %v1701
        %1719 = vst.msk [vmem:[#allocation5 + $0x40] sm:$0xff] %vm1710, %v1702
        %1720 = vst.msk [vmem:[#allocation5 + $0x48] sm:$0xff] %vm1710, %v1703
        %1721 = vst.msk [vmem:[#allocation5 + $0x50] sm:$0xff] %vm1710, %v1704
        %1722 = vst.msk [vmem:[#allocation5 + $0x58] sm:$0xff] %vm1710, %v1705
        %1723 = vst.msk [vmem:[#allocation5 + $0x60] sm:$0xff] %vm1710, %v1706
        %1724 = vst.msk [vmem:[#allocation5 + $0x68] sm:$0xff] %vm1710, %v1707
        %1725 = vst.msk [vmem:[#allocation5 + $0x70] sm:$0xff] %vm1710, %v1708
        %1726 = vst.msk [vmem:[#allocation5 + $0x78] sm:$0xff] %vm1710, %v1709
        %v1727 = vld [vmem:[#allocation7] sm:$0xff]
        %v1728 = vld [vmem:[#allocation7 + $0x8] sm:$0xff]
        %v1729 = vld [vmem:[#allocation7 + $0x10] sm:$0xff]
        %v1730 = vld [vmem:[#allocation7 + $0x18] sm:$0xff]
        %v1731 = vld [vmem:[#allocation7 + $0x20] sm:$0xff]
        %v1732 = vld [vmem:[#allocation7 + $0x28] sm:$0xff]
        %v1733 = vld [vmem:[#allocation7 + $0x30] sm:$0xff]
        %v1734 = vld [vmem:[#allocation7 + $0x38] sm:$0xff]
        %v1735 = vld [vmem:[#allocation7 + $0x40] sm:$0xff]
        %v1736 = vld [vmem:[#allocation7 + $0x48] sm:$0xff]
        %v1737 = vld [vmem:[#allocation7 + $0x50] sm:$0xff]
        %v1738 = vld [vmem:[#allocation7 + $0x58] sm:$0xff]
        %v1739 = vld [vmem:[#allocation7 + $0x60] sm:$0xff]
        %v1740 = vld [vmem:[#allocation7 + $0x68] sm:$0xff]
        %v1741 = vld [vmem:[#allocation7 + $0x70] sm:$0xff]
        %v1742 = vld [vmem:[#allocation7 + $0x78] sm:$0xff]
        %1744 = vset.pattern.permute.xlu0 0
        %1745 = vperm.xlu0 %1744, %v1471
        %v1746 = vpop.permute.xlu0 %1745
        %1749 = vset.pattern.permute.xlu0 0
        %1750 = vperm.xlu0 %1749, %v1473
        %v1751 = vpop.permute.xlu0 %1750
        %1754 = vset.pattern.permute.xlu0 0
        %1755 = vperm.xlu0 %1754, %v1475
        %v1756 = vpop.permute.xlu0 %1755
        %1759 = vset.pattern.permute.xlu0 0
        %1760 = vperm.xlu0 %1759, %v1477
        %v1761 = vpop.permute.xlu0 %1760
        %1764 = vset.pattern.permute.xlu0 0
        %1765 = vperm.xlu0 %1764, %v1479
        %v1766 = vpop.permute.xlu0 %1765
        %1769 = vset.pattern.permute.xlu0 0
        %1770 = vperm.xlu0 %1769, %v1481
        %v1771 = vpop.permute.xlu0 %1770
        %1774 = vset.pattern.permute.xlu0 0
        %1775 = vperm.xlu0 %1774, %v1483
        %v1776 = vpop.permute.xlu0 %1775
        %1779 = vset.pattern.permute.xlu0 0
        %1780 = vperm.xlu0 %1779, %v1485
        %v1781 = vpop.permute.xlu0 %1780
        %1784 = vset.pattern.permute.xlu0 0
        %1785 = vperm.xlu0 %1784, %v1487
        %v1786 = vpop.permute.xlu0 %1785
        %1789 = vset.pattern.permute.xlu0 0
        %1790 = vperm.xlu0 %1789, %v1489
        %v1791 = vpop.permute.xlu0 %1790
        %1794 = vset.pattern.permute.xlu0 0
        %1795 = vperm.xlu0 %1794, %v1491
        %v1796 = vpop.permute.xlu0 %1795
        %1799 = vset.pattern.permute.xlu0 0
        %1800 = vperm.xlu0 %1799, %v1493
        %v1801 = vpop.permute.xlu0 %1800
        %1804 = vset.pattern.permute.xlu0 0
        %1805 = vperm.xlu0 %1804, %v1495
        %v1806 = vpop.permute.xlu0 %1805
        %1809 = vset.pattern.permute.xlu0 0
        %1810 = vperm.xlu0 %1809, %v1497
        %v1811 = vpop.permute.xlu0 %1810
        %1814 = vset.pattern.permute.xlu0 0
        %1815 = vperm.xlu0 %1814, %v1499
        %v1816 = vpop.permute.xlu0 %1815
        %1819 = vset.pattern.permute.xlu0 0
        %1820 = vperm.xlu0 %1819, %v1501
        %v1821 = vpop.permute.xlu0 %1820
        %v1823 = vmul.f32 %v1746, %v1727
        %v1824 = vmul.f32 %v1751, %v1728
        %v1825 = vmul.f32 %v1756, %v1729
        %v1826 = vmul.f32 %v1761, %v1730
        %v1827 = vmul.f32 %v1766, %v1731
        %v1828 = vmul.f32 %v1771, %v1732
        %v1829 = vmul.f32 %v1776, %v1733
        %v1830 = vmul.f32 %v1781, %v1734
        %v1831 = vmul.f32 %v1786, %v1735
        %v1832 = vmul.f32 %v1791, %v1736
        %v1833 = vmul.f32 %v1796, %v1737
        %v1834 = vmul.f32 %v1801, %v1738
        %v1835 = vmul.f32 %v1806, %v1739
        %v1836 = vmul.f32 %v1811, %v1740
        %v1837 = vmul.f32 %v1816, %v1741
        %v1838 = vmul.f32 %v1821, %v1742
        %v1839 = vpack.c.bf16 %v1601, %v1599
        %v1840 = vpack.c.bf16 %v1605, %v1603
        %v1841 = vpack.c.bf16 %v1609, %v1607
        %v1842 = vpack.c.bf16 %v1613, %v1611
        %v1843 = vpack.c.bf16 %v1617, %v1615
        %v1844 = vpack.c.bf16 %v1621, %v1619
        %v1845 = vpack.c.bf16 %v1625, %v1623
        %v1846 = vpack.c.bf16 %v1629, %v1627
        %v1863 = vunpack.c.l.b16 %v1081
        %v1864 = vunpack.c.l.b16 %v1082
        %v1865 = vunpack.c.l.b16 %v1083
        %v1866 = vunpack.c.l.b16 %v1084
        %v1867 = vunpack.c.l.b16 %v1085
        %v1868 = vunpack.c.l.b16 %v1086
        %v1869 = vunpack.c.l.b16 %v1087
        %v1870 = vunpack.c.l.b16 %v1088
        %v1871 = vunpack.c.l.b16 %v1089
        %v1872 = vunpack.c.l.b16 %v1090
        %v1873 = vunpack.c.l.b16 %v1091
        %v1874 = vunpack.c.l.b16 %v1092
        %v1875 = vunpack.c.l.b16 %v1093
        %v1876 = vunpack.c.l.b16 %v1094
        %v1877 = vunpack.c.l.b16 %v1095
        %v1878 = vunpack.c.l.b16 %v1096
        %v1879 = vpack.c.b16 %v1864, %v1863
        %v1880 = vpack.c.b16 %v1866, %v1865
        %v1881 = vpack.c.b16 %v1868, %v1867
        %v1882 = vpack.c.b16 %v1870, %v1869
        %v1883 = vpack.c.b16 %v1872, %v1871
        %v1884 = vpack.c.b16 %v1874, %v1873
        %v1885 = vpack.c.b16 %v1876, %v1875
        %v1886 = vpack.c.b16 %v1878, %v1877
        %1895 = vmatprep.subr.bf16.mxu0 0
        %1896 = vmatpush1.bf16.msra.mxu0 %v1886
        %1897 = vmatprep.subr.bf16.mxu0 0
        %1898 = vmatpush1.bf16.msra.mxu0 %v1885
        %1899 = vmatprep.subr.bf16.mxu0 0
        %1900 = vmatpush1.bf16.msra.mxu0 %v1884
        %1901 = vmatprep.subr.bf16.mxu0 0
        %1902 = vmatpush1.bf16.msra.mxu0 %v1883
        %1903 = vmatprep.subr.bf16.mxu0 0
        %1904 = vmatpush1.bf16.msra.mxu0 %v1882
        %1905 = vmatprep.subr.bf16.mxu0 0
        %1906 = vmatpush1.bf16.msra.mxu0 %v1881
        %1907 = vmatprep.subr.bf16.mxu0 0
        %1908 = vmatpush1.bf16.msra.mxu0 %v1880
        %1909 = vmatprep.subr.bf16.mxu0 0
        %1910 = vmatpush1.bf16.msra.mxu0 %v1879
        %1911 = vmatprep.subr.bf16.mxu0 0
        %1912 = vmatpush2.bf16.msra.mxu0 0
        %1913 = vmatprep.subr.bf16.mxu0 0
        %1914 = vmatpush2.bf16.msra.mxu0 0
        %1915 = vmatprep.subr.bf16.mxu0 0
        %1916 = vmatpush2.bf16.msra.mxu0 0
        %1917 = vmatprep.subr.bf16.mxu0 0
        %1918 = vmatpush2.bf16.msra.mxu0 0
        %1919 = vmatprep.subr.bf16.mxu0 0
        %1920 = vmatpush2.bf16.msra.mxu0 0
        %1921 = vmatprep.subr.bf16.mxu0 0
        %1922 = vmatpush2.bf16.msra.mxu0 0
        %1923 = vmatprep.subr.bf16.mxu0 0
        %1924 = vmatpush2.bf16.msra.mxu0 0
        %1925 = vmatprep.subr.bf16.mxu0 0
        %1926 = vmatpush2.bf16.msra.mxu0 0
        %1927 = vmatprep.mubr.bf16.mxu0 0
        %1928 = vmatmul.mubr.bf16.gmra.mxu0 %v1839
        %v1929 = vpop.f32.mrf.mxu0
        %v1930 = vadd.f32 0.0, %v1929
        %v1931 = vpop.f32.mrf.mxu0
        %v1932 = vpop.f32.mrf.mxu0
        %v1933 = vadd.f32 0.0, %v1932
        %v1934 = vpop.f32.mrf.mxu0
        %1935 = vmatprep.mubr.bf16.mxu0 0
        %1936 = vmatmul.mubr.bf16.gmra.mxu0 %v1840
        %v1937 = vpop.f32.mrf.mxu0
        %v1938 = vadd.f32 0.0, %v1937
        %v1939 = vpop.f32.mrf.mxu0
        %v1940 = vpop.f32.mrf.mxu0
        %v1941 = vadd.f32 0.0, %v1940
        %v1942 = vpop.f32.mrf.mxu0
        %1943 = vmatprep.mubr.bf16.mxu0 0
        %1944 = vmatmul.mubr.bf16.gmra.mxu0 %v1841
        %v1945 = vpop.f32.mrf.mxu0
        %v1946 = vadd.f32 0.0, %v1945
        %v1947 = vpop.f32.mrf.mxu0
        %v1948 = vpop.f32.mrf.mxu0
        %v1949 = vadd.f32 0.0, %v1948
        %v1950 = vpop.f32.mrf.mxu0
        %1951 = vmatprep.mubr.bf16.mxu0 0
        %1952 = vmatmul.mubr.bf16.gmra.mxu0 %v1842
        %v1953 = vpop.f32.mrf.mxu0
        %v1954 = vadd.f32 0.0, %v1953
        %v1955 = vpop.f32.mrf.mxu0
        %v1956 = vpop.f32.mrf.mxu0
        %v1957 = vadd.f32 0.0, %v1956
        %v1958 = vpop.f32.mrf.mxu0
        %1959 = vmatprep.mubr.bf16.mxu0 0
        %1960 = vmatmul.mubr.bf16.gmra.mxu0 %v1843
        %v1961 = vpop.f32.mrf.mxu0
        %v1962 = vadd.f32 0.0, %v1961
        %v1963 = vpop.f32.mrf.mxu0
        %v1964 = vpop.f32.mrf.mxu0
        %v1965 = vadd.f32 0.0, %v1964
        %v1966 = vpop.f32.mrf.mxu0
        %1967 = vmatprep.mubr.bf16.mxu0 0
        %1968 = vmatmul.mubr.bf16.gmra.mxu0 %v1844
        %v1969 = vpop.f32.mrf.mxu0
        %v1970 = vadd.f32 0.0, %v1969
        %v1971 = vpop.f32.mrf.mxu0
        %v1972 = vpop.f32.mrf.mxu0
        %v1973 = vadd.f32 0.0, %v1972
        %v1974 = vpop.f32.mrf.mxu0
        %1975 = vmatprep.mubr.bf16.mxu0 0
        %1976 = vmatmul.mubr.bf16.gmra.mxu0 %v1845
        %v1977 = vpop.f32.mrf.mxu0
        %v1978 = vadd.f32 0.0, %v1977
        %v1979 = vpop.f32.mrf.mxu0
        %v1980 = vpop.f32.mrf.mxu0
        %v1981 = vadd.f32 0.0, %v1980
        %v1982 = vpop.f32.mrf.mxu0
        %1983 = vmatprep.mubr.bf16.mxu0 0
        %1984 = vmatmul.mubr.bf16.gmra.mxu0 %v1846
        %v1985 = vpop.f32.mrf.mxu0
        %v1986 = vadd.f32 0.0, %v1985
        %v1987 = vpop.f32.mrf.mxu0
        %v1988 = vpop.f32.mrf.mxu0
        %v1989 = vadd.f32 0.0, %v1988
        %v1990 = vpop.f32.mrf.mxu0
        %1991 = vdwg.mxu0
        %v1992 = vadd.f32 %v1823, %v1930
        %v1993 = vadd.f32 %v1824, %v1933
        %v1994 = vadd.f32 %v1825, %v1938
        %v1995 = vadd.f32 %v1826, %v1941
        %v1996 = vadd.f32 %v1827, %v1946
        %v1997 = vadd.f32 %v1828, %v1949
        %v1998 = vadd.f32 %v1829, %v1954
        %v1999 = vadd.f32 %v1830, %v1957
        %v2000 = vadd.f32 %v1831, %v1962
        %v2001 = vadd.f32 %v1832, %v1965
        %v2002 = vadd.f32 %v1833, %v1970
        %v2003 = vadd.f32 %v1834, %v1973
        %v2004 = vadd.f32 %v1835, %v1978
        %v2005 = vadd.f32 %v1836, %v1981
        %v2006 = vadd.f32 %v1837, %v1986
        %v2007 = vadd.f32 %v1838, %v1989
        %2008 = vst [vmem:[#allocation7] sm:$0xff] %v1992
        %2009 = vst [vmem:[#allocation7 + $0x8] sm:$0xff] %v1993
        %2010 = vst [vmem:[#allocation7 + $0x10] sm:$0xff] %v1994
        %2011 = vst [vmem:[#allocation7 + $0x18] sm:$0xff] %v1995
        %2012 = vst [vmem:[#allocation7 + $0x20] sm:$0xff] %v1996
        %2013 = vst [vmem:[#allocation7 + $0x28] sm:$0xff] %v1997
        %2014 = vst [vmem:[#allocation7 + $0x30] sm:$0xff] %v1998
        %2015 = vst [vmem:[#allocation7 + $0x38] sm:$0xff] %v1999
        %2016 = vst [vmem:[#allocation7 + $0x40] sm:$0xff] %v2000
        %2017 = vst [vmem:[#allocation7 + $0x48] sm:$0xff] %v2001
        %2018 = vst [vmem:[#allocation7 + $0x50] sm:$0xff] %v2002
        %2019 = vst [vmem:[#allocation7 + $0x58] sm:$0xff] %v2003
        %2020 = vst [vmem:[#allocation7 + $0x60] sm:$0xff] %v2004
        %2021 = vst [vmem:[#allocation7 + $0x68] sm:$0xff] %v2005
        %2022 = vst [vmem:[#allocation7 + $0x70] sm:$0xff] %v2006
        %2023 = vst [vmem:[#allocation7 + $0x78] sm:$0xff] %v2007
        %2024 = vst.msk [vmem:[#allocation4] sm:$0xff] %vm1710, %v1438
        %2025 = vst.msk [vmem:[#allocation4 + $0x8] sm:$0xff] %vm1710, %v1439
        %2026 = vst.msk [vmem:[#allocation4 + $0x10] sm:$0xff] %vm1710, %v1440
        %2027 = vst.msk [vmem:[#allocation4 + $0x18] sm:$0xff] %vm1710, %v1441
        %2028 = vst.msk [vmem:[#allocation4 + $0x20] sm:$0xff] %vm1710, %v1442
        %2029 = vst.msk [vmem:[#allocation4 + $0x28] sm:$0xff] %vm1710, %v1443
        %2030 = vst.msk [vmem:[#allocation4 + $0x30] sm:$0xff] %vm1710, %v1444
        %2031 = vst.msk [vmem:[#allocation4 + $0x38] sm:$0xff] %vm1710, %v1445
        %2032 = vst.msk [vmem:[#allocation4 + $0x40] sm:$0xff] %vm1710, %v1446
        %2033 = vst.msk [vmem:[#allocation4 + $0x48] sm:$0xff] %vm1710, %v1447
        %2034 = vst.msk [vmem:[#allocation4 + $0x50] sm:$0xff] %vm1710, %v1448
        %2035 = vst.msk [vmem:[#allocation4 + $0x58] sm:$0xff] %vm1710, %v1449
        %2036 = vst.msk [vmem:[#allocation4 + $0x60] sm:$0xff] %vm1710, %v1450
        %2037 = vst.msk [vmem:[#allocation4 + $0x68] sm:$0xff] %vm1710, %v1451
        %2038 = vst.msk [vmem:[#allocation4 + $0x70] sm:$0xff] %vm1710, %v1452
        %2039 = vst.msk [vmem:[#allocation4 + $0x78] sm:$0xff] %vm1710, %v1453
        %v2040 = vld [vmem:[%s509] sm:$0x1]
        %v2042 = vlaneseq
        %v2043 = vshrl.u32 %v2042, 7
        %v2044 = vsub.s32 0, %v2043
        %v2045 = vrot.slane %v2040, %v2044
        %v2047 = vmul.f32 %v1149, %v2045
        %v2048 = vmul.f32 %v1150, %v2045
        %v2049 = vmul.f32 %v1151, %v2045
        %v2050 = vmul.f32 %v1152, %v2045
        %v2051 = vmul.f32 %v1153, %v2045
        %v2052 = vmul.f32 %v1154, %v2045
        %v2053 = vmul.f32 %v1155, %v2045
        %v2054 = vmul.f32 %v1156, %v2045
        %v2055 = vmul.f32 %v1157, %v2045
        %v2056 = vmul.f32 %v1158, %v2045
        %v2057 = vmul.f32 %v1159, %v2045
        %v2058 = vmul.f32 %v1160, %v2045
        %v2059 = vmul.f32 %v1161, %v2045
        %v2060 = vmul.f32 %v1162, %v2045
        %v2061 = vmul.f32 %v1163, %v2045
        %v2062 = vmul.f32 %v1164, %v2045
        %v2063 = vld [vmem:[#allocation6] sm:$0xff]
        %v2064 = vld [vmem:[#allocation6 + $0x8] sm:$0xff]
        %v2065 = vld [vmem:[#allocation6 + $0x10] sm:$0xff]
        %v2066 = vld [vmem:[#allocation6 + $0x18] sm:$0xff]
        %v2067 = vld [vmem:[#allocation6 + $0x20] sm:$0xff]
        %v2068 = vld [vmem:[#allocation6 + $0x28] sm:$0xff]
        %v2069 = vld [vmem:[#allocation6 + $0x30] sm:$0xff]
        %v2070 = vld [vmem:[#allocation6 + $0x38] sm:$0xff]
        %v2071 = vld [vmem:[#allocation6 + $0x40] sm:$0xff]
        %v2072 = vld [vmem:[#allocation6 + $0x48] sm:$0xff]
        %v2073 = vld [vmem:[#allocation6 + $0x50] sm:$0xff]
        %v2074 = vld [vmem:[#allocation6 + $0x58] sm:$0xff]
        %v2075 = vld [vmem:[#allocation6 + $0x60] sm:$0xff]
        %v2076 = vld [vmem:[#allocation6 + $0x68] sm:$0xff]
        %v2077 = vld [vmem:[#allocation6 + $0x70] sm:$0xff]
        %v2078 = vld [vmem:[#allocation6 + $0x78] sm:$0xff]
        %2079 = vadd.xlane.f32.xlu0 %v2047
        %v2080 = vpop.xlane.xlu0 %2079
        %2081 = vadd.xlane.f32.xlu0 %v2048
        %v2082 = vpop.xlane.xlu0 %2081
        %2083 = vadd.xlane.f32.xlu0 %v2049
        %v2084 = vpop.xlane.xlu0 %2083
        %2085 = vadd.xlane.f32.xlu0 %v2050
        %v2086 = vpop.xlane.xlu0 %2085
        %2087 = vadd.xlane.f32.xlu0 %v2051
        %v2088 = vpop.xlane.xlu0 %2087
        %2089 = vadd.xlane.f32.xlu0 %v2052
        %v2090 = vpop.xlane.xlu0 %2089
        %2091 = vadd.xlane.f32.xlu0 %v2053
        %v2092 = vpop.xlane.xlu0 %2091
        %2093 = vadd.xlane.f32.xlu0 %v2054
        %v2094 = vpop.xlane.xlu0 %2093
        %2095 = vadd.xlane.f32.xlu0 %v2055
        %v2096 = vpop.xlane.xlu0 %2095
        %2097 = vadd.xlane.f32.xlu0 %v2056
        %v2098 = vpop.xlane.xlu0 %2097
        %2099 = vadd.xlane.f32.xlu0 %v2057
        %v2100 = vpop.xlane.xlu0 %2099
        %2101 = vadd.xlane.f32.xlu0 %v2058
        %v2102 = vpop.xlane.xlu0 %2101
        %2103 = vadd.xlane.f32.xlu0 %v2059
        %v2104 = vpop.xlane.xlu0 %2103
        %2105 = vadd.xlane.f32.xlu0 %v2060
        %v2106 = vpop.xlane.xlu0 %2105
        %2107 = vadd.xlane.f32.xlu0 %v2061
        %v2108 = vpop.xlane.xlu0 %2107
        %2109 = vadd.xlane.f32.xlu0 %v2062
        %v2110 = vpop.xlane.xlu0 %2109
        %v2111 = vadd.f32 %v2063, %v2080
        %v2112 = vadd.f32 %v2064, %v2082
        %v2113 = vadd.f32 %v2065, %v2084
        %v2114 = vadd.f32 %v2066, %v2086
        %v2115 = vadd.f32 %v2067, %v2088
        %v2116 = vadd.f32 %v2068, %v2090
        %v2117 = vadd.f32 %v2069, %v2092
        %v2118 = vadd.f32 %v2070, %v2094
        %v2119 = vadd.f32 %v2071, %v2096
        %v2120 = vadd.f32 %v2072, %v2098
        %v2121 = vadd.f32 %v2073, %v2100
        %v2122 = vadd.f32 %v2074, %v2102
        %v2123 = vadd.f32 %v2075, %v2104
        %v2124 = vadd.f32 %v2076, %v2106
        %v2125 = vadd.f32 %v2077, %v2108
        %v2126 = vadd.f32 %v2078, %v2110
        %2127 = vst.msk [vmem:[#allocation6] sm:$0xff] %vm1710, %v2111
        %2128 = vst.msk [vmem:[#allocation6 + $0x8] sm:$0xff] %vm1710, %v2112
        %2129 = vst.msk [vmem:[#allocation6 + $0x10] sm:$0xff] %vm1710, %v2113
        %2130 = vst.msk [vmem:[#allocation6 + $0x18] sm:$0xff] %vm1710, %v2114
        %2131 = vst.msk [vmem:[#allocation6 + $0x20] sm:$0xff] %vm1710, %v2115
        %2132 = vst.msk [vmem:[#allocation6 + $0x28] sm:$0xff] %vm1710, %v2116
        %2133 = vst.msk [vmem:[#allocation6 + $0x30] sm:$0xff] %vm1710, %v2117
        %2134 = vst.msk [vmem:[#allocation6 + $0x38] sm:$0xff] %vm1710, %v2118
        %2135 = vst.msk [vmem:[#allocation6 + $0x40] sm:$0xff] %vm1710, %v2119
        %2136 = vst.msk [vmem:[#allocation6 + $0x48] sm:$0xff] %vm1710, %v2120
        %2137 = vst.msk [vmem:[#allocation6 + $0x50] sm:$0xff] %vm1710, %v2121
        %2138 = vst.msk [vmem:[#allocation6 + $0x58] sm:$0xff] %vm1710, %v2122
        %2139 = vst.msk [vmem:[#allocation6 + $0x60] sm:$0xff] %vm1710, %v2123
        %2140 = vst.msk [vmem:[#allocation6 + $0x68] sm:$0xff] %vm1710, %v2124
        %2141 = vst.msk [vmem:[#allocation6 + $0x70] sm:$0xff] %vm1710, %v2125
        %2142 = vst.msk [vmem:[#allocation6 + $0x78] sm:$0xff] %vm1710, %v2126
        %v2143 = vld [vmem:[#allocation8] sm:$0xff]
        %v2144 = vld [vmem:[#allocation8 + $0x8] sm:$0xff]
        %v2145 = vld [vmem:[#allocation8 + $0x10] sm:$0xff]
        %v2146 = vld [vmem:[#allocation8 + $0x18] sm:$0xff]
        %v2147 = vld [vmem:[#allocation8 + $0x20] sm:$0xff]
        %v2148 = vld [vmem:[#allocation8 + $0x28] sm:$0xff]
        %v2149 = vld [vmem:[#allocation8 + $0x30] sm:$0xff]
        %v2150 = vld [vmem:[#allocation8 + $0x38] sm:$0xff]
        %v2151 = vld [vmem:[#allocation8 + $0x40] sm:$0xff]
        %v2152 = vld [vmem:[#allocation8 + $0x48] sm:$0xff]
        %v2153 = vld [vmem:[#allocation8 + $0x50] sm:$0xff]
        %v2154 = vld [vmem:[#allocation8 + $0x58] sm:$0xff]
        %v2155 = vld [vmem:[#allocation8 + $0x60] sm:$0xff]
        %v2156 = vld [vmem:[#allocation8 + $0x68] sm:$0xff]
        %v2157 = vld [vmem:[#allocation8 + $0x70] sm:$0xff]
        %v2158 = vld [vmem:[#allocation8 + $0x78] sm:$0xff]
        %v2159 = vpack.c.bf16 %v2048, %v2047
        %v2160 = vpack.c.bf16 %v2050, %v2049
        %v2161 = vpack.c.bf16 %v2052, %v2051
        %v2162 = vpack.c.bf16 %v2054, %v2053
        %v2163 = vpack.c.bf16 %v2056, %v2055
        %v2164 = vpack.c.bf16 %v2058, %v2057
        %v2165 = vpack.c.bf16 %v2060, %v2059
        %v2166 = vpack.c.bf16 %v2062, %v2061
        %2167 = vmatprep.subr.bf16.mxu0 0
        %2168 = vmatpush1.bf16.msra.mxu0 %v1886
        %2169 = vmatprep.subr.bf16.mxu0 0
        %2170 = vmatpush1.bf16.msra.mxu0 %v1885
        %2171 = vmatprep.subr.bf16.mxu0 0
        %2172 = vmatpush1.bf16.msra.mxu0 %v1884
        %2173 = vmatprep.subr.bf16.mxu0 0
        %2174 = vmatpush1.bf16.msra.mxu0 %v1883
        %2175 = vmatprep.subr.bf16.mxu0 0
        %2176 = vmatpush1.bf16.msra.mxu0 %v1882
        %2177 = vmatprep.subr.bf16.mxu0 0
        %2178 = vmatpush1.bf16.msra.mxu0 %v1881
        %2179 = vmatprep.subr.bf16.mxu0 0
        %2180 = vmatpush1.bf16.msra.mxu0 %v1880
        %2181 = vmatprep.subr.bf16.mxu0 0
        %2182 = vmatpush1.bf16.msra.mxu0 %v1879
        %2183 = vmatprep.subr.bf16.mxu0 0
        %2184 = vmatpush2.bf16.msra.mxu0 0
        %2185 = vmatprep.subr.bf16.mxu0 0
        %2186 = vmatpush2.bf16.msra.mxu0 0
        %2187 = vmatprep.subr.bf16.mxu0 0
        %2188 = vmatpush2.bf16.msra.mxu0 0
        %2189 = vmatprep.subr.bf16.mxu0 0
        %2190 = vmatpush2.bf16.msra.mxu0 0
        %2191 = vmatprep.subr.bf16.mxu0 0
        %2192 = vmatpush2.bf16.msra.mxu0 0
        %2193 = vmatprep.subr.bf16.mxu0 0
        %2194 = vmatpush2.bf16.msra.mxu0 0
        %2195 = vmatprep.subr.bf16.mxu0 0
        %2196 = vmatpush2.bf16.msra.mxu0 0
        %2197 = vmatprep.subr.bf16.mxu0 0
        %2198 = vmatpush2.bf16.msra.mxu0 0
        %2199 = vmatprep.mubr.bf16.mxu0 0
        %2200 = vmatmul.mubr.bf16.gmra.mxu0 %v2159
        %v2201 = vpop.f32.mrf.mxu0
        %v2202 = vadd.f32 0.0, %v2201
        %v2203 = vpop.f32.mrf.mxu0
        %v2204 = vpop.f32.mrf.mxu0
        %v2205 = vadd.f32 0.0, %v2204
        %v2206 = vpop.f32.mrf.mxu0
        %2207 = vmatprep.mubr.bf16.mxu0 0
        %2208 = vmatmul.mubr.bf16.gmra.mxu0 %v2160
        %v2209 = vpop.f32.mrf.mxu0
        %v2210 = vadd.f32 0.0, %v2209
        %v2211 = vpop.f32.mrf.mxu0
        %v2212 = vpop.f32.mrf.mxu0
        %v2213 = vadd.f32 0.0, %v2212
        %v2214 = vpop.f32.mrf.mxu0
        %2215 = vmatprep.mubr.bf16.mxu0 0
        %2216 = vmatmul.mubr.bf16.gmra.mxu0 %v2161
        %v2217 = vpop.f32.mrf.mxu0
        %v2218 = vadd.f32 0.0, %v2217
        %v2219 = vpop.f32.mrf.mxu0
        %v2220 = vpop.f32.mrf.mxu0
        %v2221 = vadd.f32 0.0, %v2220
        %v2222 = vpop.f32.mrf.mxu0
        %2223 = vmatprep.mubr.bf16.mxu0 0
        %2224 = vmatmul.mubr.bf16.gmra.mxu0 %v2162
        %v2225 = vpop.f32.mrf.mxu0
        %v2226 = vadd.f32 0.0, %v2225
        %v2227 = vpop.f32.mrf.mxu0
        %v2228 = vpop.f32.mrf.mxu0
        %v2229 = vadd.f32 0.0, %v2228
        %v2230 = vpop.f32.mrf.mxu0
        %2231 = vmatprep.mubr.bf16.mxu0 0
        %2232 = vmatmul.mubr.bf16.gmra.mxu0 %v2163
        %v2233 = vpop.f32.mrf.mxu0
        %v2234 = vadd.f32 0.0, %v2233
        %v2235 = vpop.f32.mrf.mxu0
        %v2236 = vpop.f32.mrf.mxu0
        %v2237 = vadd.f32 0.0, %v2236
        %v2238 = vpop.f32.mrf.mxu0
        %2239 = vmatprep.mubr.bf16.mxu0 0
        %2240 = vmatmul.mubr.bf16.gmra.mxu0 %v2164
        %v2241 = vpop.f32.mrf.mxu0
        %v2242 = vadd.f32 0.0, %v2241
        %v2243 = vpop.f32.mrf.mxu0
        %v2244 = vpop.f32.mrf.mxu0
        %v2245 = vadd.f32 0.0, %v2244
        %v2246 = vpop.f32.mrf.mxu0
        %2247 = vmatprep.mubr.bf16.mxu0 0
        %2248 = vmatmul.mubr.bf16.gmra.mxu0 %v2165
        %v2249 = vpop.f32.mrf.mxu0
        %v2250 = vadd.f32 0.0, %v2249
        %v2251 = vpop.f32.mrf.mxu0
        %v2252 = vpop.f32.mrf.mxu0
        %v2253 = vadd.f32 0.0, %v2252
        %v2254 = vpop.f32.mrf.mxu0
        %2255 = vmatprep.mubr.bf16.mxu0 0
        %2256 = vmatmul.mubr.bf16.gmra.mxu0 %v2166
        %v2257 = vpop.f32.mrf.mxu0
        %v2258 = vadd.f32 0.0, %v2257
        %v2259 = vpop.f32.mrf.mxu0
        %v2260 = vpop.f32.mrf.mxu0
        %v2261 = vadd.f32 0.0, %v2260
        %v2262 = vpop.f32.mrf.mxu0
        %2263 = vdwg.mxu0
        %v2264 = vadd.f32 %v2143, %v2202
        %v2265 = vadd.f32 %v2144, %v2205
        %v2266 = vadd.f32 %v2145, %v2210
        %v2267 = vadd.f32 %v2146, %v2213
        %v2268 = vadd.f32 %v2147, %v2218
        %v2269 = vadd.f32 %v2148, %v2221
        %v2270 = vadd.f32 %v2149, %v2226
        %v2271 = vadd.f32 %v2150, %v2229
        %v2272 = vadd.f32 %v2151, %v2234
        %v2273 = vadd.f32 %v2152, %v2237
        %v2274 = vadd.f32 %v2153, %v2242
        %v2275 = vadd.f32 %v2154, %v2245
        %v2276 = vadd.f32 %v2155, %v2250
        %v2277 = vadd.f32 %v2156, %v2253
        %v2278 = vadd.f32 %v2157, %v2258
        %v2279 = vadd.f32 %v2158, %v2261
        %2280 = vst [vmem:[#allocation8] sm:$0xff] %v2264
        %2281 = vst [vmem:[#allocation8 + $0x8] sm:$0xff] %v2265
        %2282 = vst [vmem:[#allocation8 + $0x10] sm:$0xff] %v2266
        %2283 = vst [vmem:[#allocation8 + $0x18] sm:$0xff] %v2267
        %2284 = vst [vmem:[#allocation8 + $0x20] sm:$0xff] %v2268
        %2285 = vst [vmem:[#allocation8 + $0x28] sm:$0xff] %v2269
        %2286 = vst [vmem:[#allocation8 + $0x30] sm:$0xff] %v2270
        %2287 = vst [vmem:[#allocation8 + $0x38] sm:$0xff] %v2271
        %2288 = vst [vmem:[#allocation8 + $0x40] sm:$0xff] %v2272
        %2289 = vst [vmem:[#allocation8 + $0x48] sm:$0xff] %v2273
        %2290 = vst [vmem:[#allocation8 + $0x50] sm:$0xff] %v2274
        %2291 = vst [vmem:[#allocation8 + $0x58] sm:$0xff] %v2275
        %2292 = vst [vmem:[#allocation8 + $0x60] sm:$0xff] %v2276
        %2293 = vst [vmem:[#allocation8 + $0x68] sm:$0xff] %v2277
        %2294 = vst [vmem:[#allocation8 + $0x70] sm:$0xff] %v2278
        %2295 = vst [vmem:[#allocation8 + $0x78] sm:$0xff] %v2279
        %p2296 = scmp.eq.s32.totalorder %s28, 1
        // Predicated region
        $region107: #{boot_gcn_layer.7} parent=97 // pred_check
          %p2297 = pneg %p2296
        $region108: #{boot_gcn_layer.7} parent=97 // pred_check_branch
          %2299 = sbr.rel (%p2297) target = $region110
        $region109: #{boot_gcn_layer.7} parent=97 // pred_region
          %v2300 = vld [vmem:[#allocation7] sm:$0xff]
          %v2301 = vld [vmem:[#allocation7 + $0x8] sm:$0xff]
          %v2302 = vld [vmem:[#allocation7 + $0x10] sm:$0xff]
          %v2303 = vld [vmem:[#allocation7 + $0x18] sm:$0xff]
          %v2304 = vld [vmem:[#allocation7 + $0x20] sm:$0xff]
          %v2305 = vld [vmem:[#allocation7 + $0x28] sm:$0xff]
          %v2306 = vld [vmem:[#allocation7 + $0x30] sm:$0xff]
          %v2307 = vld [vmem:[#allocation7 + $0x38] sm:$0xff]
          %v2308 = vld [vmem:[#allocation7 + $0x40] sm:$0xff]
          %v2309 = vld [vmem:[#allocation7 + $0x48] sm:$0xff]
          %v2310 = vld [vmem:[#allocation7 + $0x50] sm:$0xff]
          %v2311 = vld [vmem:[#allocation7 + $0x58] sm:$0xff]
          %v2312 = vld [vmem:[#allocation7 + $0x60] sm:$0xff]
          %v2313 = vld [vmem:[#allocation7 + $0x68] sm:$0xff]
          %v2314 = vld [vmem:[#allocation7 + $0x70] sm:$0xff]
          %v2315 = vld [vmem:[#allocation7 + $0x78] sm:$0xff]
          %v2316 = vld [vmem:[#allocation5] sm:$0xff]
          %v2317 = vld [vmem:[#allocation5 + $0x8] sm:$0xff]
          %v2318 = vld [vmem:[#allocation5 + $0x10] sm:$0xff]
          %v2319 = vld [vmem:[#allocation5 + $0x18] sm:$0xff]
          %v2320 = vld [vmem:[#allocation5 + $0x20] sm:$0xff]
          %v2321 = vld [vmem:[#allocation5 + $0x28] sm:$0xff]
          %v2322 = vld [vmem:[#allocation5 + $0x30] sm:$0xff]
          %v2323 = vld [vmem:[#allocation5 + $0x38] sm:$0xff]
          %v2324 = vld [vmem:[#allocation5 + $0x40] sm:$0xff]
          %v2325 = vld [vmem:[#allocation5 + $0x48] sm:$0xff]
          %v2326 = vld [vmem:[#allocation5 + $0x50] sm:$0xff]
          %v2327 = vld [vmem:[#allocation5 + $0x58] sm:$0xff]
          %v2328 = vld [vmem:[#allocation5 + $0x60] sm:$0xff]
          %v2329 = vld [vmem:[#allocation5 + $0x68] sm:$0xff]
          %v2330 = vld [vmem:[#allocation5 + $0x70] sm:$0xff]
          %v2331 = vld [vmem:[#allocation5 + $0x78] sm:$0xff]
          %v2332 = vrcp.pop %v2316
          %v2333 = vrcp.pop %v2317
          %v2334 = vrcp.pop %v2318
          %v2335 = vrcp.pop %v2319
          %v2336 = vrcp.pop %v2320
          %v2337 = vrcp.pop %v2321
          %v2338 = vrcp.pop %v2322
          %v2339 = vrcp.pop %v2323
          %v2340 = vrcp.pop %v2324
          %v2341 = vrcp.pop %v2325
          %v2342 = vrcp.pop %v2326
          %v2343 = vrcp.pop %v2327
          %v2344 = vrcp.pop %v2328
          %v2345 = vrcp.pop %v2329
          %v2346 = vrcp.pop %v2330
          %v2347 = vrcp.pop %v2331
          %2349 = vset.pattern.permute.xlu0 0
          %2350 = vperm.xlu0 %2349, %v2332
          %v2351 = vpop.permute.xlu0 %2350
          %2354 = vset.pattern.permute.xlu0 0
          %2355 = vperm.xlu0 %2354, %v2333
          %v2356 = vpop.permute.xlu0 %2355
          %2359 = vset.pattern.permute.xlu0 0
          %2360 = vperm.xlu0 %2359, %v2334
          %v2361 = vpop.permute.xlu0 %2360
          %2364 = vset.pattern.permute.xlu0 0
          %2365 = vperm.xlu0 %2364, %v2335
          %v2366 = vpop.permute.xlu0 %2365
          %2369 = vset.pattern.permute.xlu0 0
          %2370 = vperm.xlu0 %2369, %v2336
          %v2371 = vpop.permute.xlu0 %2370
          %2374 = vset.pattern.permute.xlu0 0
          %2375 = vperm.xlu0 %2374, %v2337
          %v2376 = vpop.permute.xlu0 %2375
          %2379 = vset.pattern.permute.xlu0 0
          %2380 = vperm.xlu0 %2379, %v2338
          %v2381 = vpop.permute.xlu0 %2380
          %2384 = vset.pattern.permute.xlu0 0
          %2385 = vperm.xlu0 %2384, %v2339
          %v2386 = vpop.permute.xlu0 %2385
          %2389 = vset.pattern.permute.xlu0 0
          %2390 = vperm.xlu0 %2389, %v2340
          %v2391 = vpop.permute.xlu0 %2390
          %2394 = vset.pattern.permute.xlu0 0
          %2395 = vperm.xlu0 %2394, %v2341
          %v2396 = vpop.permute.xlu0 %2395
          %2399 = vset.pattern.permute.xlu0 0
          %2400 = vperm.xlu0 %2399, %v2342
          %v2401 = vpop.permute.xlu0 %2400
          %2404 = vset.pattern.permute.xlu0 0
          %2405 = vperm.xlu0 %2404, %v2343
          %v2406 = vpop.permute.xlu0 %2405
          %2409 = vset.pattern.permute.xlu0 0
          %2410 = vperm.xlu0 %2409, %v2344
          %v2411 = vpop.permute.xlu0 %2410
          %2414 = vset.pattern.permute.xlu0 0
          %2415 = vperm.xlu0 %2414, %v2345
          %v2416 = vpop.permute.xlu0 %2415
          %2419 = vset.pattern.permute.xlu0 0
          %2420 = vperm.xlu0 %2419, %v2346
          %v2421 = vpop.permute.xlu0 %2420
          %2424 = vset.pattern.permute.xlu0 0
          %2425 = vperm.xlu0 %2424, %v2347
          %v2426 = vpop.permute.xlu0 %2425
          %v2428 = vmul.f32 %v2300, %v2351
          %v2429 = vmul.f32 %v2301, %v2356
          %v2430 = vmul.f32 %v2302, %v2361
          %v2431 = vmul.f32 %v2303, %v2366
          %v2432 = vmul.f32 %v2304, %v2371
          %v2433 = vmul.f32 %v2305, %v2376
          %v2434 = vmul.f32 %v2306, %v2381
          %v2435 = vmul.f32 %v2307, %v2386
          %v2436 = vmul.f32 %v2308, %v2391
          %v2437 = vmul.f32 %v2309, %v2396
          %v2438 = vmul.f32 %v2310, %v2401
          %v2439 = vmul.f32 %v2311, %v2406
          %v2440 = vmul.f32 %v2312, %v2411
          %v2441 = vmul.f32 %v2313, %v2416
          %v2442 = vmul.f32 %v2314, %v2421
          %v2443 = vmul.f32 %v2315, %v2426
          %v2444 = vld [vmem:[#allocation8] sm:$0xff]
          %v2445 = vld [vmem:[#allocation8 + $0x8] sm:$0xff]
          %v2446 = vld [vmem:[#allocation8 + $0x10] sm:$0xff]
          %v2447 = vld [vmem:[#allocation8 + $0x18] sm:$0xff]
          %v2448 = vld [vmem:[#allocation8 + $0x20] sm:$0xff]
          %v2449 = vld [vmem:[#allocation8 + $0x28] sm:$0xff]
          %v2450 = vld [vmem:[#allocation8 + $0x30] sm:$0xff]
          %v2451 = vld [vmem:[#allocation8 + $0x38] sm:$0xff]
          %v2452 = vld [vmem:[#allocation8 + $0x40] sm:$0xff]
          %v2453 = vld [vmem:[#allocation8 + $0x48] sm:$0xff]
          %v2454 = vld [vmem:[#allocation8 + $0x50] sm:$0xff]
          %v2455 = vld [vmem:[#allocation8 + $0x58] sm:$0xff]
          %v2456 = vld [vmem:[#allocation8 + $0x60] sm:$0xff]
          %v2457 = vld [vmem:[#allocation8 + $0x68] sm:$0xff]
          %v2458 = vld [vmem:[#allocation8 + $0x70] sm:$0xff]
          %v2459 = vld [vmem:[#allocation8 + $0x78] sm:$0xff]
          %v2460 = vld [vmem:[#allocation6] sm:$0xff]
          %v2461 = vld [vmem:[#allocation6 + $0x8] sm:$0xff]
          %v2462 = vld [vmem:[#allocation6 + $0x10] sm:$0xff]
          %v2463 = vld [vmem:[#allocation6 + $0x18] sm:$0xff]
          %v2464 = vld [vmem:[#allocation6 + $0x20] sm:$0xff]
          %v2465 = vld [vmem:[#allocation6 + $0x28] sm:$0xff]
          %v2466 = vld [vmem:[#allocation6 + $0x30] sm:$0xff]
          %v2467 = vld [vmem:[#allocation6 + $0x38] sm:$0xff]
          %v2468 = vld [vmem:[#allocation6 + $0x40] sm:$0xff]
          %v2469 = vld [vmem:[#allocation6 + $0x48] sm:$0xff]
          %v2470 = vld [vmem:[#allocation6 + $0x50] sm:$0xff]
          %v2471 = vld [vmem:[#allocation6 + $0x58] sm:$0xff]
          %v2472 = vld [vmem:[#allocation6 + $0x60] sm:$0xff]
          %v2473 = vld [vmem:[#allocation6 + $0x68] sm:$0xff]
          %v2474 = vld [vmem:[#allocation6 + $0x70] sm:$0xff]
          %v2475 = vld [vmem:[#allocation6 + $0x78] sm:$0xff]
          %v2476 = vmax.f32 %v2460, 1e-30
          %v2477 = vmax.f32 %v2461, 1e-30
          %v2478 = vmax.f32 %v2462, 1e-30
          %v2479 = vmax.f32 %v2463, 1e-30
          %v2480 = vmax.f32 %v2464, 1e-30
          %v2481 = vmax.f32 %v2465, 1e-30
          %v2482 = vmax.f32 %v2466, 1e-30
          %v2483 = vmax.f32 %v2467, 1e-30
          %v2484 = vmax.f32 %v2468, 1e-30
          %v2485 = vmax.f32 %v2469, 1e-30
          %v2486 = vmax.f32 %v2470, 1e-30
          %v2487 = vmax.f32 %v2471, 1e-30
          %v2488 = vmax.f32 %v2472, 1e-30
          %v2489 = vmax.f32 %v2473, 1e-30
          %v2490 = vmax.f32 %v2474, 1e-30
          %v2491 = vmax.f32 %v2475, 1e-30
          %v2492 = vrcp.pop %v2476
          %v2493 = vrcp.pop %v2477
          %v2494 = vrcp.pop %v2478
          %v2495 = vrcp.pop %v2479
          %v2496 = vrcp.pop %v2480
          %v2497 = vrcp.pop %v2481
          %v2498 = vrcp.pop %v2482
          %v2499 = vrcp.pop %v2483
          %v2500 = vrcp.pop %v2484
          %v2501 = vrcp.pop %v2485
          %v2502 = vrcp.pop %v2486
          %v2503 = vrcp.pop %v2487
          %v2504 = vrcp.pop %v2488
          %v2505 = vrcp.pop %v2489
          %v2506 = vrcp.pop %v2490
          %v2507 = vrcp.pop %v2491
          %2509 = vset.pattern.permute.xlu0 0
          %2510 = vperm.xlu0 %2509, %v2492
          %v2511 = vpop.permute.xlu0 %2510
          %2514 = vset.pattern.permute.xlu0 0
          %2515 = vperm.xlu0 %2514, %v2493
          %v2516 = vpop.permute.xlu0 %2515
          %2519 = vset.pattern.permute.xlu0 0
          %2520 = vperm.xlu0 %2519, %v2494
          %v2521 = vpop.permute.xlu0 %2520
          %2524 = vset.pattern.permute.xlu0 0
          %2525 = vperm.xlu0 %2524, %v2495
          %v2526 = vpop.permute.xlu0 %2525
          %2529 = vset.pattern.permute.xlu0 0
          %2530 = vperm.xlu0 %2529, %v2496
          %v2531 = vpop.permute.xlu0 %2530
          %2534 = vset.pattern.permute.xlu0 0
          %2535 = vperm.xlu0 %2534, %v2497
          %v2536 = vpop.permute.xlu0 %2535
          %2539 = vset.pattern.permute.xlu0 0
          %2540 = vperm.xlu0 %2539, %v2498
          %v2541 = vpop.permute.xlu0 %2540
          %2544 = vset.pattern.permute.xlu0 0
          %2545 = vperm.xlu0 %2544, %v2499
          %v2546 = vpop.permute.xlu0 %2545
          %2549 = vset.pattern.permute.xlu0 0
          %2550 = vperm.xlu0 %2549, %v2500
          %v2551 = vpop.permute.xlu0 %2550
          %2554 = vset.pattern.permute.xlu0 0
          %2555 = vperm.xlu0 %2554, %v2501
          %v2556 = vpop.permute.xlu0 %2555
          %2559 = vset.pattern.permute.xlu0 0
          %2560 = vperm.xlu0 %2559, %v2502
          %v2561 = vpop.permute.xlu0 %2560
          %2564 = vset.pattern.permute.xlu0 0
          %2565 = vperm.xlu0 %2564, %v2503
          %v2566 = vpop.permute.xlu0 %2565
          %2569 = vset.pattern.permute.xlu0 0
          %2570 = vperm.xlu0 %2569, %v2504
          %v2571 = vpop.permute.xlu0 %2570
          %2574 = vset.pattern.permute.xlu0 0
          %2575 = vperm.xlu0 %2574, %v2505
          %v2576 = vpop.permute.xlu0 %2575
          %2579 = vset.pattern.permute.xlu0 0
          %2580 = vperm.xlu0 %2579, %v2506
          %v2581 = vpop.permute.xlu0 %2580
          %2584 = vset.pattern.permute.xlu0 0
          %2585 = vperm.xlu0 %2584, %v2507
          %v2586 = vpop.permute.xlu0 %2585
          %v2588 = vmul.f32 %v2444, %v2511
          %v2589 = vmul.f32 %v2445, %v2516
          %v2590 = vmul.f32 %v2446, %v2521
          %v2591 = vmul.f32 %v2447, %v2526
          %v2592 = vmul.f32 %v2448, %v2531
          %v2593 = vmul.f32 %v2449, %v2536
          %v2594 = vmul.f32 %v2450, %v2541
          %v2595 = vmul.f32 %v2451, %v2546
          %v2596 = vmul.f32 %v2452, %v2551
          %v2597 = vmul.f32 %v2453, %v2556
          %v2598 = vmul.f32 %v2454, %v2561
          %v2599 = vmul.f32 %v2455, %v2566
          %v2600 = vmul.f32 %v2456, %v2571
          %v2601 = vmul.f32 %v2457, %v2576
          %v2602 = vmul.f32 %v2458, %v2581
          %v2603 = vmul.f32 %v2459, %v2586
          %v2604 = vmul.f32 %v2588, 0.5
          %v2605 = vmul.f32 %v2589, 0.5
          %v2606 = vmul.f32 %v2590, 0.5
          %v2607 = vmul.f32 %v2591, 0.5
          %v2608 = vmul.f32 %v2592, 0.5
          %v2609 = vmul.f32 %v2593, 0.5
          %v2610 = vmul.f32 %v2594, 0.5
          %v2611 = vmul.f32 %v2595, 0.5
          %v2612 = vmul.f32 %v2596, 0.5
          %v2613 = vmul.f32 %v2597, 0.5
          %v2614 = vmul.f32 %v2598, 0.5
          %v2615 = vmul.f32 %v2599, 0.5
          %v2616 = vmul.f32 %v2600, 0.5
          %v2617 = vmul.f32 %v2601, 0.5
          %v2618 = vmul.f32 %v2602, 0.5
          %v2619 = vmul.f32 %v2603, 0.5
          %v2620 = vmul.f32 %v2428, 0.5
          %v2621 = vmul.f32 %v2429, 0.5
          %v2622 = vmul.f32 %v2430, 0.5
          %v2623 = vmul.f32 %v2431, 0.5
          %v2624 = vmul.f32 %v2432, 0.5
          %v2625 = vmul.f32 %v2433, 0.5
          %v2626 = vmul.f32 %v2434, 0.5
          %v2627 = vmul.f32 %v2435, 0.5
          %v2628 = vmul.f32 %v2436, 0.5
          %v2629 = vmul.f32 %v2437, 0.5
          %v2630 = vmul.f32 %v2438, 0.5
          %v2631 = vmul.f32 %v2439, 0.5
          %v2632 = vmul.f32 %v2440, 0.5
          %v2633 = vmul.f32 %v2441, 0.5
          %v2634 = vmul.f32 %v2442, 0.5
          %v2635 = vmul.f32 %v2443, 0.5
          %v2636 = vadd.f32 %v2604, %v2620
          %v2637 = vadd.f32 %v2605, %v2621
          %v2638 = vadd.f32 %v2606, %v2622
          %v2639 = vadd.f32 %v2607, %v2623
          %v2640 = vadd.f32 %v2608, %v2624
          %v2641 = vadd.f32 %v2609, %v2625
          %v2642 = vadd.f32 %v2610, %v2626
          %v2643 = vadd.f32 %v2611, %v2627
          %v2644 = vadd.f32 %v2612, %v2628
          %v2645 = vadd.f32 %v2613, %v2629
          %v2646 = vadd.f32 %v2614, %v2630
          %v2647 = vadd.f32 %v2615, %v2631
          %v2648 = vadd.f32 %v2616, %v2632
          %v2649 = vadd.f32 %v2617, %v2633
          %v2650 = vadd.f32 %v2618, %v2634
          %v2651 = vadd.f32 %v2619, %v2635
          %v2652 = vld [vmem:[#allocation3] sm:$0xff]
          %v2653 = vld [vmem:[#allocation3 + $0x8] sm:$0xff]
          %v2654 = vld [vmem:[#allocation3 + $0x10] sm:$0xff]
          %v2655 = vld [vmem:[#allocation3 + $0x18] sm:$0xff]
          %v2656 = vld [vmem:[#allocation3 + $0x20] sm:$0xff]
          %v2657 = vld [vmem:[#allocation3 + $0x28] sm:$0xff]
          %v2658 = vld [vmem:[#allocation3 + $0x30] sm:$0xff]
          %v2659 = vld [vmem:[#allocation3 + $0x38] sm:$0xff]
          %v2660 = vld [vmem:[#allocation3 + $0x40] sm:$0xff]
          %v2661 = vld [vmem:[#allocation3 + $0x48] sm:$0xff]
          %v2662 = vld [vmem:[#allocation3 + $0x50] sm:$0xff]
          %v2663 = vld [vmem:[#allocation3 + $0x58] sm:$0xff]
          %v2664 = vld [vmem:[#allocation3 + $0x60] sm:$0xff]
          %v2665 = vld [vmem:[#allocation3 + $0x68] sm:$0xff]
          %v2666 = vld [vmem:[#allocation3 + $0x70] sm:$0xff]
          %v2667 = vld [vmem:[#allocation3 + $0x78] sm:$0xff]
          %v2668 = vadd.f32 %v2636, %v2652
          %v2669 = vadd.f32 %v2637, %v2653
          %v2670 = vadd.f32 %v2638, %v2654
          %v2671 = vadd.f32 %v2639, %v2655
          %v2672 = vadd.f32 %v2640, %v2656
          %v2673 = vadd.f32 %v2641, %v2657
          %v2674 = vadd.f32 %v2642, %v2658
          %v2675 = vadd.f32 %v2643, %v2659
          %v2676 = vadd.f32 %v2644, %v2660
          %v2677 = vadd.f32 %v2645, %v2661
          %v2678 = vadd.f32 %v2646, %v2662
          %v2679 = vadd.f32 %v2647, %v2663
          %v2680 = vadd.f32 %v2648, %v2664
          %v2681 = vadd.f32 %v2649, %v2665
          %v2682 = vadd.f32 %v2650, %v2666
          %v2683 = vadd.f32 %v2651, %v2667
          %v2684 = vmax.f32 %v2668, 0.0
          %v2685 = vmax.f32 %v2669, 0.0
          %v2686 = vmax.f32 %v2670, 0.0
          %v2687 = vmax.f32 %v2671, 0.0
          %v2688 = vmax.f32 %v2672, 0.0
          %v2689 = vmax.f32 %v2673, 0.0
          %v2690 = vmax.f32 %v2674, 0.0
          %v2691 = vmax.f32 %v2675, 0.0
          %v2692 = vmax.f32 %v2676, 0.0
          %v2693 = vmax.f32 %v2677, 0.0
          %v2694 = vmax.f32 %v2678, 0.0
          %v2695 = vmax.f32 %v2679, 0.0
          %v2696 = vmax.f32 %v2680, 0.0
          %v2697 = vmax.f32 %v2681, 0.0
          %v2698 = vmax.f32 %v2682, 0.0
          %v2699 = vmax.f32 %v2683, 0.0
          %2700 = vadd.xlane.f32.xlu0 %v2684
          %v2701 = vpop.xlane.xlu0 %2700
          %2702 = vadd.xlane.f32.xlu0 %v2685
          %v2703 = vpop.xlane.xlu0 %2702
          %2704 = vadd.xlane.f32.xlu0 %v2686
          %v2705 = vpop.xlane.xlu0 %2704
          %2706 = vadd.xlane.f32.xlu0 %v2687
          %v2707 = vpop.xlane.xlu0 %2706
          %2708 = vadd.xlane.f32.xlu0 %v2688
          %v2709 = vpop.xlane.xlu0 %2708
          %2710 = vadd.xlane.f32.xlu0 %v2689
          %v2711 = vpop.xlane.xlu0 %2710
          %2712 = vadd.xlane.f32.xlu0 %v2690
          %v2713 = vpop.xlane.xlu0 %2712
          %2714 = vadd.xlane.f32.xlu0 %v2691
          %v2715 = vpop.xlane.xlu0 %2714
          %2716 = vadd.xlane.f32.xlu0 %v2692
          %v2717 = vpop.xlane.xlu0 %2716
          %2718 = vadd.xlane.f32.xlu0 %v2693
          %v2719 = vpop.xlane.xlu0 %2718
          %2720 = vadd.xlane.f32.xlu0 %v2694
          %v2721 = vpop.xlane.xlu0 %2720
          %2722 = vadd.xlane.f32.xlu0 %v2695
          %v2723 = vpop.xlane.xlu0 %2722
          %2724 = vadd.xlane.f32.xlu0 %v2696
          %v2725 = vpop.xlane.xlu0 %2724
          %2726 = vadd.xlane.f32.xlu0 %v2697
          %v2727 = vpop.xlane.xlu0 %2726
          %2728 = vadd.xlane.f32.xlu0 %v2698
          %v2729 = vpop.xlane.xlu0 %2728
          %2730 = vadd.xlane.f32.xlu0 %v2699
          %v2731 = vpop.xlane.xlu0 %2730
          %v2732 = vrcp.pop 128.0
          %v2733 = vmul.f32 %v2701, %v2732
          %v2734 = vmul.f32 %v2703, %v2732
          %v2735 = vmul.f32 %v2705, %v2732
          %v2736 = vmul.f32 %v2707, %v2732
          %v2737 = vmul.f32 %v2709, %v2732
          %v2738 = vmul.f32 %v2711, %v2732
          %v2739 = vmul.f32 %v2713, %v2732
          %v2740 = vmul.f32 %v2715, %v2732
          %v2741 = vmul.f32 %v2717, %v2732
          %v2742 = vmul.f32 %v2719, %v2732
          %v2743 = vmul.f32 %v2721, %v2732
          %v2744 = vmul.f32 %v2723, %v2732
          %v2745 = vmul.f32 %v2725, %v2732
          %v2746 = vmul.f32 %v2727, %v2732
          %v2747 = vmul.f32 %v2729, %v2732
          %v2748 = vmul.f32 %v2731, %v2732
          %v2749 = vsub.f32 %v2684, %v2733
          %v2750 = vsub.f32 %v2685, %v2734
          %v2751 = vsub.f32 %v2686, %v2735
          %v2752 = vsub.f32 %v2687, %v2736
          %v2753 = vsub.f32 %v2688, %v2737
          %v2754 = vsub.f32 %v2689, %v2738
          %v2755 = vsub.f32 %v2690, %v2739
          %v2756 = vsub.f32 %v2691, %v2740
          %v2757 = vsub.f32 %v2692, %v2741
          %v2758 = vsub.f32 %v2693, %v2742
          %v2759 = vsub.f32 %v2694, %v2743
          %v2760 = vsub.f32 %v2695, %v2744
          %v2761 = vsub.f32 %v2696, %v2745
          %v2762 = vsub.f32 %v2697, %v2746
          %v2763 = vsub.f32 %v2698, %v2747
          %v2764 = vsub.f32 %v2699, %v2748
          %v2765 = vmul.f32 %v2749, %v2749
          %v2766 = vmul.f32 %v2750, %v2750
          %v2767 = vmul.f32 %v2751, %v2751
          %v2768 = vmul.f32 %v2752, %v2752
          %v2769 = vmul.f32 %v2753, %v2753
          %v2770 = vmul.f32 %v2754, %v2754
          %v2771 = vmul.f32 %v2755, %v2755
          %v2772 = vmul.f32 %v2756, %v2756
          %v2773 = vmul.f32 %v2757, %v2757
          %v2774 = vmul.f32 %v2758, %v2758
          %v2775 = vmul.f32 %v2759, %v2759
          %v2776 = vmul.f32 %v2760, %v2760
          %v2777 = vmul.f32 %v2761, %v2761
          %v2778 = vmul.f32 %v2762, %v2762
          %v2779 = vmul.f32 %v2763, %v2763
          %v2780 = vmul.f32 %v2764, %v2764
          %2781 = vadd.xlane.f32.xlu0 %v2765
          %v2782 = vpop.xlane.xlu0 %2781
          %2783 = vadd.xlane.f32.xlu0 %v2766
          %v2784 = vpop.xlane.xlu0 %2783
          %2785 = vadd.xlane.f32.xlu0 %v2767
          %v2786 = vpop.xlane.xlu0 %2785
          %2787 = vadd.xlane.f32.xlu0 %v2768
          %v2788 = vpop.xlane.xlu0 %2787
          %2789 = vadd.xlane.f32.xlu0 %v2769
          %v2790 = vpop.xlane.xlu0 %2789
          %2791 = vadd.xlane.f32.xlu0 %v2770
          %v2792 = vpop.xlane.xlu0 %2791
          %2793 = vadd.xlane.f32.xlu0 %v2771
          %v2794 = vpop.xlane.xlu0 %2793
          %2795 = vadd.xlane.f32.xlu0 %v2772
          %v2796 = vpop.xlane.xlu0 %2795
          %2797 = vadd.xlane.f32.xlu0 %v2773
          %v2798 = vpop.xlane.xlu0 %2797
          %2799 = vadd.xlane.f32.xlu0 %v2774
          %v2800 = vpop.xlane.xlu0 %2799
          %2801 = vadd.xlane.f32.xlu0 %v2775
          %v2802 = vpop.xlane.xlu0 %2801
          %2803 = vadd.xlane.f32.xlu0 %v2776
          %v2804 = vpop.xlane.xlu0 %2803
          %2805 = vadd.xlane.f32.xlu0 %v2777
          %v2806 = vpop.xlane.xlu0 %2805
          %2807 = vadd.xlane.f32.xlu0 %v2778
          %v2808 = vpop.xlane.xlu0 %2807
          %2809 = vadd.xlane.f32.xlu0 %v2779
          %v2810 = vpop.xlane.xlu0 %2809
          %2811 = vadd.xlane.f32.xlu0 %v2780
          %v2812 = vpop.xlane.xlu0 %2811
          %v2813 = vmul.f32 %v2782, %v2732
          %v2814 = vmul.f32 %v2784, %v2732
          %v2815 = vmul.f32 %v2786, %v2732
          %v2816 = vmul.f32 %v2788, %v2732
          %v2817 = vmul.f32 %v2790, %v2732
          %v2818 = vmul.f32 %v2792, %v2732
          %v2819 = vmul.f32 %v2794, %v2732
          %v2820 = vmul.f32 %v2796, %v2732
          %v2821 = vmul.f32 %v2798, %v2732
          %v2822 = vmul.f32 %v2800, %v2732
          %v2823 = vmul.f32 %v2802, %v2732
          %v2824 = vmul.f32 %v2804, %v2732
          %v2825 = vmul.f32 %v2806, %v2732
          %v2826 = vmul.f32 %v2808, %v2732
          %v2827 = vmul.f32 %v2810, %v2732
          %v2828 = vmul.f32 %v2812, %v2732
          %v2829 = vadd.f32 %v2813, 1e-05
          %v2830 = vadd.f32 %v2814, 1e-05
          %v2831 = vadd.f32 %v2815, 1e-05
          %v2832 = vadd.f32 %v2816, 1e-05
          %v2833 = vadd.f32 %v2817, 1e-05
          %v2834 = vadd.f32 %v2818, 1e-05
          %v2835 = vadd.f32 %v2819, 1e-05
          %v2836 = vadd.f32 %v2820, 1e-05
          %v2837 = vadd.f32 %v2821, 1e-05
          %v2838 = vadd.f32 %v2822, 1e-05
          %v2839 = vadd.f32 %v2823, 1e-05
          %v2840 = vadd.f32 %v2824, 1e-05
          %v2841 = vadd.f32 %v2825, 1e-05
          %v2842 = vadd.f32 %v2826, 1e-05
          %v2843 = vadd.f32 %v2827, 1e-05
          %v2844 = vadd.f32 %v2828, 1e-05
          %v2845 = vrsqrt.pop %v2829
          %v2846 = vrsqrt.pop %v2830
          %v2847 = vrsqrt.pop %v2831
          %v2848 = vrsqrt.pop %v2832
          %v2849 = vrsqrt.pop %v2833
          %v2850 = vrsqrt.pop %v2834
          %v2851 = vrsqrt.pop %v2835
          %v2852 = vrsqrt.pop %v2836
          %v2853 = vrsqrt.pop %v2837
          %v2854 = vrsqrt.pop %v2838
          %v2855 = vrsqrt.pop %v2839
          %v2856 = vrsqrt.pop %v2840
          %v2857 = vrsqrt.pop %v2841
          %v2858 = vrsqrt.pop %v2842
          %v2859 = vrsqrt.pop %v2843
          %v2860 = vrsqrt.pop %v2844
          %v2861 = vmul.f32 %v2749, %v2845
          %v2862 = vmul.f32 %v2750, %v2846
          %v2863 = vmul.f32 %v2751, %v2847
          %v2864 = vmul.f32 %v2752, %v2848
          %v2865 = vmul.f32 %v2753, %v2849
          %v2866 = vmul.f32 %v2754, %v2850
          %v2867 = vmul.f32 %v2755, %v2851
          %v2868 = vmul.f32 %v2756, %v2852
          %v2869 = vmul.f32 %v2757, %v2853
          %v2870 = vmul.f32 %v2758, %v2854
          %v2871 = vmul.f32 %v2759, %v2855
          %v2872 = vmul.f32 %v2760, %v2856
          %v2873 = vmul.f32 %v2761, %v2857
          %v2874 = vmul.f32 %v2762, %v2858
          %v2875 = vmul.f32 %v2763, %v2859
          %v2876 = vmul.f32 %v2764, %v2860
          %v2877 = vld [vmem:[%s9] sm:$0x1]
          %v2879 = vlaneseq
          %v2880 = vshrl.u32 %v2879, 7
          %v2881 = vsub.s32 0, %v2880
          %v2882 = vrot.slane %v2877, %v2881
          %v2884 = vmul.f32 %v2861, %v2882
          %v2885 = vmul.f32 %v2862, %v2882
          %v2886 = vmul.f32 %v2863, %v2882
          %v2887 = vmul.f32 %v2864, %v2882
          %v2888 = vmul.f32 %v2865, %v2882
          %v2889 = vmul.f32 %v2866, %v2882
          %v2890 = vmul.f32 %v2867, %v2882
          %v2891 = vmul.f32 %v2868, %v2882
          %v2892 = vmul.f32 %v2869, %v2882
          %v2893 = vmul.f32 %v2870, %v2882
          %v2894 = vmul.f32 %v2871, %v2882
          %v2895 = vmul.f32 %v2872, %v2882
          %v2896 = vmul.f32 %v2873, %v2882
          %v2897 = vmul.f32 %v2874, %v2882
          %v2898 = vmul.f32 %v2875, %v2882
          %v2899 = vmul.f32 %v2876, %v2882
          %v2900 = vld [vmem:[%s10] sm:$0x1]
          %v2902 = vlaneseq
          %v2903 = vshrl.u32 %v2902, 7
          %v2904 = vsub.s32 0, %v2903
          %v2905 = vrot.slane %v2900, %v2904
          %v2907 = vadd.f32 %v2884, %v2905
          %v2908 = vadd.f32 %v2885, %v2905
          %v2909 = vadd.f32 %v2886, %v2905
          %v2910 = vadd.f32 %v2887, %v2905
          %v2911 = vadd.f32 %v2888, %v2905
          %v2912 = vadd.f32 %v2889, %v2905
          %v2913 = vadd.f32 %v2890, %v2905
          %v2914 = vadd.f32 %v2891, %v2905
          %v2915 = vadd.f32 %v2892, %v2905
          %v2916 = vadd.f32 %v2893, %v2905
          %v2917 = vadd.f32 %v2894, %v2905
          %v2918 = vadd.f32 %v2895, %v2905
          %v2919 = vadd.f32 %v2896, %v2905
          %v2920 = vadd.f32 %v2897, %v2905
          %v2921 = vadd.f32 %v2898, %v2905
          %v2922 = vadd.f32 %v2899, %v2905
          %2923 = vst [vmem:[#allocation10] sm:$0xff] %v2907
          %2924 = vst [vmem:[#allocation10 + $0x8] sm:$0xff] %v2908
          %2925 = vst [vmem:[#allocation10 + $0x10] sm:$0xff] %v2909
          %2926 = vst [vmem:[#allocation10 + $0x18] sm:$0xff] %v2910
          %2927 = vst [vmem:[#allocation10 + $0x20] sm:$0xff] %v2911
          %2928 = vst [vmem:[#allocation10 + $0x28] sm:$0xff] %v2912
          %2929 = vst [vmem:[#allocation10 + $0x30] sm:$0xff] %v2913
          %2930 = vst [vmem:[#allocation10 + $0x38] sm:$0xff] %v2914
          %2931 = vst [vmem:[#allocation10 + $0x40] sm:$0xff] %v2915
          %2932 = vst [vmem:[#allocation10 + $0x48] sm:$0xff] %v2916
          %2933 = vst [vmem:[#allocation10 + $0x50] sm:$0xff] %v2917
          %2934 = vst [vmem:[#allocation10 + $0x58] sm:$0xff] %v2918
          %2935 = vst [vmem:[#allocation10 + $0x60] sm:$0xff] %v2919
          %2936 = vst [vmem:[#allocation10 + $0x68] sm:$0xff] %v2920
          %2937 = vst [vmem:[#allocation10 + $0x70] sm:$0xff] %v2921
          %2938 = vst [vmem:[#allocation10 + $0x78] sm:$0xff] %v2922
        $region110: #{boot_gcn_layer.7} parent=97 // pred_fallthru
          _
        // Predicated region
        $region111: #{boot_gcn_layer.7} parent=97 // pred_check
          %p2939 = pneg %p311
        $region112: #{boot_gcn_layer.7} parent=97 // pred_check_branch
          %2941 = sbr.rel (%p2939) target = $region114
        $region113: #{boot_gcn_layer.7} parent=97 // pred_region
          %s2942 = smul.u32 16, %s27
          %s2944 = ssub.s32 2048, 2048
          %2945 = vsyncadd [#allocation11], %s2944
          %s2946 = smul.addr %s2942, 128
          %s2947 = scalar_lea.hbm %s11, %s2946
          %s2948 = sshll.u32 [#allocation10], 4
          %s2949 = int_to_ptr.vmem [resolvable:$true] %s2948
          %2954 = dma.vmem_to_hbm [thread:$0]  %s2949, 2048, %s2947, [#allocation11], 128, 128, 8
        $region114: #{boot_gcn_layer.7} parent=97 // pred_fallthru
          _
        // Predicated region
        $region115: #{boot_gcn_layer.7} parent=97 // pred_check
          %p2955 = pneg %p311
        $region116: #{boot_gcn_layer.7} parent=97 // pred_check_branch
          %2957 = sbr.rel (%p2955) target = $region118
        $region117: #{boot_gcn_layer.7} parent=97 // pred_region
          %2958 = dma.done [#allocation11], 2048
        $region118: #{boot_gcn_layer.7} parent=97 // pred_fallthru
          _
      $region98: #{boot_gcn_layer.7} parent=5 // pred_fallthru
        _
      %p2959 = scmp.le.s32.totalorder 2, %s18
      // Predicated region
      $region119: #{boot_gcn_layer.7} parent=5 // pred_check
        %p2960 = pneg %p2959
      $region120: #{boot_gcn_layer.7} parent=5 // pred_check_branch
        %2962 = sbr.rel (%p2960) target = $region122
      $region121: #{boot_gcn_layer.7} parent=5 // pred_region
        %s2963 = ssub.s32 %s18, 2
      $region122: #{boot_gcn_layer.7} parent=5 // pred_fallthru
        _
    $region6: #{boot_gcn_layer.7} parent=1 // loop_footer
      %s22 = sadd.s32 1, %s18
    $region7: #{boot_gcn_layer.7} parent=1 // loop_footer_branch
      %17 = sbr.rel target = $region3
    $region8: #{boot_gcn_layer.7} parent=1 // loop_exit
      _
    %2964 = vsyncpa [#allocation11], 1
    %s2965 = scalar_lea.sflag [#allocation11], 1
    %2966 = vsyncpa %s2965, 1

</llo_original>
